<compile_context>
chip_gen: v5e
topology: v5e:2x2
jax: 0.10.0
libtpu: 0.0.40
codegen_flags: <defaults>
</compile_context>

<pallas_src>
import functools

import jax
import jax.numpy as jnp
from jax.experimental import pallas as pl
from jax.experimental.pallas import tpu as pltpu

INPUT_SIZE = 784
INPUT_PAD = 896                 # 7 * 128: lane-dense padding of the 784 feature dim
HIDDEN_SIZE = 256
LATENT_SIZE = 64
STATS_SIZE = 2 * LATENT_SIZE    # fused mean|logvar slab (lane-dense 128)


def _round_up(a, m):
    return ((a + m - 1) // m) * m


def _vae_kernel(
    x_ref, eps_ref,
    w1_ref, b1_ref,
    wml_ref, bml_ref,
    w3_ref, b3_ref,
    w4_ref, b4_ref,
    recon_ref, ml_ref,
):
    # ----- encode -----
    h = jnp.dot(x_ref[...], w1_ref[...], preferred_element_type=jnp.float32)
    h = jnp.maximum(h + b1_ref[...], 0.0)                               # [TB, 256]

    # fused mean|logvar projection: one lane-dense N=128 matmul
    ml = jnp.dot(h, wml_ref[...], preferred_element_type=jnp.float32) + bml_ref[...]
    mean = ml[:, :LATENT_SIZE]                                          # [TB, 64]
    logvar = ml[:, LATENT_SIZE:]                                        # [TB, 64]

    # ----- reparameterize (eps passed in: deterministic & testable) -----
    z = mean + eps_ref[...] * jnp.exp(0.5 * logvar)                     # [TB, 64]

    # ----- decode -----
    h2 = jnp.dot(z, w3_ref[...], preferred_element_type=jnp.float32)
    h2 = jnp.maximum(h2 + b3_ref[...], 0.0)                             # [TB, 256]
    logits = jnp.dot(h2, w4_ref[...], preferred_element_type=jnp.float32) + b4_ref[...]

    recon_ref[...] = jax.nn.sigmoid(logits).astype(recon_ref.dtype)     # [TB, 896]
    ml_ref[...] = ml.astype(ml_ref.dtype)                               # [TB, 128]


def _batch_spec(tb, n):
    # Tiled along batch; one block per grid step.
    return pl.BlockSpec((tb, n), lambda b: (b, 0))


def _resident_spec(shape):
    # Constant block index -> weight stays resident in VMEM across the grid.
    return pl.BlockSpec(shape, lambda b: (0, 0))


@functools.partial(jax.jit, static_argnames=("tb",))
def vae_forward(x, eps, packed, *, tb=256):
    """x: [B, 784] f32, eps: [B, 64] f32 (standard normal draws).

    packed: dict from pack_params() with
      w1[896,256], b1[1,256], wml[256,128], bml[1,128],
      w3[64,256],  b3[1,256], w4[256,896],  b4[1,896]
    Returns (recon [B,784], mean [B,64], logvar [B,64]) in f32.
    """
    B = x.shape[0]
    tb_eff = min(tb, _round_up(B, 8))
    b_pad = _round_up(B, tb_eff)
    nb = b_pad // tb_eff

    # Zero-pad batch to a multiple of the tile and features to 896 (exact: padded
    # K-rows of w1 are zero, padded N-cols of w4/b4 are zero and sliced off).
    x_p = jnp.pad(x, ((0, b_pad - B), (0, INPUT_PAD - INPUT_SIZE)))
    eps_p = jnp.pad(eps, ((0, b_pad - B), (0, 0)))

    recon_p, ml_p = pl.pallas_call(
        _vae_kernel,
        out_shape=(
            jax.ShapeDtypeStruct((b_pad, INPUT_PAD), jnp.float32),   # recon (padded)
            jax.ShapeDtypeStruct((b_pad, STATS_SIZE), jnp.float32),  # mean|logvar slab
        ),
        grid=(nb,),
        in_specs=[
            _batch_spec(tb_eff, INPUT_PAD),                 # x tile
            _batch_spec(tb_eff, LATENT_SIZE),               # eps tile
            _resident_spec((INPUT_PAD, HIDDEN_SIZE)),       # w1
            _resident_spec((1, HIDDEN_SIZE)),               # b1
            _resident_spec((HIDDEN_SIZE, STATS_SIZE)),      # wml (wm|wv fused)
            _resident_spec((1, STATS_SIZE)),                # bml
            _resident_spec((LATENT_SIZE, HIDDEN_SIZE)),     # w3
            _resident_spec((1, HIDDEN_SIZE)),               # b3
            _resident_spec((HIDDEN_SIZE, INPUT_PAD)),       # w4
            _resident_spec((1, INPUT_PAD)),                 # b4
        ],
        out_specs=(
            _batch_spec(tb_eff, INPUT_PAD),
            _batch_spec(tb_eff, STATS_SIZE),
        ),
        compiler_params=pltpu.CompilerParams(
            dimension_semantics=("parallel",),              # megacore sharding on v7x
        ),
    )(
        x_p, eps_p,
        packed["w1"], packed["b1"],
        packed["wml"], packed["bml"],
        packed["w3"], packed["b3"],
        packed["w4"], packed["b4"],
    )

    recon = recon_p[:B, :INPUT_SIZE]
    mean = ml_p[:B, :LATENT_SIZE]
    logvar = ml_p[:B, LATENT_SIZE:]
    return recon, mean, logvar


def init_params(key):
    """Deterministic init matching PyTorch nn.Linear default:
    U(-1/sqrt(fan_in), 1/sqrt(fan_in)) for weight and bias.
    Weights stored as [in, out] (already transposed for x @ W)."""
    def linear(k, fan_in, fan_out):
        kw, kb = jax.random.split(k)
        bound = 1.0 / jnp.sqrt(fan_in)
        w = jax.random.uniform(kw, (fan_in, fan_out), jnp.float32, -bound, bound)
        b = jax.random.uniform(kb, (1, fan_out), jnp.float32, -bound, bound)
        return w, b

    k1, k2, k3, k4, k5 = jax.random.split(key, 5)
    w1, b1 = linear(k1, INPUT_SIZE, HIDDEN_SIZE)    # fc1
    wm, bm = linear(k2, HIDDEN_SIZE, LATENT_SIZE)   # fc2_mean
    wv, bv = linear(k3, HIDDEN_SIZE, LATENT_SIZE)   # fc2_logvar
    w3, b3 = linear(k4, LATENT_SIZE, HIDDEN_SIZE)   # fc3
    w4, b4 = linear(k5, HIDDEN_SIZE, INPUT_SIZE)    # fc4
    return dict(w1=w1, b1=b1, wm=wm, bm=bm, wv=wv, bv=bv,
                w3=w3, b3=b3, w4=w4, b4=b4)


def pack_params(p):
    """One-time packing for the kernel: fuse mean/logvar weights (lane-dense N=128)
    and zero-pad the 784 feature dim to 896 on w1 (K) and w4/b4 (N)."""
    k_pad = INPUT_PAD - INPUT_SIZE
    return dict(
        w1=jnp.pad(p["w1"], ((0, k_pad), (0, 0))),              # [896, 256]
        b1=p["b1"],                                             # [1, 256]
        wml=jnp.concatenate([p["wm"], p["wv"]], axis=1),        # [256, 128]
        bml=jnp.concatenate([p["bm"], p["bv"]], axis=1),        # [1, 128]
        w3=p["w3"],                                             # [64, 256]
        b3=p["b3"],                                             # [1, 256]
        w4=jnp.pad(p["w4"], ((0, 0), (0, k_pad))),              # [256, 896]
        b4=jnp.pad(p["b4"], ((0, 0), (0, k_pad))),              # [1, 896]
    )


def vae_forward_ref(x, eps, p):
    """Pure-JAX reference (unpadded/unfused params) for correctness checking."""
    h = jnp.maximum(x @ p["w1"] + p["b1"], 0.0)
    mean = h @ p["wm"] + p["bm"]
    logvar = h @ p["wv"] + p["bv"]
    z = mean + eps * jnp.exp(0.5 * logvar)
    h2 = jnp.maximum(z @ p["w3"] + p["b3"], 0.0)
    recon = jax.nn.sigmoid(h2 @ p["w4"] + p["b4"])
    return recon, mean, logvar


if __name__ == "__main__":
    key = jax.random.PRNGKey(0)
    k_params, k_x, k_eps = jax.random.split(key, 3)

    # Batch chosen to exercise both grid tiling (2 batch tiles of 256) and the
    # batch-padding path (384 -> 512), while keeping data tiny (~1.2 MB input).
    B = 384
    params = init_params(k_params)
    packed = pack_params(params)
    x = jax.random.uniform(k_x, (B, INPUT_SIZE), jnp.float32)      # MNIST-like pixels in [0,1)
    eps = jax.random.normal(k_eps, (B, LATENT_SIZE), jnp.float32)  # reparameterization noise

    recon, mean, logvar = vae_forward(x, eps, packed)
    jax.block_until_ready((recon, mean, logvar))

    # sanity check against pure-JAX reference
    r_ref, m_ref, lv_ref = vae_forward_ref(x, eps, params)
    assert recon.shape == (B, INPUT_SIZE)
    assert mean.shape == (B, LATENT_SIZE) and logvar.shape == (B, LATENT_SIZE)
    assert jnp.allclose(recon, r_ref, atol=2e-5, rtol=2e-5)
    assert jnp.allclose(mean, m_ref, atol=2e-5, rtol=2e-5)
    assert jnp.allclose(logvar, lv_ref, atol=2e-5, rtol=2e-5)

    print("KERNEL_OK")
</pallas_src>

<mosaic_0001>
module attributes {stable_mosaic.version = 11 : i64} {
  func.func @_vae_kernel(%arg0: i32, %arg1: memref<256x896xf32, #tpu.memory_space<vmem>>, %arg2: memref<256x64xf32, #tpu.memory_space<vmem>>, %arg3: memref<896x256xf32, #tpu.memory_space<vmem>>, %arg4: memref<1x256xf32, #tpu.memory_space<vmem>>, %arg5: memref<256x128xf32, #tpu.memory_space<vmem>>, %arg6: memref<1x128xf32, #tpu.memory_space<vmem>>, %arg7: memref<64x256xf32, #tpu.memory_space<vmem>>, %arg8: memref<1x256xf32, #tpu.memory_space<vmem>>, %arg9: memref<256x896xf32, #tpu.memory_space<vmem>>, %arg10: memref<1x896xf32, #tpu.memory_space<vmem>>, %arg11: memref<256x896xf32, #tpu.memory_space<vmem>>, %arg12: memref<256x128xf32, #tpu.memory_space<vmem>>) attributes {dimension_semantics = [#tpu.dimension_semantics<parallel>], iteration_bounds = array<i64: 2>, scalar_prefetch = 0 : i64, scratch_operands = 0 : i64, tpu.core_type = #tpu.core_type<tc>, window_params = [{transform_indices = @transform_0, window_bounds = array<i64: 256, 896>}, {transform_indices = @transform_1, window_bounds = array<i64: 256, 64>}, {pipeline_mode = #tpu.pipeline_mode<synchronous>, transform_indices = @transform_2, window_bounds = array<i64: 896, 256>}, {pipeline_mode = #tpu.pipeline_mode<synchronous>, transform_indices = @transform_3, window_bounds = array<i64: 1, 256>}, {pipeline_mode = #tpu.pipeline_mode<synchronous>, transform_indices = @transform_4, window_bounds = array<i64: 256, 128>}, {pipeline_mode = #tpu.pipeline_mode<synchronous>, transform_indices = @transform_5, window_bounds = array<i64: 1, 128>}, {pipeline_mode = #tpu.pipeline_mode<synchronous>, transform_indices = @transform_6, window_bounds = array<i64: 64, 256>}, {pipeline_mode = #tpu.pipeline_mode<synchronous>, transform_indices = @transform_7, window_bounds = array<i64: 1, 256>}, {pipeline_mode = #tpu.pipeline_mode<synchronous>, transform_indices = @transform_8, window_bounds = array<i64: 256, 896>}, {pipeline_mode = #tpu.pipeline_mode<synchronous>, transform_indices = @transform_9, window_bounds = array<i64: 1, 896>}, {transform_indices = @transform_10, window_bounds = array<i64: 256, 896>}, {transform_indices = @transform_11, window_bounds = array<i64: 256, 128>}]} {
    %c0 = arith.constant 0 : index
    %c0_0 = arith.constant 0 : index
    %0 = vector.load %arg1[%c0, %c0_0] : memref<256x896xf32, #tpu.memory_space<vmem>>, vector<256x896xf32>
    %c0_1 = arith.constant 0 : index
    %c0_2 = arith.constant 0 : index
    %1 = vector.load %arg3[%c0_1, %c0_2] : memref<896x256xf32, #tpu.memory_space<vmem>>, vector<896x256xf32>
    %cst = arith.constant dense<0.000000e+00> : vector<256x256xf32>
    %2 = tpu.matmul %0, %1, %cst {dimension_numbers = #tpu.dot_dimension_numbers<[1], [0], [0], [1], [0, 0, 1, 1], [], []>} : vector<256x896xf32>, vector<896x256xf32>, vector<256x256xf32> -> vector<256x256xf32>
    %c0_3 = arith.constant 0 : index
    %c0_4 = arith.constant 0 : index
    %3 = vector.load %arg4[%c0_3, %c0_4] : memref<1x256xf32, #tpu.memory_space<vmem>>, vector<1x256xf32>
    %4 = vector.broadcast %3 : vector<1x256xf32> to vector<256x256xf32>
    %5 = arith.addf %2, %4 : vector<256x256xf32>
    %cst_5 = arith.constant 0.000000e+00 : f32
    %6 = vector.broadcast %cst_5 : f32 to vector<256x256xf32>
    %7 = arith.maximumf %5, %6 : vector<256x256xf32>
    %c0_6 = arith.constant 0 : index
    %c0_7 = arith.constant 0 : index
    %8 = vector.load %arg5[%c0_6, %c0_7] : memref<256x128xf32, #tpu.memory_space<vmem>>, vector<256x128xf32>
    %cst_8 = arith.constant dense<0.000000e+00> : vector<256x128xf32>
    %9 = tpu.matmul %7, %8, %cst_8 {dimension_numbers = #tpu.dot_dimension_numbers<[1], [0], [0], [1], [0, 0, 1, 1], [], []>} : vector<256x256xf32>, vector<256x128xf32>, vector<256x128xf32> -> vector<256x128xf32>
    %c0_9 = arith.constant 0 : index
    %c0_10 = arith.constant 0 : index
    %10 = vector.load %arg6[%c0_9, %c0_10] : memref<1x128xf32, #tpu.memory_space<vmem>>, vector<1x128xf32>
    %11 = vector.broadcast %10 : vector<1x128xf32> to vector<256x128xf32>
    %12 = arith.addf %9, %11 : vector<256x128xf32>
    %13 = vector.extract_strided_slice %12 {offsets = [0, 0], sizes = [256, 64], strides = [1, 1]} : vector<256x128xf32> to vector<256x64xf32>
    %14 = vector.extract_strided_slice %12 {offsets = [0, 64], sizes = [256, 64], strides = [1, 1]} : vector<256x128xf32> to vector<256x64xf32>
    %c0_11 = arith.constant 0 : index
    %c0_12 = arith.constant 0 : index
    %15 = vector.load %arg2[%c0_11, %c0_12] : memref<256x64xf32, #tpu.memory_space<vmem>>, vector<256x64xf32>
    %cst_13 = arith.constant 5.000000e-01 : f32
    %16 = vector.broadcast %cst_13 : f32 to vector<256x64xf32>
    %17 = arith.mulf %16, %14 : vector<256x64xf32>
    %18 = math.exp %17 : vector<256x64xf32>
    %19 = arith.mulf %15, %18 : vector<256x64xf32>
    %20 = arith.addf %13, %19 : vector<256x64xf32>
    %c0_14 = arith.constant 0 : index
    %c0_15 = arith.constant 0 : index
    %21 = vector.load %arg7[%c0_14, %c0_15] : memref<64x256xf32, #tpu.memory_space<vmem>>, vector<64x256xf32>
    %cst_16 = arith.constant dense<0.000000e+00> : vector<256x256xf32>
    %22 = tpu.matmul %20, %21, %cst_16 {dimension_numbers = #tpu.dot_dimension_numbers<[1], [0], [0], [1], [0, 0, 1, 1], [], []>} : vector<256x64xf32>, vector<64x256xf32>, vector<256x256xf32> -> vector<256x256xf32>
    %c0_17 = arith.constant 0 : index
    %c0_18 = arith.constant 0 : index
    %23 = vector.load %arg8[%c0_17, %c0_18] : memref<1x256xf32, #tpu.memory_space<vmem>>, vector<1x256xf32>
    %24 = vector.broadcast %23 : vector<1x256xf32> to vector<256x256xf32>
    %25 = arith.addf %22, %24 : vector<256x256xf32>
    %cst_19 = arith.constant 0.000000e+00 : f32
    %26 = vector.broadcast %cst_19 : f32 to vector<256x256xf32>
    %27 = arith.maximumf %25, %26 : vector<256x256xf32>
    %c0_20 = arith.constant 0 : index
    %c0_21 = arith.constant 0 : index
    %28 = vector.load %arg9[%c0_20, %c0_21] : memref<256x896xf32, #tpu.memory_space<vmem>>, vector<256x896xf32>
    %cst_22 = arith.constant dense<0.000000e+00> : vector<256x896xf32>
    %29 = tpu.matmul %27, %28, %cst_22 {dimension_numbers = #tpu.dot_dimension_numbers<[1], [0], [0], [1], [0, 0, 1, 1], [], []>} : vector<256x256xf32>, vector<256x896xf32>, vector<256x896xf32> -> vector<256x896xf32>
    %c0_23 = arith.constant 0 : index
    %c0_24 = arith.constant 0 : index
    %30 = vector.load %arg10[%c0_23, %c0_24] : memref<1x896xf32, #tpu.memory_space<vmem>>, vector<1x896xf32>
    %31 = vector.broadcast %30 : vector<1x896xf32> to vector<256x896xf32>
    %32 = arith.addf %29, %31 : vector<256x896xf32>
    %33 = arith.negf %32 : vector<256x896xf32>
    %34 = math.exp %33 : vector<256x896xf32>
    %cst_25 = arith.constant 1.000000e+00 : f32
    %35 = vector.broadcast %cst_25 : f32 to vector<256x896xf32>
    %36 = arith.addf %35, %34 : vector<256x896xf32>
    %37 = arith.divf %35, %36 : vector<256x896xf32>
    %c0_26 = arith.constant 0 : index
    %c0_27 = arith.constant 0 : index
    %38 = vector.load %arg11[%c0_26, %c0_27] : memref<256x896xf32, #tpu.memory_space<vmem>>, vector<256x896xf32>
    tpu.vector_store %arg11[%c0_26, %c0_27], %37 {strides = array<i32>} : memref<256x896xf32, #tpu.memory_space<vmem>>, vector<256x896xf32>,
    %c0_28 = arith.constant 0 : index
    %c0_29 = arith.constant 0 : index
    %39 = vector.load %arg12[%c0_28, %c0_29] : memref<256x128xf32, #tpu.memory_space<vmem>>, vector<256x128xf32>
    tpu.vector_store %arg12[%c0_28, %c0_29], %12 {strides = array<i32>} : memref<256x128xf32, #tpu.memory_space<vmem>>, vector<256x128xf32>,
    return
  }
  func.func @transform_0(%arg0: i32) -> (i32, i32) {
    %c0_i32 = arith.constant 0 : i32
    %c0_i32_0 = arith.constant 0 : i32
    return %arg0, %c0_i32 : i32, i32
  }
  func.func @transform_1(%arg0: i32) -> (i32, i32) {
    %c0_i32 = arith.constant 0 : i32
    %c0_i32_0 = arith.constant 0 : i32
    return %arg0, %c0_i32 : i32, i32
  }
  func.func @transform_2(%arg0: i32) -> (i32, i32) {
    %c0_i32 = arith.constant 0 : i32
    %c0_i32_0 = arith.constant 0 : i32
    %c0_i32_1 = arith.constant 0 : i32
    return %c0_i32, %c0_i32_0 : i32, i32
  }
  func.func @transform_3(%arg0: i32) -> (i32, i32) {
    %c0_i32 = arith.constant 0 : i32
    %c0_i32_0 = arith.constant 0 : i32
    %c0_i32_1 = arith.constant 0 : i32
    return %c0_i32, %c0_i32_0 : i32, i32
  }
  func.func @transform_4(%arg0: i32) -> (i32, i32) {
    %c0_i32 = arith.constant 0 : i32
    %c0_i32_0 = arith.constant 0 : i32
    %c0_i32_1 = arith.constant 0 : i32
    return %c0_i32, %c0_i32_0 : i32, i32
  }
  func.func @transform_5(%arg0: i32) -> (i32, i32) {
    %c0_i32 = arith.constant 0 : i32
    %c0_i32_0 = arith.constant 0 : i32
    %c0_i32_1 = arith.constant 0 : i32
    return %c0_i32, %c0_i32_0 : i32, i32
  }
  func.func @transform_6(%arg0: i32) -> (i32, i32) {
    %c0_i32 = arith.constant 0 : i32
    %c0_i32_0 = arith.constant 0 : i32
    %c0_i32_1 = arith.constant 0 : i32
    return %c0_i32, %c0_i32_0 : i32, i32
  }
  func.func @transform_7(%arg0: i32) -> (i32, i32) {
    %c0_i32 = arith.constant 0 : i32
    %c0_i32_0 = arith.constant 0 : i32
    %c0_i32_1 = arith.constant 0 : i32
    return %c0_i32, %c0_i32_0 : i32, i32
  }
  func.func @transform_8(%arg0: i32) -> (i32, i32) {
    %c0_i32 = arith.constant 0 : i32
    %c0_i32_0 = arith.constant 0 : i32
    %c0_i32_1 = arith.constant 0 : i32
    return %c0_i32, %c0_i32_0 : i32, i32
  }
  func.func @transform_9(%arg0: i32) -> (i32, i32) {
    %c0_i32 = arith.constant 0 : i32
    %c0_i32_0 = arith.constant 0 : i32
    %c0_i32_1 = arith.constant 0 : i32
    return %c0_i32, %c0_i32_0 : i32, i32
  }
  func.func @transform_10(%arg0: i32) -> (i32, i32) {
    %c0_i32 = arith.constant 0 : i32
    %c0_i32_0 = arith.constant 0 : i32
    return %arg0, %c0_i32 : i32, i32
  }
  func.func @transform_11(%arg0: i32) -> (i32, i32) {
    %c0_i32 = arith.constant 0 : i32
    %c0_i32_0 = arith.constant 0 : i32
    return %arg0, %c0_i32 : i32, i32
  }
}

</mosaic_0001>

<llo_original>
// kernel: vae_forward.1
$region0: #{vae_forward.1}
  #allocation0 [shape = 'u32[]', space=smem, size = 0x4, offset = 0x4, fixed_abs, tag = 'smem constant byte address 0x4 - core index']
  #allocation1 [shape = 'u32[72,128]{1,0:T(1,128)}', space=vmem, size = 0x9000, scoped, tag = 'internal scratch']
  %s0 = inlined_call_operand.vmem [shape: f32[512,896], index: 0, kind: input, shape index: {}]
  %s1 = inlined_call_operand.vmem [shape: f32[512,64], index: 1, kind: input, shape index: {}]
  %s2 = inlined_call_operand.vmem [shape: f32[896,256], index: 2, kind: input, shape index: {}]
  %s3 = inlined_call_operand.vmem [shape: f32[1,256], index: 3, kind: input, shape index: {}]
  %s4 = inlined_call_operand.vmem [shape: f32[256,128], index: 4, kind: input, shape index: {}]
  %s5 = inlined_call_operand.vmem [shape: f32[1,128], index: 5, kind: input, shape index: {}]
  %s6 = inlined_call_operand.vmem [shape: f32[64,256], index: 6, kind: input, shape index: {}]
  %s7 = inlined_call_operand.vmem [shape: f32[1,256], index: 7, kind: input, shape index: {}]
  %s8 = inlined_call_operand.vmem [shape: f32[256,896], index: 8, kind: input, shape index: {}]
  %s9 = inlined_call_operand.vmem [shape: f32[1,896], index: 9, kind: input, shape index: {}]
  %s10 = inlined_call_operand.vmem [shape: f32[512,896], index: 10, kind: output, shape index: {0}]
  %s11 = inlined_call_operand.vmem [shape: f32[512,128], index: 11, kind: output, shape index: {1}]
  %12 = xla_tuple %s10, %s11
  %s13 = sld [smem:[#allocation0]]
  $region81: #{vae_forward.1} parent=0
    _
  %s15 = ssub.s32 1, %s13
  %s16 = scalar_select 0, %s15, %s13
  loop: start=0, step=1, limit=4
  $region2: #{vae_forward.1} parent=0 // loop_pre_header
    _
  $region3: #{vae_forward.1} parent=0 // loop_header
    %s18 = sphi 0, %s22
    %p19 = scmp.ge.s32.totalorder %s18, 4
    %s28 = sphi 0, %s30
    %s31 = sphi 0, %s28
    %s32 = sphi 0, %s31
    %s48 = sphi 0, %s32
    %s54 = sphi 0, %s56
    %s57 = sphi 0, %s54
    %s58 = sphi 0, %s57
    %s74 = sphi 0, %s58
    %s78 = sphi 0, %s78
    %s80 = sphi 0, %s78
    %s81 = sphi 0, %s80
    %s95 = sphi 0, %s81
    %s99 = sphi 0, %s99
    %s101 = sphi 0, %s99
    %s102 = sphi 0, %s101
    %s116 = sphi 0, %s102
    %s120 = sphi 0, %s120
    %s122 = sphi 0, %s120
    %s123 = sphi 0, %s122
    %s137 = sphi 0, %s123
    %s141 = sphi 0, %s141
    %s143 = sphi 0, %s141
    %s144 = sphi 0, %s143
    %s158 = sphi 0, %s144
    %s162 = sphi 0, %s162
    %s164 = sphi 0, %s162
    %s165 = sphi 0, %s164
    %s179 = sphi 0, %s165
    %s183 = sphi 0, %s183
    %s185 = sphi 0, %s183
    %s186 = sphi 0, %s185
    %s200 = sphi 0, %s186
    %s204 = sphi 0, %s204
    %s206 = sphi 0, %s204
    %s207 = sphi 0, %s206
    %s221 = sphi 0, %s207
    %s225 = sphi 0, %s225
    %s227 = sphi 0, %s225
    %s228 = sphi 0, %s227
    %s242 = sphi 0, %s228
    %s248 = sphi 0, %s250
    %s251 = sphi 0, %s248
    %s252 = sphi 0, %s251
    %s268 = sphi 0, %s252
    %s274 = sphi 0, %s276
    %s277 = sphi 0, %s274
    %s278 = sphi 0, %s277
    %s294 = sphi 0, %s278
  $region4: #{vae_forward.1} parent=0 // loop_header_branch
    %21 = sbr.rel (%p19) target = $region8
  $region5: #{vae_forward.1} parent=0 // loop_body
    %s23 = ssub.s32 %s18, 1
    %s24 = ssub.s32 %s18, 2
    %s25 = sadd.s32 %s18, 1
    %s26 = ssub.s32 %s18, %s25
    %p27 = scmp.eq.s32.totalorder %s26, 0
    %s29 = sadd.s32 %s28, 1
    %s30 = scalar_select %p27, %s28, %s29
    %p33 = pneg %p27
    %p34 = scmp.eq.s32.totalorder %s18, 1
    %p35 = por %p33, %p34
    %p36 = scmp.ne.s32.totalorder %s28, %s31
    %p37 = scmp.eq.s32.totalorder %s18, 0
    %p38 = por %p36, %p37
    %p39 = scmp.ne.s32.totalorder %s28, %s31
    %p40 = scmp.eq.s32.totalorder %s23, 1
    %p41 = por %p39, %p40
    %p42 = scmp.ne.s32.totalorder %s31, %s32
    %p43 = scmp.eq.s32.totalorder %s23, 0
    %p44 = por %p42, %p43
    %p45 = scmp.ne.s32.totalorder %s31, %s32
    %p46 = scmp.eq.s32.totalorder %s24, 1
    %p47 = por %p45, %p46
    %p49 = scmp.ne.s32.totalorder %s32, %s48
    %p50 = scmp.eq.s32.totalorder %s24, 0
    %p51 = por %p49, %p50
    %s52 = ssub.s32 %s18, %s25
    %p53 = scmp.eq.s32.totalorder %s52, 0
    %s55 = sadd.s32 %s54, 1
    %s56 = scalar_select %p53, %s54, %s55
    %p59 = pneg %p53
    %p60 = scmp.eq.s32.totalorder %s18, 1
    %p61 = por %p59, %p60
    %p62 = scmp.ne.s32.totalorder %s54, %s57
    %p63 = scmp.eq.s32.totalorder %s18, 0
    %p64 = por %p62, %p63
    %p65 = scmp.ne.s32.totalorder %s54, %s57
    %p66 = scmp.eq.s32.totalorder %s23, 1
    %p67 = por %p65, %p66
    %p68 = scmp.ne.s32.totalorder %s57, %s58
    %p69 = scmp.eq.s32.totalorder %s23, 0
    %p70 = por %p68, %p69
    %p71 = scmp.ne.s32.totalorder %s57, %s58
    %p72 = scmp.eq.s32.totalorder %s24, 1
    %p73 = por %p71, %p72
    %p75 = scmp.ne.s32.totalorder %s58, %s74
    %p76 = scmp.eq.s32.totalorder %s24, 0
    %p77 = por %p75, %p76
    %s79 = sadd.s32 %s78, 1
    %p82 = scmp.eq.s32.totalorder %s18, 1
    %p83 = scmp.ne.s32.totalorder %s78, %s80
    %p84 = scmp.eq.s32.totalorder %s18, 0
    %p85 = por %p83, %p84
    %p86 = scmp.ne.s32.totalorder %s78, %s80
    %p87 = scmp.eq.s32.totalorder %s23, 1
    %p88 = por %p86, %p87
    %p89 = scmp.ne.s32.totalorder %s80, %s81
    %p90 = scmp.eq.s32.totalorder %s23, 0
    %p91 = por %p89, %p90
    %p92 = scmp.ne.s32.totalorder %s80, %s81
    %p93 = scmp.eq.s32.totalorder %s24, 1
    %p94 = por %p92, %p93
    %p96 = scmp.ne.s32.totalorder %s81, %s95
    %p97 = scmp.eq.s32.totalorder %s24, 0
    %p98 = por %p96, %p97
    %s100 = sadd.s32 %s99, 1
    %p103 = scmp.eq.s32.totalorder %s18, 1
    %p104 = scmp.ne.s32.totalorder %s99, %s101
    %p105 = scmp.eq.s32.totalorder %s18, 0
    %p106 = por %p104, %p105
    %p107 = scmp.ne.s32.totalorder %s99, %s101
    %p108 = scmp.eq.s32.totalorder %s23, 1
    %p109 = por %p107, %p108
    %p110 = scmp.ne.s32.totalorder %s101, %s102
    %p111 = scmp.eq.s32.totalorder %s23, 0
    %p112 = por %p110, %p111
    %p113 = scmp.ne.s32.totalorder %s101, %s102
    %p114 = scmp.eq.s32.totalorder %s24, 1
    %p115 = por %p113, %p114
    %p117 = scmp.ne.s32.totalorder %s102, %s116
    %p118 = scmp.eq.s32.totalorder %s24, 0
    %p119 = por %p117, %p118
    %s121 = sadd.s32 %s120, 1
    %p124 = scmp.eq.s32.totalorder %s18, 1
    %p125 = scmp.ne.s32.totalorder %s120, %s122
    %p126 = scmp.eq.s32.totalorder %s18, 0
    %p127 = por %p125, %p126
    %p128 = scmp.ne.s32.totalorder %s120, %s122
    %p129 = scmp.eq.s32.totalorder %s23, 1
    %p130 = por %p128, %p129
    %p131 = scmp.ne.s32.totalorder %s122, %s123
    %p132 = scmp.eq.s32.totalorder %s23, 0
    %p133 = por %p131, %p132
    %p134 = scmp.ne.s32.totalorder %s122, %s123
    %p135 = scmp.eq.s32.totalorder %s24, 1
    %p136 = por %p134, %p135
    %p138 = scmp.ne.s32.totalorder %s123, %s137
    %p139 = scmp.eq.s32.totalorder %s24, 0
    %p140 = por %p138, %p139
    %s142 = sadd.s32 %s141, 1
    %p145 = scmp.eq.s32.totalorder %s18, 1
    %p146 = scmp.ne.s32.totalorder %s141, %s143
    %p147 = scmp.eq.s32.totalorder %s18, 0
    %p148 = por %p146, %p147
    %p149 = scmp.ne.s32.totalorder %s141, %s143
    %p150 = scmp.eq.s32.totalorder %s23, 1
    %p151 = por %p149, %p150
    %p152 = scmp.ne.s32.totalorder %s143, %s144
    %p153 = scmp.eq.s32.totalorder %s23, 0
    %p154 = por %p152, %p153
    %p155 = scmp.ne.s32.totalorder %s143, %s144
    %p156 = scmp.eq.s32.totalorder %s24, 1
    %p157 = por %p155, %p156
    %p159 = scmp.ne.s32.totalorder %s144, %s158
    %p160 = scmp.eq.s32.totalorder %s24, 0
    %p161 = por %p159, %p160
    %s163 = sadd.s32 %s162, 1
    %p166 = scmp.eq.s32.totalorder %s18, 1
    %p167 = scmp.ne.s32.totalorder %s162, %s164
    %p168 = scmp.eq.s32.totalorder %s18, 0
    %p169 = por %p167, %p168
    %p170 = scmp.ne.s32.totalorder %s162, %s164
    %p171 = scmp.eq.s32.totalorder %s23, 1
    %p172 = por %p170, %p171
    %p173 = scmp.ne.s32.totalorder %s164, %s165
    %p174 = scmp.eq.s32.totalorder %s23, 0
    %p175 = por %p173, %p174
    %p176 = scmp.ne.s32.totalorder %s164, %s165
    %p177 = scmp.eq.s32.totalorder %s24, 1
    %p178 = por %p176, %p177
    %p180 = scmp.ne.s32.totalorder %s165, %s179
    %p181 = scmp.eq.s32.totalorder %s24, 0
    %p182 = por %p180, %p181
    %s184 = sadd.s32 %s183, 1
    %p187 = scmp.eq.s32.totalorder %s18, 1
    %p188 = scmp.ne.s32.totalorder %s183, %s185
    %p189 = scmp.eq.s32.totalorder %s18, 0
    %p190 = por %p188, %p189
    %p191 = scmp.ne.s32.totalorder %s183, %s185
    %p192 = scmp.eq.s32.totalorder %s23, 1
    %p193 = por %p191, %p192
    %p194 = scmp.ne.s32.totalorder %s185, %s186
    %p195 = scmp.eq.s32.totalorder %s23, 0
    %p196 = por %p194, %p195
    %p197 = scmp.ne.s32.totalorder %s185, %s186
    %p198 = scmp.eq.s32.totalorder %s24, 1
    %p199 = por %p197, %p198
    %p201 = scmp.ne.s32.totalorder %s186, %s200
    %p202 = scmp.eq.s32.totalorder %s24, 0
    %p203 = por %p201, %p202
    %s205 = sadd.s32 %s204, 1
    %p208 = scmp.eq.s32.totalorder %s18, 1
    %p209 = scmp.ne.s32.totalorder %s204, %s206
    %p210 = scmp.eq.s32.totalorder %s18, 0
    %p211 = por %p209, %p210
    %p212 = scmp.ne.s32.totalorder %s204, %s206
    %p213 = scmp.eq.s32.totalorder %s23, 1
    %p214 = por %p212, %p213
    %p215 = scmp.ne.s32.totalorder %s206, %s207
    %p216 = scmp.eq.s32.totalorder %s23, 0
    %p217 = por %p215, %p216
    %p218 = scmp.ne.s32.totalorder %s206, %s207
    %p219 = scmp.eq.s32.totalorder %s24, 1
    %p220 = por %p218, %p219
    %p222 = scmp.ne.s32.totalorder %s207, %s221
    %p223 = scmp.eq.s32.totalorder %s24, 0
    %p224 = por %p222, %p223
    %s226 = sadd.s32 %s225, 1
    %p229 = scmp.eq.s32.totalorder %s18, 1
    %p230 = scmp.ne.s32.totalorder %s225, %s227
    %p231 = scmp.eq.s32.totalorder %s18, 0
    %p232 = por %p230, %p231
    %p233 = scmp.ne.s32.totalorder %s225, %s227
    %p234 = scmp.eq.s32.totalorder %s23, 1
    %p235 = por %p233, %p234
    %p236 = scmp.ne.s32.totalorder %s227, %s228
    %p237 = scmp.eq.s32.totalorder %s23, 0
    %p238 = por %p236, %p237
    %p239 = scmp.ne.s32.totalorder %s227, %s228
    %p240 = scmp.eq.s32.totalorder %s24, 1
    %p241 = por %p239, %p240
    %p243 = scmp.ne.s32.totalorder %s228, %s242
    %p244 = scmp.eq.s32.totalorder %s24, 0
    %p245 = por %p243, %p244
    %s246 = ssub.s32 %s18, %s25
    %p247 = scmp.eq.s32.totalorder %s246, 0
    %s249 = sadd.s32 %s248, 1
    %s250 = scalar_select %p247, %s248, %s249
    %p253 = pneg %p247
    %p254 = scmp.eq.s32.totalorder %s18, 1
    %p255 = por %p253, %p254
    %p256 = scmp.ne.s32.totalorder %s248, %s251
    %p257 = scmp.eq.s32.totalorder %s18, 0
    %p258 = por %p256, %p257
    %p259 = scmp.ne.s32.totalorder %s248, %s251
    %p260 = scmp.eq.s32.totalorder %s23, 1
    %p261 = por %p259, %p260
    %p262 = scmp.ne.s32.totalorder %s251, %s252
    %p263 = scmp.eq.s32.totalorder %s23, 0
    %p264 = por %p262, %p263
    %p265 = scmp.ne.s32.totalorder %s251, %s252
    %p266 = scmp.eq.s32.totalorder %s24, 1
    %p267 = por %p265, %p266
    %p269 = scmp.ne.s32.totalorder %s252, %s268
    %p270 = scmp.eq.s32.totalorder %s24, 0
    %p271 = por %p269, %p270
    %s272 = ssub.s32 %s18, %s25
    %p273 = scmp.eq.s32.totalorder %s272, 0
    %s275 = sadd.s32 %s274, 1
    %s276 = scalar_select %p273, %s274, %s275
    %p279 = pneg %p273
    %p280 = scmp.eq.s32.totalorder %s18, 1
    %p281 = por %p279, %p280
    %p282 = scmp.ne.s32.totalorder %s274, %s277
    %p283 = scmp.eq.s32.totalorder %s18, 0
    %p284 = por %p282, %p283
    %p285 = scmp.ne.s32.totalorder %s274, %s277
    %p286 = scmp.eq.s32.totalorder %s23, 1
    %p287 = por %p285, %p286
    %p288 = scmp.ne.s32.totalorder %s277, %s278
    %p289 = scmp.eq.s32.totalorder %s23, 0
    %p290 = por %p288, %p289
    %p291 = scmp.ne.s32.totalorder %s277, %s278
    %p292 = scmp.eq.s32.totalorder %s24, 1
    %p293 = por %p291, %p292
    %p295 = scmp.ne.s32.totalorder %s278, %s294
    %p296 = scmp.eq.s32.totalorder %s24, 0
    %p297 = por %p295, %p296
    %p298 = scmp.le.s32.totalorder 1, %s18
    %p299 = scmp.lt.s32.totalorder %s18, 3
    %p300 = pnand %p298, %p299
    %p301 = pneg %p300
    // Predicated region
    $region9: #{vae_forward.1} parent=5 // pred_check
      _
    $region10: #{vae_forward.1} parent=5 // pred_check_branch
      %303 = sbr.rel (%p300) target = $region12
    $region11: #{vae_forward.1} parent=5 // pred_region
      %s304 = ssub.s32 %s18, 1
      // Predicated region
      $region13: #{vae_forward.1} parent=11 // pred_check
        %p305 = pneg %p91
      $region14: #{vae_forward.1} parent=11 // pred_check_branch
        %307 = sbr.rel (%p305) target = $region16
      $region15: #{vae_forward.1} parent=11 // pred_region
        _
      $region16: #{vae_forward.1} parent=11 // pred_fallthru
        _
      // Predicated region
      $region17: #{vae_forward.1} parent=11 // pred_check
        %p308 = pneg %p112
      $region18: #{vae_forward.1} parent=11 // pred_check_branch
        %310 = sbr.rel (%p308) target = $region20
      $region19: #{vae_forward.1} parent=11 // pred_region
        _
      $region20: #{vae_forward.1} parent=11 // pred_fallthru
        _
      // Predicated region
      $region21: #{vae_forward.1} parent=11 // pred_check
        %p311 = pneg %p133
      $region22: #{vae_forward.1} parent=11 // pred_check_branch
        %313 = sbr.rel (%p311) target = $region24
      $region23: #{vae_forward.1} parent=11 // pred_region
        _
      $region24: #{vae_forward.1} parent=11 // pred_fallthru
        _
      // Predicated region
      $region25: #{vae_forward.1} parent=11 // pred_check
        %p314 = pneg %p154
      $region26: #{vae_forward.1} parent=11 // pred_check_branch
        %316 = sbr.rel (%p314) target = $region28
      $region27: #{vae_forward.1} parent=11 // pred_region
        _
      $region28: #{vae_forward.1} parent=11 // pred_fallthru
        _
      // Predicated region
      $region29: #{vae_forward.1} parent=11 // pred_check
        %p317 = pneg %p175
      $region30: #{vae_forward.1} parent=11 // pred_check_branch
        %319 = sbr.rel (%p317) target = $region32
      $region31: #{vae_forward.1} parent=11 // pred_region
        _
      $region32: #{vae_forward.1} parent=11 // pred_fallthru
        _
      // Predicated region
      $region33: #{vae_forward.1} parent=11 // pred_check
        %p320 = pneg %p196
      $region34: #{vae_forward.1} parent=11 // pred_check_branch
        %322 = sbr.rel (%p320) target = $region36
      $region35: #{vae_forward.1} parent=11 // pred_region
        _
      $region36: #{vae_forward.1} parent=11 // pred_fallthru
        _
      // Predicated region
      $region37: #{vae_forward.1} parent=11 // pred_check
        %p323 = pneg %p217
      $region38: #{vae_forward.1} parent=11 // pred_check_branch
        %325 = sbr.rel (%p323) target = $region40
      $region39: #{vae_forward.1} parent=11 // pred_region
        _
      $region40: #{vae_forward.1} parent=11 // pred_fallthru
        _
      // Predicated region
      $region41: #{vae_forward.1} parent=11 // pred_check
        %p326 = pneg %p238
      $region42: #{vae_forward.1} parent=11 // pred_check_branch
        %328 = sbr.rel (%p326) target = $region44
      $region43: #{vae_forward.1} parent=11 // pred_region
        _
      $region44: #{vae_forward.1} parent=11 // pred_fallthru
        _
    $region12: #{vae_forward.1} parent=5 // pred_fallthru
      _
    %p329 = scmp.lt.s32.totalorder %s18, 2
    // Predicated region
    $region45: #{vae_forward.1} parent=5 // pred_check
      %p330 = pneg %p329
    $region46: #{vae_forward.1} parent=5 // pred_check_branch
      %332 = sbr.rel (%p330) target = $region48
    $region47: #{vae_forward.1} parent=5 // pred_region
      // Predicated region
      $region49: #{vae_forward.1} parent=47 // pred_check
        %p333 = pneg %p38
      $region50: #{vae_forward.1} parent=47 // pred_check_branch
        %335 = sbr.rel (%p333) target = $region52
      $region51: #{vae_forward.1} parent=47 // pred_region
        %s336 = smul.u32 32, %s18
        %p337 = scmp.lt.s32.totalorder %s336, 63
        %s338 = scalar_select %p337, %s336, 63
        %s339 = smul.addr %s338, 7
        %s340 = smul.addr %s339, 8
        %s341 = scalar_lea.vmem %s0, %s340
        %s342 = smul.u32 32, %s18
      $region52: #{vae_forward.1} parent=47 // pred_fallthru
        _
      // Predicated region
      $region53: #{vae_forward.1} parent=47 // pred_check
        %p343 = pneg %p64
      $region54: #{vae_forward.1} parent=47 // pred_check_branch
        %345 = sbr.rel (%p343) target = $region56
      $region55: #{vae_forward.1} parent=47 // pred_region
        %s346 = smul.u32 32, %s18
        %p347 = scmp.lt.s32.totalorder %s346, 63
        %s348 = scalar_select %p347, %s346, 63
        %s349 = smul.addr %s348, 8
        %s350 = scalar_lea.vmem %s1, %s349
        %s351 = smul.u32 32, %s18
      $region56: #{vae_forward.1} parent=47 // pred_fallthru
        _
    $region48: #{vae_forward.1} parent=5 // pred_fallthru
      _
    %p352 = scmp.le.s32.totalorder 1, %s18
    %p353 = scmp.lt.s32.totalorder %s18, 3
    %p354 = pnand %p352, %p353
    %p355 = pneg %p354
    // Predicated region
    $region57: #{vae_forward.1} parent=5 // pred_check
      _
    $region58: #{vae_forward.1} parent=5 // pred_check_branch
      %357 = sbr.rel (%p354) target = $region60
    $region59: #{vae_forward.1} parent=5 // pred_region
      %s358 = ssub.s32 %s18, 1
      %s359 = smul.u32 32, %s23
      %p360 = scmp.lt.s32.totalorder %s359, 63
      %s361 = scalar_select %p360, %s359, 63
      %s362 = smul.addr %s361, 7
      %s363 = smul.addr %s362, 8
      %s364 = scalar_lea.vmem %s0, %s363
      %p365 = pneg %p44
      %p366 = pneg %p41
      %s367 = smul.u32 32, %s23
      %p368 = scmp.lt.s32.totalorder %s367, 63
      %s369 = scalar_select %p368, %s367, 63
      %s370 = smul.addr %s369, 8
      %s371 = scalar_lea.vmem %s1, %s370
      %p372 = pneg %p70
      %p373 = pneg %p67
      %p374 = pneg %p91
      %p375 = pneg %p88
      %p376 = pneg %p112
      %p377 = pneg %p109
      %p378 = pneg %p133
      %p379 = pneg %p130
      %p380 = pneg %p154
      %p381 = pneg %p151
      %p382 = pneg %p175
      %p383 = pneg %p172
      %p384 = pneg %p196
      %p385 = pneg %p193
      %p386 = pneg %p217
      %p387 = pneg %p214
      %p388 = pneg %p238
      %p389 = pneg %p235
      %p390 = pneg %p264
      %p391 = pneg %p261
      %s392 = smul.u32 32, %s23
      %p393 = scmp.lt.s32.totalorder %s392, 63
      %s394 = scalar_select %p393, %s392, 63
      %s395 = smul.addr %s394, 7
      %s396 = smul.addr %s395, 8
      %s397 = scalar_lea.vmem %s10, %s396
      %p398 = pneg %p290
      %p399 = pneg %p287
      %s400 = smul.u32 32, %s23
      %p401 = scmp.lt.s32.totalorder %s400, 63
      %s402 = scalar_select %p401, %s400, 63
      %s403 = smul.addr %s402, 8
      %s404 = scalar_lea.vmem %s11, %s403
      %s405 = smul.u32 32, %s23
      %p406 = scmp.lt.s32.totalorder %s405, 63
      %s407 = scalar_select %p406, %s405, 63
      %s408 = smul.addr %s407, 7
      %s409 = smul.addr %s408, 8
      %s410 = scalar_lea.vmem %s0, %s409
      %s411 = smul.u32 32, %s23
      %s412 = smul.u32 32, %s23
      %p413 = scmp.lt.s32.totalorder %s412, 63
      %s414 = scalar_select %p413, %s412, 63
      %s415 = smul.addr %s414, 8
      %s416 = scalar_lea.vmem %s1, %s415
      %s417 = smul.u32 32, %s23
      %s418 = smul.u32 32, %s23
      %p419 = scmp.lt.s32.totalorder %s418, 63
      %s420 = scalar_select %p419, %s418, 63
      %s421 = smul.addr %s420, 7
      %s422 = smul.addr %s421, 8
      %s423 = scalar_lea.vmem %s10, %s422
      %s424 = smul.u32 32, %s23
      %s425 = smul.u32 32, %s23
      %p426 = scmp.lt.s32.totalorder %s425, 63
      %s427 = scalar_select %p426, %s425, 63
      %s428 = smul.addr %s427, 8
      %s429 = scalar_lea.vmem %s11, %s428
      %s430 = smul.u32 32, %s23
      %v431 = vld [vmem:[%s410] sm:$0xff]
      %v432 = vld [vmem:[%s410 + $0x8] sm:$0xff]
      %v433 = vld [vmem:[%s410 + $0x10] sm:$0xff]
      %v434 = vld [vmem:[%s410 + $0x18] sm:$0xff]
      %v435 = vld [vmem:[%s410 + $0x20] sm:$0xff]
      %v436 = vld [vmem:[%s410 + $0x28] sm:$0xff]
      %v437 = vld [vmem:[%s410 + $0x30] sm:$0xff]
      %v438 = vld [vmem:[%s410 + $0x38] sm:$0xff]
      %v439 = vld [vmem:[%s410 + $0x40] sm:$0xff]
      %v440 = vld [vmem:[%s410 + $0x48] sm:$0xff]
      %v441 = vld [vmem:[%s410 + $0x50] sm:$0xff]
      %v442 = vld [vmem:[%s410 + $0x58] sm:$0xff]
      %v443 = vld [vmem:[%s410 + $0x60] sm:$0xff]
      %v444 = vld [vmem:[%s410 + $0x68] sm:$0xff]
      %v445 = vld [vmem:[%s410 + $0x70] sm:$0xff]
      %v446 = vld [vmem:[%s410 + $0x78] sm:$0xff]
      %v447 = vld [vmem:[%s410 + $0x80] sm:$0xff]
      %v448 = vld [vmem:[%s410 + $0x88] sm:$0xff]
      %v449 = vld [vmem:[%s410 + $0x90] sm:$0xff]
      %v450 = vld [vmem:[%s410 + $0x98] sm:$0xff]
      %v451 = vld [vmem:[%s410 + $0xa0] sm:$0xff]
      %v452 = vld [vmem:[%s410 + $0xa8] sm:$0xff]
      %v453 = vld [vmem:[%s410 + $0xb0] sm:$0xff]
      %v454 = vld [vmem:[%s410 + $0xb8] sm:$0xff]
      %v455 = vld [vmem:[%s410 + $0xc0] sm:$0xff]
      %v456 = vld [vmem:[%s410 + $0xc8] sm:$0xff]
      %v457 = vld [vmem:[%s410 + $0xd0] sm:$0xff]
      %v458 = vld [vmem:[%s410 + $0xd8] sm:$0xff]
      %v459 = vld [vmem:[%s410 + $0xe0] sm:$0xff]
      %v460 = vld [vmem:[%s410 + $0xe8] sm:$0xff]
      %v461 = vld [vmem:[%s410 + $0xf0] sm:$0xff]
      %v462 = vld [vmem:[%s410 + $0xf8] sm:$0xff]
      %v463 = vld [vmem:[%s410 + $0x100] sm:$0xff]
      %v464 = vld [vmem:[%s410 + $0x108] sm:$0xff]
      %v465 = vld [vmem:[%s410 + $0x110] sm:$0xff]
      %v466 = vld [vmem:[%s410 + $0x118] sm:$0xff]
      %v467 = vld [vmem:[%s410 + $0x120] sm:$0xff]
      %v468 = vld [vmem:[%s410 + $0x128] sm:$0xff]
      %v469 = vld [vmem:[%s410 + $0x130] sm:$0xff]
      %v470 = vld [vmem:[%s410 + $0x138] sm:$0xff]
      %v471 = vld [vmem:[%s410 + $0x140] sm:$0xff]
      %v472 = vld [vmem:[%s410 + $0x148] sm:$0xff]
      %v473 = vld [vmem:[%s410 + $0x150] sm:$0xff]
      %v474 = vld [vmem:[%s410 + $0x158] sm:$0xff]
      %v475 = vld [vmem:[%s410 + $0x160] sm:$0xff]
      %v476 = vld [vmem:[%s410 + $0x168] sm:$0xff]
      %v477 = vld [vmem:[%s410 + $0x170] sm:$0xff]
      %v478 = vld [vmem:[%s410 + $0x178] sm:$0xff]
      %v479 = vld [vmem:[%s410 + $0x180] sm:$0xff]
      %v480 = vld [vmem:[%s410 + $0x188] sm:$0xff]
      %v481 = vld [vmem:[%s410 + $0x190] sm:$0xff]
      %v482 = vld [vmem:[%s410 + $0x198] sm:$0xff]
      %v483 = vld [vmem:[%s410 + $0x1a0] sm:$0xff]
      %v484 = vld [vmem:[%s410 + $0x1a8] sm:$0xff]
      %v485 = vld [vmem:[%s410 + $0x1b0] sm:$0xff]
      %v486 = vld [vmem:[%s410 + $0x1b8] sm:$0xff]
      %v487 = vld [vmem:[%s410 + $0x1c0] sm:$0xff]
      %v488 = vld [vmem:[%s410 + $0x1c8] sm:$0xff]
      %v489 = vld [vmem:[%s410 + $0x1d0] sm:$0xff]
      %v490 = vld [vmem:[%s410 + $0x1d8] sm:$0xff]
      %v491 = vld [vmem:[%s410 + $0x1e0] sm:$0xff]
      %v492 = vld [vmem:[%s410 + $0x1e8] sm:$0xff]
      %v493 = vld [vmem:[%s410 + $0x1f0] sm:$0xff]
      %v494 = vld [vmem:[%s410 + $0x1f8] sm:$0xff]
      %v495 = vld [vmem:[%s410 + $0x200] sm:$0xff]
      %v496 = vld [vmem:[%s410 + $0x208] sm:$0xff]
      %v497 = vld [vmem:[%s410 + $0x210] sm:$0xff]
      %v498 = vld [vmem:[%s410 + $0x218] sm:$0xff]
      %v499 = vld [vmem:[%s410 + $0x220] sm:$0xff]
      %v500 = vld [vmem:[%s410 + $0x228] sm:$0xff]
      %v501 = vld [vmem:[%s410 + $0x230] sm:$0xff]
      %v502 = vld [vmem:[%s410 + $0x238] sm:$0xff]
      %v503 = vld [vmem:[%s410 + $0x240] sm:$0xff]
      %v504 = vld [vmem:[%s410 + $0x248] sm:$0xff]
      %v505 = vld [vmem:[%s410 + $0x250] sm:$0xff]
      %v506 = vld [vmem:[%s410 + $0x258] sm:$0xff]
      %v507 = vld [vmem:[%s410 + $0x260] sm:$0xff]
      %v508 = vld [vmem:[%s410 + $0x268] sm:$0xff]
      %v509 = vld [vmem:[%s410 + $0x270] sm:$0xff]
      %v510 = vld [vmem:[%s410 + $0x278] sm:$0xff]
      %v511 = vld [vmem:[%s410 + $0x280] sm:$0xff]
      %v512 = vld [vmem:[%s410 + $0x288] sm:$0xff]
      %v513 = vld [vmem:[%s410 + $0x290] sm:$0xff]
      %v514 = vld [vmem:[%s410 + $0x298] sm:$0xff]
      %v515 = vld [vmem:[%s410 + $0x2a0] sm:$0xff]
      %v516 = vld [vmem:[%s410 + $0x2a8] sm:$0xff]
      %v517 = vld [vmem:[%s410 + $0x2b0] sm:$0xff]
      %v518 = vld [vmem:[%s410 + $0x2b8] sm:$0xff]
      %v519 = vld [vmem:[%s410 + $0x2c0] sm:$0xff]
      %v520 = vld [vmem:[%s410 + $0x2c8] sm:$0xff]
      %v521 = vld [vmem:[%s410 + $0x2d0] sm:$0xff]
      %v522 = vld [vmem:[%s410 + $0x2d8] sm:$0xff]
      %v523 = vld [vmem:[%s410 + $0x2e0] sm:$0xff]
      %v524 = vld [vmem:[%s410 + $0x2e8] sm:$0xff]
      %v525 = vld [vmem:[%s410 + $0x2f0] sm:$0xff]
      %v526 = vld [vmem:[%s410 + $0x2f8] sm:$0xff]
      %v527 = vld [vmem:[%s410 + $0x300] sm:$0xff]
      %v528 = vld [vmem:[%s410 + $0x308] sm:$0xff]
      %v529 = vld [vmem:[%s410 + $0x310] sm:$0xff]
      %v530 = vld [vmem:[%s410 + $0x318] sm:$0xff]
      %v531 = vld [vmem:[%s410 + $0x320] sm:$0xff]
      %v532 = vld [vmem:[%s410 + $0x328] sm:$0xff]
      %v533 = vld [vmem:[%s410 + $0x330] sm:$0xff]
      %v534 = vld [vmem:[%s410 + $0x338] sm:$0xff]
      %v535 = vld [vmem:[%s410 + $0x340] sm:$0xff]
      %v536 = vld [vmem:[%s410 + $0x348] sm:$0xff]
      %v537 = vld [vmem:[%s410 + $0x350] sm:$0xff]
      %v538 = vld [vmem:[%s410 + $0x358] sm:$0xff]
      %v539 = vld [vmem:[%s410 + $0x360] sm:$0xff]
      %v540 = vld [vmem:[%s410 + $0x368] sm:$0xff]
      %v541 = vld [vmem:[%s410 + $0x370] sm:$0xff]
      %v542 = vld [vmem:[%s410 + $0x378] sm:$0xff]
      %v543 = vld [vmem:[%s410 + $0x380] sm:$0xff]
      %v544 = vld [vmem:[%s410 + $0x388] sm:$0xff]
      %v545 = vld [vmem:[%s410 + $0x390] sm:$0xff]
      %v546 = vld [vmem:[%s410 + $0x398] sm:$0xff]
      %v547 = vld [vmem:[%s410 + $0x3a0] sm:$0xff]
      %v548 = vld [vmem:[%s410 + $0x3a8] sm:$0xff]
      %v549 = vld [vmem:[%s410 + $0x3b0] sm:$0xff]
      %v550 = vld [vmem:[%s410 + $0x3b8] sm:$0xff]
      %v551 = vld [vmem:[%s410 + $0x3c0] sm:$0xff]
      %v552 = vld [vmem:[%s410 + $0x3c8] sm:$0xff]
      %v553 = vld [vmem:[%s410 + $0x3d0] sm:$0xff]
      %v554 = vld [vmem:[%s410 + $0x3d8] sm:$0xff]
      %v555 = vld [vmem:[%s410 + $0x3e0] sm:$0xff]
      %v556 = vld [vmem:[%s410 + $0x3e8] sm:$0xff]
      %v557 = vld [vmem:[%s410 + $0x3f0] sm:$0xff]
      %v558 = vld [vmem:[%s410 + $0x3f8] sm:$0xff]
      %v559 = vld [vmem:[%s410 + $0x400] sm:$0xff]
      %v560 = vld [vmem:[%s410 + $0x408] sm:$0xff]
      %v561 = vld [vmem:[%s410 + $0x410] sm:$0xff]
      %v562 = vld [vmem:[%s410 + $0x418] sm:$0xff]
      %v563 = vld [vmem:[%s410 + $0x420] sm:$0xff]
      %v564 = vld [vmem:[%s410 + $0x428] sm:$0xff]
      %v565 = vld [vmem:[%s410 + $0x430] sm:$0xff]
      %v566 = vld [vmem:[%s410 + $0x438] sm:$0xff]
      %v567 = vld [vmem:[%s410 + $0x440] sm:$0xff]
      %v568 = vld [vmem:[%s410 + $0x448] sm:$0xff]
      %v569 = vld [vmem:[%s410 + $0x450] sm:$0xff]
      %v570 = vld [vmem:[%s410 + $0x458] sm:$0xff]
      %v571 = vld [vmem:[%s410 + $0x460] sm:$0xff]
      %v572 = vld [vmem:[%s410 + $0x468] sm:$0xff]
      %v573 = vld [vmem:[%s410 + $0x470] sm:$0xff]
      %v574 = vld [vmem:[%s410 + $0x478] sm:$0xff]
      %v575 = vld [vmem:[%s410 + $0x480] sm:$0xff]
      %v576 = vld [vmem:[%s410 + $0x488] sm:$0xff]
      %v577 = vld [vmem:[%s410 + $0x490] sm:$0xff]
      %v578 = vld [vmem:[%s410 + $0x498] sm:$0xff]
      %v579 = vld [vmem:[%s410 + $0x4a0] sm:$0xff]
      %v580 = vld [vmem:[%s410 + $0x4a8] sm:$0xff]
      %v581 = vld [vmem:[%s410 + $0x4b0] sm:$0xff]
      %v582 = vld [vmem:[%s410 + $0x4b8] sm:$0xff]
      %v583 = vld [vmem:[%s410 + $0x4c0] sm:$0xff]
      %v584 = vld [vmem:[%s410 + $0x4c8] sm:$0xff]
      %v585 = vld [vmem:[%s410 + $0x4d0] sm:$0xff]
      %v586 = vld [vmem:[%s410 + $0x4d8] sm:$0xff]
      %v587 = vld [vmem:[%s410 + $0x4e0] sm:$0xff]
      %v588 = vld [vmem:[%s410 + $0x4e8] sm:$0xff]
      %v589 = vld [vmem:[%s410 + $0x4f0] sm:$0xff]
      %v590 = vld [vmem:[%s410 + $0x4f8] sm:$0xff]
      %v591 = vld [vmem:[%s410 + $0x500] sm:$0xff]
      %v592 = vld [vmem:[%s410 + $0x508] sm:$0xff]
      %v593 = vld [vmem:[%s410 + $0x510] sm:$0xff]
      %v594 = vld [vmem:[%s410 + $0x518] sm:$0xff]
      %v595 = vld [vmem:[%s410 + $0x520] sm:$0xff]
      %v596 = vld [vmem:[%s410 + $0x528] sm:$0xff]
      %v597 = vld [vmem:[%s410 + $0x530] sm:$0xff]
      %v598 = vld [vmem:[%s410 + $0x538] sm:$0xff]
      %v599 = vld [vmem:[%s410 + $0x540] sm:$0xff]
      %v600 = vld [vmem:[%s410 + $0x548] sm:$0xff]
      %v601 = vld [vmem:[%s410 + $0x550] sm:$0xff]
      %v602 = vld [vmem:[%s410 + $0x558] sm:$0xff]
      %v603 = vld [vmem:[%s410 + $0x560] sm:$0xff]
      %v604 = vld [vmem:[%s410 + $0x568] sm:$0xff]
      %v605 = vld [vmem:[%s410 + $0x570] sm:$0xff]
      %v606 = vld [vmem:[%s410 + $0x578] sm:$0xff]
      %v607 = vld [vmem:[%s410 + $0x580] sm:$0xff]
      %v608 = vld [vmem:[%s410 + $0x588] sm:$0xff]
      %v609 = vld [vmem:[%s410 + $0x590] sm:$0xff]
      %v610 = vld [vmem:[%s410 + $0x598] sm:$0xff]
      %v611 = vld [vmem:[%s410 + $0x5a0] sm:$0xff]
      %v612 = vld [vmem:[%s410 + $0x5a8] sm:$0xff]
      %v613 = vld [vmem:[%s410 + $0x5b0] sm:$0xff]
      %v614 = vld [vmem:[%s410 + $0x5b8] sm:$0xff]
      %v615 = vld [vmem:[%s410 + $0x5c0] sm:$0xff]
      %v616 = vld [vmem:[%s410 + $0x5c8] sm:$0xff]
      %v617 = vld [vmem:[%s410 + $0x5d0] sm:$0xff]
      %v618 = vld [vmem:[%s410 + $0x5d8] sm:$0xff]
      %v619 = vld [vmem:[%s410 + $0x5e0] sm:$0xff]
      %v620 = vld [vmem:[%s410 + $0x5e8] sm:$0xff]
      %v621 = vld [vmem:[%s410 + $0x5f0] sm:$0xff]
      %v622 = vld [vmem:[%s410 + $0x5f8] sm:$0xff]
      %v623 = vld [vmem:[%s410 + $0x600] sm:$0xff]
      %v624 = vld [vmem:[%s410 + $0x608] sm:$0xff]
      %v625 = vld [vmem:[%s410 + $0x610] sm:$0xff]
      %v626 = vld [vmem:[%s410 + $0x618] sm:$0xff]
      %v627 = vld [vmem:[%s410 + $0x620] sm:$0xff]
      %v628 = vld [vmem:[%s410 + $0x628] sm:$0xff]
      %v629 = vld [vmem:[%s410 + $0x630] sm:$0xff]
      %v630 = vld [vmem:[%s410 + $0x638] sm:$0xff]
      %v631 = vld [vmem:[%s410 + $0x640] sm:$0xff]
      %v632 = vld [vmem:[%s410 + $0x648] sm:$0xff]
      %v633 = vld [vmem:[%s410 + $0x650] sm:$0xff]
      %v634 = vld [vmem:[%s410 + $0x658] sm:$0xff]
      %v635 = vld [vmem:[%s410 + $0x660] sm:$0xff]
      %v636 = vld [vmem:[%s410 + $0x668] sm:$0xff]
      %v637 = vld [vmem:[%s410 + $0x670] sm:$0xff]
      %v638 = vld [vmem:[%s410 + $0x678] sm:$0xff]
      %v639 = vld [vmem:[%s410 + $0x680] sm:$0xff]
      %v640 = vld [vmem:[%s410 + $0x688] sm:$0xff]
      %v641 = vld [vmem:[%s410 + $0x690] sm:$0xff]
      %v642 = vld [vmem:[%s410 + $0x698] sm:$0xff]
      %v643 = vld [vmem:[%s410 + $0x6a0] sm:$0xff]
      %v644 = vld [vmem:[%s410 + $0x6a8] sm:$0xff]
      %v645 = vld [vmem:[%s410 + $0x6b0] sm:$0xff]
      %v646 = vld [vmem:[%s410 + $0x6b8] sm:$0xff]
      %v647 = vld [vmem:[%s410 + $0x6c0] sm:$0xff]
      %v648 = vld [vmem:[%s410 + $0x6c8] sm:$0xff]
      %v649 = vld [vmem:[%s410 + $0x6d0] sm:$0xff]
      %v650 = vld [vmem:[%s410 + $0x6d8] sm:$0xff]
      %v651 = vld [vmem:[%s410 + $0x6e0] sm:$0xff]
      %v652 = vld [vmem:[%s410 + $0x6e8] sm:$0xff]
      %v653 = vld [vmem:[%s410 + $0x6f0] sm:$0xff]
      %v654 = vld [vmem:[%s410 + $0x6f8] sm:$0xff]
      %v655 = vld [vmem:[%s2] sm:$0xff]
      %v656 = vld [vmem:[%s2 + $0x8] sm:$0xff]
      %v657 = vld [vmem:[%s2 + $0x10] sm:$0xff]
      %v658 = vld [vmem:[%s2 + $0x18] sm:$0xff]
      %v659 = vld [vmem:[%s2 + $0x20] sm:$0xff]
      %v660 = vld [vmem:[%s2 + $0x28] sm:$0xff]
      %v661 = vld [vmem:[%s2 + $0x30] sm:$0xff]
      %v662 = vld [vmem:[%s2 + $0x38] sm:$0xff]
      %v663 = vld [vmem:[%s2 + $0x40] sm:$0xff]
      %v664 = vld [vmem:[%s2 + $0x48] sm:$0xff]
      %v665 = vld [vmem:[%s2 + $0x50] sm:$0xff]
      %v666 = vld [vmem:[%s2 + $0x58] sm:$0xff]
      %v667 = vld [vmem:[%s2 + $0x60] sm:$0xff]
      %v668 = vld [vmem:[%s2 + $0x68] sm:$0xff]
      %v669 = vld [vmem:[%s2 + $0x70] sm:$0xff]
      %v670 = vld [vmem:[%s2 + $0x78] sm:$0xff]
      %v671 = vld [vmem:[%s2 + $0x80] sm:$0xff]
      %v672 = vld [vmem:[%s2 + $0x88] sm:$0xff]
      %v673 = vld [vmem:[%s2 + $0x90] sm:$0xff]
      %v674 = vld [vmem:[%s2 + $0x98] sm:$0xff]
      %v675 = vld [vmem:[%s2 + $0xa0] sm:$0xff]
      %v676 = vld [vmem:[%s2 + $0xa8] sm:$0xff]
      %v677 = vld [vmem:[%s2 + $0xb0] sm:$0xff]
      %v678 = vld [vmem:[%s2 + $0xb8] sm:$0xff]
      %v679 = vld [vmem:[%s2 + $0xc0] sm:$0xff]
      %v680 = vld [vmem:[%s2 + $0xc8] sm:$0xff]
      %v681 = vld [vmem:[%s2 + $0xd0] sm:$0xff]
      %v682 = vld [vmem:[%s2 + $0xd8] sm:$0xff]
      %v683 = vld [vmem:[%s2 + $0xe0] sm:$0xff]
      %v684 = vld [vmem:[%s2 + $0xe8] sm:$0xff]
      %v685 = vld [vmem:[%s2 + $0xf0] sm:$0xff]
      %v686 = vld [vmem:[%s2 + $0xf8] sm:$0xff]
      %v687 = vld [vmem:[%s2 + $0x100] sm:$0xff]
      %v688 = vld [vmem:[%s2 + $0x108] sm:$0xff]
      %v689 = vld [vmem:[%s2 + $0x110] sm:$0xff]
      %v690 = vld [vmem:[%s2 + $0x118] sm:$0xff]
      %v691 = vld [vmem:[%s2 + $0x120] sm:$0xff]
      %v692 = vld [vmem:[%s2 + $0x128] sm:$0xff]
      %v693 = vld [vmem:[%s2 + $0x130] sm:$0xff]
      %v694 = vld [vmem:[%s2 + $0x138] sm:$0xff]
      %v695 = vld [vmem:[%s2 + $0x140] sm:$0xff]
      %v696 = vld [vmem:[%s2 + $0x148] sm:$0xff]
      %v697 = vld [vmem:[%s2 + $0x150] sm:$0xff]
      %v698 = vld [vmem:[%s2 + $0x158] sm:$0xff]
      %v699 = vld [vmem:[%s2 + $0x160] sm:$0xff]
      %v700 = vld [vmem:[%s2 + $0x168] sm:$0xff]
      %v701 = vld [vmem:[%s2 + $0x170] sm:$0xff]
      %v702 = vld [vmem:[%s2 + $0x178] sm:$0xff]
      %v703 = vld [vmem:[%s2 + $0x180] sm:$0xff]
      %v704 = vld [vmem:[%s2 + $0x188] sm:$0xff]
      %v705 = vld [vmem:[%s2 + $0x190] sm:$0xff]
      %v706 = vld [vmem:[%s2 + $0x198] sm:$0xff]
      %v707 = vld [vmem:[%s2 + $0x1a0] sm:$0xff]
      %v708 = vld [vmem:[%s2 + $0x1a8] sm:$0xff]
      %v709 = vld [vmem:[%s2 + $0x1b0] sm:$0xff]
      %v710 = vld [vmem:[%s2 + $0x1b8] sm:$0xff]
      %v711 = vld [vmem:[%s2 + $0x1c0] sm:$0xff]
      %v712 = vld [vmem:[%s2 + $0x1c8] sm:$0xff]
      %v713 = vld [vmem:[%s2 + $0x1d0] sm:$0xff]
      %v714 = vld [vmem:[%s2 + $0x1d8] sm:$0xff]
      %v715 = vld [vmem:[%s2 + $0x1e0] sm:$0xff]
      %v716 = vld [vmem:[%s2 + $0x1e8] sm:$0xff]
      %v717 = vld [vmem:[%s2 + $0x1f0] sm:$0xff]
      %v718 = vld [vmem:[%s2 + $0x1f8] sm:$0xff]
      %v719 = vld [vmem:[%s2 + $0x200] sm:$0xff]
      %v720 = vld [vmem:[%s2 + $0x208] sm:$0xff]
      %v721 = vld [vmem:[%s2 + $0x210] sm:$0xff]
      %v722 = vld [vmem:[%s2 + $0x218] sm:$0xff]
      %v723 = vld [vmem:[%s2 + $0x220] sm:$0xff]
      %v724 = vld [vmem:[%s2 + $0x228] sm:$0xff]
      %v725 = vld [vmem:[%s2 + $0x230] sm:$0xff]
      %v726 = vld [vmem:[%s2 + $0x238] sm:$0xff]
      %v727 = vld [vmem:[%s2 + $0x240] sm:$0xff]
      %v728 = vld [vmem:[%s2 + $0x248] sm:$0xff]
      %v729 = vld [vmem:[%s2 + $0x250] sm:$0xff]
      %v730 = vld [vmem:[%s2 + $0x258] sm:$0xff]
      %v731 = vld [vmem:[%s2 + $0x260] sm:$0xff]
      %v732 = vld [vmem:[%s2 + $0x268] sm:$0xff]
      %v733 = vld [vmem:[%s2 + $0x270] sm:$0xff]
      %v734 = vld [vmem:[%s2 + $0x278] sm:$0xff]
      %v735 = vld [vmem:[%s2 + $0x280] sm:$0xff]
      %v736 = vld [vmem:[%s2 + $0x288] sm:$0xff]
      %v737 = vld [vmem:[%s2 + $0x290] sm:$0xff]
      %v738 = vld [vmem:[%s2 + $0x298] sm:$0xff]
      %v739 = vld [vmem:[%s2 + $0x2a0] sm:$0xff]
      %v740 = vld [vmem:[%s2 + $0x2a8] sm:$0xff]
      %v741 = vld [vmem:[%s2 + $0x2b0] sm:$0xff]
      %v742 = vld [vmem:[%s2 + $0x2b8] sm:$0xff]
      %v743 = vld [vmem:[%s2 + $0x2c0] sm:$0xff]
      %v744 = vld [vmem:[%s2 + $0x2c8] sm:$0xff]
      %v745 = vld [vmem:[%s2 + $0x2d0] sm:$0xff]
      %v746 = vld [vmem:[%s2 + $0x2d8] sm:$0xff]
      %v747 = vld [vmem:[%s2 + $0x2e0] sm:$0xff]
      %v748 = vld [vmem:[%s2 + $0x2e8] sm:$0xff]
      %v749 = vld [vmem:[%s2 + $0x2f0] sm:$0xff]
      %v750 = vld [vmem:[%s2 + $0x2f8] sm:$0xff]
      %v751 = vld [vmem:[%s2 + $0x300] sm:$0xff]
      %v752 = vld [vmem:[%s2 + $0x308] sm:$0xff]
      %v753 = vld [vmem:[%s2 + $0x310] sm:$0xff]
      %v754 = vld [vmem:[%s2 + $0x318] sm:$0xff]
      %v755 = vld [vmem:[%s2 + $0x320] sm:$0xff]
      %v756 = vld [vmem:[%s2 + $0x328] sm:$0xff]
      %v757 = vld [vmem:[%s2 + $0x330] sm:$0xff]
      %v758 = vld [vmem:[%s2 + $0x338] sm:$0xff]
      %v759 = vld [vmem:[%s2 + $0x340] sm:$0xff]
      %v760 = vld [vmem:[%s2 + $0x348] sm:$0xff]
      %v761 = vld [vmem:[%s2 + $0x350] sm:$0xff]
      %v762 = vld [vmem:[%s2 + $0x358] sm:$0xff]
      %v763 = vld [vmem:[%s2 + $0x360] sm:$0xff]
      %v764 = vld [vmem:[%s2 + $0x368] sm:$0xff]
      %v765 = vld [vmem:[%s2 + $0x370] sm:$0xff]
      %v766 = vld [vmem:[%s2 + $0x378] sm:$0xff]
      %v767 = vld [vmem:[%s2 + $0x380] sm:$0xff]
      %v768 = vld [vmem:[%s2 + $0x388] sm:$0xff]
      %v769 = vld [vmem:[%s2 + $0x390] sm:$0xff]
      %v770 = vld [vmem:[%s2 + $0x398] sm:$0xff]
      %v771 = vld [vmem:[%s2 + $0x3a0] sm:$0xff]
      %v772 = vld [vmem:[%s2 + $0x3a8] sm:$0xff]
      %v773 = vld [vmem:[%s2 + $0x3b0] sm:$0xff]
      %v774 = vld [vmem:[%s2 + $0x3b8] sm:$0xff]
      %v775 = vld [vmem:[%s2 + $0x3c0] sm:$0xff]
      %v776 = vld [vmem:[%s2 + $0x3c8] sm:$0xff]
      %v777 = vld [vmem:[%s2 + $0x3d0] sm:$0xff]
      %v778 = vld [vmem:[%s2 + $0x3d8] sm:$0xff]
      %v779 = vld [vmem:[%s2 + $0x3e0] sm:$0xff]
      %v780 = vld [vmem:[%s2 + $0x3e8] sm:$0xff]
      %v781 = vld [vmem:[%s2 + $0x3f0] sm:$0xff]
      %v782 = vld [vmem:[%s2 + $0x3f8] sm:$0xff]
      %v783 = vld [vmem:[%s2 + $0x400] sm:$0xff]
      %v784 = vld [vmem:[%s2 + $0x408] sm:$0xff]
      %v785 = vld [vmem:[%s2 + $0x410] sm:$0xff]
      %v786 = vld [vmem:[%s2 + $0x418] sm:$0xff]
      %v787 = vld [vmem:[%s2 + $0x420] sm:$0xff]
      %v788 = vld [vmem:[%s2 + $0x428] sm:$0xff]
      %v789 = vld [vmem:[%s2 + $0x430] sm:$0xff]
      %v790 = vld [vmem:[%s2 + $0x438] sm:$0xff]
      %v791 = vld [vmem:[%s2 + $0x440] sm:$0xff]
      %v792 = vld [vmem:[%s2 + $0x448] sm:$0xff]
      %v793 = vld [vmem:[%s2 + $0x450] sm:$0xff]
      %v794 = vld [vmem:[%s2 + $0x458] sm:$0xff]
      %v795 = vld [vmem:[%s2 + $0x460] sm:$0xff]
      %v796 = vld [vmem:[%s2 + $0x468] sm:$0xff]
      %v797 = vld [vmem:[%s2 + $0x470] sm:$0xff]
      %v798 = vld [vmem:[%s2 + $0x478] sm:$0xff]
      %v799 = vld [vmem:[%s2 + $0x480] sm:$0xff]
      %v800 = vld [vmem:[%s2 + $0x488] sm:$0xff]
      %v801 = vld [vmem:[%s2 + $0x490] sm:$0xff]
      %v802 = vld [vmem:[%s2 + $0x498] sm:$0xff]
      %v803 = vld [vmem:[%s2 + $0x4a0] sm:$0xff]
      %v804 = vld [vmem:[%s2 + $0x4a8] sm:$0xff]
      %v805 = vld [vmem:[%s2 + $0x4b0] sm:$0xff]
      %v806 = vld [vmem:[%s2 + $0x4b8] sm:$0xff]
      %v807 = vld [vmem:[%s2 + $0x4c0] sm:$0xff]
      %v808 = vld [vmem:[%s2 + $0x4c8] sm:$0xff]
      %v809 = vld [vmem:[%s2 + $0x4d0] sm:$0xff]
      %v810 = vld [vmem:[%s2 + $0x4d8] sm:$0xff]
      %v811 = vld [vmem:[%s2 + $0x4e0] sm:$0xff]
      %v812 = vld [vmem:[%s2 + $0x4e8] sm:$0xff]
      %v813 = vld [vmem:[%s2 + $0x4f0] sm:$0xff]
      %v814 = vld [vmem:[%s2 + $0x4f8] sm:$0xff]
      %v815 = vld [vmem:[%s2 + $0x500] sm:$0xff]
      %v816 = vld [vmem:[%s2 + $0x508] sm:$0xff]
      %v817 = vld [vmem:[%s2 + $0x510] sm:$0xff]
      %v818 = vld [vmem:[%s2 + $0x518] sm:$0xff]
      %v819 = vld [vmem:[%s2 + $0x520] sm:$0xff]
      %v820 = vld [vmem:[%s2 + $0x528] sm:$0xff]
      %v821 = vld [vmem:[%s2 + $0x530] sm:$0xff]
      %v822 = vld [vmem:[%s2 + $0x538] sm:$0xff]
      %v823 = vld [vmem:[%s2 + $0x540] sm:$0xff]
      %v824 = vld [vmem:[%s2 + $0x548] sm:$0xff]
      %v825 = vld [vmem:[%s2 + $0x550] sm:$0xff]
      %v826 = vld [vmem:[%s2 + $0x558] sm:$0xff]
      %v827 = vld [vmem:[%s2 + $0x560] sm:$0xff]
      %v828 = vld [vmem:[%s2 + $0x568] sm:$0xff]
      %v829 = vld [vmem:[%s2 + $0x570] sm:$0xff]
      %v830 = vld [vmem:[%s2 + $0x578] sm:$0xff]
      %v831 = vld [vmem:[%s2 + $0x580] sm:$0xff]
      %v832 = vld [vmem:[%s2 + $0x588] sm:$0xff]
      %v833 = vld [vmem:[%s2 + $0x590] sm:$0xff]
      %v834 = vld [vmem:[%s2 + $0x598] sm:$0xff]
      %v835 = vld [vmem:[%s2 + $0x5a0] sm:$0xff]
      %v836 = vld [vmem:[%s2 + $0x5a8] sm:$0xff]
      %v837 = vld [vmem:[%s2 + $0x5b0] sm:$0xff]
      %v838 = vld [vmem:[%s2 + $0x5b8] sm:$0xff]
      %v839 = vld [vmem:[%s2 + $0x5c0] sm:$0xff]
      %v840 = vld [vmem:[%s2 + $0x5c8] sm:$0xff]
      %v841 = vld [vmem:[%s2 + $0x5d0] sm:$0xff]
      %v842 = vld [vmem:[%s2 + $0x5d8] sm:$0xff]
      %v843 = vld [vmem:[%s2 + $0x5e0] sm:$0xff]
      %v844 = vld [vmem:[%s2 + $0x5e8] sm:$0xff]
      %v845 = vld [vmem:[%s2 + $0x5f0] sm:$0xff]
      %v846 = vld [vmem:[%s2 + $0x5f8] sm:$0xff]
      %v847 = vld [vmem:[%s2 + $0x600] sm:$0xff]
      %v848 = vld [vmem:[%s2 + $0x608] sm:$0xff]
      %v849 = vld [vmem:[%s2 + $0x610] sm:$0xff]
      %v850 = vld [vmem:[%s2 + $0x618] sm:$0xff]
      %v851 = vld [vmem:[%s2 + $0x620] sm:$0xff]
      %v852 = vld [vmem:[%s2 + $0x628] sm:$0xff]
      %v853 = vld [vmem:[%s2 + $0x630] sm:$0xff]
      %v854 = vld [vmem:[%s2 + $0x638] sm:$0xff]
      %v855 = vld [vmem:[%s2 + $0x640] sm:$0xff]
      %v856 = vld [vmem:[%s2 + $0x648] sm:$0xff]
      %v857 = vld [vmem:[%s2 + $0x650] sm:$0xff]
      %v858 = vld [vmem:[%s2 + $0x658] sm:$0xff]
      %v859 = vld [vmem:[%s2 + $0x660] sm:$0xff]
      %v860 = vld [vmem:[%s2 + $0x668] sm:$0xff]
      %v861 = vld [vmem:[%s2 + $0x670] sm:$0xff]
      %v862 = vld [vmem:[%s2 + $0x678] sm:$0xff]
      %v863 = vld [vmem:[%s2 + $0x680] sm:$0xff]
      %v864 = vld [vmem:[%s2 + $0x688] sm:$0xff]
      %v865 = vld [vmem:[%s2 + $0x690] sm:$0xff]
      %v866 = vld [vmem:[%s2 + $0x698] sm:$0xff]
      %v867 = vld [vmem:[%s2 + $0x6a0] sm:$0xff]
      %v868 = vld [vmem:[%s2 + $0x6a8] sm:$0xff]
      %v869 = vld [vmem:[%s2 + $0x6b0] sm:$0xff]
      %v870 = vld [vmem:[%s2 + $0x6b8] sm:$0xff]
      %v871 = vld [vmem:[%s2 + $0x6c0] sm:$0xff]
      %v872 = vld [vmem:[%s2 + $0x6c8] sm:$0xff]
      %v873 = vld [vmem:[%s2 + $0x6d0] sm:$0xff]
      %v874 = vld [vmem:[%s2 + $0x6d8] sm:$0xff]
      %v875 = vld [vmem:[%s2 + $0x6e0] sm:$0xff]
      %v876 = vld [vmem:[%s2 + $0x6e8] sm:$0xff]
      %v877 = vld [vmem:[%s2 + $0x6f0] sm:$0xff]
      %v878 = vld [vmem:[%s2 + $0x6f8] sm:$0xff]
      %v879 = vld [vmem:[%s3] sm:$0x3]
      %v881 = vperm.slane %v879, 0
      %v882 = vperm.slane %v879, 1
      %885 = vmatpush.msra.mxu0 %v685
      %886 = vmatpush.msra.mxu0 %v683
      %887 = vmatpush.msra.mxu0 %v681
      %888 = vmatpush.msra.mxu0 %v679
      %889 = vmatpush.msra.mxu0 %v677
      %890 = vmatpush.msra.mxu0 %v675
      %891 = vmatpush.msra.mxu0 %v673
      %892 = vmatpush.msra.mxu0 %v671
      %893 = vmatpush.msra.mxu0 %v669
      %894 = vmatpush.msra.mxu0 %v667
      %895 = vmatpush.msra.mxu0 %v665
      %896 = vmatpush.msra.mxu0 %v663
      %897 = vmatpush.msra.mxu0 %v661
      %898 = vmatpush.msra.mxu0 %v659
      %899 = vmatpush.msra.mxu0 %v657
      %900 = vmatpush.msra.mxu0 %v655
      %901 = vmatmul.f32.gmra.mxu0 %v431
      %v902 = vpop.f32.mrf.mxu0
      %v903 = vadd.f32 %v881, %v902
      %904 = vmatmul.f32.gmra.mxu0 %v438
      %v905 = vpop.f32.mrf.mxu0
      %v906 = vadd.f32 %v881, %v905
      %907 = vmatmul.f32.gmra.mxu0 %v445
      %v908 = vpop.f32.mrf.mxu0
      %v909 = vadd.f32 %v881, %v908
      %910 = vmatmul.f32.gmra.mxu0 %v452
      %v911 = vpop.f32.mrf.mxu0
      %v912 = vadd.f32 %v881, %v911
      %913 = vmatmul.f32.gmra.mxu0 %v459
      %v914 = vpop.f32.mrf.mxu0
      %v915 = vadd.f32 %v881, %v914
      %916 = vmatmul.f32.gmra.mxu0 %v466
      %v917 = vpop.f32.mrf.mxu0
      %v918 = vadd.f32 %v881, %v917
      %919 = vmatmul.f32.gmra.mxu0 %v473
      %v920 = vpop.f32.mrf.mxu0
      %v921 = vadd.f32 %v881, %v920
      %922 = vmatmul.f32.gmra.mxu0 %v480
      %v923 = vpop.f32.mrf.mxu0
      %v924 = vadd.f32 %v881, %v923
      %925 = vmatmul.f32.gmra.mxu0 %v487
      %v926 = vpop.f32.mrf.mxu0
      %v927 = vadd.f32 %v881, %v926
      %928 = vmatmul.f32.gmra.mxu0 %v494
      %v929 = vpop.f32.mrf.mxu0
      %v930 = vadd.f32 %v881, %v929
      %931 = vmatmul.f32.gmra.mxu0 %v501
      %v932 = vpop.f32.mrf.mxu0
      %v933 = vadd.f32 %v881, %v932
      %934 = vmatmul.f32.gmra.mxu0 %v508
      %v935 = vpop.f32.mrf.mxu0
      %v936 = vadd.f32 %v881, %v935
      %937 = vmatmul.f32.gmra.mxu0 %v515
      %v938 = vpop.f32.mrf.mxu0
      %v939 = vadd.f32 %v881, %v938
      %940 = vmatmul.f32.gmra.mxu0 %v522
      %v941 = vpop.f32.mrf.mxu0
      %v942 = vadd.f32 %v881, %v941
      %943 = vmatmul.f32.gmra.mxu0 %v529
      %v944 = vpop.f32.mrf.mxu0
      %v945 = vadd.f32 %v881, %v944
      %946 = vmatmul.f32.gmra.mxu0 %v536
      %v947 = vpop.f32.mrf.mxu0
      %v948 = vadd.f32 %v881, %v947
      %949 = vmatmul.f32.gmra.mxu0 %v543
      %v950 = vpop.f32.mrf.mxu0
      %v951 = vadd.f32 %v881, %v950
      %952 = vmatmul.f32.gmra.mxu0 %v550
      %v953 = vpop.f32.mrf.mxu0
      %v954 = vadd.f32 %v881, %v953
      %955 = vmatmul.f32.gmra.mxu0 %v557
      %v956 = vpop.f32.mrf.mxu0
      %v957 = vadd.f32 %v881, %v956
      %958 = vmatmul.f32.gmra.mxu0 %v564
      %v959 = vpop.f32.mrf.mxu0
      %v960 = vadd.f32 %v881, %v959
      %961 = vmatmul.f32.gmra.mxu0 %v571
      %v962 = vpop.f32.mrf.mxu0
      %v963 = vadd.f32 %v881, %v962
      %964 = vmatmul.f32.gmra.mxu0 %v578
      %v965 = vpop.f32.mrf.mxu0
      %v966 = vadd.f32 %v881, %v965
      %967 = vmatmul.f32.gmra.mxu0 %v585
      %v968 = vpop.f32.mrf.mxu0
      %v969 = vadd.f32 %v881, %v968
      %970 = vmatmul.f32.gmra.mxu0 %v592
      %v971 = vpop.f32.mrf.mxu0
      %v972 = vadd.f32 %v881, %v971
      %973 = vmatmul.f32.gmra.mxu0 %v599
      %v974 = vpop.f32.mrf.mxu0
      %v975 = vadd.f32 %v881, %v974
      %976 = vmatmul.f32.gmra.mxu0 %v606
      %v977 = vpop.f32.mrf.mxu0
      %v978 = vadd.f32 %v881, %v977
      %979 = vmatmul.f32.gmra.mxu0 %v613
      %v980 = vpop.f32.mrf.mxu0
      %v981 = vadd.f32 %v881, %v980
      %982 = vmatmul.f32.gmra.mxu0 %v620
      %v983 = vpop.f32.mrf.mxu0
      %v984 = vadd.f32 %v881, %v983
      %985 = vmatmul.f32.gmra.mxu0 %v627
      %v986 = vpop.f32.mrf.mxu0
      %v987 = vadd.f32 %v881, %v986
      %988 = vmatmul.f32.gmra.mxu0 %v634
      %v989 = vpop.f32.mrf.mxu0
      %v990 = vadd.f32 %v881, %v989
      %991 = vmatmul.f32.gmra.mxu0 %v641
      %v992 = vpop.f32.mrf.mxu0
      %v993 = vadd.f32 %v881, %v992
      %994 = vmatmul.f32.gmra.mxu0 %v648
      %v995 = vpop.f32.mrf.mxu0
      %v996 = vadd.f32 %v881, %v995
      %997 = vdwg.mxu0
      %998 = vmatpush.msra.mxu0 %v717
      %999 = vmatpush.msra.mxu0 %v715
      %1000 = vmatpush.msra.mxu0 %v713
      %1001 = vmatpush.msra.mxu0 %v711
      %1002 = vmatpush.msra.mxu0 %v709
      %1003 = vmatpush.msra.mxu0 %v707
      %1004 = vmatpush.msra.mxu0 %v705
      %1005 = vmatpush.msra.mxu0 %v703
      %1006 = vmatpush.msra.mxu0 %v701
      %1007 = vmatpush.msra.mxu0 %v699
      %1008 = vmatpush.msra.mxu0 %v697
      %1009 = vmatpush.msra.mxu0 %v695
      %1010 = vmatpush.msra.mxu0 %v693
      %1011 = vmatpush.msra.mxu0 %v691
      %1012 = vmatpush.msra.mxu0 %v689
      %1013 = vmatpush.msra.mxu0 %v687
      %1014 = vmatmul.f32.gmra.mxu0 %v432
      %v1015 = vpop.f32.mrf.mxu0
      %v1016 = vadd.f32 %v903, %v1015
      %1017 = vmatmul.f32.gmra.mxu0 %v439
      %v1018 = vpop.f32.mrf.mxu0
      %v1019 = vadd.f32 %v906, %v1018
      %1020 = vmatmul.f32.gmra.mxu0 %v446
      %v1021 = vpop.f32.mrf.mxu0
      %v1022 = vadd.f32 %v909, %v1021
      %1023 = vmatmul.f32.gmra.mxu0 %v453
      %v1024 = vpop.f32.mrf.mxu0
      %v1025 = vadd.f32 %v912, %v1024
      %1026 = vmatmul.f32.gmra.mxu0 %v460
      %v1027 = vpop.f32.mrf.mxu0
      %v1028 = vadd.f32 %v915, %v1027
      %1029 = vmatmul.f32.gmra.mxu0 %v467
      %v1030 = vpop.f32.mrf.mxu0
      %v1031 = vadd.f32 %v918, %v1030
      %1032 = vmatmul.f32.gmra.mxu0 %v474
      %v1033 = vpop.f32.mrf.mxu0
      %v1034 = vadd.f32 %v921, %v1033
      %1035 = vmatmul.f32.gmra.mxu0 %v481
      %v1036 = vpop.f32.mrf.mxu0
      %v1037 = vadd.f32 %v924, %v1036
      %1038 = vmatmul.f32.gmra.mxu0 %v488
      %v1039 = vpop.f32.mrf.mxu0
      %v1040 = vadd.f32 %v927, %v1039
      %1041 = vmatmul.f32.gmra.mxu0 %v495
      %v1042 = vpop.f32.mrf.mxu0
      %v1043 = vadd.f32 %v930, %v1042
      %1044 = vmatmul.f32.gmra.mxu0 %v502
      %v1045 = vpop.f32.mrf.mxu0
      %v1046 = vadd.f32 %v933, %v1045
      %1047 = vmatmul.f32.gmra.mxu0 %v509
      %v1048 = vpop.f32.mrf.mxu0
      %v1049 = vadd.f32 %v936, %v1048
      %1050 = vmatmul.f32.gmra.mxu0 %v516
      %v1051 = vpop.f32.mrf.mxu0
      %v1052 = vadd.f32 %v939, %v1051
      %1053 = vmatmul.f32.gmra.mxu0 %v523
      %v1054 = vpop.f32.mrf.mxu0
      %v1055 = vadd.f32 %v942, %v1054
      %1056 = vmatmul.f32.gmra.mxu0 %v530
      %v1057 = vpop.f32.mrf.mxu0
      %v1058 = vadd.f32 %v945, %v1057
      %1059 = vmatmul.f32.gmra.mxu0 %v537
      %v1060 = vpop.f32.mrf.mxu0
      %v1061 = vadd.f32 %v948, %v1060
      %1062 = vmatmul.f32.gmra.mxu0 %v544
      %v1063 = vpop.f32.mrf.mxu0
      %v1064 = vadd.f32 %v951, %v1063
      %1065 = vmatmul.f32.gmra.mxu0 %v551
      %v1066 = vpop.f32.mrf.mxu0
      %v1067 = vadd.f32 %v954, %v1066
      %1068 = vmatmul.f32.gmra.mxu0 %v558
      %v1069 = vpop.f32.mrf.mxu0
      %v1070 = vadd.f32 %v957, %v1069
      %1071 = vmatmul.f32.gmra.mxu0 %v565
      %v1072 = vpop.f32.mrf.mxu0
      %v1073 = vadd.f32 %v960, %v1072
      %1074 = vmatmul.f32.gmra.mxu0 %v572
      %v1075 = vpop.f32.mrf.mxu0
      %v1076 = vadd.f32 %v963, %v1075
      %1077 = vmatmul.f32.gmra.mxu0 %v579
      %v1078 = vpop.f32.mrf.mxu0
      %v1079 = vadd.f32 %v966, %v1078
      %1080 = vmatmul.f32.gmra.mxu0 %v586
      %v1081 = vpop.f32.mrf.mxu0
      %v1082 = vadd.f32 %v969, %v1081
      %1083 = vmatmul.f32.gmra.mxu0 %v593
      %v1084 = vpop.f32.mrf.mxu0
      %v1085 = vadd.f32 %v972, %v1084
      %1086 = vmatmul.f32.gmra.mxu0 %v600
      %v1087 = vpop.f32.mrf.mxu0
      %v1088 = vadd.f32 %v975, %v1087
      %1089 = vmatmul.f32.gmra.mxu0 %v607
      %v1090 = vpop.f32.mrf.mxu0
      %v1091 = vadd.f32 %v978, %v1090
      %1092 = vmatmul.f32.gmra.mxu0 %v614
      %v1093 = vpop.f32.mrf.mxu0
      %v1094 = vadd.f32 %v981, %v1093
      %1095 = vmatmul.f32.gmra.mxu0 %v621
      %v1096 = vpop.f32.mrf.mxu0
      %v1097 = vadd.f32 %v984, %v1096
      %1098 = vmatmul.f32.gmra.mxu0 %v628
      %v1099 = vpop.f32.mrf.mxu0
      %v1100 = vadd.f32 %v987, %v1099
      %1101 = vmatmul.f32.gmra.mxu0 %v635
      %v1102 = vpop.f32.mrf.mxu0
      %v1103 = vadd.f32 %v990, %v1102
      %1104 = vmatmul.f32.gmra.mxu0 %v642
      %v1105 = vpop.f32.mrf.mxu0
      %v1106 = vadd.f32 %v993, %v1105
      %1107 = vmatmul.f32.gmra.mxu0 %v649
      %v1108 = vpop.f32.mrf.mxu0
      %v1109 = vadd.f32 %v996, %v1108
      %1110 = vdwg.mxu0
      %1111 = vmatpush.msra.mxu0 %v749
      %1112 = vmatpush.msra.mxu0 %v747
      %1113 = vmatpush.msra.mxu0 %v745
      %1114 = vmatpush.msra.mxu0 %v743
      %1115 = vmatpush.msra.mxu0 %v741
      %1116 = vmatpush.msra.mxu0 %v739
      %1117 = vmatpush.msra.mxu0 %v737
      %1118 = vmatpush.msra.mxu0 %v735
      %1119 = vmatpush.msra.mxu0 %v733
      %1120 = vmatpush.msra.mxu0 %v731
      %1121 = vmatpush.msra.mxu0 %v729
      %1122 = vmatpush.msra.mxu0 %v727
      %1123 = vmatpush.msra.mxu0 %v725
      %1124 = vmatpush.msra.mxu0 %v723
      %1125 = vmatpush.msra.mxu0 %v721
      %1126 = vmatpush.msra.mxu0 %v719
      %1127 = vmatmul.f32.gmra.mxu0 %v433
      %v1128 = vpop.f32.mrf.mxu0
      %v1129 = vadd.f32 %v1016, %v1128
      %1130 = vmatmul.f32.gmra.mxu0 %v440
      %v1131 = vpop.f32.mrf.mxu0
      %v1132 = vadd.f32 %v1019, %v1131
      %1133 = vmatmul.f32.gmra.mxu0 %v447
      %v1134 = vpop.f32.mrf.mxu0
      %v1135 = vadd.f32 %v1022, %v1134
      %1136 = vmatmul.f32.gmra.mxu0 %v454
      %v1137 = vpop.f32.mrf.mxu0
      %v1138 = vadd.f32 %v1025, %v1137
      %1139 = vmatmul.f32.gmra.mxu0 %v461
      %v1140 = vpop.f32.mrf.mxu0
      %v1141 = vadd.f32 %v1028, %v1140
      %1142 = vmatmul.f32.gmra.mxu0 %v468
      %v1143 = vpop.f32.mrf.mxu0
      %v1144 = vadd.f32 %v1031, %v1143
      %1145 = vmatmul.f32.gmra.mxu0 %v475
      %v1146 = vpop.f32.mrf.mxu0
      %v1147 = vadd.f32 %v1034, %v1146
      %1148 = vmatmul.f32.gmra.mxu0 %v482
      %v1149 = vpop.f32.mrf.mxu0
      %v1150 = vadd.f32 %v1037, %v1149
      %1151 = vmatmul.f32.gmra.mxu0 %v489
      %v1152 = vpop.f32.mrf.mxu0
      %v1153 = vadd.f32 %v1040, %v1152
      %1154 = vmatmul.f32.gmra.mxu0 %v496
      %v1155 = vpop.f32.mrf.mxu0
      %v1156 = vadd.f32 %v1043, %v1155
      %1157 = vmatmul.f32.gmra.mxu0 %v503
      %v1158 = vpop.f32.mrf.mxu0
      %v1159 = vadd.f32 %v1046, %v1158
      %1160 = vmatmul.f32.gmra.mxu0 %v510
      %v1161 = vpop.f32.mrf.mxu0
      %v1162 = vadd.f32 %v1049, %v1161
      %1163 = vmatmul.f32.gmra.mxu0 %v517
      %v1164 = vpop.f32.mrf.mxu0
      %v1165 = vadd.f32 %v1052, %v1164
      %1166 = vmatmul.f32.gmra.mxu0 %v524
      %v1167 = vpop.f32.mrf.mxu0
      %v1168 = vadd.f32 %v1055, %v1167
      %1169 = vmatmul.f32.gmra.mxu0 %v531
      %v1170 = vpop.f32.mrf.mxu0
      %v1171 = vadd.f32 %v1058, %v1170
      %1172 = vmatmul.f32.gmra.mxu0 %v538
      %v1173 = vpop.f32.mrf.mxu0
      %v1174 = vadd.f32 %v1061, %v1173
      %1175 = vmatmul.f32.gmra.mxu0 %v545
      %v1176 = vpop.f32.mrf.mxu0
      %v1177 = vadd.f32 %v1064, %v1176
      %1178 = vmatmul.f32.gmra.mxu0 %v552
      %v1179 = vpop.f32.mrf.mxu0
      %v1180 = vadd.f32 %v1067, %v1179
      %1181 = vmatmul.f32.gmra.mxu0 %v559
      %v1182 = vpop.f32.mrf.mxu0
      %v1183 = vadd.f32 %v1070, %v1182
      %1184 = vmatmul.f32.gmra.mxu0 %v566
      %v1185 = vpop.f32.mrf.mxu0
      %v1186 = vadd.f32 %v1073, %v1185
      %1187 = vmatmul.f32.gmra.mxu0 %v573
      %v1188 = vpop.f32.mrf.mxu0
      %v1189 = vadd.f32 %v1076, %v1188
      %1190 = vmatmul.f32.gmra.mxu0 %v580
      %v1191 = vpop.f32.mrf.mxu0
      %v1192 = vadd.f32 %v1079, %v1191
      %1193 = vmatmul.f32.gmra.mxu0 %v587
      %v1194 = vpop.f32.mrf.mxu0
      %v1195 = vadd.f32 %v1082, %v1194
      %1196 = vmatmul.f32.gmra.mxu0 %v594
      %v1197 = vpop.f32.mrf.mxu0
      %v1198 = vadd.f32 %v1085, %v1197
      %1199 = vmatmul.f32.gmra.mxu0 %v601
      %v1200 = vpop.f32.mrf.mxu0
      %v1201 = vadd.f32 %v1088, %v1200
      %1202 = vmatmul.f32.gmra.mxu0 %v608
      %v1203 = vpop.f32.mrf.mxu0
      %v1204 = vadd.f32 %v1091, %v1203
      %1205 = vmatmul.f32.gmra.mxu0 %v615
      %v1206 = vpop.f32.mrf.mxu0
      %v1207 = vadd.f32 %v1094, %v1206
      %1208 = vmatmul.f32.gmra.mxu0 %v622
      %v1209 = vpop.f32.mrf.mxu0
      %v1210 = vadd.f32 %v1097, %v1209
      %1211 = vmatmul.f32.gmra.mxu0 %v629
      %v1212 = vpop.f32.mrf.mxu0
      %v1213 = vadd.f32 %v1100, %v1212
      %1214 = vmatmul.f32.gmra.mxu0 %v636
      %v1215 = vpop.f32.mrf.mxu0
      %v1216 = vadd.f32 %v1103, %v1215
      %1217 = vmatmul.f32.gmra.mxu0 %v643
      %v1218 = vpop.f32.mrf.mxu0
      %v1219 = vadd.f32 %v1106, %v1218
      %1220 = vmatmul.f32.gmra.mxu0 %v650
      %v1221 = vpop.f32.mrf.mxu0
      %v1222 = vadd.f32 %v1109, %v1221
      %1223 = vdwg.mxu0
      %1224 = vmatpush.msra.mxu0 %v781
      %1225 = vmatpush.msra.mxu0 %v779
      %1226 = vmatpush.msra.mxu0 %v777
      %1227 = vmatpush.msra.mxu0 %v775
      %1228 = vmatpush.msra.mxu0 %v773
      %1229 = vmatpush.msra.mxu0 %v771
      %1230 = vmatpush.msra.mxu0 %v769
      %1231 = vmatpush.msra.mxu0 %v767
      %1232 = vmatpush.msra.mxu0 %v765
      %1233 = vmatpush.msra.mxu0 %v763
      %1234 = vmatpush.msra.mxu0 %v761
      %1235 = vmatpush.msra.mxu0 %v759
      %1236 = vmatpush.msra.mxu0 %v757
      %1237 = vmatpush.msra.mxu0 %v755
      %1238 = vmatpush.msra.mxu0 %v753
      %1239 = vmatpush.msra.mxu0 %v751
      %1240 = vmatmul.f32.gmra.mxu0 %v434
      %v1241 = vpop.f32.mrf.mxu0
      %v1242 = vadd.f32 %v1129, %v1241
      %1243 = vmatmul.f32.gmra.mxu0 %v441
      %v1244 = vpop.f32.mrf.mxu0
      %v1245 = vadd.f32 %v1132, %v1244
      %1246 = vmatmul.f32.gmra.mxu0 %v448
      %v1247 = vpop.f32.mrf.mxu0
      %v1248 = vadd.f32 %v1135, %v1247
      %1249 = vmatmul.f32.gmra.mxu0 %v455
      %v1250 = vpop.f32.mrf.mxu0
      %v1251 = vadd.f32 %v1138, %v1250
      %1252 = vmatmul.f32.gmra.mxu0 %v462
      %v1253 = vpop.f32.mrf.mxu0
      %v1254 = vadd.f32 %v1141, %v1253
      %1255 = vmatmul.f32.gmra.mxu0 %v469
      %v1256 = vpop.f32.mrf.mxu0
      %v1257 = vadd.f32 %v1144, %v1256
      %1258 = vmatmul.f32.gmra.mxu0 %v476
      %v1259 = vpop.f32.mrf.mxu0
      %v1260 = vadd.f32 %v1147, %v1259
      %1261 = vmatmul.f32.gmra.mxu0 %v483
      %v1262 = vpop.f32.mrf.mxu0
      %v1263 = vadd.f32 %v1150, %v1262
      %1264 = vmatmul.f32.gmra.mxu0 %v490
      %v1265 = vpop.f32.mrf.mxu0
      %v1266 = vadd.f32 %v1153, %v1265
      %1267 = vmatmul.f32.gmra.mxu0 %v497
      %v1268 = vpop.f32.mrf.mxu0
      %v1269 = vadd.f32 %v1156, %v1268
      %1270 = vmatmul.f32.gmra.mxu0 %v504
      %v1271 = vpop.f32.mrf.mxu0
      %v1272 = vadd.f32 %v1159, %v1271
      %1273 = vmatmul.f32.gmra.mxu0 %v511
      %v1274 = vpop.f32.mrf.mxu0
      %v1275 = vadd.f32 %v1162, %v1274
      %1276 = vmatmul.f32.gmra.mxu0 %v518
      %v1277 = vpop.f32.mrf.mxu0
      %v1278 = vadd.f32 %v1165, %v1277
      %1279 = vmatmul.f32.gmra.mxu0 %v525
      %v1280 = vpop.f32.mrf.mxu0
      %v1281 = vadd.f32 %v1168, %v1280
      %1282 = vmatmul.f32.gmra.mxu0 %v532
      %v1283 = vpop.f32.mrf.mxu0
      %v1284 = vadd.f32 %v1171, %v1283
      %1285 = vmatmul.f32.gmra.mxu0 %v539
      %v1286 = vpop.f32.mrf.mxu0
      %v1287 = vadd.f32 %v1174, %v1286
      %1288 = vmatmul.f32.gmra.mxu0 %v546
      %v1289 = vpop.f32.mrf.mxu0
      %v1290 = vadd.f32 %v1177, %v1289
      %1291 = vmatmul.f32.gmra.mxu0 %v553
      %v1292 = vpop.f32.mrf.mxu0
      %v1293 = vadd.f32 %v1180, %v1292
      %1294 = vmatmul.f32.gmra.mxu0 %v560
      %v1295 = vpop.f32.mrf.mxu0
      %v1296 = vadd.f32 %v1183, %v1295
      %1297 = vmatmul.f32.gmra.mxu0 %v567
      %v1298 = vpop.f32.mrf.mxu0
      %v1299 = vadd.f32 %v1186, %v1298
      %1300 = vmatmul.f32.gmra.mxu0 %v574
      %v1301 = vpop.f32.mrf.mxu0
      %v1302 = vadd.f32 %v1189, %v1301
      %1303 = vmatmul.f32.gmra.mxu0 %v581
      %v1304 = vpop.f32.mrf.mxu0
      %v1305 = vadd.f32 %v1192, %v1304
      %1306 = vmatmul.f32.gmra.mxu0 %v588
      %v1307 = vpop.f32.mrf.mxu0
      %v1308 = vadd.f32 %v1195, %v1307
      %1309 = vmatmul.f32.gmra.mxu0 %v595
      %v1310 = vpop.f32.mrf.mxu0
      %v1311 = vadd.f32 %v1198, %v1310
      %1312 = vmatmul.f32.gmra.mxu0 %v602
      %v1313 = vpop.f32.mrf.mxu0
      %v1314 = vadd.f32 %v1201, %v1313
      %1315 = vmatmul.f32.gmra.mxu0 %v609
      %v1316 = vpop.f32.mrf.mxu0
      %v1317 = vadd.f32 %v1204, %v1316
      %1318 = vmatmul.f32.gmra.mxu0 %v616
      %v1319 = vpop.f32.mrf.mxu0
      %v1320 = vadd.f32 %v1207, %v1319
      %1321 = vmatmul.f32.gmra.mxu0 %v623
      %v1322 = vpop.f32.mrf.mxu0
      %v1323 = vadd.f32 %v1210, %v1322
      %1324 = vmatmul.f32.gmra.mxu0 %v630
      %v1325 = vpop.f32.mrf.mxu0
      %v1326 = vadd.f32 %v1213, %v1325
      %1327 = vmatmul.f32.gmra.mxu0 %v637
      %v1328 = vpop.f32.mrf.mxu0
      %v1329 = vadd.f32 %v1216, %v1328
      %1330 = vmatmul.f32.gmra.mxu0 %v644
      %v1331 = vpop.f32.mrf.mxu0
      %v1332 = vadd.f32 %v1219, %v1331
      %1333 = vmatmul.f32.gmra.mxu0 %v651
      %v1334 = vpop.f32.mrf.mxu0
      %v1335 = vadd.f32 %v1222, %v1334
      %1336 = vdwg.mxu0
      %1337 = vmatpush.msra.mxu0 %v813
      %1338 = vmatpush.msra.mxu0 %v811
      %1339 = vmatpush.msra.mxu0 %v809
      %1340 = vmatpush.msra.mxu0 %v807
      %1341 = vmatpush.msra.mxu0 %v805
      %1342 = vmatpush.msra.mxu0 %v803
      %1343 = vmatpush.msra.mxu0 %v801
      %1344 = vmatpush.msra.mxu0 %v799
      %1345 = vmatpush.msra.mxu0 %v797
      %1346 = vmatpush.msra.mxu0 %v795
      %1347 = vmatpush.msra.mxu0 %v793
      %1348 = vmatpush.msra.mxu0 %v791
      %1349 = vmatpush.msra.mxu0 %v789
      %1350 = vmatpush.msra.mxu0 %v787
      %1351 = vmatpush.msra.mxu0 %v785
      %1352 = vmatpush.msra.mxu0 %v783
      %1353 = vmatmul.f32.gmra.mxu0 %v435
      %v1354 = vpop.f32.mrf.mxu0
      %v1355 = vadd.f32 %v1242, %v1354
      %1356 = vmatmul.f32.gmra.mxu0 %v442
      %v1357 = vpop.f32.mrf.mxu0
      %v1358 = vadd.f32 %v1245, %v1357
      %1359 = vmatmul.f32.gmra.mxu0 %v449
      %v1360 = vpop.f32.mrf.mxu0
      %v1361 = vadd.f32 %v1248, %v1360
      %1362 = vmatmul.f32.gmra.mxu0 %v456
      %v1363 = vpop.f32.mrf.mxu0
      %v1364 = vadd.f32 %v1251, %v1363
      %1365 = vmatmul.f32.gmra.mxu0 %v463
      %v1366 = vpop.f32.mrf.mxu0
      %v1367 = vadd.f32 %v1254, %v1366
      %1368 = vmatmul.f32.gmra.mxu0 %v470
      %v1369 = vpop.f32.mrf.mxu0
      %v1370 = vadd.f32 %v1257, %v1369
      %1371 = vmatmul.f32.gmra.mxu0 %v477
      %v1372 = vpop.f32.mrf.mxu0
      %v1373 = vadd.f32 %v1260, %v1372
      %1374 = vmatmul.f32.gmra.mxu0 %v484
      %v1375 = vpop.f32.mrf.mxu0
      %v1376 = vadd.f32 %v1263, %v1375
      %1377 = vmatmul.f32.gmra.mxu0 %v491
      %v1378 = vpop.f32.mrf.mxu0
      %v1379 = vadd.f32 %v1266, %v1378
      %1380 = vmatmul.f32.gmra.mxu0 %v498
      %v1381 = vpop.f32.mrf.mxu0
      %v1382 = vadd.f32 %v1269, %v1381
      %1383 = vmatmul.f32.gmra.mxu0 %v505
      %v1384 = vpop.f32.mrf.mxu0
      %v1385 = vadd.f32 %v1272, %v1384
      %1386 = vmatmul.f32.gmra.mxu0 %v512
      %v1387 = vpop.f32.mrf.mxu0
      %v1388 = vadd.f32 %v1275, %v1387
      %1389 = vmatmul.f32.gmra.mxu0 %v519
      %v1390 = vpop.f32.mrf.mxu0
      %v1391 = vadd.f32 %v1278, %v1390
      %1392 = vmatmul.f32.gmra.mxu0 %v526
      %v1393 = vpop.f32.mrf.mxu0
      %v1394 = vadd.f32 %v1281, %v1393
      %1395 = vmatmul.f32.gmra.mxu0 %v533
      %v1396 = vpop.f32.mrf.mxu0
      %v1397 = vadd.f32 %v1284, %v1396
      %1398 = vmatmul.f32.gmra.mxu0 %v540
      %v1399 = vpop.f32.mrf.mxu0
      %v1400 = vadd.f32 %v1287, %v1399
      %1401 = vmatmul.f32.gmra.mxu0 %v547
      %v1402 = vpop.f32.mrf.mxu0
      %v1403 = vadd.f32 %v1290, %v1402
      %1404 = vmatmul.f32.gmra.mxu0 %v554
      %v1405 = vpop.f32.mrf.mxu0
      %v1406 = vadd.f32 %v1293, %v1405
      %1407 = vmatmul.f32.gmra.mxu0 %v561
      %v1408 = vpop.f32.mrf.mxu0
      %v1409 = vadd.f32 %v1296, %v1408
      %1410 = vmatmul.f32.gmra.mxu0 %v568
      %v1411 = vpop.f32.mrf.mxu0
      %v1412 = vadd.f32 %v1299, %v1411
      %1413 = vmatmul.f32.gmra.mxu0 %v575
      %v1414 = vpop.f32.mrf.mxu0
      %v1415 = vadd.f32 %v1302, %v1414
      %1416 = vmatmul.f32.gmra.mxu0 %v582
      %v1417 = vpop.f32.mrf.mxu0
      %v1418 = vadd.f32 %v1305, %v1417
      %1419 = vmatmul.f32.gmra.mxu0 %v589
      %v1420 = vpop.f32.mrf.mxu0
      %v1421 = vadd.f32 %v1308, %v1420
      %1422 = vmatmul.f32.gmra.mxu0 %v596
      %v1423 = vpop.f32.mrf.mxu0
      %v1424 = vadd.f32 %v1311, %v1423
      %1425 = vmatmul.f32.gmra.mxu0 %v603
      %v1426 = vpop.f32.mrf.mxu0
      %v1427 = vadd.f32 %v1314, %v1426
      %1428 = vmatmul.f32.gmra.mxu0 %v610
      %v1429 = vpop.f32.mrf.mxu0
      %v1430 = vadd.f32 %v1317, %v1429
      %1431 = vmatmul.f32.gmra.mxu0 %v617
      %v1432 = vpop.f32.mrf.mxu0
      %v1433 = vadd.f32 %v1320, %v1432
      %1434 = vmatmul.f32.gmra.mxu0 %v624
      %v1435 = vpop.f32.mrf.mxu0
      %v1436 = vadd.f32 %v1323, %v1435
      %1437 = vmatmul.f32.gmra.mxu0 %v631
      %v1438 = vpop.f32.mrf.mxu0
      %v1439 = vadd.f32 %v1326, %v1438
      %1440 = vmatmul.f32.gmra.mxu0 %v638
      %v1441 = vpop.f32.mrf.mxu0
      %v1442 = vadd.f32 %v1329, %v1441
      %1443 = vmatmul.f32.gmra.mxu0 %v645
      %v1444 = vpop.f32.mrf.mxu0
      %v1445 = vadd.f32 %v1332, %v1444
      %1446 = vmatmul.f32.gmra.mxu0 %v652
      %v1447 = vpop.f32.mrf.mxu0
      %v1448 = vadd.f32 %v1335, %v1447
      %1449 = vdwg.mxu0
      %1450 = vmatpush.msra.mxu0 %v845
      %1451 = vmatpush.msra.mxu0 %v843
      %1452 = vmatpush.msra.mxu0 %v841
      %1453 = vmatpush.msra.mxu0 %v839
      %1454 = vmatpush.msra.mxu0 %v837
      %1455 = vmatpush.msra.mxu0 %v835
      %1456 = vmatpush.msra.mxu0 %v833
      %1457 = vmatpush.msra.mxu0 %v831
      %1458 = vmatpush.msra.mxu0 %v829
      %1459 = vmatpush.msra.mxu0 %v827
      %1460 = vmatpush.msra.mxu0 %v825
      %1461 = vmatpush.msra.mxu0 %v823
      %1462 = vmatpush.msra.mxu0 %v821
      %1463 = vmatpush.msra.mxu0 %v819
      %1464 = vmatpush.msra.mxu0 %v817
      %1465 = vmatpush.msra.mxu0 %v815
      %1466 = vmatmul.f32.gmra.mxu0 %v436
      %v1467 = vpop.f32.mrf.mxu0
      %v1468 = vadd.f32 %v1355, %v1467
      %1469 = vmatmul.f32.gmra.mxu0 %v443
      %v1470 = vpop.f32.mrf.mxu0
      %v1471 = vadd.f32 %v1358, %v1470
      %1472 = vmatmul.f32.gmra.mxu0 %v450
      %v1473 = vpop.f32.mrf.mxu0
      %v1474 = vadd.f32 %v1361, %v1473
      %1475 = vmatmul.f32.gmra.mxu0 %v457
      %v1476 = vpop.f32.mrf.mxu0
      %v1477 = vadd.f32 %v1364, %v1476
      %1478 = vmatmul.f32.gmra.mxu0 %v464
      %v1479 = vpop.f32.mrf.mxu0
      %v1480 = vadd.f32 %v1367, %v1479
      %1481 = vmatmul.f32.gmra.mxu0 %v471
      %v1482 = vpop.f32.mrf.mxu0
      %v1483 = vadd.f32 %v1370, %v1482
      %1484 = vmatmul.f32.gmra.mxu0 %v478
      %v1485 = vpop.f32.mrf.mxu0
      %v1486 = vadd.f32 %v1373, %v1485
      %1487 = vmatmul.f32.gmra.mxu0 %v485
      %v1488 = vpop.f32.mrf.mxu0
      %v1489 = vadd.f32 %v1376, %v1488
      %1490 = vmatmul.f32.gmra.mxu0 %v492
      %v1491 = vpop.f32.mrf.mxu0
      %v1492 = vadd.f32 %v1379, %v1491
      %1493 = vmatmul.f32.gmra.mxu0 %v499
      %v1494 = vpop.f32.mrf.mxu0
      %v1495 = vadd.f32 %v1382, %v1494
      %1496 = vmatmul.f32.gmra.mxu0 %v506
      %v1497 = vpop.f32.mrf.mxu0
      %v1498 = vadd.f32 %v1385, %v1497
      %1499 = vmatmul.f32.gmra.mxu0 %v513
      %v1500 = vpop.f32.mrf.mxu0
      %v1501 = vadd.f32 %v1388, %v1500
      %1502 = vmatmul.f32.gmra.mxu0 %v520
      %v1503 = vpop.f32.mrf.mxu0
      %v1504 = vadd.f32 %v1391, %v1503
      %1505 = vmatmul.f32.gmra.mxu0 %v527
      %v1506 = vpop.f32.mrf.mxu0
      %v1507 = vadd.f32 %v1394, %v1506
      %1508 = vmatmul.f32.gmra.mxu0 %v534
      %v1509 = vpop.f32.mrf.mxu0
      %v1510 = vadd.f32 %v1397, %v1509
      %1511 = vmatmul.f32.gmra.mxu0 %v541
      %v1512 = vpop.f32.mrf.mxu0
      %v1513 = vadd.f32 %v1400, %v1512
      %1514 = vmatmul.f32.gmra.mxu0 %v548
      %v1515 = vpop.f32.mrf.mxu0
      %v1516 = vadd.f32 %v1403, %v1515
      %1517 = vmatmul.f32.gmra.mxu0 %v555
      %v1518 = vpop.f32.mrf.mxu0
      %v1519 = vadd.f32 %v1406, %v1518
      %1520 = vmatmul.f32.gmra.mxu0 %v562
      %v1521 = vpop.f32.mrf.mxu0
      %v1522 = vadd.f32 %v1409, %v1521
      %1523 = vmatmul.f32.gmra.mxu0 %v569
      %v1524 = vpop.f32.mrf.mxu0
      %v1525 = vadd.f32 %v1412, %v1524
      %1526 = vmatmul.f32.gmra.mxu0 %v576
      %v1527 = vpop.f32.mrf.mxu0
      %v1528 = vadd.f32 %v1415, %v1527
      %1529 = vmatmul.f32.gmra.mxu0 %v583
      %v1530 = vpop.f32.mrf.mxu0
      %v1531 = vadd.f32 %v1418, %v1530
      %1532 = vmatmul.f32.gmra.mxu0 %v590
      %v1533 = vpop.f32.mrf.mxu0
      %v1534 = vadd.f32 %v1421, %v1533
      %1535 = vmatmul.f32.gmra.mxu0 %v597
      %v1536 = vpop.f32.mrf.mxu0
      %v1537 = vadd.f32 %v1424, %v1536
      %1538 = vmatmul.f32.gmra.mxu0 %v604
      %v1539 = vpop.f32.mrf.mxu0
      %v1540 = vadd.f32 %v1427, %v1539
      %1541 = vmatmul.f32.gmra.mxu0 %v611
      %v1542 = vpop.f32.mrf.mxu0
      %v1543 = vadd.f32 %v1430, %v1542
      %1544 = vmatmul.f32.gmra.mxu0 %v618
      %v1545 = vpop.f32.mrf.mxu0
      %v1546 = vadd.f32 %v1433, %v1545
      %1547 = vmatmul.f32.gmra.mxu0 %v625
      %v1548 = vpop.f32.mrf.mxu0
      %v1549 = vadd.f32 %v1436, %v1548
      %1550 = vmatmul.f32.gmra.mxu0 %v632
      %v1551 = vpop.f32.mrf.mxu0
      %v1552 = vadd.f32 %v1439, %v1551
      %1553 = vmatmul.f32.gmra.mxu0 %v639
      %v1554 = vpop.f32.mrf.mxu0
      %v1555 = vadd.f32 %v1442, %v1554
      %1556 = vmatmul.f32.gmra.mxu0 %v646
      %v1557 = vpop.f32.mrf.mxu0
      %v1558 = vadd.f32 %v1445, %v1557
      %1559 = vmatmul.f32.gmra.mxu0 %v653
      %v1560 = vpop.f32.mrf.mxu0
      %v1561 = vadd.f32 %v1448, %v1560
      %1562 = vdwg.mxu0
      %1563 = vmatpush.msra.mxu0 %v877
      %1564 = vmatpush.msra.mxu0 %v875
      %1565 = vmatpush.msra.mxu0 %v873
      %1566 = vmatpush.msra.mxu0 %v871
      %1567 = vmatpush.msra.mxu0 %v869
      %1568 = vmatpush.msra.mxu0 %v867
      %1569 = vmatpush.msra.mxu0 %v865
      %1570 = vmatpush.msra.mxu0 %v863
      %1571 = vmatpush.msra.mxu0 %v861
      %1572 = vmatpush.msra.mxu0 %v859
      %1573 = vmatpush.msra.mxu0 %v857
      %1574 = vmatpush.msra.mxu0 %v855
      %1575 = vmatpush.msra.mxu0 %v853
      %1576 = vmatpush.msra.mxu0 %v851
      %1577 = vmatpush.msra.mxu0 %v849
      %1578 = vmatpush.msra.mxu0 %v847
      %1579 = vmatmul.f32.gmra.mxu0 %v437
      %v1580 = vpop.f32.mrf.mxu0
      %v1581 = vadd.f32 %v1468, %v1580
      %1582 = vmatmul.f32.gmra.mxu0 %v444
      %v1583 = vpop.f32.mrf.mxu0
      %v1584 = vadd.f32 %v1471, %v1583
      %1585 = vmatmul.f32.gmra.mxu0 %v451
      %v1586 = vpop.f32.mrf.mxu0
      %v1587 = vadd.f32 %v1474, %v1586
      %1588 = vmatmul.f32.gmra.mxu0 %v458
      %v1589 = vpop.f32.mrf.mxu0
      %v1590 = vadd.f32 %v1477, %v1589
      %1591 = vmatmul.f32.gmra.mxu0 %v465
      %v1592 = vpop.f32.mrf.mxu0
      %v1593 = vadd.f32 %v1480, %v1592
      %1594 = vmatmul.f32.gmra.mxu0 %v472
      %v1595 = vpop.f32.mrf.mxu0
      %v1596 = vadd.f32 %v1483, %v1595
      %1597 = vmatmul.f32.gmra.mxu0 %v479
      %v1598 = vpop.f32.mrf.mxu0
      %v1599 = vadd.f32 %v1486, %v1598
      %1600 = vmatmul.f32.gmra.mxu0 %v486
      %v1601 = vpop.f32.mrf.mxu0
      %v1602 = vadd.f32 %v1489, %v1601
      %1603 = vmatmul.f32.gmra.mxu0 %v493
      %v1604 = vpop.f32.mrf.mxu0
      %v1605 = vadd.f32 %v1492, %v1604
      %1606 = vmatmul.f32.gmra.mxu0 %v500
      %v1607 = vpop.f32.mrf.mxu0
      %v1608 = vadd.f32 %v1495, %v1607
      %1609 = vmatmul.f32.gmra.mxu0 %v507
      %v1610 = vpop.f32.mrf.mxu0
      %v1611 = vadd.f32 %v1498, %v1610
      %1612 = vmatmul.f32.gmra.mxu0 %v514
      %v1613 = vpop.f32.mrf.mxu0
      %v1614 = vadd.f32 %v1501, %v1613
      %1615 = vmatmul.f32.gmra.mxu0 %v521
      %v1616 = vpop.f32.mrf.mxu0
      %v1617 = vadd.f32 %v1504, %v1616
      %1618 = vmatmul.f32.gmra.mxu0 %v528
      %v1619 = vpop.f32.mrf.mxu0
      %v1620 = vadd.f32 %v1507, %v1619
      %1621 = vmatmul.f32.gmra.mxu0 %v535
      %v1622 = vpop.f32.mrf.mxu0
      %v1623 = vadd.f32 %v1510, %v1622
      %1624 = vmatmul.f32.gmra.mxu0 %v542
      %v1625 = vpop.f32.mrf.mxu0
      %v1626 = vadd.f32 %v1513, %v1625
      %1627 = vmatmul.f32.gmra.mxu0 %v549
      %v1628 = vpop.f32.mrf.mxu0
      %v1629 = vadd.f32 %v1516, %v1628
      %1630 = vmatmul.f32.gmra.mxu0 %v556
      %v1631 = vpop.f32.mrf.mxu0
      %v1632 = vadd.f32 %v1519, %v1631
      %1633 = vmatmul.f32.gmra.mxu0 %v563
      %v1634 = vpop.f32.mrf.mxu0
      %v1635 = vadd.f32 %v1522, %v1634
      %1636 = vmatmul.f32.gmra.mxu0 %v570
      %v1637 = vpop.f32.mrf.mxu0
      %v1638 = vadd.f32 %v1525, %v1637
      %1639 = vmatmul.f32.gmra.mxu0 %v577
      %v1640 = vpop.f32.mrf.mxu0
      %v1641 = vadd.f32 %v1528, %v1640
      %1642 = vmatmul.f32.gmra.mxu0 %v584
      %v1643 = vpop.f32.mrf.mxu0
      %v1644 = vadd.f32 %v1531, %v1643
      %1645 = vmatmul.f32.gmra.mxu0 %v591
      %v1646 = vpop.f32.mrf.mxu0
      %v1647 = vadd.f32 %v1534, %v1646
      %1648 = vmatmul.f32.gmra.mxu0 %v598
      %v1649 = vpop.f32.mrf.mxu0
      %v1650 = vadd.f32 %v1537, %v1649
      %1651 = vmatmul.f32.gmra.mxu0 %v605
      %v1652 = vpop.f32.mrf.mxu0
      %v1653 = vadd.f32 %v1540, %v1652
      %1654 = vmatmul.f32.gmra.mxu0 %v612
      %v1655 = vpop.f32.mrf.mxu0
      %v1656 = vadd.f32 %v1543, %v1655
      %1657 = vmatmul.f32.gmra.mxu0 %v619
      %v1658 = vpop.f32.mrf.mxu0
      %v1659 = vadd.f32 %v1546, %v1658
      %1660 = vmatmul.f32.gmra.mxu0 %v626
      %v1661 = vpop.f32.mrf.mxu0
      %v1662 = vadd.f32 %v1549, %v1661
      %1663 = vmatmul.f32.gmra.mxu0 %v633
      %v1664 = vpop.f32.mrf.mxu0
      %v1665 = vadd.f32 %v1552, %v1664
      %1666 = vmatmul.f32.gmra.mxu0 %v640
      %v1667 = vpop.f32.mrf.mxu0
      %v1668 = vadd.f32 %v1555, %v1667
      %1669 = vmatmul.f32.gmra.mxu0 %v647
      %v1670 = vpop.f32.mrf.mxu0
      %v1671 = vadd.f32 %v1558, %v1670
      %1672 = vmatmul.f32.gmra.mxu0 %v654
      %v1673 = vpop.f32.mrf.mxu0
      %v1674 = vadd.f32 %v1561, %v1673
      %1675 = vdwg.mxu0
      %1676 = vmatpush.msra.mxu0 %v686
      %1677 = vmatpush.msra.mxu0 %v684
      %1678 = vmatpush.msra.mxu0 %v682
      %1679 = vmatpush.msra.mxu0 %v680
      %1680 = vmatpush.msra.mxu0 %v678
      %1681 = vmatpush.msra.mxu0 %v676
      %1682 = vmatpush.msra.mxu0 %v674
      %1683 = vmatpush.msra.mxu0 %v672
      %1684 = vmatpush.msra.mxu0 %v670
      %1685 = vmatpush.msra.mxu0 %v668
      %1686 = vmatpush.msra.mxu0 %v666
      %1687 = vmatpush.msra.mxu0 %v664
      %1688 = vmatpush.msra.mxu0 %v662
      %1689 = vmatpush.msra.mxu0 %v660
      %1690 = vmatpush.msra.mxu0 %v658
      %1691 = vmatpush.msra.mxu0 %v656
      %1692 = vmatmul.f32.gmra.mxu0 %v431
      %v1693 = vpop.f32.mrf.mxu0
      %v1694 = vadd.f32 %v882, %v1693
      %1695 = vmatmul.f32.gmra.mxu0 %v438
      %v1696 = vpop.f32.mrf.mxu0
      %v1697 = vadd.f32 %v882, %v1696
      %1698 = vmatmul.f32.gmra.mxu0 %v445
      %v1699 = vpop.f32.mrf.mxu0
      %v1700 = vadd.f32 %v882, %v1699
      %1701 = vmatmul.f32.gmra.mxu0 %v452
      %v1702 = vpop.f32.mrf.mxu0
      %v1703 = vadd.f32 %v882, %v1702
      %1704 = vmatmul.f32.gmra.mxu0 %v459
      %v1705 = vpop.f32.mrf.mxu0
      %v1706 = vadd.f32 %v882, %v1705
      %1707 = vmatmul.f32.gmra.mxu0 %v466
      %v1708 = vpop.f32.mrf.mxu0
      %v1709 = vadd.f32 %v882, %v1708
      %1710 = vmatmul.f32.gmra.mxu0 %v473
      %v1711 = vpop.f32.mrf.mxu0
      %v1712 = vadd.f32 %v882, %v1711
      %1713 = vmatmul.f32.gmra.mxu0 %v480
      %v1714 = vpop.f32.mrf.mxu0
      %v1715 = vadd.f32 %v882, %v1714
      %1716 = vmatmul.f32.gmra.mxu0 %v487
      %v1717 = vpop.f32.mrf.mxu0
      %v1718 = vadd.f32 %v882, %v1717
      %1719 = vmatmul.f32.gmra.mxu0 %v494
      %v1720 = vpop.f32.mrf.mxu0
      %v1721 = vadd.f32 %v882, %v1720
      %1722 = vmatmul.f32.gmra.mxu0 %v501
      %v1723 = vpop.f32.mrf.mxu0
      %v1724 = vadd.f32 %v882, %v1723
      %1725 = vmatmul.f32.gmra.mxu0 %v508
      %v1726 = vpop.f32.mrf.mxu0
      %v1727 = vadd.f32 %v882, %v1726
      %1728 = vmatmul.f32.gmra.mxu0 %v515
      %v1729 = vpop.f32.mrf.mxu0
      %v1730 = vadd.f32 %v882, %v1729
      %1731 = vmatmul.f32.gmra.mxu0 %v522
      %v1732 = vpop.f32.mrf.mxu0
      %v1733 = vadd.f32 %v882, %v1732
      %1734 = vmatmul.f32.gmra.mxu0 %v529
      %v1735 = vpop.f32.mrf.mxu0
      %v1736 = vadd.f32 %v882, %v1735
      %1737 = vmatmul.f32.gmra.mxu0 %v536
      %v1738 = vpop.f32.mrf.mxu0
      %v1739 = vadd.f32 %v882, %v1738
      %1740 = vmatmul.f32.gmra.mxu0 %v543
      %v1741 = vpop.f32.mrf.mxu0
      %v1742 = vadd.f32 %v882, %v1741
      %1743 = vmatmul.f32.gmra.mxu0 %v550
      %v1744 = vpop.f32.mrf.mxu0
      %v1745 = vadd.f32 %v882, %v1744
      %1746 = vmatmul.f32.gmra.mxu0 %v557
      %v1747 = vpop.f32.mrf.mxu0
      %v1748 = vadd.f32 %v882, %v1747
      %1749 = vmatmul.f32.gmra.mxu0 %v564
      %v1750 = vpop.f32.mrf.mxu0
      %v1751 = vadd.f32 %v882, %v1750
      %1752 = vmatmul.f32.gmra.mxu0 %v571
      %v1753 = vpop.f32.mrf.mxu0
      %v1754 = vadd.f32 %v882, %v1753
      %1755 = vmatmul.f32.gmra.mxu0 %v578
      %v1756 = vpop.f32.mrf.mxu0
      %v1757 = vadd.f32 %v882, %v1756
      %1758 = vmatmul.f32.gmra.mxu0 %v585
      %v1759 = vpop.f32.mrf.mxu0
      %v1760 = vadd.f32 %v882, %v1759
      %1761 = vmatmul.f32.gmra.mxu0 %v592
      %v1762 = vpop.f32.mrf.mxu0
      %v1763 = vadd.f32 %v882, %v1762
      %1764 = vmatmul.f32.gmra.mxu0 %v599
      %v1765 = vpop.f32.mrf.mxu0
      %v1766 = vadd.f32 %v882, %v1765
      %1767 = vmatmul.f32.gmra.mxu0 %v606
      %v1768 = vpop.f32.mrf.mxu0
      %v1769 = vadd.f32 %v882, %v1768
      %1770 = vmatmul.f32.gmra.mxu0 %v613
      %v1771 = vpop.f32.mrf.mxu0
      %v1772 = vadd.f32 %v882, %v1771
      %1773 = vmatmul.f32.gmra.mxu0 %v620
      %v1774 = vpop.f32.mrf.mxu0
      %v1775 = vadd.f32 %v882, %v1774
      %1776 = vmatmul.f32.gmra.mxu0 %v627
      %v1777 = vpop.f32.mrf.mxu0
      %v1778 = vadd.f32 %v882, %v1777
      %1779 = vmatmul.f32.gmra.mxu0 %v634
      %v1780 = vpop.f32.mrf.mxu0
      %v1781 = vadd.f32 %v882, %v1780
      %1782 = vmatmul.f32.gmra.mxu0 %v641
      %v1783 = vpop.f32.mrf.mxu0
      %v1784 = vadd.f32 %v882, %v1783
      %1785 = vmatmul.f32.gmra.mxu0 %v648
      %v1786 = vpop.f32.mrf.mxu0
      %v1787 = vadd.f32 %v882, %v1786
      %1788 = vdwg.mxu0
      %1789 = vmatpush.msra.mxu0 %v718
      %1790 = vmatpush.msra.mxu0 %v716
      %1791 = vmatpush.msra.mxu0 %v714
      %1792 = vmatpush.msra.mxu0 %v712
      %1793 = vmatpush.msra.mxu0 %v710
      %1794 = vmatpush.msra.mxu0 %v708
      %1795 = vmatpush.msra.mxu0 %v706
      %1796 = vmatpush.msra.mxu0 %v704
      %1797 = vmatpush.msra.mxu0 %v702
      %1798 = vmatpush.msra.mxu0 %v700
      %1799 = vmatpush.msra.mxu0 %v698
      %1800 = vmatpush.msra.mxu0 %v696
      %1801 = vmatpush.msra.mxu0 %v694
      %1802 = vmatpush.msra.mxu0 %v692
      %1803 = vmatpush.msra.mxu0 %v690
      %1804 = vmatpush.msra.mxu0 %v688
      %1805 = vmatmul.f32.gmra.mxu0 %v432
      %v1806 = vpop.f32.mrf.mxu0
      %v1807 = vadd.f32 %v1694, %v1806
      %1808 = vmatmul.f32.gmra.mxu0 %v439
      %v1809 = vpop.f32.mrf.mxu0
      %v1810 = vadd.f32 %v1697, %v1809
      %1811 = vmatmul.f32.gmra.mxu0 %v446
      %v1812 = vpop.f32.mrf.mxu0
      %v1813 = vadd.f32 %v1700, %v1812
      %1814 = vmatmul.f32.gmra.mxu0 %v453
      %v1815 = vpop.f32.mrf.mxu0
      %v1816 = vadd.f32 %v1703, %v1815
      %1817 = vmatmul.f32.gmra.mxu0 %v460
      %v1818 = vpop.f32.mrf.mxu0
      %v1819 = vadd.f32 %v1706, %v1818
      %1820 = vmatmul.f32.gmra.mxu0 %v467
      %v1821 = vpop.f32.mrf.mxu0
      %v1822 = vadd.f32 %v1709, %v1821
      %1823 = vmatmul.f32.gmra.mxu0 %v474
      %v1824 = vpop.f32.mrf.mxu0
      %v1825 = vadd.f32 %v1712, %v1824
      %1826 = vmatmul.f32.gmra.mxu0 %v481
      %v1827 = vpop.f32.mrf.mxu0
      %v1828 = vadd.f32 %v1715, %v1827
      %1829 = vmatmul.f32.gmra.mxu0 %v488
      %v1830 = vpop.f32.mrf.mxu0
      %v1831 = vadd.f32 %v1718, %v1830
      %1832 = vmatmul.f32.gmra.mxu0 %v495
      %v1833 = vpop.f32.mrf.mxu0
      %v1834 = vadd.f32 %v1721, %v1833
      %1835 = vmatmul.f32.gmra.mxu0 %v502
      %v1836 = vpop.f32.mrf.mxu0
      %v1837 = vadd.f32 %v1724, %v1836
      %1838 = vmatmul.f32.gmra.mxu0 %v509
      %v1839 = vpop.f32.mrf.mxu0
      %v1840 = vadd.f32 %v1727, %v1839
      %1841 = vmatmul.f32.gmra.mxu0 %v516
      %v1842 = vpop.f32.mrf.mxu0
      %v1843 = vadd.f32 %v1730, %v1842
      %1844 = vmatmul.f32.gmra.mxu0 %v523
      %v1845 = vpop.f32.mrf.mxu0
      %v1846 = vadd.f32 %v1733, %v1845
      %1847 = vmatmul.f32.gmra.mxu0 %v530
      %v1848 = vpop.f32.mrf.mxu0
      %v1849 = vadd.f32 %v1736, %v1848
      %1850 = vmatmul.f32.gmra.mxu0 %v537
      %v1851 = vpop.f32.mrf.mxu0
      %v1852 = vadd.f32 %v1739, %v1851
      %1853 = vmatmul.f32.gmra.mxu0 %v544
      %v1854 = vpop.f32.mrf.mxu0
      %v1855 = vadd.f32 %v1742, %v1854
      %1856 = vmatmul.f32.gmra.mxu0 %v551
      %v1857 = vpop.f32.mrf.mxu0
      %v1858 = vadd.f32 %v1745, %v1857
      %1859 = vmatmul.f32.gmra.mxu0 %v558
      %v1860 = vpop.f32.mrf.mxu0
      %v1861 = vadd.f32 %v1748, %v1860
      %1862 = vmatmul.f32.gmra.mxu0 %v565
      %v1863 = vpop.f32.mrf.mxu0
      %v1864 = vadd.f32 %v1751, %v1863
      %1865 = vmatmul.f32.gmra.mxu0 %v572
      %v1866 = vpop.f32.mrf.mxu0
      %v1867 = vadd.f32 %v1754, %v1866
      %1868 = vmatmul.f32.gmra.mxu0 %v579
      %v1869 = vpop.f32.mrf.mxu0
      %v1870 = vadd.f32 %v1757, %v1869
      %1871 = vmatmul.f32.gmra.mxu0 %v586
      %v1872 = vpop.f32.mrf.mxu0
      %v1873 = vadd.f32 %v1760, %v1872
      %1874 = vmatmul.f32.gmra.mxu0 %v593
      %v1875 = vpop.f32.mrf.mxu0
      %v1876 = vadd.f32 %v1763, %v1875
      %1877 = vmatmul.f32.gmra.mxu0 %v600
      %v1878 = vpop.f32.mrf.mxu0
      %v1879 = vadd.f32 %v1766, %v1878
      %1880 = vmatmul.f32.gmra.mxu0 %v607
      %v1881 = vpop.f32.mrf.mxu0
      %v1882 = vadd.f32 %v1769, %v1881
      %1883 = vmatmul.f32.gmra.mxu0 %v614
      %v1884 = vpop.f32.mrf.mxu0
      %v1885 = vadd.f32 %v1772, %v1884
      %1886 = vmatmul.f32.gmra.mxu0 %v621
      %v1887 = vpop.f32.mrf.mxu0
      %v1888 = vadd.f32 %v1775, %v1887
      %1889 = vmatmul.f32.gmra.mxu0 %v628
      %v1890 = vpop.f32.mrf.mxu0
      %v1891 = vadd.f32 %v1778, %v1890
      %1892 = vmatmul.f32.gmra.mxu0 %v635
      %v1893 = vpop.f32.mrf.mxu0
      %v1894 = vadd.f32 %v1781, %v1893
      %1895 = vmatmul.f32.gmra.mxu0 %v642
      %v1896 = vpop.f32.mrf.mxu0
      %v1897 = vadd.f32 %v1784, %v1896
      %1898 = vmatmul.f32.gmra.mxu0 %v649
      %v1899 = vpop.f32.mrf.mxu0
      %v1900 = vadd.f32 %v1787, %v1899
      %1901 = vdwg.mxu0
      %1902 = vmatpush.msra.mxu0 %v750
      %1903 = vmatpush.msra.mxu0 %v748
      %1904 = vmatpush.msra.mxu0 %v746
      %1905 = vmatpush.msra.mxu0 %v744
      %1906 = vmatpush.msra.mxu0 %v742
      %1907 = vmatpush.msra.mxu0 %v740
      %1908 = vmatpush.msra.mxu0 %v738
      %1909 = vmatpush.msra.mxu0 %v736
      %1910 = vmatpush.msra.mxu0 %v734
      %1911 = vmatpush.msra.mxu0 %v732
      %1912 = vmatpush.msra.mxu0 %v730
      %1913 = vmatpush.msra.mxu0 %v728
      %1914 = vmatpush.msra.mxu0 %v726
      %1915 = vmatpush.msra.mxu0 %v724
      %1916 = vmatpush.msra.mxu0 %v722
      %1917 = vmatpush.msra.mxu0 %v720
      %1918 = vmatmul.f32.gmra.mxu0 %v433
      %v1919 = vpop.f32.mrf.mxu0
      %v1920 = vadd.f32 %v1807, %v1919
      %1921 = vmatmul.f32.gmra.mxu0 %v440
      %v1922 = vpop.f32.mrf.mxu0
      %v1923 = vadd.f32 %v1810, %v1922
      %1924 = vmatmul.f32.gmra.mxu0 %v447
      %v1925 = vpop.f32.mrf.mxu0
      %v1926 = vadd.f32 %v1813, %v1925
      %1927 = vmatmul.f32.gmra.mxu0 %v454
      %v1928 = vpop.f32.mrf.mxu0
      %v1929 = vadd.f32 %v1816, %v1928
      %1930 = vmatmul.f32.gmra.mxu0 %v461
      %v1931 = vpop.f32.mrf.mxu0
      %v1932 = vadd.f32 %v1819, %v1931
      %1933 = vmatmul.f32.gmra.mxu0 %v468
      %v1934 = vpop.f32.mrf.mxu0
      %v1935 = vadd.f32 %v1822, %v1934
      %1936 = vmatmul.f32.gmra.mxu0 %v475
      %v1937 = vpop.f32.mrf.mxu0
      %v1938 = vadd.f32 %v1825, %v1937
      %1939 = vmatmul.f32.gmra.mxu0 %v482
      %v1940 = vpop.f32.mrf.mxu0
      %v1941 = vadd.f32 %v1828, %v1940
      %1942 = vmatmul.f32.gmra.mxu0 %v489
      %v1943 = vpop.f32.mrf.mxu0
      %v1944 = vadd.f32 %v1831, %v1943
      %1945 = vmatmul.f32.gmra.mxu0 %v496
      %v1946 = vpop.f32.mrf.mxu0
      %v1947 = vadd.f32 %v1834, %v1946
      %1948 = vmatmul.f32.gmra.mxu0 %v503
      %v1949 = vpop.f32.mrf.mxu0
      %v1950 = vadd.f32 %v1837, %v1949
      %1951 = vmatmul.f32.gmra.mxu0 %v510
      %v1952 = vpop.f32.mrf.mxu0
      %v1953 = vadd.f32 %v1840, %v1952
      %1954 = vmatmul.f32.gmra.mxu0 %v517
      %v1955 = vpop.f32.mrf.mxu0
      %v1956 = vadd.f32 %v1843, %v1955
      %1957 = vmatmul.f32.gmra.mxu0 %v524
      %v1958 = vpop.f32.mrf.mxu0
      %v1959 = vadd.f32 %v1846, %v1958
      %1960 = vmatmul.f32.gmra.mxu0 %v531
      %v1961 = vpop.f32.mrf.mxu0
      %v1962 = vadd.f32 %v1849, %v1961
      %1963 = vmatmul.f32.gmra.mxu0 %v538
      %v1964 = vpop.f32.mrf.mxu0
      %v1965 = vadd.f32 %v1852, %v1964
      %1966 = vmatmul.f32.gmra.mxu0 %v545
      %v1967 = vpop.f32.mrf.mxu0
      %v1968 = vadd.f32 %v1855, %v1967
      %1969 = vmatmul.f32.gmra.mxu0 %v552
      %v1970 = vpop.f32.mrf.mxu0
      %v1971 = vadd.f32 %v1858, %v1970
      %1972 = vmatmul.f32.gmra.mxu0 %v559
      %v1973 = vpop.f32.mrf.mxu0
      %v1974 = vadd.f32 %v1861, %v1973
      %1975 = vmatmul.f32.gmra.mxu0 %v566
      %v1976 = vpop.f32.mrf.mxu0
      %v1977 = vadd.f32 %v1864, %v1976
      %1978 = vmatmul.f32.gmra.mxu0 %v573
      %v1979 = vpop.f32.mrf.mxu0
      %v1980 = vadd.f32 %v1867, %v1979
      %1981 = vmatmul.f32.gmra.mxu0 %v580
      %v1982 = vpop.f32.mrf.mxu0
      %v1983 = vadd.f32 %v1870, %v1982
      %1984 = vmatmul.f32.gmra.mxu0 %v587
      %v1985 = vpop.f32.mrf.mxu0
      %v1986 = vadd.f32 %v1873, %v1985
      %1987 = vmatmul.f32.gmra.mxu0 %v594
      %v1988 = vpop.f32.mrf.mxu0
      %v1989 = vadd.f32 %v1876, %v1988
      %1990 = vmatmul.f32.gmra.mxu0 %v601
      %v1991 = vpop.f32.mrf.mxu0
      %v1992 = vadd.f32 %v1879, %v1991
      %1993 = vmatmul.f32.gmra.mxu0 %v608
      %v1994 = vpop.f32.mrf.mxu0
      %v1995 = vadd.f32 %v1882, %v1994
      %1996 = vmatmul.f32.gmra.mxu0 %v615
      %v1997 = vpop.f32.mrf.mxu0
      %v1998 = vadd.f32 %v1885, %v1997
      %1999 = vmatmul.f32.gmra.mxu0 %v622
      %v2000 = vpop.f32.mrf.mxu0
      %v2001 = vadd.f32 %v1888, %v2000
      %2002 = vmatmul.f32.gmra.mxu0 %v629
      %v2003 = vpop.f32.mrf.mxu0
      %v2004 = vadd.f32 %v1891, %v2003
      %2005 = vmatmul.f32.gmra.mxu0 %v636
      %v2006 = vpop.f32.mrf.mxu0
      %v2007 = vadd.f32 %v1894, %v2006
      %2008 = vmatmul.f32.gmra.mxu0 %v643
      %v2009 = vpop.f32.mrf.mxu0
      %v2010 = vadd.f32 %v1897, %v2009
      %2011 = vmatmul.f32.gmra.mxu0 %v650
      %v2012 = vpop.f32.mrf.mxu0
      %v2013 = vadd.f32 %v1900, %v2012
      %2014 = vdwg.mxu0
      %2015 = vmatpush.msra.mxu0 %v782
      %2016 = vmatpush.msra.mxu0 %v780
      %2017 = vmatpush.msra.mxu0 %v778
      %2018 = vmatpush.msra.mxu0 %v776
      %2019 = vmatpush.msra.mxu0 %v774
      %2020 = vmatpush.msra.mxu0 %v772
      %2021 = vmatpush.msra.mxu0 %v770
      %2022 = vmatpush.msra.mxu0 %v768
      %2023 = vmatpush.msra.mxu0 %v766
      %2024 = vmatpush.msra.mxu0 %v764
      %2025 = vmatpush.msra.mxu0 %v762
      %2026 = vmatpush.msra.mxu0 %v760
      %2027 = vmatpush.msra.mxu0 %v758
      %2028 = vmatpush.msra.mxu0 %v756
      %2029 = vmatpush.msra.mxu0 %v754
      %2030 = vmatpush.msra.mxu0 %v752
      %2031 = vmatmul.f32.gmra.mxu0 %v434
      %v2032 = vpop.f32.mrf.mxu0
      %v2033 = vadd.f32 %v1920, %v2032
      %2034 = vmatmul.f32.gmra.mxu0 %v441
      %v2035 = vpop.f32.mrf.mxu0
      %v2036 = vadd.f32 %v1923, %v2035
      %2037 = vmatmul.f32.gmra.mxu0 %v448
      %v2038 = vpop.f32.mrf.mxu0
      %v2039 = vadd.f32 %v1926, %v2038
      %2040 = vmatmul.f32.gmra.mxu0 %v455
      %v2041 = vpop.f32.mrf.mxu0
      %v2042 = vadd.f32 %v1929, %v2041
      %2043 = vmatmul.f32.gmra.mxu0 %v462
      %v2044 = vpop.f32.mrf.mxu0
      %v2045 = vadd.f32 %v1932, %v2044
      %2046 = vmatmul.f32.gmra.mxu0 %v469
      %v2047 = vpop.f32.mrf.mxu0
      %v2048 = vadd.f32 %v1935, %v2047
      %2049 = vmatmul.f32.gmra.mxu0 %v476
      %v2050 = vpop.f32.mrf.mxu0
      %v2051 = vadd.f32 %v1938, %v2050
      %2052 = vmatmul.f32.gmra.mxu0 %v483
      %v2053 = vpop.f32.mrf.mxu0
      %v2054 = vadd.f32 %v1941, %v2053
      %2055 = vmatmul.f32.gmra.mxu0 %v490
      %v2056 = vpop.f32.mrf.mxu0
      %v2057 = vadd.f32 %v1944, %v2056
      %2058 = vmatmul.f32.gmra.mxu0 %v497
      %v2059 = vpop.f32.mrf.mxu0
      %v2060 = vadd.f32 %v1947, %v2059
      %2061 = vmatmul.f32.gmra.mxu0 %v504
      %v2062 = vpop.f32.mrf.mxu0
      %v2063 = vadd.f32 %v1950, %v2062
      %2064 = vmatmul.f32.gmra.mxu0 %v511
      %v2065 = vpop.f32.mrf.mxu0
      %v2066 = vadd.f32 %v1953, %v2065
      %2067 = vmatmul.f32.gmra.mxu0 %v518
      %v2068 = vpop.f32.mrf.mxu0
      %v2069 = vadd.f32 %v1956, %v2068
      %2070 = vmatmul.f32.gmra.mxu0 %v525
      %v2071 = vpop.f32.mrf.mxu0
      %v2072 = vadd.f32 %v1959, %v2071
      %2073 = vmatmul.f32.gmra.mxu0 %v532
      %v2074 = vpop.f32.mrf.mxu0
      %v2075 = vadd.f32 %v1962, %v2074
      %2076 = vmatmul.f32.gmra.mxu0 %v539
      %v2077 = vpop.f32.mrf.mxu0
      %v2078 = vadd.f32 %v1965, %v2077
      %2079 = vmatmul.f32.gmra.mxu0 %v546
      %v2080 = vpop.f32.mrf.mxu0
      %v2081 = vadd.f32 %v1968, %v2080
      %2082 = vmatmul.f32.gmra.mxu0 %v553
      %v2083 = vpop.f32.mrf.mxu0
      %v2084 = vadd.f32 %v1971, %v2083
      %2085 = vmatmul.f32.gmra.mxu0 %v560
      %v2086 = vpop.f32.mrf.mxu0
      %v2087 = vadd.f32 %v1974, %v2086
      %2088 = vmatmul.f32.gmra.mxu0 %v567
      %v2089 = vpop.f32.mrf.mxu0
      %v2090 = vadd.f32 %v1977, %v2089
      %2091 = vmatmul.f32.gmra.mxu0 %v574
      %v2092 = vpop.f32.mrf.mxu0
      %v2093 = vadd.f32 %v1980, %v2092
      %2094 = vmatmul.f32.gmra.mxu0 %v581
      %v2095 = vpop.f32.mrf.mxu0
      %v2096 = vadd.f32 %v1983, %v2095
      %2097 = vmatmul.f32.gmra.mxu0 %v588
      %v2098 = vpop.f32.mrf.mxu0
      %v2099 = vadd.f32 %v1986, %v2098
      %2100 = vmatmul.f32.gmra.mxu0 %v595
      %v2101 = vpop.f32.mrf.mxu0
      %v2102 = vadd.f32 %v1989, %v2101
      %2103 = vmatmul.f32.gmra.mxu0 %v602
      %v2104 = vpop.f32.mrf.mxu0
      %v2105 = vadd.f32 %v1992, %v2104
      %2106 = vmatmul.f32.gmra.mxu0 %v609
      %v2107 = vpop.f32.mrf.mxu0
      %v2108 = vadd.f32 %v1995, %v2107
      %2109 = vmatmul.f32.gmra.mxu0 %v616
      %v2110 = vpop.f32.mrf.mxu0
      %v2111 = vadd.f32 %v1998, %v2110
      %2112 = vmatmul.f32.gmra.mxu0 %v623
      %v2113 = vpop.f32.mrf.mxu0
      %v2114 = vadd.f32 %v2001, %v2113
      %2115 = vmatmul.f32.gmra.mxu0 %v630
      %v2116 = vpop.f32.mrf.mxu0
      %v2117 = vadd.f32 %v2004, %v2116
      %2118 = vmatmul.f32.gmra.mxu0 %v637
      %v2119 = vpop.f32.mrf.mxu0
      %v2120 = vadd.f32 %v2007, %v2119
      %2121 = vmatmul.f32.gmra.mxu0 %v644
      %v2122 = vpop.f32.mrf.mxu0
      %v2123 = vadd.f32 %v2010, %v2122
      %2124 = vmatmul.f32.gmra.mxu0 %v651
      %v2125 = vpop.f32.mrf.mxu0
      %v2126 = vadd.f32 %v2013, %v2125
      %2127 = vdwg.mxu0
      %2128 = vmatpush.msra.mxu0 %v814
      %2129 = vmatpush.msra.mxu0 %v812
      %2130 = vmatpush.msra.mxu0 %v810
      %2131 = vmatpush.msra.mxu0 %v808
      %2132 = vmatpush.msra.mxu0 %v806
      %2133 = vmatpush.msra.mxu0 %v804
      %2134 = vmatpush.msra.mxu0 %v802
      %2135 = vmatpush.msra.mxu0 %v800
      %2136 = vmatpush.msra.mxu0 %v798
      %2137 = vmatpush.msra.mxu0 %v796
      %2138 = vmatpush.msra.mxu0 %v794
      %2139 = vmatpush.msra.mxu0 %v792
      %2140 = vmatpush.msra.mxu0 %v790
      %2141 = vmatpush.msra.mxu0 %v788
      %2142 = vmatpush.msra.mxu0 %v786
      %2143 = vmatpush.msra.mxu0 %v784
      %2144 = vmatmul.f32.gmra.mxu0 %v435
      %v2145 = vpop.f32.mrf.mxu0
      %v2146 = vadd.f32 %v2033, %v2145
      %2147 = vmatmul.f32.gmra.mxu0 %v442
      %v2148 = vpop.f32.mrf.mxu0
      %v2149 = vadd.f32 %v2036, %v2148
      %2150 = vmatmul.f32.gmra.mxu0 %v449
      %v2151 = vpop.f32.mrf.mxu0
      %v2152 = vadd.f32 %v2039, %v2151
      %2153 = vmatmul.f32.gmra.mxu0 %v456
      %v2154 = vpop.f32.mrf.mxu0
      %v2155 = vadd.f32 %v2042, %v2154
      %2156 = vmatmul.f32.gmra.mxu0 %v463
      %v2157 = vpop.f32.mrf.mxu0
      %v2158 = vadd.f32 %v2045, %v2157
      %2159 = vmatmul.f32.gmra.mxu0 %v470
      %v2160 = vpop.f32.mrf.mxu0
      %v2161 = vadd.f32 %v2048, %v2160
      %2162 = vmatmul.f32.gmra.mxu0 %v477
      %v2163 = vpop.f32.mrf.mxu0
      %v2164 = vadd.f32 %v2051, %v2163
      %2165 = vmatmul.f32.gmra.mxu0 %v484
      %v2166 = vpop.f32.mrf.mxu0
      %v2167 = vadd.f32 %v2054, %v2166
      %2168 = vmatmul.f32.gmra.mxu0 %v491
      %v2169 = vpop.f32.mrf.mxu0
      %v2170 = vadd.f32 %v2057, %v2169
      %2171 = vmatmul.f32.gmra.mxu0 %v498
      %v2172 = vpop.f32.mrf.mxu0
      %v2173 = vadd.f32 %v2060, %v2172
      %2174 = vmatmul.f32.gmra.mxu0 %v505
      %v2175 = vpop.f32.mrf.mxu0
      %v2176 = vadd.f32 %v2063, %v2175
      %2177 = vmatmul.f32.gmra.mxu0 %v512
      %v2178 = vpop.f32.mrf.mxu0
      %v2179 = vadd.f32 %v2066, %v2178
      %2180 = vmatmul.f32.gmra.mxu0 %v519
      %v2181 = vpop.f32.mrf.mxu0
      %v2182 = vadd.f32 %v2069, %v2181
      %2183 = vmatmul.f32.gmra.mxu0 %v526
      %v2184 = vpop.f32.mrf.mxu0
      %v2185 = vadd.f32 %v2072, %v2184
      %2186 = vmatmul.f32.gmra.mxu0 %v533
      %v2187 = vpop.f32.mrf.mxu0
      %v2188 = vadd.f32 %v2075, %v2187
      %2189 = vmatmul.f32.gmra.mxu0 %v540
      %v2190 = vpop.f32.mrf.mxu0
      %v2191 = vadd.f32 %v2078, %v2190
      %2192 = vmatmul.f32.gmra.mxu0 %v547
      %v2193 = vpop.f32.mrf.mxu0
      %v2194 = vadd.f32 %v2081, %v2193
      %2195 = vmatmul.f32.gmra.mxu0 %v554
      %v2196 = vpop.f32.mrf.mxu0
      %v2197 = vadd.f32 %v2084, %v2196
      %2198 = vmatmul.f32.gmra.mxu0 %v561
      %v2199 = vpop.f32.mrf.mxu0
      %v2200 = vadd.f32 %v2087, %v2199
      %2201 = vmatmul.f32.gmra.mxu0 %v568
      %v2202 = vpop.f32.mrf.mxu0
      %v2203 = vadd.f32 %v2090, %v2202
      %2204 = vmatmul.f32.gmra.mxu0 %v575
      %v2205 = vpop.f32.mrf.mxu0
      %v2206 = vadd.f32 %v2093, %v2205
      %2207 = vmatmul.f32.gmra.mxu0 %v582
      %v2208 = vpop.f32.mrf.mxu0
      %v2209 = vadd.f32 %v2096, %v2208
      %2210 = vmatmul.f32.gmra.mxu0 %v589
      %v2211 = vpop.f32.mrf.mxu0
      %v2212 = vadd.f32 %v2099, %v2211
      %2213 = vmatmul.f32.gmra.mxu0 %v596
      %v2214 = vpop.f32.mrf.mxu0
      %v2215 = vadd.f32 %v2102, %v2214
      %2216 = vmatmul.f32.gmra.mxu0 %v603
      %v2217 = vpop.f32.mrf.mxu0
      %v2218 = vadd.f32 %v2105, %v2217
      %2219 = vmatmul.f32.gmra.mxu0 %v610
      %v2220 = vpop.f32.mrf.mxu0
      %v2221 = vadd.f32 %v2108, %v2220
      %2222 = vmatmul.f32.gmra.mxu0 %v617
      %v2223 = vpop.f32.mrf.mxu0
      %v2224 = vadd.f32 %v2111, %v2223
      %2225 = vmatmul.f32.gmra.mxu0 %v624
      %v2226 = vpop.f32.mrf.mxu0
      %v2227 = vadd.f32 %v2114, %v2226
      %2228 = vmatmul.f32.gmra.mxu0 %v631
      %v2229 = vpop.f32.mrf.mxu0
      %v2230 = vadd.f32 %v2117, %v2229
      %2231 = vmatmul.f32.gmra.mxu0 %v638
      %v2232 = vpop.f32.mrf.mxu0
      %v2233 = vadd.f32 %v2120, %v2232
      %2234 = vmatmul.f32.gmra.mxu0 %v645
      %v2235 = vpop.f32.mrf.mxu0
      %v2236 = vadd.f32 %v2123, %v2235
      %2237 = vmatmul.f32.gmra.mxu0 %v652
      %v2238 = vpop.f32.mrf.mxu0
      %v2239 = vadd.f32 %v2126, %v2238
      %2240 = vdwg.mxu0
      %2241 = vmatpush.msra.mxu0 %v846
      %2242 = vmatpush.msra.mxu0 %v844
      %2243 = vmatpush.msra.mxu0 %v842
      %2244 = vmatpush.msra.mxu0 %v840
      %2245 = vmatpush.msra.mxu0 %v838
      %2246 = vmatpush.msra.mxu0 %v836
      %2247 = vmatpush.msra.mxu0 %v834
      %2248 = vmatpush.msra.mxu0 %v832
      %2249 = vmatpush.msra.mxu0 %v830
      %2250 = vmatpush.msra.mxu0 %v828
      %2251 = vmatpush.msra.mxu0 %v826
      %2252 = vmatpush.msra.mxu0 %v824
      %2253 = vmatpush.msra.mxu0 %v822
      %2254 = vmatpush.msra.mxu0 %v820
      %2255 = vmatpush.msra.mxu0 %v818
      %2256 = vmatpush.msra.mxu0 %v816
      %2257 = vmatmul.f32.gmra.mxu0 %v436
      %v2258 = vpop.f32.mrf.mxu0
      %v2259 = vadd.f32 %v2146, %v2258
      %2260 = vmatmul.f32.gmra.mxu0 %v443
      %v2261 = vpop.f32.mrf.mxu0
      %v2262 = vadd.f32 %v2149, %v2261
      %2263 = vmatmul.f32.gmra.mxu0 %v450
      %v2264 = vpop.f32.mrf.mxu0
      %v2265 = vadd.f32 %v2152, %v2264
      %2266 = vmatmul.f32.gmra.mxu0 %v457
      %v2267 = vpop.f32.mrf.mxu0
      %v2268 = vadd.f32 %v2155, %v2267
      %2269 = vmatmul.f32.gmra.mxu0 %v464
      %v2270 = vpop.f32.mrf.mxu0
      %v2271 = vadd.f32 %v2158, %v2270
      %2272 = vmatmul.f32.gmra.mxu0 %v471
      %v2273 = vpop.f32.mrf.mxu0
      %v2274 = vadd.f32 %v2161, %v2273
      %2275 = vmatmul.f32.gmra.mxu0 %v478
      %v2276 = vpop.f32.mrf.mxu0
      %v2277 = vadd.f32 %v2164, %v2276
      %2278 = vmatmul.f32.gmra.mxu0 %v485
      %v2279 = vpop.f32.mrf.mxu0
      %v2280 = vadd.f32 %v2167, %v2279
      %2281 = vmatmul.f32.gmra.mxu0 %v492
      %v2282 = vpop.f32.mrf.mxu0
      %v2283 = vadd.f32 %v2170, %v2282
      %2284 = vmatmul.f32.gmra.mxu0 %v499
      %v2285 = vpop.f32.mrf.mxu0
      %v2286 = vadd.f32 %v2173, %v2285
      %2287 = vmatmul.f32.gmra.mxu0 %v506
      %v2288 = vpop.f32.mrf.mxu0
      %v2289 = vadd.f32 %v2176, %v2288
      %2290 = vmatmul.f32.gmra.mxu0 %v513
      %v2291 = vpop.f32.mrf.mxu0
      %v2292 = vadd.f32 %v2179, %v2291
      %2293 = vmatmul.f32.gmra.mxu0 %v520
      %v2294 = vpop.f32.mrf.mxu0
      %v2295 = vadd.f32 %v2182, %v2294
      %2296 = vmatmul.f32.gmra.mxu0 %v527
      %v2297 = vpop.f32.mrf.mxu0
      %v2298 = vadd.f32 %v2185, %v2297
      %2299 = vmatmul.f32.gmra.mxu0 %v534
      %v2300 = vpop.f32.mrf.mxu0
      %v2301 = vadd.f32 %v2188, %v2300
      %2302 = vmatmul.f32.gmra.mxu0 %v541
      %v2303 = vpop.f32.mrf.mxu0
      %v2304 = vadd.f32 %v2191, %v2303
      %2305 = vmatmul.f32.gmra.mxu0 %v548
      %v2306 = vpop.f32.mrf.mxu0
      %v2307 = vadd.f32 %v2194, %v2306
      %2308 = vmatmul.f32.gmra.mxu0 %v555
      %v2309 = vpop.f32.mrf.mxu0
      %v2310 = vadd.f32 %v2197, %v2309
      %2311 = vmatmul.f32.gmra.mxu0 %v562
      %v2312 = vpop.f32.mrf.mxu0
      %v2313 = vadd.f32 %v2200, %v2312
      %2314 = vmatmul.f32.gmra.mxu0 %v569
      %v2315 = vpop.f32.mrf.mxu0
      %v2316 = vadd.f32 %v2203, %v2315
      %2317 = vmatmul.f32.gmra.mxu0 %v576
      %v2318 = vpop.f32.mrf.mxu0
      %v2319 = vadd.f32 %v2206, %v2318
      %2320 = vmatmul.f32.gmra.mxu0 %v583
      %v2321 = vpop.f32.mrf.mxu0
      %v2322 = vadd.f32 %v2209, %v2321
      %2323 = vmatmul.f32.gmra.mxu0 %v590
      %v2324 = vpop.f32.mrf.mxu0
      %v2325 = vadd.f32 %v2212, %v2324
      %2326 = vmatmul.f32.gmra.mxu0 %v597
      %v2327 = vpop.f32.mrf.mxu0
      %v2328 = vadd.f32 %v2215, %v2327
      %2329 = vmatmul.f32.gmra.mxu0 %v604
      %v2330 = vpop.f32.mrf.mxu0
      %v2331 = vadd.f32 %v2218, %v2330
      %2332 = vmatmul.f32.gmra.mxu0 %v611
      %v2333 = vpop.f32.mrf.mxu0
      %v2334 = vadd.f32 %v2221, %v2333
      %2335 = vmatmul.f32.gmra.mxu0 %v618
      %v2336 = vpop.f32.mrf.mxu0
      %v2337 = vadd.f32 %v2224, %v2336
      %2338 = vmatmul.f32.gmra.mxu0 %v625
      %v2339 = vpop.f32.mrf.mxu0
      %v2340 = vadd.f32 %v2227, %v2339
      %2341 = vmatmul.f32.gmra.mxu0 %v632
      %v2342 = vpop.f32.mrf.mxu0
      %v2343 = vadd.f32 %v2230, %v2342
      %2344 = vmatmul.f32.gmra.mxu0 %v639
      %v2345 = vpop.f32.mrf.mxu0
      %v2346 = vadd.f32 %v2233, %v2345
      %2347 = vmatmul.f32.gmra.mxu0 %v646
      %v2348 = vpop.f32.mrf.mxu0
      %v2349 = vadd.f32 %v2236, %v2348
      %2350 = vmatmul.f32.gmra.mxu0 %v653
      %v2351 = vpop.f32.mrf.mxu0
      %v2352 = vadd.f32 %v2239, %v2351
      %2353 = vdwg.mxu0
      %2354 = vmatpush.msra.mxu0 %v878
      %2355 = vmatpush.msra.mxu0 %v876
      %2356 = vmatpush.msra.mxu0 %v874
      %2357 = vmatpush.msra.mxu0 %v872
      %2358 = vmatpush.msra.mxu0 %v870
      %2359 = vmatpush.msra.mxu0 %v868
      %2360 = vmatpush.msra.mxu0 %v866
      %2361 = vmatpush.msra.mxu0 %v864
      %2362 = vmatpush.msra.mxu0 %v862
      %2363 = vmatpush.msra.mxu0 %v860
      %2364 = vmatpush.msra.mxu0 %v858
      %2365 = vmatpush.msra.mxu0 %v856
      %2366 = vmatpush.msra.mxu0 %v854
      %2367 = vmatpush.msra.mxu0 %v852
      %2368 = vmatpush.msra.mxu0 %v850
      %2369 = vmatpush.msra.mxu0 %v848
      %2370 = vmatmul.f32.gmra.mxu0 %v437
      %v2371 = vpop.f32.mrf.mxu0
      %v2372 = vadd.f32 %v2259, %v2371
      %2373 = vmatmul.f32.gmra.mxu0 %v444
      %v2374 = vpop.f32.mrf.mxu0
      %v2375 = vadd.f32 %v2262, %v2374
      %2376 = vmatmul.f32.gmra.mxu0 %v451
      %v2377 = vpop.f32.mrf.mxu0
      %v2378 = vadd.f32 %v2265, %v2377
      %2379 = vmatmul.f32.gmra.mxu0 %v458
      %v2380 = vpop.f32.mrf.mxu0
      %v2381 = vadd.f32 %v2268, %v2380
      %2382 = vmatmul.f32.gmra.mxu0 %v465
      %v2383 = vpop.f32.mrf.mxu0
      %v2384 = vadd.f32 %v2271, %v2383
      %2385 = vmatmul.f32.gmra.mxu0 %v472
      %v2386 = vpop.f32.mrf.mxu0
      %v2387 = vadd.f32 %v2274, %v2386
      %2388 = vmatmul.f32.gmra.mxu0 %v479
      %v2389 = vpop.f32.mrf.mxu0
      %v2390 = vadd.f32 %v2277, %v2389
      %2391 = vmatmul.f32.gmra.mxu0 %v486
      %v2392 = vpop.f32.mrf.mxu0
      %v2393 = vadd.f32 %v2280, %v2392
      %2394 = vmatmul.f32.gmra.mxu0 %v493
      %v2395 = vpop.f32.mrf.mxu0
      %v2396 = vadd.f32 %v2283, %v2395
      %2397 = vmatmul.f32.gmra.mxu0 %v500
      %v2398 = vpop.f32.mrf.mxu0
      %v2399 = vadd.f32 %v2286, %v2398
      %2400 = vmatmul.f32.gmra.mxu0 %v507
      %v2401 = vpop.f32.mrf.mxu0
      %v2402 = vadd.f32 %v2289, %v2401
      %2403 = vmatmul.f32.gmra.mxu0 %v514
      %v2404 = vpop.f32.mrf.mxu0
      %v2405 = vadd.f32 %v2292, %v2404
      %2406 = vmatmul.f32.gmra.mxu0 %v521
      %v2407 = vpop.f32.mrf.mxu0
      %v2408 = vadd.f32 %v2295, %v2407
      %2409 = vmatmul.f32.gmra.mxu0 %v528
      %v2410 = vpop.f32.mrf.mxu0
      %v2411 = vadd.f32 %v2298, %v2410
      %2412 = vmatmul.f32.gmra.mxu0 %v535
      %v2413 = vpop.f32.mrf.mxu0
      %v2414 = vadd.f32 %v2301, %v2413
      %2415 = vmatmul.f32.gmra.mxu0 %v542
      %v2416 = vpop.f32.mrf.mxu0
      %v2417 = vadd.f32 %v2304, %v2416
      %2418 = vmatmul.f32.gmra.mxu0 %v549
      %v2419 = vpop.f32.mrf.mxu0
      %v2420 = vadd.f32 %v2307, %v2419
      %2421 = vmatmul.f32.gmra.mxu0 %v556
      %v2422 = vpop.f32.mrf.mxu0
      %v2423 = vadd.f32 %v2310, %v2422
      %2424 = vmatmul.f32.gmra.mxu0 %v563
      %v2425 = vpop.f32.mrf.mxu0
      %v2426 = vadd.f32 %v2313, %v2425
      %2427 = vmatmul.f32.gmra.mxu0 %v570
      %v2428 = vpop.f32.mrf.mxu0
      %v2429 = vadd.f32 %v2316, %v2428
      %2430 = vmatmul.f32.gmra.mxu0 %v577
      %v2431 = vpop.f32.mrf.mxu0
      %v2432 = vadd.f32 %v2319, %v2431
      %2433 = vmatmul.f32.gmra.mxu0 %v584
      %v2434 = vpop.f32.mrf.mxu0
      %v2435 = vadd.f32 %v2322, %v2434
      %2436 = vmatmul.f32.gmra.mxu0 %v591
      %v2437 = vpop.f32.mrf.mxu0
      %v2438 = vadd.f32 %v2325, %v2437
      %2439 = vmatmul.f32.gmra.mxu0 %v598
      %v2440 = vpop.f32.mrf.mxu0
      %v2441 = vadd.f32 %v2328, %v2440
      %2442 = vmatmul.f32.gmra.mxu0 %v605
      %v2443 = vpop.f32.mrf.mxu0
      %v2444 = vadd.f32 %v2331, %v2443
      %2445 = vmatmul.f32.gmra.mxu0 %v612
      %v2446 = vpop.f32.mrf.mxu0
      %v2447 = vadd.f32 %v2334, %v2446
      %2448 = vmatmul.f32.gmra.mxu0 %v619
      %v2449 = vpop.f32.mrf.mxu0
      %v2450 = vadd.f32 %v2337, %v2449
      %2451 = vmatmul.f32.gmra.mxu0 %v626
      %v2452 = vpop.f32.mrf.mxu0
      %v2453 = vadd.f32 %v2340, %v2452
      %2454 = vmatmul.f32.gmra.mxu0 %v633
      %v2455 = vpop.f32.mrf.mxu0
      %v2456 = vadd.f32 %v2343, %v2455
      %2457 = vmatmul.f32.gmra.mxu0 %v640
      %v2458 = vpop.f32.mrf.mxu0
      %v2459 = vadd.f32 %v2346, %v2458
      %2460 = vmatmul.f32.gmra.mxu0 %v647
      %v2461 = vpop.f32.mrf.mxu0
      %v2462 = vadd.f32 %v2349, %v2461
      %2463 = vmatmul.f32.gmra.mxu0 %v654
      %v2464 = vpop.f32.mrf.mxu0
      %v2465 = vadd.f32 %v2352, %v2464
      %2466 = vdwg.mxu0
      %v2467 = vmax.f32 %v1581, 0.0
      %v2468 = vmax.f32 %v2372, 0.0
      %v2469 = vmax.f32 %v1584, 0.0
      %v2470 = vmax.f32 %v2375, 0.0
      %v2471 = vmax.f32 %v1587, 0.0
      %v2472 = vmax.f32 %v2378, 0.0
      %v2473 = vmax.f32 %v1590, 0.0
      %v2474 = vmax.f32 %v2381, 0.0
      %v2475 = vmax.f32 %v1593, 0.0
      %v2476 = vmax.f32 %v2384, 0.0
      %v2477 = vmax.f32 %v1596, 0.0
      %v2478 = vmax.f32 %v2387, 0.0
      %v2479 = vmax.f32 %v1599, 0.0
      %v2480 = vmax.f32 %v2390, 0.0
      %v2481 = vmax.f32 %v1602, 0.0
      %v2482 = vmax.f32 %v2393, 0.0
      %v2483 = vmax.f32 %v1605, 0.0
      %v2484 = vmax.f32 %v2396, 0.0
      %v2485 = vmax.f32 %v1608, 0.0
      %v2486 = vmax.f32 %v2399, 0.0
      %v2487 = vmax.f32 %v1611, 0.0
      %v2488 = vmax.f32 %v2402, 0.0
      %v2489 = vmax.f32 %v1614, 0.0
      %v2490 = vmax.f32 %v2405, 0.0
      %v2491 = vmax.f32 %v1617, 0.0
      %v2492 = vmax.f32 %v2408, 0.0
      %v2493 = vmax.f32 %v1620, 0.0
      %v2494 = vmax.f32 %v2411, 0.0
      %v2495 = vmax.f32 %v1623, 0.0
      %v2496 = vmax.f32 %v2414, 0.0
      %v2497 = vmax.f32 %v1626, 0.0
      %v2498 = vmax.f32 %v2417, 0.0
      %v2499 = vmax.f32 %v1629, 0.0
      %v2500 = vmax.f32 %v2420, 0.0
      %v2501 = vmax.f32 %v1632, 0.0
      %v2502 = vmax.f32 %v2423, 0.0
      %v2503 = vmax.f32 %v1635, 0.0
      %v2504 = vmax.f32 %v2426, 0.0
      %v2505 = vmax.f32 %v1638, 0.0
      %v2506 = vmax.f32 %v2429, 0.0
      %v2507 = vmax.f32 %v1641, 0.0
      %v2508 = vmax.f32 %v2432, 0.0
      %v2509 = vmax.f32 %v1644, 0.0
      %v2510 = vmax.f32 %v2435, 0.0
      %v2511 = vmax.f32 %v1647, 0.0
      %v2512 = vmax.f32 %v2438, 0.0
      %v2513 = vmax.f32 %v1650, 0.0
      %v2514 = vmax.f32 %v2441, 0.0
      %v2515 = vmax.f32 %v1653, 0.0
      %v2516 = vmax.f32 %v2444, 0.0
      %v2517 = vmax.f32 %v1656, 0.0
      %v2518 = vmax.f32 %v2447, 0.0
      %v2519 = vmax.f32 %v1659, 0.0
      %v2520 = vmax.f32 %v2450, 0.0
      %v2521 = vmax.f32 %v1662, 0.0
      %v2522 = vmax.f32 %v2453, 0.0
      %v2523 = vmax.f32 %v1665, 0.0
      %v2524 = vmax.f32 %v2456, 0.0
      %v2525 = vmax.f32 %v1668, 0.0
      %v2526 = vmax.f32 %v2459, 0.0
      %v2527 = vmax.f32 %v1671, 0.0
      %v2528 = vmax.f32 %v2462, 0.0
      %v2529 = vmax.f32 %v1674, 0.0
      %v2530 = vmax.f32 %v2465, 0.0
      %v2531 = vld [vmem:[%s4] sm:$0xff]
      %v2532 = vld [vmem:[%s4 + $0x8] sm:$0xff]
      %v2533 = vld [vmem:[%s4 + $0x10] sm:$0xff]
      %v2534 = vld [vmem:[%s4 + $0x18] sm:$0xff]
      %v2535 = vld [vmem:[%s4 + $0x20] sm:$0xff]
      %v2536 = vld [vmem:[%s4 + $0x28] sm:$0xff]
      %v2537 = vld [vmem:[%s4 + $0x30] sm:$0xff]
      %v2538 = vld [vmem:[%s4 + $0x38] sm:$0xff]
      %v2539 = vld [vmem:[%s4 + $0x40] sm:$0xff]
      %v2540 = vld [vmem:[%s4 + $0x48] sm:$0xff]
      %v2541 = vld [vmem:[%s4 + $0x50] sm:$0xff]
      %v2542 = vld [vmem:[%s4 + $0x58] sm:$0xff]
      %v2543 = vld [vmem:[%s4 + $0x60] sm:$0xff]
      %v2544 = vld [vmem:[%s4 + $0x68] sm:$0xff]
      %v2545 = vld [vmem:[%s4 + $0x70] sm:$0xff]
      %v2546 = vld [vmem:[%s4 + $0x78] sm:$0xff]
      %v2547 = vld [vmem:[%s4 + $0x80] sm:$0xff]
      %v2548 = vld [vmem:[%s4 + $0x88] sm:$0xff]
      %v2549 = vld [vmem:[%s4 + $0x90] sm:$0xff]
      %v2550 = vld [vmem:[%s4 + $0x98] sm:$0xff]
      %v2551 = vld [vmem:[%s4 + $0xa0] sm:$0xff]
      %v2552 = vld [vmem:[%s4 + $0xa8] sm:$0xff]
      %v2553 = vld [vmem:[%s4 + $0xb0] sm:$0xff]
      %v2554 = vld [vmem:[%s4 + $0xb8] sm:$0xff]
      %v2555 = vld [vmem:[%s4 + $0xc0] sm:$0xff]
      %v2556 = vld [vmem:[%s4 + $0xc8] sm:$0xff]
      %v2557 = vld [vmem:[%s4 + $0xd0] sm:$0xff]
      %v2558 = vld [vmem:[%s4 + $0xd8] sm:$0xff]
      %v2559 = vld [vmem:[%s4 + $0xe0] sm:$0xff]
      %v2560 = vld [vmem:[%s4 + $0xe8] sm:$0xff]
      %v2561 = vld [vmem:[%s4 + $0xf0] sm:$0xff]
      %v2562 = vld [vmem:[%s4 + $0xf8] sm:$0xff]
      %v2563 = vld [vmem:[%s5] sm:$0x1]
      %v2565 = vperm.slane %v2563, 0
      %2567 = vmatpush.msra.mxu0 %v2546
      %2568 = vmatpush.msra.mxu0 %v2545
      %2569 = vmatpush.msra.mxu0 %v2544
      %2570 = vmatpush.msra.mxu0 %v2543
      %2571 = vmatpush.msra.mxu0 %v2542
      %2572 = vmatpush.msra.mxu0 %v2541
      %2573 = vmatpush.msra.mxu0 %v2540
      %2574 = vmatpush.msra.mxu0 %v2539
      %2575 = vmatpush.msra.mxu0 %v2538
      %2576 = vmatpush.msra.mxu0 %v2537
      %2577 = vmatpush.msra.mxu0 %v2536
      %2578 = vmatpush.msra.mxu0 %v2535
      %2579 = vmatpush.msra.mxu0 %v2534
      %2580 = vmatpush.msra.mxu0 %v2533
      %2581 = vmatpush.msra.mxu0 %v2532
      %2582 = vmatpush.msra.mxu0 %v2531
      %2583 = vmatmul.f32.gmra.mxu0 %v2467
      %v2584 = vpop.f32.mrf.mxu0
      %v2585 = vadd.f32 %v2565, %v2584
      %2586 = vmatmul.f32.gmra.mxu0 %v2469
      %v2587 = vpop.f32.mrf.mxu0
      %v2588 = vadd.f32 %v2565, %v2587
      %2589 = vmatmul.f32.gmra.mxu0 %v2471
      %v2590 = vpop.f32.mrf.mxu0
      %v2591 = vadd.f32 %v2565, %v2590
      %2592 = vmatmul.f32.gmra.mxu0 %v2473
      %v2593 = vpop.f32.mrf.mxu0
      %v2594 = vadd.f32 %v2565, %v2593
      %2595 = vmatmul.f32.gmra.mxu0 %v2475
      %v2596 = vpop.f32.mrf.mxu0
      %v2597 = vadd.f32 %v2565, %v2596
      %2598 = vmatmul.f32.gmra.mxu0 %v2477
      %v2599 = vpop.f32.mrf.mxu0
      %v2600 = vadd.f32 %v2565, %v2599
      %2601 = vmatmul.f32.gmra.mxu0 %v2479
      %v2602 = vpop.f32.mrf.mxu0
      %v2603 = vadd.f32 %v2565, %v2602
      %2604 = vmatmul.f32.gmra.mxu0 %v2481
      %v2605 = vpop.f32.mrf.mxu0
      %v2606 = vadd.f32 %v2565, %v2605
      %2607 = vmatmul.f32.gmra.mxu0 %v2483
      %v2608 = vpop.f32.mrf.mxu0
      %v2609 = vadd.f32 %v2565, %v2608
      %2610 = vmatmul.f32.gmra.mxu0 %v2485
      %v2611 = vpop.f32.mrf.mxu0
      %v2612 = vadd.f32 %v2565, %v2611
      %2613 = vmatmul.f32.gmra.mxu0 %v2487
      %v2614 = vpop.f32.mrf.mxu0
      %v2615 = vadd.f32 %v2565, %v2614
      %2616 = vmatmul.f32.gmra.mxu0 %v2489
      %v2617 = vpop.f32.mrf.mxu0
      %v2618 = vadd.f32 %v2565, %v2617
      %2619 = vmatmul.f32.gmra.mxu0 %v2491
      %v2620 = vpop.f32.mrf.mxu0
      %v2621 = vadd.f32 %v2565, %v2620
      %2622 = vmatmul.f32.gmra.mxu0 %v2493
      %v2623 = vpop.f32.mrf.mxu0
      %v2624 = vadd.f32 %v2565, %v2623
      %2625 = vmatmul.f32.gmra.mxu0 %v2495
      %v2626 = vpop.f32.mrf.mxu0
      %v2627 = vadd.f32 %v2565, %v2626
      %2628 = vmatmul.f32.gmra.mxu0 %v2497
      %v2629 = vpop.f32.mrf.mxu0
      %v2630 = vadd.f32 %v2565, %v2629
      %2631 = vmatmul.f32.gmra.mxu0 %v2499
      %v2632 = vpop.f32.mrf.mxu0
      %v2633 = vadd.f32 %v2565, %v2632
      %2634 = vmatmul.f32.gmra.mxu0 %v2501
      %v2635 = vpop.f32.mrf.mxu0
      %v2636 = vadd.f32 %v2565, %v2635
      %2637 = vmatmul.f32.gmra.mxu0 %v2503
      %v2638 = vpop.f32.mrf.mxu0
      %v2639 = vadd.f32 %v2565, %v2638
      %2640 = vmatmul.f32.gmra.mxu0 %v2505
      %v2641 = vpop.f32.mrf.mxu0
      %v2642 = vadd.f32 %v2565, %v2641
      %2643 = vmatmul.f32.gmra.mxu0 %v2507
      %v2644 = vpop.f32.mrf.mxu0
      %v2645 = vadd.f32 %v2565, %v2644
      %2646 = vmatmul.f32.gmra.mxu0 %v2509
      %v2647 = vpop.f32.mrf.mxu0
      %v2648 = vadd.f32 %v2565, %v2647
      %2649 = vmatmul.f32.gmra.mxu0 %v2511
      %v2650 = vpop.f32.mrf.mxu0
      %v2651 = vadd.f32 %v2565, %v2650
      %2652 = vmatmul.f32.gmra.mxu0 %v2513
      %v2653 = vpop.f32.mrf.mxu0
      %v2654 = vadd.f32 %v2565, %v2653
      %2655 = vmatmul.f32.gmra.mxu0 %v2515
      %v2656 = vpop.f32.mrf.mxu0
      %v2657 = vadd.f32 %v2565, %v2656
      %2658 = vmatmul.f32.gmra.mxu0 %v2517
      %v2659 = vpop.f32.mrf.mxu0
      %v2660 = vadd.f32 %v2565, %v2659
      %2661 = vmatmul.f32.gmra.mxu0 %v2519
      %v2662 = vpop.f32.mrf.mxu0
      %v2663 = vadd.f32 %v2565, %v2662
      %2664 = vmatmul.f32.gmra.mxu0 %v2521
      %v2665 = vpop.f32.mrf.mxu0
      %v2666 = vadd.f32 %v2565, %v2665
      %2667 = vmatmul.f32.gmra.mxu0 %v2523
      %v2668 = vpop.f32.mrf.mxu0
      %v2669 = vadd.f32 %v2565, %v2668
      %2670 = vmatmul.f32.gmra.mxu0 %v2525
      %v2671 = vpop.f32.mrf.mxu0
      %v2672 = vadd.f32 %v2565, %v2671
      %2673 = vmatmul.f32.gmra.mxu0 %v2527
      %v2674 = vpop.f32.mrf.mxu0
      %v2675 = vadd.f32 %v2565, %v2674
      %2676 = vmatmul.f32.gmra.mxu0 %v2529
      %v2677 = vpop.f32.mrf.mxu0
      %v2678 = vadd.f32 %v2565, %v2677
      %2679 = vdwg.mxu0
      %2680 = vmatpush.msra.mxu0 %v2562
      %2681 = vmatpush.msra.mxu0 %v2561
      %2682 = vmatpush.msra.mxu0 %v2560
      %2683 = vmatpush.msra.mxu0 %v2559
      %2684 = vmatpush.msra.mxu0 %v2558
      %2685 = vmatpush.msra.mxu0 %v2557
      %2686 = vmatpush.msra.mxu0 %v2556
      %2687 = vmatpush.msra.mxu0 %v2555
      %2688 = vmatpush.msra.mxu0 %v2554
      %2689 = vmatpush.msra.mxu0 %v2553
      %2690 = vmatpush.msra.mxu0 %v2552
      %2691 = vmatpush.msra.mxu0 %v2551
      %2692 = vmatpush.msra.mxu0 %v2550
      %2693 = vmatpush.msra.mxu0 %v2549
      %2694 = vmatpush.msra.mxu0 %v2548
      %2695 = vmatpush.msra.mxu0 %v2547
      %2696 = vmatmul.f32.gmra.mxu0 %v2468
      %v2697 = vpop.f32.mrf.mxu0
      %v2698 = vadd.f32 %v2585, %v2697
      %2699 = vmatmul.f32.gmra.mxu0 %v2470
      %v2700 = vpop.f32.mrf.mxu0
      %v2701 = vadd.f32 %v2588, %v2700
      %2702 = vmatmul.f32.gmra.mxu0 %v2472
      %v2703 = vpop.f32.mrf.mxu0
      %v2704 = vadd.f32 %v2591, %v2703
      %2705 = vmatmul.f32.gmra.mxu0 %v2474
      %v2706 = vpop.f32.mrf.mxu0
      %v2707 = vadd.f32 %v2594, %v2706
      %2708 = vmatmul.f32.gmra.mxu0 %v2476
      %v2709 = vpop.f32.mrf.mxu0
      %v2710 = vadd.f32 %v2597, %v2709
      %2711 = vmatmul.f32.gmra.mxu0 %v2478
      %v2712 = vpop.f32.mrf.mxu0
      %v2713 = vadd.f32 %v2600, %v2712
      %2714 = vmatmul.f32.gmra.mxu0 %v2480
      %v2715 = vpop.f32.mrf.mxu0
      %v2716 = vadd.f32 %v2603, %v2715
      %2717 = vmatmul.f32.gmra.mxu0 %v2482
      %v2718 = vpop.f32.mrf.mxu0
      %v2719 = vadd.f32 %v2606, %v2718
      %2720 = vmatmul.f32.gmra.mxu0 %v2484
      %v2721 = vpop.f32.mrf.mxu0
      %v2722 = vadd.f32 %v2609, %v2721
      %2723 = vmatmul.f32.gmra.mxu0 %v2486
      %v2724 = vpop.f32.mrf.mxu0
      %v2725 = vadd.f32 %v2612, %v2724
      %2726 = vmatmul.f32.gmra.mxu0 %v2488
      %v2727 = vpop.f32.mrf.mxu0
      %v2728 = vadd.f32 %v2615, %v2727
      %2729 = vmatmul.f32.gmra.mxu0 %v2490
      %v2730 = vpop.f32.mrf.mxu0
      %v2731 = vadd.f32 %v2618, %v2730
      %2732 = vmatmul.f32.gmra.mxu0 %v2492
      %v2733 = vpop.f32.mrf.mxu0
      %v2734 = vadd.f32 %v2621, %v2733
      %2735 = vmatmul.f32.gmra.mxu0 %v2494
      %v2736 = vpop.f32.mrf.mxu0
      %v2737 = vadd.f32 %v2624, %v2736
      %2738 = vmatmul.f32.gmra.mxu0 %v2496
      %v2739 = vpop.f32.mrf.mxu0
      %v2740 = vadd.f32 %v2627, %v2739
      %2741 = vmatmul.f32.gmra.mxu0 %v2498
      %v2742 = vpop.f32.mrf.mxu0
      %v2743 = vadd.f32 %v2630, %v2742
      %2744 = vmatmul.f32.gmra.mxu0 %v2500
      %v2745 = vpop.f32.mrf.mxu0
      %v2746 = vadd.f32 %v2633, %v2745
      %2747 = vmatmul.f32.gmra.mxu0 %v2502
      %v2748 = vpop.f32.mrf.mxu0
      %v2749 = vadd.f32 %v2636, %v2748
      %2750 = vmatmul.f32.gmra.mxu0 %v2504
      %v2751 = vpop.f32.mrf.mxu0
      %v2752 = vadd.f32 %v2639, %v2751
      %2753 = vmatmul.f32.gmra.mxu0 %v2506
      %v2754 = vpop.f32.mrf.mxu0
      %v2755 = vadd.f32 %v2642, %v2754
      %2756 = vmatmul.f32.gmra.mxu0 %v2508
      %v2757 = vpop.f32.mrf.mxu0
      %v2758 = vadd.f32 %v2645, %v2757
      %2759 = vmatmul.f32.gmra.mxu0 %v2510
      %v2760 = vpop.f32.mrf.mxu0
      %v2761 = vadd.f32 %v2648, %v2760
      %2762 = vmatmul.f32.gmra.mxu0 %v2512
      %v2763 = vpop.f32.mrf.mxu0
      %v2764 = vadd.f32 %v2651, %v2763
      %2765 = vmatmul.f32.gmra.mxu0 %v2514
      %v2766 = vpop.f32.mrf.mxu0
      %v2767 = vadd.f32 %v2654, %v2766
      %2768 = vmatmul.f32.gmra.mxu0 %v2516
      %v2769 = vpop.f32.mrf.mxu0
      %v2770 = vadd.f32 %v2657, %v2769
      %2771 = vmatmul.f32.gmra.mxu0 %v2518
      %v2772 = vpop.f32.mrf.mxu0
      %v2773 = vadd.f32 %v2660, %v2772
      %2774 = vmatmul.f32.gmra.mxu0 %v2520
      %v2775 = vpop.f32.mrf.mxu0
      %v2776 = vadd.f32 %v2663, %v2775
      %2777 = vmatmul.f32.gmra.mxu0 %v2522
      %v2778 = vpop.f32.mrf.mxu0
      %v2779 = vadd.f32 %v2666, %v2778
      %2780 = vmatmul.f32.gmra.mxu0 %v2524
      %v2781 = vpop.f32.mrf.mxu0
      %v2782 = vadd.f32 %v2669, %v2781
      %2783 = vmatmul.f32.gmra.mxu0 %v2526
      %v2784 = vpop.f32.mrf.mxu0
      %v2785 = vadd.f32 %v2672, %v2784
      %2786 = vmatmul.f32.gmra.mxu0 %v2528
      %v2787 = vpop.f32.mrf.mxu0
      %v2788 = vadd.f32 %v2675, %v2787
      %2789 = vmatmul.f32.gmra.mxu0 %v2530
      %v2790 = vpop.f32.mrf.mxu0
      %v2791 = vadd.f32 %v2678, %v2790
      %2792 = vdwg.mxu0
      %v2793 = vld [vmem:[%s416] sm:$0xff]
      %v2794 = vld [vmem:[%s416 + $0x8] sm:$0xff]
      %v2795 = vld [vmem:[%s416 + $0x10] sm:$0xff]
      %v2796 = vld [vmem:[%s416 + $0x18] sm:$0xff]
      %v2797 = vld [vmem:[%s416 + $0x20] sm:$0xff]
      %v2798 = vld [vmem:[%s416 + $0x28] sm:$0xff]
      %v2799 = vld [vmem:[%s416 + $0x30] sm:$0xff]
      %v2800 = vld [vmem:[%s416 + $0x38] sm:$0xff]
      %v2801 = vld [vmem:[%s416 + $0x40] sm:$0xff]
      %v2802 = vld [vmem:[%s416 + $0x48] sm:$0xff]
      %v2803 = vld [vmem:[%s416 + $0x50] sm:$0xff]
      %v2804 = vld [vmem:[%s416 + $0x58] sm:$0xff]
      %v2805 = vld [vmem:[%s416 + $0x60] sm:$0xff]
      %v2806 = vld [vmem:[%s416 + $0x68] sm:$0xff]
      %v2807 = vld [vmem:[%s416 + $0x70] sm:$0xff]
      %v2808 = vld [vmem:[%s416 + $0x78] sm:$0xff]
      %v2809 = vld [vmem:[%s416 + $0x80] sm:$0xff]
      %v2810 = vld [vmem:[%s416 + $0x88] sm:$0xff]
      %v2811 = vld [vmem:[%s416 + $0x90] sm:$0xff]
      %v2812 = vld [vmem:[%s416 + $0x98] sm:$0xff]
      %v2813 = vld [vmem:[%s416 + $0xa0] sm:$0xff]
      %v2814 = vld [vmem:[%s416 + $0xa8] sm:$0xff]
      %v2815 = vld [vmem:[%s416 + $0xb0] sm:$0xff]
      %v2816 = vld [vmem:[%s416 + $0xb8] sm:$0xff]
      %v2817 = vld [vmem:[%s416 + $0xc0] sm:$0xff]
      %v2818 = vld [vmem:[%s416 + $0xc8] sm:$0xff]
      %v2819 = vld [vmem:[%s416 + $0xd0] sm:$0xff]
      %v2820 = vld [vmem:[%s416 + $0xd8] sm:$0xff]
      %v2821 = vld [vmem:[%s416 + $0xe0] sm:$0xff]
      %v2822 = vld [vmem:[%s416 + $0xe8] sm:$0xff]
      %v2823 = vld [vmem:[%s416 + $0xf0] sm:$0xff]
      %v2824 = vld [vmem:[%s416 + $0xf8] sm:$0xff]
      %v2825 = vmul.f32 %v2698, 0.5
      %v2826 = vmul.f32 %v2701, 0.5
      %v2827 = vmul.f32 %v2704, 0.5
      %v2828 = vmul.f32 %v2707, 0.5
      %v2829 = vmul.f32 %v2710, 0.5
      %v2830 = vmul.f32 %v2713, 0.5
      %v2831 = vmul.f32 %v2716, 0.5
      %v2832 = vmul.f32 %v2719, 0.5
      %v2833 = vmul.f32 %v2722, 0.5
      %v2834 = vmul.f32 %v2725, 0.5
      %v2835 = vmul.f32 %v2728, 0.5
      %v2836 = vmul.f32 %v2731, 0.5
      %v2837 = vmul.f32 %v2734, 0.5
      %v2838 = vmul.f32 %v2737, 0.5
      %v2839 = vmul.f32 %v2740, 0.5
      %v2840 = vmul.f32 %v2743, 0.5
      %v2841 = vmul.f32 %v2746, 0.5
      %v2842 = vmul.f32 %v2749, 0.5
      %v2843 = vmul.f32 %v2752, 0.5
      %v2844 = vmul.f32 %v2755, 0.5
      %v2845 = vmul.f32 %v2758, 0.5
      %v2846 = vmul.f32 %v2761, 0.5
      %v2847 = vmul.f32 %v2764, 0.5
      %v2848 = vmul.f32 %v2767, 0.5
      %v2849 = vmul.f32 %v2770, 0.5
      %v2850 = vmul.f32 %v2773, 0.5
      %v2851 = vmul.f32 %v2776, 0.5
      %v2852 = vmul.f32 %v2779, 0.5
      %v2853 = vmul.f32 %v2782, 0.5
      %v2854 = vmul.f32 %v2785, 0.5
      %v2855 = vmul.f32 %v2788, 0.5
      %v2856 = vmul.f32 %v2791, 0.5
      %v2857 = vmul.f32 %v2825, 1.442695
      %v2858 = vpow.pop %v2857
      %v2859 = vmul.f32 %v2826, 1.442695
      %v2860 = vpow.pop %v2859
      %v2861 = vmul.f32 %v2827, 1.442695
      %v2862 = vpow.pop %v2861
      %v2863 = vmul.f32 %v2828, 1.442695
      %v2864 = vpow.pop %v2863
      %v2865 = vmul.f32 %v2829, 1.442695
      %v2866 = vpow.pop %v2865
      %v2867 = vmul.f32 %v2830, 1.442695
      %v2868 = vpow.pop %v2867
      %v2869 = vmul.f32 %v2831, 1.442695
      %v2870 = vpow.pop %v2869
      %v2871 = vmul.f32 %v2832, 1.442695
      %v2872 = vpow.pop %v2871
      %v2873 = vmul.f32 %v2833, 1.442695
      %v2874 = vpow.pop %v2873
      %v2875 = vmul.f32 %v2834, 1.442695
      %v2876 = vpow.pop %v2875
      %v2877 = vmul.f32 %v2835, 1.442695
      %v2878 = vpow.pop %v2877
      %v2879 = vmul.f32 %v2836, 1.442695
      %v2880 = vpow.pop %v2879
      %v2881 = vmul.f32 %v2837, 1.442695
      %v2882 = vpow.pop %v2881
      %v2883 = vmul.f32 %v2838, 1.442695
      %v2884 = vpow.pop %v2883
      %v2885 = vmul.f32 %v2839, 1.442695
      %v2886 = vpow.pop %v2885
      %v2887 = vmul.f32 %v2840, 1.442695
      %v2888 = vpow.pop %v2887
      %v2889 = vmul.f32 %v2841, 1.442695
      %v2890 = vpow.pop %v2889
      %v2891 = vmul.f32 %v2842, 1.442695
      %v2892 = vpow.pop %v2891
      %v2893 = vmul.f32 %v2843, 1.442695
      %v2894 = vpow.pop %v2893
      %v2895 = vmul.f32 %v2844, 1.442695
      %v2896 = vpow.pop %v2895
      %v2897 = vmul.f32 %v2845, 1.442695
      %v2898 = vpow.pop %v2897
      %v2899 = vmul.f32 %v2846, 1.442695
      %v2900 = vpow.pop %v2899
      %v2901 = vmul.f32 %v2847, 1.442695
      %v2902 = vpow.pop %v2901
      %v2903 = vmul.f32 %v2848, 1.442695
      %v2904 = vpow.pop %v2903
      %v2905 = vmul.f32 %v2849, 1.442695
      %v2906 = vpow.pop %v2905
      %v2907 = vmul.f32 %v2850, 1.442695
      %v2908 = vpow.pop %v2907
      %v2909 = vmul.f32 %v2851, 1.442695
      %v2910 = vpow.pop %v2909
      %v2911 = vmul.f32 %v2852, 1.442695
      %v2912 = vpow.pop %v2911
      %v2913 = vmul.f32 %v2853, 1.442695
      %v2914 = vpow.pop %v2913
      %v2915 = vmul.f32 %v2854, 1.442695
      %v2916 = vpow.pop %v2915
      %v2917 = vmul.f32 %v2855, 1.442695
      %v2918 = vpow.pop %v2917
      %v2919 = vmul.f32 %v2856, 1.442695
      %v2920 = vpow.pop %v2919
      %2953 = vrot.lane.b32.xlu0 %v2858, 64
      %v2954 = vpop.permute.xlu0 %2953
      %2955 = vrot.lane.b32.xlu0 %v2860, 64
      %v2956 = vpop.permute.xlu0 %2955
      %2957 = vrot.lane.b32.xlu0 %v2862, 64
      %v2958 = vpop.permute.xlu0 %2957
      %2959 = vrot.lane.b32.xlu0 %v2864, 64
      %v2960 = vpop.permute.xlu0 %2959
      %2961 = vrot.lane.b32.xlu0 %v2866, 64
      %v2962 = vpop.permute.xlu0 %2961
      %2963 = vrot.lane.b32.xlu0 %v2868, 64
      %v2964 = vpop.permute.xlu0 %2963
      %2965 = vrot.lane.b32.xlu0 %v2870, 64
      %v2966 = vpop.permute.xlu0 %2965
      %2967 = vrot.lane.b32.xlu0 %v2872, 64
      %v2968 = vpop.permute.xlu0 %2967
      %2969 = vrot.lane.b32.xlu0 %v2874, 64
      %v2970 = vpop.permute.xlu0 %2969
      %2971 = vrot.lane.b32.xlu0 %v2876, 64
      %v2972 = vpop.permute.xlu0 %2971
      %2973 = vrot.lane.b32.xlu0 %v2878, 64
      %v2974 = vpop.permute.xlu0 %2973
      %2975 = vrot.lane.b32.xlu0 %v2880, 64
      %v2976 = vpop.permute.xlu0 %2975
      %2977 = vrot.lane.b32.xlu0 %v2882, 64
      %v2978 = vpop.permute.xlu0 %2977
      %2979 = vrot.lane.b32.xlu0 %v2884, 64
      %v2980 = vpop.permute.xlu0 %2979
      %2981 = vrot.lane.b32.xlu0 %v2886, 64
      %v2982 = vpop.permute.xlu0 %2981
      %2983 = vrot.lane.b32.xlu0 %v2888, 64
      %v2984 = vpop.permute.xlu0 %2983
      %2985 = vrot.lane.b32.xlu0 %v2890, 64
      %v2986 = vpop.permute.xlu0 %2985
      %2987 = vrot.lane.b32.xlu0 %v2892, 64
      %v2988 = vpop.permute.xlu0 %2987
      %2989 = vrot.lane.b32.xlu0 %v2894, 64
      %v2990 = vpop.permute.xlu0 %2989
      %2991 = vrot.lane.b32.xlu0 %v2896, 64
      %v2992 = vpop.permute.xlu0 %2991
      %2993 = vrot.lane.b32.xlu0 %v2898, 64
      %v2994 = vpop.permute.xlu0 %2993
      %2995 = vrot.lane.b32.xlu0 %v2900, 64
      %v2996 = vpop.permute.xlu0 %2995
      %2997 = vrot.lane.b32.xlu0 %v2902, 64
      %v2998 = vpop.permute.xlu0 %2997
      %2999 = vrot.lane.b32.xlu0 %v2904, 64
      %v3000 = vpop.permute.xlu0 %2999
      %3001 = vrot.lane.b32.xlu0 %v2906, 64
      %v3002 = vpop.permute.xlu0 %3001
      %3003 = vrot.lane.b32.xlu0 %v2908, 64
      %v3004 = vpop.permute.xlu0 %3003
      %3005 = vrot.lane.b32.xlu0 %v2910, 64
      %v3006 = vpop.permute.xlu0 %3005
      %3007 = vrot.lane.b32.xlu0 %v2912, 64
      %v3008 = vpop.permute.xlu0 %3007
      %3009 = vrot.lane.b32.xlu0 %v2914, 64
      %v3010 = vpop.permute.xlu0 %3009
      %3011 = vrot.lane.b32.xlu0 %v2916, 64
      %v3012 = vpop.permute.xlu0 %3011
      %3013 = vrot.lane.b32.xlu0 %v2918, 64
      %v3014 = vpop.permute.xlu0 %3013
      %3015 = vrot.lane.b32.xlu0 %v2920, 64
      %v3016 = vpop.permute.xlu0 %3015
      %v3049 = vmul.f32 %v2793, %v2954
      %v3050 = vmul.f32 %v2794, %v2956
      %v3051 = vmul.f32 %v2795, %v2958
      %v3052 = vmul.f32 %v2796, %v2960
      %v3053 = vmul.f32 %v2797, %v2962
      %v3054 = vmul.f32 %v2798, %v2964
      %v3055 = vmul.f32 %v2799, %v2966
      %v3056 = vmul.f32 %v2800, %v2968
      %v3057 = vmul.f32 %v2801, %v2970
      %v3058 = vmul.f32 %v2802, %v2972
      %v3059 = vmul.f32 %v2803, %v2974
      %v3060 = vmul.f32 %v2804, %v2976
      %v3061 = vmul.f32 %v2805, %v2978
      %v3062 = vmul.f32 %v2806, %v2980
      %v3063 = vmul.f32 %v2807, %v2982
      %v3064 = vmul.f32 %v2808, %v2984
      %v3065 = vmul.f32 %v2809, %v2986
      %v3066 = vmul.f32 %v2810, %v2988
      %v3067 = vmul.f32 %v2811, %v2990
      %v3068 = vmul.f32 %v2812, %v2992
      %v3069 = vmul.f32 %v2813, %v2994
      %v3070 = vmul.f32 %v2814, %v2996
      %v3071 = vmul.f32 %v2815, %v2998
      %v3072 = vmul.f32 %v2816, %v3000
      %v3073 = vmul.f32 %v2817, %v3002
      %v3074 = vmul.f32 %v2818, %v3004
      %v3075 = vmul.f32 %v2819, %v3006
      %v3076 = vmul.f32 %v2820, %v3008
      %v3077 = vmul.f32 %v2821, %v3010
      %v3078 = vmul.f32 %v2822, %v3012
      %v3079 = vmul.f32 %v2823, %v3014
      %v3080 = vmul.f32 %v2824, %v3016
      %v3081 = vadd.f32 %v2698, %v3049
      %v3082 = vadd.f32 %v2701, %v3050
      %v3083 = vadd.f32 %v2704, %v3051
      %v3084 = vadd.f32 %v2707, %v3052
      %v3085 = vadd.f32 %v2710, %v3053
      %v3086 = vadd.f32 %v2713, %v3054
      %v3087 = vadd.f32 %v2716, %v3055
      %v3088 = vadd.f32 %v2719, %v3056
      %v3089 = vadd.f32 %v2722, %v3057
      %v3090 = vadd.f32 %v2725, %v3058
      %v3091 = vadd.f32 %v2728, %v3059
      %v3092 = vadd.f32 %v2731, %v3060
      %v3093 = vadd.f32 %v2734, %v3061
      %v3094 = vadd.f32 %v2737, %v3062
      %v3095 = vadd.f32 %v2740, %v3063
      %v3096 = vadd.f32 %v2743, %v3064
      %v3097 = vadd.f32 %v2746, %v3065
      %v3098 = vadd.f32 %v2749, %v3066
      %v3099 = vadd.f32 %v2752, %v3067
      %v3100 = vadd.f32 %v2755, %v3068
      %v3101 = vadd.f32 %v2758, %v3069
      %v3102 = vadd.f32 %v2761, %v3070
      %v3103 = vadd.f32 %v2764, %v3071
      %v3104 = vadd.f32 %v2767, %v3072
      %v3105 = vadd.f32 %v2770, %v3073
      %v3106 = vadd.f32 %v2773, %v3074
      %v3107 = vadd.f32 %v2776, %v3075
      %v3108 = vadd.f32 %v2779, %v3076
      %v3109 = vadd.f32 %v2782, %v3077
      %v3110 = vadd.f32 %v2785, %v3078
      %v3111 = vadd.f32 %v2788, %v3079
      %v3112 = vadd.f32 %v2791, %v3080
      %v3113 = vld [vmem:[%s6] sm:$0xff]
      %v3114 = vld [vmem:[%s6 + $0x8] sm:$0xff]
      %v3115 = vld [vmem:[%s6 + $0x10] sm:$0xff]
      %v3116 = vld [vmem:[%s6 + $0x18] sm:$0xff]
      %v3117 = vld [vmem:[%s6 + $0x20] sm:$0xff]
      %v3118 = vld [vmem:[%s6 + $0x28] sm:$0xff]
      %v3119 = vld [vmem:[%s6 + $0x30] sm:$0xff]
      %v3120 = vld [vmem:[%s6 + $0x38] sm:$0xff]
      %v3121 = vld [vmem:[%s6 + $0x40] sm:$0xff]
      %v3122 = vld [vmem:[%s6 + $0x48] sm:$0xff]
      %v3123 = vld [vmem:[%s6 + $0x50] sm:$0xff]
      %v3124 = vld [vmem:[%s6 + $0x58] sm:$0xff]
      %v3125 = vld [vmem:[%s6 + $0x60] sm:$0xff]
      %v3126 = vld [vmem:[%s6 + $0x68] sm:$0xff]
      %v3127 = vld [vmem:[%s6 + $0x70] sm:$0xff]
      %v3128 = vld [vmem:[%s6 + $0x78] sm:$0xff]
      %v3129 = vld [vmem:[%s7] sm:$0x3]
      %v3131 = vperm.slane %v3129, 0
      %v3132 = vperm.slane %v3129, 1
      %vm3135 = vcmask 523264
      %v3137 = vsel %vm3135, %v3081, 0
      %v3140 = vsel %vm3135, %v3082, 0
      %v3143 = vsel %vm3135, %v3083, 0
      %v3146 = vsel %vm3135, %v3084, 0
      %v3149 = vsel %vm3135, %v3085, 0
      %v3152 = vsel %vm3135, %v3086, 0
      %v3155 = vsel %vm3135, %v3087, 0
      %v3158 = vsel %vm3135, %v3088, 0
      %v3161 = vsel %vm3135, %v3089, 0
      %v3164 = vsel %vm3135, %v3090, 0
      %v3167 = vsel %vm3135, %v3091, 0
      %v3170 = vsel %vm3135, %v3092, 0
      %v3173 = vsel %vm3135, %v3093, 0
      %v3176 = vsel %vm3135, %v3094, 0
      %v3179 = vsel %vm3135, %v3095, 0
      %v3182 = vsel %vm3135, %v3096, 0
      %v3185 = vsel %vm3135, %v3097, 0
      %v3188 = vsel %vm3135, %v3098, 0
      %v3191 = vsel %vm3135, %v3099, 0
      %v3194 = vsel %vm3135, %v3100, 0
      %v3197 = vsel %vm3135, %v3101, 0
      %v3200 = vsel %vm3135, %v3102, 0
      %v3203 = vsel %vm3135, %v3103, 0
      %v3206 = vsel %vm3135, %v3104, 0
      %v3209 = vsel %vm3135, %v3105, 0
      %v3212 = vsel %vm3135, %v3106, 0
      %v3215 = vsel %vm3135, %v3107, 0
      %v3218 = vsel %vm3135, %v3108, 0
      %v3221 = vsel %vm3135, %v3109, 0
      %v3224 = vsel %vm3135, %v3110, 0
      %v3227 = vsel %vm3135, %v3111, 0
      %v3230 = vsel %vm3135, %v3112, 0
      %3232 = vmatpush.msra.mxu0 0.0
      %3233 = vmatpush.msra.mxu0 0.0
      %3234 = vmatpush.msra.mxu0 0.0
      %3235 = vmatpush.msra.mxu0 0.0
      %3236 = vmatpush.msra.mxu0 0.0
      %3237 = vmatpush.msra.mxu0 0.0
      %3238 = vmatpush.msra.mxu0 0.0
      %3239 = vmatpush.msra.mxu0 0.0
      %3240 = vmatpush.msra.mxu0 %v3127
      %3241 = vmatpush.msra.mxu0 %v3125
      %3242 = vmatpush.msra.mxu0 %v3123
      %3243 = vmatpush.msra.mxu0 %v3121
      %3244 = vmatpush.msra.mxu0 %v3119
      %3245 = vmatpush.msra.mxu0 %v3117
      %3246 = vmatpush.msra.mxu0 %v3115
      %3247 = vmatpush.msra.mxu0 %v3113
      %3248 = vmatmul.f32.gmra.mxu0 %v3137
      %v3249 = vpop.f32.mrf.mxu0
      %v3250 = vadd.f32 %v3131, %v3249
      %3251 = vmatmul.f32.gmra.mxu0 %v3140
      %v3252 = vpop.f32.mrf.mxu0
      %v3253 = vadd.f32 %v3131, %v3252
      %3254 = vmatmul.f32.gmra.mxu0 %v3143
      %v3255 = vpop.f32.mrf.mxu0
      %v3256 = vadd.f32 %v3131, %v3255
      %3257 = vmatmul.f32.gmra.mxu0 %v3146
      %v3258 = vpop.f32.mrf.mxu0
      %v3259 = vadd.f32 %v3131, %v3258
      %3260 = vmatmul.f32.gmra.mxu0 %v3149
      %v3261 = vpop.f32.mrf.mxu0
      %v3262 = vadd.f32 %v3131, %v3261
      %3263 = vmatmul.f32.gmra.mxu0 %v3152
      %v3264 = vpop.f32.mrf.mxu0
      %v3265 = vadd.f32 %v3131, %v3264
      %3266 = vmatmul.f32.gmra.mxu0 %v3155
      %v3267 = vpop.f32.mrf.mxu0
      %v3268 = vadd.f32 %v3131, %v3267
      %3269 = vmatmul.f32.gmra.mxu0 %v3158
      %v3270 = vpop.f32.mrf.mxu0
      %v3271 = vadd.f32 %v3131, %v3270
      %3272 = vmatmul.f32.gmra.mxu0 %v3161
      %v3273 = vpop.f32.mrf.mxu0
      %v3274 = vadd.f32 %v3131, %v3273
      %3275 = vmatmul.f32.gmra.mxu0 %v3164
      %v3276 = vpop.f32.mrf.mxu0
      %v3277 = vadd.f32 %v3131, %v3276
      %3278 = vmatmul.f32.gmra.mxu0 %v3167
      %v3279 = vpop.f32.mrf.mxu0
      %v3280 = vadd.f32 %v3131, %v3279
      %3281 = vmatmul.f32.gmra.mxu0 %v3170
      %v3282 = vpop.f32.mrf.mxu0
      %v3283 = vadd.f32 %v3131, %v3282
      %3284 = vmatmul.f32.gmra.mxu0 %v3173
      %v3285 = vpop.f32.mrf.mxu0
      %v3286 = vadd.f32 %v3131, %v3285
      %3287 = vmatmul.f32.gmra.mxu0 %v3176
      %v3288 = vpop.f32.mrf.mxu0
      %v3289 = vadd.f32 %v3131, %v3288
      %3290 = vmatmul.f32.gmra.mxu0 %v3179
      %v3291 = vpop.f32.mrf.mxu0
      %v3292 = vadd.f32 %v3131, %v3291
      %3293 = vmatmul.f32.gmra.mxu0 %v3182
      %v3294 = vpop.f32.mrf.mxu0
      %v3295 = vadd.f32 %v3131, %v3294
      %3296 = vmatmul.f32.gmra.mxu0 %v3185
      %v3297 = vpop.f32.mrf.mxu0
      %v3298 = vadd.f32 %v3131, %v3297
      %3299 = vmatmul.f32.gmra.mxu0 %v3188
      %v3300 = vpop.f32.mrf.mxu0
      %v3301 = vadd.f32 %v3131, %v3300
      %3302 = vmatmul.f32.gmra.mxu0 %v3191
      %v3303 = vpop.f32.mrf.mxu0
      %v3304 = vadd.f32 %v3131, %v3303
      %3305 = vmatmul.f32.gmra.mxu0 %v3194
      %v3306 = vpop.f32.mrf.mxu0
      %v3307 = vadd.f32 %v3131, %v3306
      %3308 = vmatmul.f32.gmra.mxu0 %v3197
      %v3309 = vpop.f32.mrf.mxu0
      %v3310 = vadd.f32 %v3131, %v3309
      %3311 = vmatmul.f32.gmra.mxu0 %v3200
      %v3312 = vpop.f32.mrf.mxu0
      %v3313 = vadd.f32 %v3131, %v3312
      %3314 = vmatmul.f32.gmra.mxu0 %v3203
      %v3315 = vpop.f32.mrf.mxu0
      %v3316 = vadd.f32 %v3131, %v3315
      %3317 = vmatmul.f32.gmra.mxu0 %v3206
      %v3318 = vpop.f32.mrf.mxu0
      %v3319 = vadd.f32 %v3131, %v3318
      %3320 = vmatmul.f32.gmra.mxu0 %v3209
      %v3321 = vpop.f32.mrf.mxu0
      %v3322 = vadd.f32 %v3131, %v3321
      %3323 = vmatmul.f32.gmra.mxu0 %v3212
      %v3324 = vpop.f32.mrf.mxu0
      %v3325 = vadd.f32 %v3131, %v3324
      %3326 = vmatmul.f32.gmra.mxu0 %v3215
      %v3327 = vpop.f32.mrf.mxu0
      %v3328 = vadd.f32 %v3131, %v3327
      %3329 = vmatmul.f32.gmra.mxu0 %v3218
      %v3330 = vpop.f32.mrf.mxu0
      %v3331 = vadd.f32 %v3131, %v3330
      %3332 = vmatmul.f32.gmra.mxu0 %v3221
      %v3333 = vpop.f32.mrf.mxu0
      %v3334 = vadd.f32 %v3131, %v3333
      %3335 = vmatmul.f32.gmra.mxu0 %v3224
      %v3336 = vpop.f32.mrf.mxu0
      %v3337 = vadd.f32 %v3131, %v3336
      %3338 = vmatmul.f32.gmra.mxu0 %v3227
      %v3339 = vpop.f32.mrf.mxu0
      %v3340 = vadd.f32 %v3131, %v3339
      %3341 = vmatmul.f32.gmra.mxu0 %v3230
      %v3342 = vpop.f32.mrf.mxu0
      %v3343 = vadd.f32 %v3131, %v3342
      %3344 = vdwg.mxu0
      %3345 = vmatpush.msra.mxu0 0.0
      %3346 = vmatpush.msra.mxu0 0.0
      %3347 = vmatpush.msra.mxu0 0.0
      %3348 = vmatpush.msra.mxu0 0.0
      %3349 = vmatpush.msra.mxu0 0.0
      %3350 = vmatpush.msra.mxu0 0.0
      %3351 = vmatpush.msra.mxu0 0.0
      %3352 = vmatpush.msra.mxu0 0.0
      %3353 = vmatpush.msra.mxu0 %v3128
      %3354 = vmatpush.msra.mxu0 %v3126
      %3355 = vmatpush.msra.mxu0 %v3124
      %3356 = vmatpush.msra.mxu0 %v3122
      %3357 = vmatpush.msra.mxu0 %v3120
      %3358 = vmatpush.msra.mxu0 %v3118
      %3359 = vmatpush.msra.mxu0 %v3116
      %3360 = vmatpush.msra.mxu0 %v3114
      %3361 = vmatmul.f32.gmra.mxu0 %v3137
      %v3362 = vpop.f32.mrf.mxu0
      %v3363 = vadd.f32 %v3132, %v3362
      %3364 = vmatmul.f32.gmra.mxu0 %v3140
      %v3365 = vpop.f32.mrf.mxu0
      %v3366 = vadd.f32 %v3132, %v3365
      %3367 = vmatmul.f32.gmra.mxu0 %v3143
      %v3368 = vpop.f32.mrf.mxu0
      %v3369 = vadd.f32 %v3132, %v3368
      %3370 = vmatmul.f32.gmra.mxu0 %v3146
      %v3371 = vpop.f32.mrf.mxu0
      %v3372 = vadd.f32 %v3132, %v3371
      %3373 = vmatmul.f32.gmra.mxu0 %v3149
      %v3374 = vpop.f32.mrf.mxu0
      %v3375 = vadd.f32 %v3132, %v3374
      %3376 = vmatmul.f32.gmra.mxu0 %v3152
      %v3377 = vpop.f32.mrf.mxu0
      %v3378 = vadd.f32 %v3132, %v3377
      %3379 = vmatmul.f32.gmra.mxu0 %v3155
      %v3380 = vpop.f32.mrf.mxu0
      %v3381 = vadd.f32 %v3132, %v3380
      %3382 = vmatmul.f32.gmra.mxu0 %v3158
      %v3383 = vpop.f32.mrf.mxu0
      %v3384 = vadd.f32 %v3132, %v3383
      %3385 = vmatmul.f32.gmra.mxu0 %v3161
      %v3386 = vpop.f32.mrf.mxu0
      %v3387 = vadd.f32 %v3132, %v3386
      %3388 = vmatmul.f32.gmra.mxu0 %v3164
      %v3389 = vpop.f32.mrf.mxu0
      %v3390 = vadd.f32 %v3132, %v3389
      %3391 = vmatmul.f32.gmra.mxu0 %v3167
      %v3392 = vpop.f32.mrf.mxu0
      %v3393 = vadd.f32 %v3132, %v3392
      %3394 = vmatmul.f32.gmra.mxu0 %v3170
      %v3395 = vpop.f32.mrf.mxu0
      %v3396 = vadd.f32 %v3132, %v3395
      %3397 = vmatmul.f32.gmra.mxu0 %v3173
      %v3398 = vpop.f32.mrf.mxu0
      %v3399 = vadd.f32 %v3132, %v3398
      %3400 = vmatmul.f32.gmra.mxu0 %v3176
      %v3401 = vpop.f32.mrf.mxu0
      %v3402 = vadd.f32 %v3132, %v3401
      %3403 = vmatmul.f32.gmra.mxu0 %v3179
      %v3404 = vpop.f32.mrf.mxu0
      %v3405 = vadd.f32 %v3132, %v3404
      %3406 = vmatmul.f32.gmra.mxu0 %v3182
      %v3407 = vpop.f32.mrf.mxu0
      %v3408 = vadd.f32 %v3132, %v3407
      %3409 = vmatmul.f32.gmra.mxu0 %v3185
      %v3410 = vpop.f32.mrf.mxu0
      %v3411 = vadd.f32 %v3132, %v3410
      %3412 = vmatmul.f32.gmra.mxu0 %v3188
      %v3413 = vpop.f32.mrf.mxu0
      %v3414 = vadd.f32 %v3132, %v3413
      %3415 = vmatmul.f32.gmra.mxu0 %v3191
      %v3416 = vpop.f32.mrf.mxu0
      %v3417 = vadd.f32 %v3132, %v3416
      %3418 = vmatmul.f32.gmra.mxu0 %v3194
      %v3419 = vpop.f32.mrf.mxu0
      %v3420 = vadd.f32 %v3132, %v3419
      %3421 = vmatmul.f32.gmra.mxu0 %v3197
      %v3422 = vpop.f32.mrf.mxu0
      %v3423 = vadd.f32 %v3132, %v3422
      %3424 = vmatmul.f32.gmra.mxu0 %v3200
      %v3425 = vpop.f32.mrf.mxu0
      %v3426 = vadd.f32 %v3132, %v3425
      %3427 = vmatmul.f32.gmra.mxu0 %v3203
      %v3428 = vpop.f32.mrf.mxu0
      %v3429 = vadd.f32 %v3132, %v3428
      %3430 = vmatmul.f32.gmra.mxu0 %v3206
      %v3431 = vpop.f32.mrf.mxu0
      %v3432 = vadd.f32 %v3132, %v3431
      %3433 = vmatmul.f32.gmra.mxu0 %v3209
      %v3434 = vpop.f32.mrf.mxu0
      %v3435 = vadd.f32 %v3132, %v3434
      %3436 = vmatmul.f32.gmra.mxu0 %v3212
      %v3437 = vpop.f32.mrf.mxu0
      %v3438 = vadd.f32 %v3132, %v3437
      %3439 = vmatmul.f32.gmra.mxu0 %v3215
      %v3440 = vpop.f32.mrf.mxu0
      %v3441 = vadd.f32 %v3132, %v3440
      %3442 = vmatmul.f32.gmra.mxu0 %v3218
      %v3443 = vpop.f32.mrf.mxu0
      %v3444 = vadd.f32 %v3132, %v3443
      %3445 = vmatmul.f32.gmra.mxu0 %v3221
      %v3446 = vpop.f32.mrf.mxu0
      %v3447 = vadd.f32 %v3132, %v3446
      %3448 = vmatmul.f32.gmra.mxu0 %v3224
      %v3449 = vpop.f32.mrf.mxu0
      %v3450 = vadd.f32 %v3132, %v3449
      %3451 = vmatmul.f32.gmra.mxu0 %v3227
      %v3452 = vpop.f32.mrf.mxu0
      %v3453 = vadd.f32 %v3132, %v3452
      %3454 = vmatmul.f32.gmra.mxu0 %v3230
      %v3455 = vpop.f32.mrf.mxu0
      %v3456 = vadd.f32 %v3132, %v3455
      %3457 = vdwg.mxu0
      %v3458 = vmax.f32 %v3250, 0.0
      %v3459 = vmax.f32 %v3363, 0.0
      %v3460 = vmax.f32 %v3253, 0.0
      %v3461 = vmax.f32 %v3366, 0.0
      %v3462 = vmax.f32 %v3256, 0.0
      %v3463 = vmax.f32 %v3369, 0.0
      %v3464 = vmax.f32 %v3259, 0.0
      %v3465 = vmax.f32 %v3372, 0.0
      %v3466 = vmax.f32 %v3262, 0.0
      %v3467 = vmax.f32 %v3375, 0.0
      %v3468 = vmax.f32 %v3265, 0.0
      %v3469 = vmax.f32 %v3378, 0.0
      %v3470 = vmax.f32 %v3268, 0.0
      %v3471 = vmax.f32 %v3381, 0.0
      %v3472 = vmax.f32 %v3271, 0.0
      %v3473 = vmax.f32 %v3384, 0.0
      %v3474 = vmax.f32 %v3274, 0.0
      %v3475 = vmax.f32 %v3387, 0.0
      %v3476 = vmax.f32 %v3277, 0.0
      %v3477 = vmax.f32 %v3390, 0.0
      %v3478 = vmax.f32 %v3280, 0.0
      %v3479 = vmax.f32 %v3393, 0.0
      %v3480 = vmax.f32 %v3283, 0.0
      %v3481 = vmax.f32 %v3396, 0.0
      %v3482 = vmax.f32 %v3286, 0.0
      %v3483 = vmax.f32 %v3399, 0.0
      %v3484 = vmax.f32 %v3289, 0.0
      %v3485 = vmax.f32 %v3402, 0.0
      %v3486 = vmax.f32 %v3292, 0.0
      %v3487 = vmax.f32 %v3405, 0.0
      %v3488 = vmax.f32 %v3295, 0.0
      %v3489 = vmax.f32 %v3408, 0.0
      %v3490 = vmax.f32 %v3298, 0.0
      %v3491 = vmax.f32 %v3411, 0.0
      %v3492 = vmax.f32 %v3301, 0.0
      %v3493 = vmax.f32 %v3414, 0.0
      %v3494 = vmax.f32 %v3304, 0.0
      %v3495 = vmax.f32 %v3417, 0.0
      %v3496 = vmax.f32 %v3307, 0.0
      %v3497 = vmax.f32 %v3420, 0.0
      %v3498 = vmax.f32 %v3310, 0.0
      %v3499 = vmax.f32 %v3423, 0.0
      %v3500 = vmax.f32 %v3313, 0.0
      %v3501 = vmax.f32 %v3426, 0.0
      %v3502 = vmax.f32 %v3316, 0.0
      %v3503 = vmax.f32 %v3429, 0.0
      %v3504 = vmax.f32 %v3319, 0.0
      %v3505 = vmax.f32 %v3432, 0.0
      %v3506 = vmax.f32 %v3322, 0.0
      %v3507 = vmax.f32 %v3435, 0.0
      %v3508 = vmax.f32 %v3325, 0.0
      %v3509 = vmax.f32 %v3438, 0.0
      %v3510 = vmax.f32 %v3328, 0.0
      %v3511 = vmax.f32 %v3441, 0.0
      %v3512 = vmax.f32 %v3331, 0.0
      %v3513 = vmax.f32 %v3444, 0.0
      %v3514 = vmax.f32 %v3334, 0.0
      %v3515 = vmax.f32 %v3447, 0.0
      %v3516 = vmax.f32 %v3337, 0.0
      %v3517 = vmax.f32 %v3450, 0.0
      %v3518 = vmax.f32 %v3340, 0.0
      %v3519 = vmax.f32 %v3453, 0.0
      %v3520 = vmax.f32 %v3343, 0.0
      %v3521 = vmax.f32 %v3456, 0.0
      %v3522 = vld [vmem:[%s8] sm:$0xff]
      %v3523 = vld [vmem:[%s8 + $0x8] sm:$0xff]
      %v3524 = vld [vmem:[%s8 + $0x10] sm:$0xff]
      %v3525 = vld [vmem:[%s8 + $0x18] sm:$0xff]
      %v3526 = vld [vmem:[%s8 + $0x20] sm:$0xff]
      %v3527 = vld [vmem:[%s8 + $0x28] sm:$0xff]
      %v3528 = vld [vmem:[%s8 + $0x30] sm:$0xff]
      %v3529 = vld [vmem:[%s8 + $0x38] sm:$0xff]
      %v3530 = vld [vmem:[%s8 + $0x40] sm:$0xff]
      %v3531 = vld [vmem:[%s8 + $0x48] sm:$0xff]
      %v3532 = vld [vmem:[%s8 + $0x50] sm:$0xff]
      %v3533 = vld [vmem:[%s8 + $0x58] sm:$0xff]
      %v3534 = vld [vmem:[%s8 + $0x60] sm:$0xff]
      %v3535 = vld [vmem:[%s8 + $0x68] sm:$0xff]
      %v3536 = vld [vmem:[%s8 + $0x70] sm:$0xff]
      %v3537 = vld [vmem:[%s8 + $0x78] sm:$0xff]
      %v3538 = vld [vmem:[%s8 + $0x80] sm:$0xff]
      %v3539 = vld [vmem:[%s8 + $0x88] sm:$0xff]
      %v3540 = vld [vmem:[%s8 + $0x90] sm:$0xff]
      %v3541 = vld [vmem:[%s8 + $0x98] sm:$0xff]
      %v3542 = vld [vmem:[%s8 + $0xa0] sm:$0xff]
      %v3543 = vld [vmem:[%s8 + $0xa8] sm:$0xff]
      %v3544 = vld [vmem:[%s8 + $0xb0] sm:$0xff]
      %v3545 = vld [vmem:[%s8 + $0xb8] sm:$0xff]
      %v3546 = vld [vmem:[%s8 + $0xc0] sm:$0xff]
      %v3547 = vld [vmem:[%s8 + $0xc8] sm:$0xff]
      %v3548 = vld [vmem:[%s8 + $0xd0] sm:$0xff]
      %v3549 = vld [vmem:[%s8 + $0xd8] sm:$0xff]
      %v3550 = vld [vmem:[%s8 + $0xe0] sm:$0xff]
      %v3551 = vld [vmem:[%s8 + $0xe8] sm:$0xff]
      %v3552 = vld [vmem:[%s8 + $0xf0] sm:$0xff]
      %v3553 = vld [vmem:[%s8 + $0xf8] sm:$0xff]
      %v3554 = vld [vmem:[%s8 + $0x100] sm:$0xff]
      %v3555 = vld [vmem:[%s8 + $0x108] sm:$0xff]
      %v3556 = vld [vmem:[%s8 + $0x110] sm:$0xff]
      %v3557 = vld [vmem:[%s8 + $0x118] sm:$0xff]
      %v3558 = vld [vmem:[%s8 + $0x120] sm:$0xff]
      %v3559 = vld [vmem:[%s8 + $0x128] sm:$0xff]
      %v3560 = vld [vmem:[%s8 + $0x130] sm:$0xff]
      %v3561 = vld [vmem:[%s8 + $0x138] sm:$0xff]
      %v3562 = vld [vmem:[%s8 + $0x140] sm:$0xff]
      %v3563 = vld [vmem:[%s8 + $0x148] sm:$0xff]
      %v3564 = vld [vmem:[%s8 + $0x150] sm:$0xff]
      %v3565 = vld [vmem:[%s8 + $0x158] sm:$0xff]
      %v3566 = vld [vmem:[%s8 + $0x160] sm:$0xff]
      %v3567 = vld [vmem:[%s8 + $0x168] sm:$0xff]
      %v3568 = vld [vmem:[%s8 + $0x170] sm:$0xff]
      %v3569 = vld [vmem:[%s8 + $0x178] sm:$0xff]
      %v3570 = vld [vmem:[%s8 + $0x180] sm:$0xff]
      %v3571 = vld [vmem:[%s8 + $0x188] sm:$0xff]
      %v3572 = vld [vmem:[%s8 + $0x190] sm:$0xff]
      %v3573 = vld [vmem:[%s8 + $0x198] sm:$0xff]
      %v3574 = vld [vmem:[%s8 + $0x1a0] sm:$0xff]
      %v3575 = vld [vmem:[%s8 + $0x1a8] sm:$0xff]
      %v3576 = vld [vmem:[%s8 + $0x1b0] sm:$0xff]
      %v3577 = vld [vmem:[%s8 + $0x1b8] sm:$0xff]
      %v3578 = vld [vmem:[%s8 + $0x1c0] sm:$0xff]
      %v3579 = vld [vmem:[%s8 + $0x1c8] sm:$0xff]
      %v3580 = vld [vmem:[%s8 + $0x1d0] sm:$0xff]
      %v3581 = vld [vmem:[%s8 + $0x1d8] sm:$0xff]
      %v3582 = vld [vmem:[%s8 + $0x1e0] sm:$0xff]
      %v3583 = vld [vmem:[%s8 + $0x1e8] sm:$0xff]
      %v3584 = vld [vmem:[%s8 + $0x1f0] sm:$0xff]
      %v3585 = vld [vmem:[%s8 + $0x1f8] sm:$0xff]
      %v3586 = vld [vmem:[%s8 + $0x200] sm:$0xff]
      %v3587 = vld [vmem:[%s8 + $0x208] sm:$0xff]
      %v3588 = vld [vmem:[%s8 + $0x210] sm:$0xff]
      %v3589 = vld [vmem:[%s8 + $0x218] sm:$0xff]
      %v3590 = vld [vmem:[%s8 + $0x220] sm:$0xff]
      %v3591 = vld [vmem:[%s8 + $0x228] sm:$0xff]
      %v3592 = vld [vmem:[%s8 + $0x230] sm:$0xff]
      %v3593 = vld [vmem:[%s8 + $0x238] sm:$0xff]
      %v3594 = vld [vmem:[%s8 + $0x240] sm:$0xff]
      %v3595 = vld [vmem:[%s8 + $0x248] sm:$0xff]
      %v3596 = vld [vmem:[%s8 + $0x250] sm:$0xff]
      %v3597 = vld [vmem:[%s8 + $0x258] sm:$0xff]
      %v3598 = vld [vmem:[%s8 + $0x260] sm:$0xff]
      %v3599 = vld [vmem:[%s8 + $0x268] sm:$0xff]
      %v3600 = vld [vmem:[%s8 + $0x270] sm:$0xff]
      %v3601 = vld [vmem:[%s8 + $0x278] sm:$0xff]
      %v3602 = vld [vmem:[%s8 + $0x280] sm:$0xff]
      %v3603 = vld [vmem:[%s8 + $0x288] sm:$0xff]
      %v3604 = vld [vmem:[%s8 + $0x290] sm:$0xff]
      %v3605 = vld [vmem:[%s8 + $0x298] sm:$0xff]
      %v3606 = vld [vmem:[%s8 + $0x2a0] sm:$0xff]
      %v3607 = vld [vmem:[%s8 + $0x2a8] sm:$0xff]
      %v3608 = vld [vmem:[%s8 + $0x2b0] sm:$0xff]
      %v3609 = vld [vmem:[%s8 + $0x2b8] sm:$0xff]
      %v3610 = vld [vmem:[%s8 + $0x2c0] sm:$0xff]
      %v3611 = vld [vmem:[%s8 + $0x2c8] sm:$0xff]
      %v3612 = vld [vmem:[%s8 + $0x2d0] sm:$0xff]
      %v3613 = vld [vmem:[%s8 + $0x2d8] sm:$0xff]
      %v3614 = vld [vmem:[%s8 + $0x2e0] sm:$0xff]
      %v3615 = vld [vmem:[%s8 + $0x2e8] sm:$0xff]
      %v3616 = vld [vmem:[%s8 + $0x2f0] sm:$0xff]
      %v3617 = vld [vmem:[%s8 + $0x2f8] sm:$0xff]
      %v3618 = vld [vmem:[%s8 + $0x300] sm:$0xff]
      %v3619 = vld [vmem:[%s8 + $0x308] sm:$0xff]
      %v3620 = vld [vmem:[%s8 + $0x310] sm:$0xff]
      %v3621 = vld [vmem:[%s8 + $0x318] sm:$0xff]
      %v3622 = vld [vmem:[%s8 + $0x320] sm:$0xff]
      %v3623 = vld [vmem:[%s8 + $0x328] sm:$0xff]
      %v3624 = vld [vmem:[%s8 + $0x330] sm:$0xff]
      %v3625 = vld [vmem:[%s8 + $0x338] sm:$0xff]
      %v3626 = vld [vmem:[%s8 + $0x340] sm:$0xff]
      %v3627 = vld [vmem:[%s8 + $0x348] sm:$0xff]
      %v3628 = vld [vmem:[%s8 + $0x350] sm:$0xff]
      %v3629 = vld [vmem:[%s8 + $0x358] sm:$0xff]
      %v3630 = vld [vmem:[%s8 + $0x360] sm:$0xff]
      %v3631 = vld [vmem:[%s8 + $0x368] sm:$0xff]
      %v3632 = vld [vmem:[%s8 + $0x370] sm:$0xff]
      %v3633 = vld [vmem:[%s8 + $0x378] sm:$0xff]
      %v3634 = vld [vmem:[%s8 + $0x380] sm:$0xff]
      %v3635 = vld [vmem:[%s8 + $0x388] sm:$0xff]
      %v3636 = vld [vmem:[%s8 + $0x390] sm:$0xff]
      %v3637 = vld [vmem:[%s8 + $0x398] sm:$0xff]
      %v3638 = vld [vmem:[%s8 + $0x3a0] sm:$0xff]
      %v3639 = vld [vmem:[%s8 + $0x3a8] sm:$0xff]
      %v3640 = vld [vmem:[%s8 + $0x3b0] sm:$0xff]
      %v3641 = vld [vmem:[%s8 + $0x3b8] sm:$0xff]
      %v3642 = vld [vmem:[%s8 + $0x3c0] sm:$0xff]
      %v3643 = vld [vmem:[%s8 + $0x3c8] sm:$0xff]
      %v3644 = vld [vmem:[%s8 + $0x3d0] sm:$0xff]
      %v3645 = vld [vmem:[%s8 + $0x3d8] sm:$0xff]
      %v3646 = vld [vmem:[%s8 + $0x3e0] sm:$0xff]
      %v3647 = vld [vmem:[%s8 + $0x3e8] sm:$0xff]
      %v3648 = vld [vmem:[%s8 + $0x3f0] sm:$0xff]
      %v3649 = vld [vmem:[%s8 + $0x3f8] sm:$0xff]
      %v3650 = vld [vmem:[%s8 + $0x400] sm:$0xff]
      %v3651 = vld [vmem:[%s8 + $0x408] sm:$0xff]
      %v3652 = vld [vmem:[%s8 + $0x410] sm:$0xff]
      %v3653 = vld [vmem:[%s8 + $0x418] sm:$0xff]
      %v3654 = vld [vmem:[%s8 + $0x420] sm:$0xff]
      %v3655 = vld [vmem:[%s8 + $0x428] sm:$0xff]
      %v3656 = vld [vmem:[%s8 + $0x430] sm:$0xff]
      %v3657 = vld [vmem:[%s8 + $0x438] sm:$0xff]
      %v3658 = vld [vmem:[%s8 + $0x440] sm:$0xff]
      %v3659 = vld [vmem:[%s8 + $0x448] sm:$0xff]
      %v3660 = vld [vmem:[%s8 + $0x450] sm:$0xff]
      %v3661 = vld [vmem:[%s8 + $0x458] sm:$0xff]
      %v3662 = vld [vmem:[%s8 + $0x460] sm:$0xff]
      %v3663 = vld [vmem:[%s8 + $0x468] sm:$0xff]
      %v3664 = vld [vmem:[%s8 + $0x470] sm:$0xff]
      %v3665 = vld [vmem:[%s8 + $0x478] sm:$0xff]
      %v3666 = vld [vmem:[%s8 + $0x480] sm:$0xff]
      %v3667 = vld [vmem:[%s8 + $0x488] sm:$0xff]
      %v3668 = vld [vmem:[%s8 + $0x490] sm:$0xff]
      %v3669 = vld [vmem:[%s8 + $0x498] sm:$0xff]
      %v3670 = vld [vmem:[%s8 + $0x4a0] sm:$0xff]
      %v3671 = vld [vmem:[%s8 + $0x4a8] sm:$0xff]
      %v3672 = vld [vmem:[%s8 + $0x4b0] sm:$0xff]
      %v3673 = vld [vmem:[%s8 + $0x4b8] sm:$0xff]
      %v3674 = vld [vmem:[%s8 + $0x4c0] sm:$0xff]
      %v3675 = vld [vmem:[%s8 + $0x4c8] sm:$0xff]
      %v3676 = vld [vmem:[%s8 + $0x4d0] sm:$0xff]
      %v3677 = vld [vmem:[%s8 + $0x4d8] sm:$0xff]
      %v3678 = vld [vmem:[%s8 + $0x4e0] sm:$0xff]
      %v3679 = vld [vmem:[%s8 + $0x4e8] sm:$0xff]
      %v3680 = vld [vmem:[%s8 + $0x4f0] sm:$0xff]
      %v3681 = vld [vmem:[%s8 + $0x4f8] sm:$0xff]
      %v3682 = vld [vmem:[%s8 + $0x500] sm:$0xff]
      %v3683 = vld [vmem:[%s8 + $0x508] sm:$0xff]
      %v3684 = vld [vmem:[%s8 + $0x510] sm:$0xff]
      %v3685 = vld [vmem:[%s8 + $0x518] sm:$0xff]
      %v3686 = vld [vmem:[%s8 + $0x520] sm:$0xff]
      %v3687 = vld [vmem:[%s8 + $0x528] sm:$0xff]
      %v3688 = vld [vmem:[%s8 + $0x530] sm:$0xff]
      %v3689 = vld [vmem:[%s8 + $0x538] sm:$0xff]
      %v3690 = vld [vmem:[%s8 + $0x540] sm:$0xff]
      %v3691 = vld [vmem:[%s8 + $0x548] sm:$0xff]
      %v3692 = vld [vmem:[%s8 + $0x550] sm:$0xff]
      %v3693 = vld [vmem:[%s8 + $0x558] sm:$0xff]
      %v3694 = vld [vmem:[%s8 + $0x560] sm:$0xff]
      %v3695 = vld [vmem:[%s8 + $0x568] sm:$0xff]
      %v3696 = vld [vmem:[%s8 + $0x570] sm:$0xff]
      %v3697 = vld [vmem:[%s8 + $0x578] sm:$0xff]
      %v3698 = vld [vmem:[%s8 + $0x580] sm:$0xff]
      %v3699 = vld [vmem:[%s8 + $0x588] sm:$0xff]
      %v3700 = vld [vmem:[%s8 + $0x590] sm:$0xff]
      %v3701 = vld [vmem:[%s8 + $0x598] sm:$0xff]
      %v3702 = vld [vmem:[%s8 + $0x5a0] sm:$0xff]
      %v3703 = vld [vmem:[%s8 + $0x5a8] sm:$0xff]
      %v3704 = vld [vmem:[%s8 + $0x5b0] sm:$0xff]
      %v3705 = vld [vmem:[%s8 + $0x5b8] sm:$0xff]
      %v3706 = vld [vmem:[%s8 + $0x5c0] sm:$0xff]
      %v3707 = vld [vmem:[%s8 + $0x5c8] sm:$0xff]
      %v3708 = vld [vmem:[%s8 + $0x5d0] sm:$0xff]
      %v3709 = vld [vmem:[%s8 + $0x5d8] sm:$0xff]
      %v3710 = vld [vmem:[%s8 + $0x5e0] sm:$0xff]
      %v3711 = vld [vmem:[%s8 + $0x5e8] sm:$0xff]
      %v3712 = vld [vmem:[%s8 + $0x5f0] sm:$0xff]
      %v3713 = vld [vmem:[%s8 + $0x5f8] sm:$0xff]
      %v3714 = vld [vmem:[%s8 + $0x600] sm:$0xff]
      %v3715 = vld [vmem:[%s8 + $0x608] sm:$0xff]
      %v3716 = vld [vmem:[%s8 + $0x610] sm:$0xff]
      %v3717 = vld [vmem:[%s8 + $0x618] sm:$0xff]
      %v3718 = vld [vmem:[%s8 + $0x620] sm:$0xff]
      %v3719 = vld [vmem:[%s8 + $0x628] sm:$0xff]
      %v3720 = vld [vmem:[%s8 + $0x630] sm:$0xff]
      %v3721 = vld [vmem:[%s8 + $0x638] sm:$0xff]
      %v3722 = vld [vmem:[%s8 + $0x640] sm:$0xff]
      %v3723 = vld [vmem:[%s8 + $0x648] sm:$0xff]
      %v3724 = vld [vmem:[%s8 + $0x650] sm:$0xff]
      %v3725 = vld [vmem:[%s8 + $0x658] sm:$0xff]
      %v3726 = vld [vmem:[%s8 + $0x660] sm:$0xff]
      %v3727 = vld [vmem:[%s8 + $0x668] sm:$0xff]
      %v3728 = vld [vmem:[%s8 + $0x670] sm:$0xff]
      %v3729 = vld [vmem:[%s8 + $0x678] sm:$0xff]
      %v3730 = vld [vmem:[%s8 + $0x680] sm:$0xff]
      %v3731 = vld [vmem:[%s8 + $0x688] sm:$0xff]
      %v3732 = vld [vmem:[%s8 + $0x690] sm:$0xff]
      %v3733 = vld [vmem:[%s8 + $0x698] sm:$0xff]
      %v3734 = vld [vmem:[%s8 + $0x6a0] sm:$0xff]
      %v3735 = vld [vmem:[%s8 + $0x6a8] sm:$0xff]
      %v3736 = vld [vmem:[%s8 + $0x6b0] sm:$0xff]
      %v3737 = vld [vmem:[%s8 + $0x6b8] sm:$0xff]
      %v3738 = vld [vmem:[%s8 + $0x6c0] sm:$0xff]
      %v3739 = vld [vmem:[%s8 + $0x6c8] sm:$0xff]
      %v3740 = vld [vmem:[%s8 + $0x6d0] sm:$0xff]
      %v3741 = vld [vmem:[%s8 + $0x6d8] sm:$0xff]
      %v3742 = vld [vmem:[%s8 + $0x6e0] sm:$0xff]
      %v3743 = vld [vmem:[%s8 + $0x6e8] sm:$0xff]
      %v3744 = vld [vmem:[%s8 + $0x6f0] sm:$0xff]
      %v3745 = vld [vmem:[%s8 + $0x6f8] sm:$0xff]
      %v3746 = vld [vmem:[%s9] sm:$0xff]
      %v3748 = vperm.slane %v3746, 0
      %v3749 = vperm.slane %v3746, 1
      %v3750 = vperm.slane %v3746, 2
      %v3751 = vperm.slane %v3746, 3
      %v3752 = vperm.slane %v3746, 4
      %v3753 = vperm.slane %v3746, 5
      %v3754 = vperm.slane %v3746, 6
      %3762 = vmatpush.msra.mxu0 %v3627
      %3763 = vmatpush.msra.mxu0 %v3620
      %3764 = vmatpush.msra.mxu0 %v3613
      %3765 = vmatpush.msra.mxu0 %v3606
      %3766 = vmatpush.msra.mxu0 %v3599
      %3767 = vmatpush.msra.mxu0 %v3592
      %3768 = vmatpush.msra.mxu0 %v3585
      %3769 = vmatpush.msra.mxu0 %v3578
      %3770 = vmatpush.msra.mxu0 %v3571
      %3771 = vmatpush.msra.mxu0 %v3564
      %3772 = vmatpush.msra.mxu0 %v3557
      %3773 = vmatpush.msra.mxu0 %v3550
      %3774 = vmatpush.msra.mxu0 %v3543
      %3775 = vmatpush.msra.mxu0 %v3536
      %3776 = vmatpush.msra.mxu0 %v3529
      %3777 = vmatpush.msra.mxu0 %v3522
      %3778 = vmatmul.f32.gmra.mxu0 %v3458
      %v3779 = vpop.f32.mrf.mxu0
      %v3780 = vadd.f32 %v3748, %v3779
      %3781 = vmatmul.f32.gmra.mxu0 %v3460
      %v3782 = vpop.f32.mrf.mxu0
      %v3783 = vadd.f32 %v3748, %v3782
      %3784 = vmatmul.f32.gmra.mxu0 %v3462
      %v3785 = vpop.f32.mrf.mxu0
      %v3786 = vadd.f32 %v3748, %v3785
      %3787 = vmatmul.f32.gmra.mxu0 %v3464
      %v3788 = vpop.f32.mrf.mxu0
      %v3789 = vadd.f32 %v3748, %v3788
      %3790 = vmatmul.f32.gmra.mxu0 %v3466
      %v3791 = vpop.f32.mrf.mxu0
      %v3792 = vadd.f32 %v3748, %v3791
      %3793 = vmatmul.f32.gmra.mxu0 %v3468
      %v3794 = vpop.f32.mrf.mxu0
      %v3795 = vadd.f32 %v3748, %v3794
      %3796 = vmatmul.f32.gmra.mxu0 %v3470
      %v3797 = vpop.f32.mrf.mxu0
      %v3798 = vadd.f32 %v3748, %v3797
      %3799 = vmatmul.f32.gmra.mxu0 %v3472
      %v3800 = vpop.f32.mrf.mxu0
      %v3801 = vadd.f32 %v3748, %v3800
      %3802 = vmatmul.f32.gmra.mxu0 %v3474
      %v3803 = vpop.f32.mrf.mxu0
      %v3804 = vadd.f32 %v3748, %v3803
      %3805 = vmatmul.f32.gmra.mxu0 %v3476
      %v3806 = vpop.f32.mrf.mxu0
      %v3807 = vadd.f32 %v3748, %v3806
      %3808 = vmatmul.f32.gmra.mxu0 %v3478
      %v3809 = vpop.f32.mrf.mxu0
      %v3810 = vadd.f32 %v3748, %v3809
      %3811 = vmatmul.f32.gmra.mxu0 %v3480
      %v3812 = vpop.f32.mrf.mxu0
      %v3813 = vadd.f32 %v3748, %v3812
      %3814 = vmatmul.f32.gmra.mxu0 %v3482
      %v3815 = vpop.f32.mrf.mxu0
      %v3816 = vadd.f32 %v3748, %v3815
      %3817 = vmatmul.f32.gmra.mxu0 %v3484
      %v3818 = vpop.f32.mrf.mxu0
      %v3819 = vadd.f32 %v3748, %v3818
      %3820 = vmatmul.f32.gmra.mxu0 %v3486
      %v3821 = vpop.f32.mrf.mxu0
      %v3822 = vadd.f32 %v3748, %v3821
      %3823 = vmatmul.f32.gmra.mxu0 %v3488
      %v3824 = vpop.f32.mrf.mxu0
      %v3825 = vadd.f32 %v3748, %v3824
      %3826 = vmatmul.f32.gmra.mxu0 %v3490
      %v3827 = vpop.f32.mrf.mxu0
      %v3828 = vadd.f32 %v3748, %v3827
      %3829 = vmatmul.f32.gmra.mxu0 %v3492
      %v3830 = vpop.f32.mrf.mxu0
      %v3831 = vadd.f32 %v3748, %v3830
      %3832 = vmatmul.f32.gmra.mxu0 %v3494
      %v3833 = vpop.f32.mrf.mxu0
      %v3834 = vadd.f32 %v3748, %v3833
      %3835 = vmatmul.f32.gmra.mxu0 %v3496
      %v3836 = vpop.f32.mrf.mxu0
      %v3837 = vadd.f32 %v3748, %v3836
      %3838 = vmatmul.f32.gmra.mxu0 %v3498
      %v3839 = vpop.f32.mrf.mxu0
      %v3840 = vadd.f32 %v3748, %v3839
      %3841 = vmatmul.f32.gmra.mxu0 %v3500
      %v3842 = vpop.f32.mrf.mxu0
      %v3843 = vadd.f32 %v3748, %v3842
      %3844 = vmatmul.f32.gmra.mxu0 %v3502
      %v3845 = vpop.f32.mrf.mxu0
      %v3846 = vadd.f32 %v3748, %v3845
      %3847 = vmatmul.f32.gmra.mxu0 %v3504
      %v3848 = vpop.f32.mrf.mxu0
      %v3849 = vadd.f32 %v3748, %v3848
      %3850 = vmatmul.f32.gmra.mxu0 %v3506
      %v3851 = vpop.f32.mrf.mxu0
      %v3852 = vadd.f32 %v3748, %v3851
      %3853 = vmatmul.f32.gmra.mxu0 %v3508
      %v3854 = vpop.f32.mrf.mxu0
      %v3855 = vadd.f32 %v3748, %v3854
      %3856 = vmatmul.f32.gmra.mxu0 %v3510
      %v3857 = vpop.f32.mrf.mxu0
      %v3858 = vadd.f32 %v3748, %v3857
      %3859 = vmatmul.f32.gmra.mxu0 %v3512
      %v3860 = vpop.f32.mrf.mxu0
      %v3861 = vadd.f32 %v3748, %v3860
      %3862 = vmatmul.f32.gmra.mxu0 %v3514
      %v3863 = vpop.f32.mrf.mxu0
      %v3864 = vadd.f32 %v3748, %v3863
      %3865 = vmatmul.f32.gmra.mxu0 %v3516
      %v3866 = vpop.f32.mrf.mxu0
      %v3867 = vadd.f32 %v3748, %v3866
      %3868 = vmatmul.f32.gmra.mxu0 %v3518
      %v3869 = vpop.f32.mrf.mxu0
      %v3870 = vadd.f32 %v3748, %v3869
      %3871 = vmatmul.f32.gmra.mxu0 %v3520
      %v3872 = vpop.f32.mrf.mxu0
      %v3873 = vadd.f32 %v3748, %v3872
      %3874 = vdwg.mxu0
      %3875 = vmatpush.msra.mxu0 %v3739
      %3876 = vmatpush.msra.mxu0 %v3732
      %3877 = vmatpush.msra.mxu0 %v3725
      %3878 = vmatpush.msra.mxu0 %v3718
      %3879 = vmatpush.msra.mxu0 %v3711
      %3880 = vmatpush.msra.mxu0 %v3704
      %3881 = vmatpush.msra.mxu0 %v3697
      %3882 = vmatpush.msra.mxu0 %v3690
      %3883 = vmatpush.msra.mxu0 %v3683
      %3884 = vmatpush.msra.mxu0 %v3676
      %3885 = vmatpush.msra.mxu0 %v3669
      %3886 = vmatpush.msra.mxu0 %v3662
      %3887 = vmatpush.msra.mxu0 %v3655
      %3888 = vmatpush.msra.mxu0 %v3648
      %3889 = vmatpush.msra.mxu0 %v3641
      %3890 = vmatpush.msra.mxu0 %v3634
      %3891 = vmatmul.f32.gmra.mxu0 %v3459
      %v3892 = vpop.f32.mrf.mxu0
      %v3893 = vadd.f32 %v3780, %v3892
      %3894 = vmatmul.f32.gmra.mxu0 %v3461
      %v3895 = vpop.f32.mrf.mxu0
      %v3896 = vadd.f32 %v3783, %v3895
      %3897 = vmatmul.f32.gmra.mxu0 %v3463
      %v3898 = vpop.f32.mrf.mxu0
      %v3899 = vadd.f32 %v3786, %v3898
      %3900 = vmatmul.f32.gmra.mxu0 %v3465
      %v3901 = vpop.f32.mrf.mxu0
      %v3902 = vadd.f32 %v3789, %v3901
      %3903 = vmatmul.f32.gmra.mxu0 %v3467
      %v3904 = vpop.f32.mrf.mxu0
      %v3905 = vadd.f32 %v3792, %v3904
      %3906 = vmatmul.f32.gmra.mxu0 %v3469
      %v3907 = vpop.f32.mrf.mxu0
      %v3908 = vadd.f32 %v3795, %v3907
      %3909 = vmatmul.f32.gmra.mxu0 %v3471
      %v3910 = vpop.f32.mrf.mxu0
      %v3911 = vadd.f32 %v3798, %v3910
      %3912 = vmatmul.f32.gmra.mxu0 %v3473
      %v3913 = vpop.f32.mrf.mxu0
      %v3914 = vadd.f32 %v3801, %v3913
      %3915 = vmatmul.f32.gmra.mxu0 %v3475
      %v3916 = vpop.f32.mrf.mxu0
      %v3917 = vadd.f32 %v3804, %v3916
      %3918 = vmatmul.f32.gmra.mxu0 %v3477
      %v3919 = vpop.f32.mrf.mxu0
      %v3920 = vadd.f32 %v3807, %v3919
      %3921 = vmatmul.f32.gmra.mxu0 %v3479
      %v3922 = vpop.f32.mrf.mxu0
      %v3923 = vadd.f32 %v3810, %v3922
      %3924 = vmatmul.f32.gmra.mxu0 %v3481
      %v3925 = vpop.f32.mrf.mxu0
      %v3926 = vadd.f32 %v3813, %v3925
      %3927 = vmatmul.f32.gmra.mxu0 %v3483
      %v3928 = vpop.f32.mrf.mxu0
      %v3929 = vadd.f32 %v3816, %v3928
      %3930 = vmatmul.f32.gmra.mxu0 %v3485
      %v3931 = vpop.f32.mrf.mxu0
      %v3932 = vadd.f32 %v3819, %v3931
      %3933 = vmatmul.f32.gmra.mxu0 %v3487
      %v3934 = vpop.f32.mrf.mxu0
      %v3935 = vadd.f32 %v3822, %v3934
      %3936 = vmatmul.f32.gmra.mxu0 %v3489
      %v3937 = vpop.f32.mrf.mxu0
      %v3938 = vadd.f32 %v3825, %v3937
      %3939 = vmatmul.f32.gmra.mxu0 %v3491
      %v3940 = vpop.f32.mrf.mxu0
      %v3941 = vadd.f32 %v3828, %v3940
      %3942 = vmatmul.f32.gmra.mxu0 %v3493
      %v3943 = vpop.f32.mrf.mxu0
      %v3944 = vadd.f32 %v3831, %v3943
      %3945 = vmatmul.f32.gmra.mxu0 %v3495
      %v3946 = vpop.f32.mrf.mxu0
      %v3947 = vadd.f32 %v3834, %v3946
      %3948 = vmatmul.f32.gmra.mxu0 %v3497
      %v3949 = vpop.f32.mrf.mxu0
      %v3950 = vadd.f32 %v3837, %v3949
      %3951 = vmatmul.f32.gmra.mxu0 %v3499
      %v3952 = vpop.f32.mrf.mxu0
      %v3953 = vadd.f32 %v3840, %v3952
      %3954 = vmatmul.f32.gmra.mxu0 %v3501
      %v3955 = vpop.f32.mrf.mxu0
      %v3956 = vadd.f32 %v3843, %v3955
      %3957 = vmatmul.f32.gmra.mxu0 %v3503
      %v3958 = vpop.f32.mrf.mxu0
      %v3959 = vadd.f32 %v3846, %v3958
      %3960 = vmatmul.f32.gmra.mxu0 %v3505
      %v3961 = vpop.f32.mrf.mxu0
      %v3962 = vadd.f32 %v3849, %v3961
      %3963 = vmatmul.f32.gmra.mxu0 %v3507
      %v3964 = vpop.f32.mrf.mxu0
      %v3965 = vadd.f32 %v3852, %v3964
      %3966 = vmatmul.f32.gmra.mxu0 %v3509
      %v3967 = vpop.f32.mrf.mxu0
      %v3968 = vadd.f32 %v3855, %v3967
      %3969 = vmatmul.f32.gmra.mxu0 %v3511
      %v3970 = vpop.f32.mrf.mxu0
      %v3971 = vadd.f32 %v3858, %v3970
      %3972 = vmatmul.f32.gmra.mxu0 %v3513
      %v3973 = vpop.f32.mrf.mxu0
      %v3974 = vadd.f32 %v3861, %v3973
      %3975 = vmatmul.f32.gmra.mxu0 %v3515
      %v3976 = vpop.f32.mrf.mxu0
      %v3977 = vadd.f32 %v3864, %v3976
      %3978 = vmatmul.f32.gmra.mxu0 %v3517
      %v3979 = vpop.f32.mrf.mxu0
      %v3980 = vadd.f32 %v3867, %v3979
      %3981 = vmatmul.f32.gmra.mxu0 %v3519
      %v3982 = vpop.f32.mrf.mxu0
      %v3983 = vadd.f32 %v3870, %v3982
      %3984 = vmatmul.f32.gmra.mxu0 %v3521
      %v3985 = vpop.f32.mrf.mxu0
      %v3986 = vadd.f32 %v3873, %v3985
      %3987 = vdwg.mxu0
      %3988 = vmatpush.msra.mxu0 %v3628
      %3989 = vmatpush.msra.mxu0 %v3621
      %3990 = vmatpush.msra.mxu0 %v3614
      %3991 = vmatpush.msra.mxu0 %v3607
      %3992 = vmatpush.msra.mxu0 %v3600
      %3993 = vmatpush.msra.mxu0 %v3593
      %3994 = vmatpush.msra.mxu0 %v3586
      %3995 = vmatpush.msra.mxu0 %v3579
      %3996 = vmatpush.msra.mxu0 %v3572
      %3997 = vmatpush.msra.mxu0 %v3565
      %3998 = vmatpush.msra.mxu0 %v3558
      %3999 = vmatpush.msra.mxu0 %v3551
      %4000 = vmatpush.msra.mxu0 %v3544
      %4001 = vmatpush.msra.mxu0 %v3537
      %4002 = vmatpush.msra.mxu0 %v3530
      %4003 = vmatpush.msra.mxu0 %v3523
      %4004 = vmatmul.f32.gmra.mxu0 %v3458
      %v4005 = vpop.f32.mrf.mxu0
      %v4006 = vadd.f32 %v3749, %v4005
      %4007 = vmatmul.f32.gmra.mxu0 %v3460
      %v4008 = vpop.f32.mrf.mxu0
      %v4009 = vadd.f32 %v3749, %v4008
      %4010 = vmatmul.f32.gmra.mxu0 %v3462
      %v4011 = vpop.f32.mrf.mxu0
      %v4012 = vadd.f32 %v3749, %v4011
      %4013 = vmatmul.f32.gmra.mxu0 %v3464
      %v4014 = vpop.f32.mrf.mxu0
      %v4015 = vadd.f32 %v3749, %v4014
      %4016 = vmatmul.f32.gmra.mxu0 %v3466
      %v4017 = vpop.f32.mrf.mxu0
      %v4018 = vadd.f32 %v3749, %v4017
      %4019 = vmatmul.f32.gmra.mxu0 %v3468
      %v4020 = vpop.f32.mrf.mxu0
      %v4021 = vadd.f32 %v3749, %v4020
      %4022 = vmatmul.f32.gmra.mxu0 %v3470
      %v4023 = vpop.f32.mrf.mxu0
      %v4024 = vadd.f32 %v3749, %v4023
      %4025 = vmatmul.f32.gmra.mxu0 %v3472
      %v4026 = vpop.f32.mrf.mxu0
      %v4027 = vadd.f32 %v3749, %v4026
      %4028 = vmatmul.f32.gmra.mxu0 %v3474
      %v4029 = vpop.f32.mrf.mxu0
      %v4030 = vadd.f32 %v3749, %v4029
      %4031 = vmatmul.f32.gmra.mxu0 %v3476
      %v4032 = vpop.f32.mrf.mxu0
      %v4033 = vadd.f32 %v3749, %v4032
      %4034 = vmatmul.f32.gmra.mxu0 %v3478
      %v4035 = vpop.f32.mrf.mxu0
      %v4036 = vadd.f32 %v3749, %v4035
      %4037 = vmatmul.f32.gmra.mxu0 %v3480
      %v4038 = vpop.f32.mrf.mxu0
      %v4039 = vadd.f32 %v3749, %v4038
      %4040 = vmatmul.f32.gmra.mxu0 %v3482
      %v4041 = vpop.f32.mrf.mxu0
      %v4042 = vadd.f32 %v3749, %v4041
      %4043 = vmatmul.f32.gmra.mxu0 %v3484
      %v4044 = vpop.f32.mrf.mxu0
      %v4045 = vadd.f32 %v3749, %v4044
      %4046 = vmatmul.f32.gmra.mxu0 %v3486
      %v4047 = vpop.f32.mrf.mxu0
      %v4048 = vadd.f32 %v3749, %v4047
      %4049 = vmatmul.f32.gmra.mxu0 %v3488
      %v4050 = vpop.f32.mrf.mxu0
      %v4051 = vadd.f32 %v3749, %v4050
      %4052 = vmatmul.f32.gmra.mxu0 %v3490
      %v4053 = vpop.f32.mrf.mxu0
      %v4054 = vadd.f32 %v3749, %v4053
      %4055 = vmatmul.f32.gmra.mxu0 %v3492
      %v4056 = vpop.f32.mrf.mxu0
      %v4057 = vadd.f32 %v3749, %v4056
      %4058 = vmatmul.f32.gmra.mxu0 %v3494
      %v4059 = vpop.f32.mrf.mxu0
      %v4060 = vadd.f32 %v3749, %v4059
      %4061 = vmatmul.f32.gmra.mxu0 %v3496
      %v4062 = vpop.f32.mrf.mxu0
      %v4063 = vadd.f32 %v3749, %v4062
      %4064 = vmatmul.f32.gmra.mxu0 %v3498
      %v4065 = vpop.f32.mrf.mxu0
      %v4066 = vadd.f32 %v3749, %v4065
      %4067 = vmatmul.f32.gmra.mxu0 %v3500
      %v4068 = vpop.f32.mrf.mxu0
      %v4069 = vadd.f32 %v3749, %v4068
      %4070 = vmatmul.f32.gmra.mxu0 %v3502
      %v4071 = vpop.f32.mrf.mxu0
      %v4072 = vadd.f32 %v3749, %v4071
      %4073 = vmatmul.f32.gmra.mxu0 %v3504
      %v4074 = vpop.f32.mrf.mxu0
      %v4075 = vadd.f32 %v3749, %v4074
      %4076 = vmatmul.f32.gmra.mxu0 %v3506
      %v4077 = vpop.f32.mrf.mxu0
      %v4078 = vadd.f32 %v3749, %v4077
      %4079 = vmatmul.f32.gmra.mxu0 %v3508
      %v4080 = vpop.f32.mrf.mxu0
      %v4081 = vadd.f32 %v3749, %v4080
      %4082 = vmatmul.f32.gmra.mxu0 %v3510
      %v4083 = vpop.f32.mrf.mxu0
      %v4084 = vadd.f32 %v3749, %v4083
      %4085 = vmatmul.f32.gmra.mxu0 %v3512
      %v4086 = vpop.f32.mrf.mxu0
      %v4087 = vadd.f32 %v3749, %v4086
      %4088 = vmatmul.f32.gmra.mxu0 %v3514
      %v4089 = vpop.f32.mrf.mxu0
      %v4090 = vadd.f32 %v3749, %v4089
      %4091 = vmatmul.f32.gmra.mxu0 %v3516
      %v4092 = vpop.f32.mrf.mxu0
      %v4093 = vadd.f32 %v3749, %v4092
      %4094 = vmatmul.f32.gmra.mxu0 %v3518
      %v4095 = vpop.f32.mrf.mxu0
      %v4096 = vadd.f32 %v3749, %v4095
      %4097 = vmatmul.f32.gmra.mxu0 %v3520
      %v4098 = vpop.f32.mrf.mxu0
      %v4099 = vadd.f32 %v3749, %v4098
      %4100 = vdwg.mxu0
      %4101 = vmatpush.msra.mxu0 %v3740
      %4102 = vmatpush.msra.mxu0 %v3733
      %4103 = vmatpush.msra.mxu0 %v3726
      %4104 = vmatpush.msra.mxu0 %v3719
      %4105 = vmatpush.msra.mxu0 %v3712
      %4106 = vmatpush.msra.mxu0 %v3705
      %4107 = vmatpush.msra.mxu0 %v3698
      %4108 = vmatpush.msra.mxu0 %v3691
      %4109 = vmatpush.msra.mxu0 %v3684
      %4110 = vmatpush.msra.mxu0 %v3677
      %4111 = vmatpush.msra.mxu0 %v3670
      %4112 = vmatpush.msra.mxu0 %v3663
      %4113 = vmatpush.msra.mxu0 %v3656
      %4114 = vmatpush.msra.mxu0 %v3649
      %4115 = vmatpush.msra.mxu0 %v3642
      %4116 = vmatpush.msra.mxu0 %v3635
      %4117 = vmatmul.f32.gmra.mxu0 %v3459
      %v4118 = vpop.f32.mrf.mxu0
      %v4119 = vadd.f32 %v4006, %v4118
      %4120 = vmatmul.f32.gmra.mxu0 %v3461
      %v4121 = vpop.f32.mrf.mxu0
      %v4122 = vadd.f32 %v4009, %v4121
      %4123 = vmatmul.f32.gmra.mxu0 %v3463
      %v4124 = vpop.f32.mrf.mxu0
      %v4125 = vadd.f32 %v4012, %v4124
      %4126 = vmatmul.f32.gmra.mxu0 %v3465
      %v4127 = vpop.f32.mrf.mxu0
      %v4128 = vadd.f32 %v4015, %v4127
      %4129 = vmatmul.f32.gmra.mxu0 %v3467
      %v4130 = vpop.f32.mrf.mxu0
      %v4131 = vadd.f32 %v4018, %v4130
      %4132 = vmatmul.f32.gmra.mxu0 %v3469
      %v4133 = vpop.f32.mrf.mxu0
      %v4134 = vadd.f32 %v4021, %v4133
      %4135 = vmatmul.f32.gmra.mxu0 %v3471
      %v4136 = vpop.f32.mrf.mxu0
      %v4137 = vadd.f32 %v4024, %v4136
      %4138 = vmatmul.f32.gmra.mxu0 %v3473
      %v4139 = vpop.f32.mrf.mxu0
      %v4140 = vadd.f32 %v4027, %v4139
      %4141 = vmatmul.f32.gmra.mxu0 %v3475
      %v4142 = vpop.f32.mrf.mxu0
      %v4143 = vadd.f32 %v4030, %v4142
      %4144 = vmatmul.f32.gmra.mxu0 %v3477
      %v4145 = vpop.f32.mrf.mxu0
      %v4146 = vadd.f32 %v4033, %v4145
      %4147 = vmatmul.f32.gmra.mxu0 %v3479
      %v4148 = vpop.f32.mrf.mxu0
      %v4149 = vadd.f32 %v4036, %v4148
      %4150 = vmatmul.f32.gmra.mxu0 %v3481
      %v4151 = vpop.f32.mrf.mxu0
      %v4152 = vadd.f32 %v4039, %v4151
      %4153 = vmatmul.f32.gmra.mxu0 %v3483
      %v4154 = vpop.f32.mrf.mxu0
      %v4155 = vadd.f32 %v4042, %v4154
      %4156 = vmatmul.f32.gmra.mxu0 %v3485
      %v4157 = vpop.f32.mrf.mxu0
      %v4158 = vadd.f32 %v4045, %v4157
      %4159 = vmatmul.f32.gmra.mxu0 %v3487
      %v4160 = vpop.f32.mrf.mxu0
      %v4161 = vadd.f32 %v4048, %v4160
      %4162 = vmatmul.f32.gmra.mxu0 %v3489
      %v4163 = vpop.f32.mrf.mxu0
      %v4164 = vadd.f32 %v4051, %v4163
      %4165 = vmatmul.f32.gmra.mxu0 %v3491
      %v4166 = vpop.f32.mrf.mxu0
      %v4167 = vadd.f32 %v4054, %v4166
      %4168 = vmatmul.f32.gmra.mxu0 %v3493
      %v4169 = vpop.f32.mrf.mxu0
      %v4170 = vadd.f32 %v4057, %v4169
      %4171 = vmatmul.f32.gmra.mxu0 %v3495
      %v4172 = vpop.f32.mrf.mxu0
      %v4173 = vadd.f32 %v4060, %v4172
      %4174 = vmatmul.f32.gmra.mxu0 %v3497
      %v4175 = vpop.f32.mrf.mxu0
      %v4176 = vadd.f32 %v4063, %v4175
      %4177 = vmatmul.f32.gmra.mxu0 %v3499
      %v4178 = vpop.f32.mrf.mxu0
      %v4179 = vadd.f32 %v4066, %v4178
      %4180 = vmatmul.f32.gmra.mxu0 %v3501
      %v4181 = vpop.f32.mrf.mxu0
      %v4182 = vadd.f32 %v4069, %v4181
      %4183 = vmatmul.f32.gmra.mxu0 %v3503
      %v4184 = vpop.f32.mrf.mxu0
      %v4185 = vadd.f32 %v4072, %v4184
      %4186 = vmatmul.f32.gmra.mxu0 %v3505
      %v4187 = vpop.f32.mrf.mxu0
      %v4188 = vadd.f32 %v4075, %v4187
      %4189 = vmatmul.f32.gmra.mxu0 %v3507
      %v4190 = vpop.f32.mrf.mxu0
      %v4191 = vadd.f32 %v4078, %v4190
      %4192 = vmatmul.f32.gmra.mxu0 %v3509
      %v4193 = vpop.f32.mrf.mxu0
      %v4194 = vadd.f32 %v4081, %v4193
      %4195 = vmatmul.f32.gmra.mxu0 %v3511
      %v4196 = vpop.f32.mrf.mxu0
      %v4197 = vadd.f32 %v4084, %v4196
      %4198 = vmatmul.f32.gmra.mxu0 %v3513
      %v4199 = vpop.f32.mrf.mxu0
      %v4200 = vadd.f32 %v4087, %v4199
      %4201 = vmatmul.f32.gmra.mxu0 %v3515
      %v4202 = vpop.f32.mrf.mxu0
      %v4203 = vadd.f32 %v4090, %v4202
      %4204 = vmatmul.f32.gmra.mxu0 %v3517
      %v4205 = vpop.f32.mrf.mxu0
      %v4206 = vadd.f32 %v4093, %v4205
      %4207 = vmatmul.f32.gmra.mxu0 %v3519
      %v4208 = vpop.f32.mrf.mxu0
      %v4209 = vadd.f32 %v4096, %v4208
      %4210 = vmatmul.f32.gmra.mxu0 %v3521
      %v4211 = vpop.f32.mrf.mxu0
      %v4212 = vadd.f32 %v4099, %v4211
      %4213 = vdwg.mxu0
      %4214 = vmatpush.msra.mxu0 %v3629
      %4215 = vmatpush.msra.mxu0 %v3622
      %4216 = vmatpush.msra.mxu0 %v3615
      %4217 = vmatpush.msra.mxu0 %v3608
      %4218 = vmatpush.msra.mxu0 %v3601
      %4219 = vmatpush.msra.mxu0 %v3594
      %4220 = vmatpush.msra.mxu0 %v3587
      %4221 = vmatpush.msra.mxu0 %v3580
      %4222 = vmatpush.msra.mxu0 %v3573
      %4223 = vmatpush.msra.mxu0 %v3566
      %4224 = vmatpush.msra.mxu0 %v3559
      %4225 = vmatpush.msra.mxu0 %v3552
      %4226 = vmatpush.msra.mxu0 %v3545
      %4227 = vmatpush.msra.mxu0 %v3538
      %4228 = vmatpush.msra.mxu0 %v3531
      %4229 = vmatpush.msra.mxu0 %v3524
      %4230 = vmatmul.f32.gmra.mxu0 %v3458
      %v4231 = vpop.f32.mrf.mxu0
      %v4232 = vadd.f32 %v3750, %v4231
      %4233 = vmatmul.f32.gmra.mxu0 %v3460
      %v4234 = vpop.f32.mrf.mxu0
      %v4235 = vadd.f32 %v3750, %v4234
      %4236 = vmatmul.f32.gmra.mxu0 %v3462
      %v4237 = vpop.f32.mrf.mxu0
      %v4238 = vadd.f32 %v3750, %v4237
      %4239 = vmatmul.f32.gmra.mxu0 %v3464
      %v4240 = vpop.f32.mrf.mxu0
      %v4241 = vadd.f32 %v3750, %v4240
      %4242 = vmatmul.f32.gmra.mxu0 %v3466
      %v4243 = vpop.f32.mrf.mxu0
      %v4244 = vadd.f32 %v3750, %v4243
      %4245 = vmatmul.f32.gmra.mxu0 %v3468
      %v4246 = vpop.f32.mrf.mxu0
      %v4247 = vadd.f32 %v3750, %v4246
      %4248 = vmatmul.f32.gmra.mxu0 %v3470
      %v4249 = vpop.f32.mrf.mxu0
      %v4250 = vadd.f32 %v3750, %v4249
      %4251 = vmatmul.f32.gmra.mxu0 %v3472
      %v4252 = vpop.f32.mrf.mxu0
      %v4253 = vadd.f32 %v3750, %v4252
      %4254 = vmatmul.f32.gmra.mxu0 %v3474
      %v4255 = vpop.f32.mrf.mxu0
      %v4256 = vadd.f32 %v3750, %v4255
      %4257 = vmatmul.f32.gmra.mxu0 %v3476
      %v4258 = vpop.f32.mrf.mxu0
      %v4259 = vadd.f32 %v3750, %v4258
      %4260 = vmatmul.f32.gmra.mxu0 %v3478
      %v4261 = vpop.f32.mrf.mxu0
      %v4262 = vadd.f32 %v3750, %v4261
      %4263 = vmatmul.f32.gmra.mxu0 %v3480
      %v4264 = vpop.f32.mrf.mxu0
      %v4265 = vadd.f32 %v3750, %v4264
      %4266 = vmatmul.f32.gmra.mxu0 %v3482
      %v4267 = vpop.f32.mrf.mxu0
      %v4268 = vadd.f32 %v3750, %v4267
      %4269 = vmatmul.f32.gmra.mxu0 %v3484
      %v4270 = vpop.f32.mrf.mxu0
      %v4271 = vadd.f32 %v3750, %v4270
      %4272 = vmatmul.f32.gmra.mxu0 %v3486
      %v4273 = vpop.f32.mrf.mxu0
      %v4274 = vadd.f32 %v3750, %v4273
      %4275 = vmatmul.f32.gmra.mxu0 %v3488
      %v4276 = vpop.f32.mrf.mxu0
      %v4277 = vadd.f32 %v3750, %v4276
      %4278 = vmatmul.f32.gmra.mxu0 %v3490
      %v4279 = vpop.f32.mrf.mxu0
      %v4280 = vadd.f32 %v3750, %v4279
      %4281 = vmatmul.f32.gmra.mxu0 %v3492
      %v4282 = vpop.f32.mrf.mxu0
      %v4283 = vadd.f32 %v3750, %v4282
      %4284 = vmatmul.f32.gmra.mxu0 %v3494
      %v4285 = vpop.f32.mrf.mxu0
      %v4286 = vadd.f32 %v3750, %v4285
      %4287 = vmatmul.f32.gmra.mxu0 %v3496
      %v4288 = vpop.f32.mrf.mxu0
      %v4289 = vadd.f32 %v3750, %v4288
      %4290 = vmatmul.f32.gmra.mxu0 %v3498
      %v4291 = vpop.f32.mrf.mxu0
      %v4292 = vadd.f32 %v3750, %v4291
      %4293 = vmatmul.f32.gmra.mxu0 %v3500
      %v4294 = vpop.f32.mrf.mxu0
      %v4295 = vadd.f32 %v3750, %v4294
      %4296 = vmatmul.f32.gmra.mxu0 %v3502
      %v4297 = vpop.f32.mrf.mxu0
      %v4298 = vadd.f32 %v3750, %v4297
      %4299 = vmatmul.f32.gmra.mxu0 %v3504
      %v4300 = vpop.f32.mrf.mxu0
      %v4301 = vadd.f32 %v3750, %v4300
      %4302 = vmatmul.f32.gmra.mxu0 %v3506
      %v4303 = vpop.f32.mrf.mxu0
      %v4304 = vadd.f32 %v3750, %v4303
      %4305 = vmatmul.f32.gmra.mxu0 %v3508
      %v4306 = vpop.f32.mrf.mxu0
      %v4307 = vadd.f32 %v3750, %v4306
      %4308 = vmatmul.f32.gmra.mxu0 %v3510
      %v4309 = vpop.f32.mrf.mxu0
      %v4310 = vadd.f32 %v3750, %v4309
      %4311 = vmatmul.f32.gmra.mxu0 %v3512
      %v4312 = vpop.f32.mrf.mxu0
      %v4313 = vadd.f32 %v3750, %v4312
      %4314 = vmatmul.f32.gmra.mxu0 %v3514
      %v4315 = vpop.f32.mrf.mxu0
      %v4316 = vadd.f32 %v3750, %v4315
      %4317 = vmatmul.f32.gmra.mxu0 %v3516
      %v4318 = vpop.f32.mrf.mxu0
      %v4319 = vadd.f32 %v3750, %v4318
      %4320 = vmatmul.f32.gmra.mxu0 %v3518
      %v4321 = vpop.f32.mrf.mxu0
      %v4322 = vadd.f32 %v3750, %v4321
      %4323 = vmatmul.f32.gmra.mxu0 %v3520
      %v4324 = vpop.f32.mrf.mxu0
      %v4325 = vadd.f32 %v3750, %v4324
      %4326 = vdwg.mxu0
      %4327 = vmatpush.msra.mxu0 %v3741
      %4328 = vmatpush.msra.mxu0 %v3734
      %4329 = vmatpush.msra.mxu0 %v3727
      %4330 = vmatpush.msra.mxu0 %v3720
      %4331 = vmatpush.msra.mxu0 %v3713
      %4332 = vmatpush.msra.mxu0 %v3706
      %4333 = vmatpush.msra.mxu0 %v3699
      %4334 = vmatpush.msra.mxu0 %v3692
      %4335 = vmatpush.msra.mxu0 %v3685
      %4336 = vmatpush.msra.mxu0 %v3678
      %4337 = vmatpush.msra.mxu0 %v3671
      %4338 = vmatpush.msra.mxu0 %v3664
      %4339 = vmatpush.msra.mxu0 %v3657
      %4340 = vmatpush.msra.mxu0 %v3650
      %4341 = vmatpush.msra.mxu0 %v3643
      %4342 = vmatpush.msra.mxu0 %v3636
      %4343 = vmatmul.f32.gmra.mxu0 %v3459
      %v4344 = vpop.f32.mrf.mxu0
      %v4345 = vadd.f32 %v4232, %v4344
      %4346 = vmatmul.f32.gmra.mxu0 %v3461
      %v4347 = vpop.f32.mrf.mxu0
      %v4348 = vadd.f32 %v4235, %v4347
      %4349 = vmatmul.f32.gmra.mxu0 %v3463
      %v4350 = vpop.f32.mrf.mxu0
      %v4351 = vadd.f32 %v4238, %v4350
      %4352 = vmatmul.f32.gmra.mxu0 %v3465
      %v4353 = vpop.f32.mrf.mxu0
      %v4354 = vadd.f32 %v4241, %v4353
      %4355 = vmatmul.f32.gmra.mxu0 %v3467
      %v4356 = vpop.f32.mrf.mxu0
      %v4357 = vadd.f32 %v4244, %v4356
      %4358 = vmatmul.f32.gmra.mxu0 %v3469
      %v4359 = vpop.f32.mrf.mxu0
      %v4360 = vadd.f32 %v4247, %v4359
      %4361 = vmatmul.f32.gmra.mxu0 %v3471
      %v4362 = vpop.f32.mrf.mxu0
      %v4363 = vadd.f32 %v4250, %v4362
      %4364 = vmatmul.f32.gmra.mxu0 %v3473
      %v4365 = vpop.f32.mrf.mxu0
      %v4366 = vadd.f32 %v4253, %v4365
      %4367 = vmatmul.f32.gmra.mxu0 %v3475
      %v4368 = vpop.f32.mrf.mxu0
      %v4369 = vadd.f32 %v4256, %v4368
      %4370 = vmatmul.f32.gmra.mxu0 %v3477
      %v4371 = vpop.f32.mrf.mxu0
      %v4372 = vadd.f32 %v4259, %v4371
      %4373 = vmatmul.f32.gmra.mxu0 %v3479
      %v4374 = vpop.f32.mrf.mxu0
      %v4375 = vadd.f32 %v4262, %v4374
      %4376 = vmatmul.f32.gmra.mxu0 %v3481
      %v4377 = vpop.f32.mrf.mxu0
      %v4378 = vadd.f32 %v4265, %v4377
      %4379 = vmatmul.f32.gmra.mxu0 %v3483
      %v4380 = vpop.f32.mrf.mxu0
      %v4381 = vadd.f32 %v4268, %v4380
      %4382 = vmatmul.f32.gmra.mxu0 %v3485
      %v4383 = vpop.f32.mrf.mxu0
      %v4384 = vadd.f32 %v4271, %v4383
      %4385 = vmatmul.f32.gmra.mxu0 %v3487
      %v4386 = vpop.f32.mrf.mxu0
      %v4387 = vadd.f32 %v4274, %v4386
      %4388 = vmatmul.f32.gmra.mxu0 %v3489
      %v4389 = vpop.f32.mrf.mxu0
      %v4390 = vadd.f32 %v4277, %v4389
      %4391 = vmatmul.f32.gmra.mxu0 %v3491
      %v4392 = vpop.f32.mrf.mxu0
      %v4393 = vadd.f32 %v4280, %v4392
      %4394 = vmatmul.f32.gmra.mxu0 %v3493
      %v4395 = vpop.f32.mrf.mxu0
      %v4396 = vadd.f32 %v4283, %v4395
      %4397 = vmatmul.f32.gmra.mxu0 %v3495
      %v4398 = vpop.f32.mrf.mxu0
      %v4399 = vadd.f32 %v4286, %v4398
      %4400 = vmatmul.f32.gmra.mxu0 %v3497
      %v4401 = vpop.f32.mrf.mxu0
      %v4402 = vadd.f32 %v4289, %v4401
      %4403 = vmatmul.f32.gmra.mxu0 %v3499
      %v4404 = vpop.f32.mrf.mxu0
      %v4405 = vadd.f32 %v4292, %v4404
      %4406 = vmatmul.f32.gmra.mxu0 %v3501
      %v4407 = vpop.f32.mrf.mxu0
      %v4408 = vadd.f32 %v4295, %v4407
      %4409 = vmatmul.f32.gmra.mxu0 %v3503
      %v4410 = vpop.f32.mrf.mxu0
      %v4411 = vadd.f32 %v4298, %v4410
      %4412 = vmatmul.f32.gmra.mxu0 %v3505
      %v4413 = vpop.f32.mrf.mxu0
      %v4414 = vadd.f32 %v4301, %v4413
      %4415 = vmatmul.f32.gmra.mxu0 %v3507
      %v4416 = vpop.f32.mrf.mxu0
      %v4417 = vadd.f32 %v4304, %v4416
      %4418 = vmatmul.f32.gmra.mxu0 %v3509
      %v4419 = vpop.f32.mrf.mxu0
      %v4420 = vadd.f32 %v4307, %v4419
      %4421 = vmatmul.f32.gmra.mxu0 %v3511
      %v4422 = vpop.f32.mrf.mxu0
      %v4423 = vadd.f32 %v4310, %v4422
      %4424 = vmatmul.f32.gmra.mxu0 %v3513
      %v4425 = vpop.f32.mrf.mxu0
      %v4426 = vadd.f32 %v4313, %v4425
      %4427 = vmatmul.f32.gmra.mxu0 %v3515
      %v4428 = vpop.f32.mrf.mxu0
      %v4429 = vadd.f32 %v4316, %v4428
      %4430 = vmatmul.f32.gmra.mxu0 %v3517
      %v4431 = vpop.f32.mrf.mxu0
      %v4432 = vadd.f32 %v4319, %v4431
      %4433 = vmatmul.f32.gmra.mxu0 %v3519
      %v4434 = vpop.f32.mrf.mxu0
      %v4435 = vadd.f32 %v4322, %v4434
      %4436 = vmatmul.f32.gmra.mxu0 %v3521
      %v4437 = vpop.f32.mrf.mxu0
      %v4438 = vadd.f32 %v4325, %v4437
      %4439 = vdwg.mxu0
      %4440 = vmatpush.msra.mxu0 %v3630
      %4441 = vmatpush.msra.mxu0 %v3623
      %4442 = vmatpush.msra.mxu0 %v3616
      %4443 = vmatpush.msra.mxu0 %v3609
      %4444 = vmatpush.msra.mxu0 %v3602
      %4445 = vmatpush.msra.mxu0 %v3595
      %4446 = vmatpush.msra.mxu0 %v3588
      %4447 = vmatpush.msra.mxu0 %v3581
      %4448 = vmatpush.msra.mxu0 %v3574
      %4449 = vmatpush.msra.mxu0 %v3567
      %4450 = vmatpush.msra.mxu0 %v3560
      %4451 = vmatpush.msra.mxu0 %v3553
      %4452 = vmatpush.msra.mxu0 %v3546
      %4453 = vmatpush.msra.mxu0 %v3539
      %4454 = vmatpush.msra.mxu0 %v3532
      %4455 = vmatpush.msra.mxu0 %v3525
      %4456 = vmatmul.f32.gmra.mxu0 %v3458
      %v4457 = vpop.f32.mrf.mxu0
      %v4458 = vadd.f32 %v3751, %v4457
      %4459 = vmatmul.f32.gmra.mxu0 %v3460
      %v4460 = vpop.f32.mrf.mxu0
      %v4461 = vadd.f32 %v3751, %v4460
      %4462 = vmatmul.f32.gmra.mxu0 %v3462
      %v4463 = vpop.f32.mrf.mxu0
      %v4464 = vadd.f32 %v3751, %v4463
      %4465 = vmatmul.f32.gmra.mxu0 %v3464
      %v4466 = vpop.f32.mrf.mxu0
      %v4467 = vadd.f32 %v3751, %v4466
      %4468 = vmatmul.f32.gmra.mxu0 %v3466
      %v4469 = vpop.f32.mrf.mxu0
      %v4470 = vadd.f32 %v3751, %v4469
      %4471 = vmatmul.f32.gmra.mxu0 %v3468
      %v4472 = vpop.f32.mrf.mxu0
      %v4473 = vadd.f32 %v3751, %v4472
      %4474 = vmatmul.f32.gmra.mxu0 %v3470
      %v4475 = vpop.f32.mrf.mxu0
      %v4476 = vadd.f32 %v3751, %v4475
      %4477 = vmatmul.f32.gmra.mxu0 %v3472
      %v4478 = vpop.f32.mrf.mxu0
      %v4479 = vadd.f32 %v3751, %v4478
      %4480 = vmatmul.f32.gmra.mxu0 %v3474
      %v4481 = vpop.f32.mrf.mxu0
      %v4482 = vadd.f32 %v3751, %v4481
      %4483 = vmatmul.f32.gmra.mxu0 %v3476
      %v4484 = vpop.f32.mrf.mxu0
      %v4485 = vadd.f32 %v3751, %v4484
      %4486 = vmatmul.f32.gmra.mxu0 %v3478
      %v4487 = vpop.f32.mrf.mxu0
      %v4488 = vadd.f32 %v3751, %v4487
      %4489 = vmatmul.f32.gmra.mxu0 %v3480
      %v4490 = vpop.f32.mrf.mxu0
      %v4491 = vadd.f32 %v3751, %v4490
      %4492 = vmatmul.f32.gmra.mxu0 %v3482
      %v4493 = vpop.f32.mrf.mxu0
      %v4494 = vadd.f32 %v3751, %v4493
      %4495 = vmatmul.f32.gmra.mxu0 %v3484
      %v4496 = vpop.f32.mrf.mxu0
      %v4497 = vadd.f32 %v3751, %v4496
      %4498 = vmatmul.f32.gmra.mxu0 %v3486
      %v4499 = vpop.f32.mrf.mxu0
      %v4500 = vadd.f32 %v3751, %v4499
      %4501 = vmatmul.f32.gmra.mxu0 %v3488
      %v4502 = vpop.f32.mrf.mxu0
      %v4503 = vadd.f32 %v3751, %v4502
      %4504 = vmatmul.f32.gmra.mxu0 %v3490
      %v4505 = vpop.f32.mrf.mxu0
      %v4506 = vadd.f32 %v3751, %v4505
      %4507 = vmatmul.f32.gmra.mxu0 %v3492
      %v4508 = vpop.f32.mrf.mxu0
      %v4509 = vadd.f32 %v3751, %v4508
      %4510 = vmatmul.f32.gmra.mxu0 %v3494
      %v4511 = vpop.f32.mrf.mxu0
      %v4512 = vadd.f32 %v3751, %v4511
      %4513 = vmatmul.f32.gmra.mxu0 %v3496
      %v4514 = vpop.f32.mrf.mxu0
      %v4515 = vadd.f32 %v3751, %v4514
      %4516 = vmatmul.f32.gmra.mxu0 %v3498
      %v4517 = vpop.f32.mrf.mxu0
      %v4518 = vadd.f32 %v3751, %v4517
      %4519 = vmatmul.f32.gmra.mxu0 %v3500
      %v4520 = vpop.f32.mrf.mxu0
      %v4521 = vadd.f32 %v3751, %v4520
      %4522 = vmatmul.f32.gmra.mxu0 %v3502
      %v4523 = vpop.f32.mrf.mxu0
      %v4524 = vadd.f32 %v3751, %v4523
      %4525 = vmatmul.f32.gmra.mxu0 %v3504
      %v4526 = vpop.f32.mrf.mxu0
      %v4527 = vadd.f32 %v3751, %v4526
      %4528 = vmatmul.f32.gmra.mxu0 %v3506
      %v4529 = vpop.f32.mrf.mxu0
      %v4530 = vadd.f32 %v3751, %v4529
      %4531 = vmatmul.f32.gmra.mxu0 %v3508
      %v4532 = vpop.f32.mrf.mxu0
      %v4533 = vadd.f32 %v3751, %v4532
      %4534 = vmatmul.f32.gmra.mxu0 %v3510
      %v4535 = vpop.f32.mrf.mxu0
      %v4536 = vadd.f32 %v3751, %v4535
      %4537 = vmatmul.f32.gmra.mxu0 %v3512
      %v4538 = vpop.f32.mrf.mxu0
      %v4539 = vadd.f32 %v3751, %v4538
      %4540 = vmatmul.f32.gmra.mxu0 %v3514
      %v4541 = vpop.f32.mrf.mxu0
      %v4542 = vadd.f32 %v3751, %v4541
      %4543 = vmatmul.f32.gmra.mxu0 %v3516
      %v4544 = vpop.f32.mrf.mxu0
      %v4545 = vadd.f32 %v3751, %v4544
      %4546 = vmatmul.f32.gmra.mxu0 %v3518
      %v4547 = vpop.f32.mrf.mxu0
      %v4548 = vadd.f32 %v3751, %v4547
      %4549 = vmatmul.f32.gmra.mxu0 %v3520
      %v4550 = vpop.f32.mrf.mxu0
      %v4551 = vadd.f32 %v3751, %v4550
      %4552 = vdwg.mxu0
      %4553 = vmatpush.msra.mxu0 %v3742
      %4554 = vmatpush.msra.mxu0 %v3735
      %4555 = vmatpush.msra.mxu0 %v3728
      %4556 = vmatpush.msra.mxu0 %v3721
      %4557 = vmatpush.msra.mxu0 %v3714
      %4558 = vmatpush.msra.mxu0 %v3707
      %4559 = vmatpush.msra.mxu0 %v3700
      %4560 = vmatpush.msra.mxu0 %v3693
      %4561 = vmatpush.msra.mxu0 %v3686
      %4562 = vmatpush.msra.mxu0 %v3679
      %4563 = vmatpush.msra.mxu0 %v3672
      %4564 = vmatpush.msra.mxu0 %v3665
      %4565 = vmatpush.msra.mxu0 %v3658
      %4566 = vmatpush.msra.mxu0 %v3651
      %4567 = vmatpush.msra.mxu0 %v3644
      %4568 = vmatpush.msra.mxu0 %v3637
      %4569 = vmatmul.f32.gmra.mxu0 %v3459
      %v4570 = vpop.f32.mrf.mxu0
      %v4571 = vadd.f32 %v4458, %v4570
      %4572 = vmatmul.f32.gmra.mxu0 %v3461
      %v4573 = vpop.f32.mrf.mxu0
      %v4574 = vadd.f32 %v4461, %v4573
      %4575 = vmatmul.f32.gmra.mxu0 %v3463
      %v4576 = vpop.f32.mrf.mxu0
      %v4577 = vadd.f32 %v4464, %v4576
      %4578 = vmatmul.f32.gmra.mxu0 %v3465
      %v4579 = vpop.f32.mrf.mxu0
      %v4580 = vadd.f32 %v4467, %v4579
      %4581 = vmatmul.f32.gmra.mxu0 %v3467
      %v4582 = vpop.f32.mrf.mxu0
      %v4583 = vadd.f32 %v4470, %v4582
      %4584 = vmatmul.f32.gmra.mxu0 %v3469
      %v4585 = vpop.f32.mrf.mxu0
      %v4586 = vadd.f32 %v4473, %v4585
      %4587 = vmatmul.f32.gmra.mxu0 %v3471
      %v4588 = vpop.f32.mrf.mxu0
      %v4589 = vadd.f32 %v4476, %v4588
      %4590 = vmatmul.f32.gmra.mxu0 %v3473
      %v4591 = vpop.f32.mrf.mxu0
      %v4592 = vadd.f32 %v4479, %v4591
      %4593 = vmatmul.f32.gmra.mxu0 %v3475
      %v4594 = vpop.f32.mrf.mxu0
      %v4595 = vadd.f32 %v4482, %v4594
      %4596 = vmatmul.f32.gmra.mxu0 %v3477
      %v4597 = vpop.f32.mrf.mxu0
      %v4598 = vadd.f32 %v4485, %v4597
      %4599 = vmatmul.f32.gmra.mxu0 %v3479
      %v4600 = vpop.f32.mrf.mxu0
      %v4601 = vadd.f32 %v4488, %v4600
      %4602 = vmatmul.f32.gmra.mxu0 %v3481
      %v4603 = vpop.f32.mrf.mxu0
      %v4604 = vadd.f32 %v4491, %v4603
      %4605 = vmatmul.f32.gmra.mxu0 %v3483
      %v4606 = vpop.f32.mrf.mxu0
      %v4607 = vadd.f32 %v4494, %v4606
      %4608 = vmatmul.f32.gmra.mxu0 %v3485
      %v4609 = vpop.f32.mrf.mxu0
      %v4610 = vadd.f32 %v4497, %v4609
      %4611 = vmatmul.f32.gmra.mxu0 %v3487
      %v4612 = vpop.f32.mrf.mxu0
      %v4613 = vadd.f32 %v4500, %v4612
      %4614 = vmatmul.f32.gmra.mxu0 %v3489
      %v4615 = vpop.f32.mrf.mxu0
      %v4616 = vadd.f32 %v4503, %v4615
      %4617 = vmatmul.f32.gmra.mxu0 %v3491
      %v4618 = vpop.f32.mrf.mxu0
      %v4619 = vadd.f32 %v4506, %v4618
      %4620 = vmatmul.f32.gmra.mxu0 %v3493
      %v4621 = vpop.f32.mrf.mxu0
      %v4622 = vadd.f32 %v4509, %v4621
      %4623 = vmatmul.f32.gmra.mxu0 %v3495
      %v4624 = vpop.f32.mrf.mxu0
      %v4625 = vadd.f32 %v4512, %v4624
      %4626 = vmatmul.f32.gmra.mxu0 %v3497
      %v4627 = vpop.f32.mrf.mxu0
      %v4628 = vadd.f32 %v4515, %v4627
      %4629 = vmatmul.f32.gmra.mxu0 %v3499
      %v4630 = vpop.f32.mrf.mxu0
      %v4631 = vadd.f32 %v4518, %v4630
      %4632 = vmatmul.f32.gmra.mxu0 %v3501
      %v4633 = vpop.f32.mrf.mxu0
      %v4634 = vadd.f32 %v4521, %v4633
      %4635 = vmatmul.f32.gmra.mxu0 %v3503
      %v4636 = vpop.f32.mrf.mxu0
      %v4637 = vadd.f32 %v4524, %v4636
      %4638 = vmatmul.f32.gmra.mxu0 %v3505
      %v4639 = vpop.f32.mrf.mxu0
      %v4640 = vadd.f32 %v4527, %v4639
      %4641 = vmatmul.f32.gmra.mxu0 %v3507
      %v4642 = vpop.f32.mrf.mxu0
      %v4643 = vadd.f32 %v4530, %v4642
      %4644 = vmatmul.f32.gmra.mxu0 %v3509
      %v4645 = vpop.f32.mrf.mxu0
      %v4646 = vadd.f32 %v4533, %v4645
      %4647 = vmatmul.f32.gmra.mxu0 %v3511
      %v4648 = vpop.f32.mrf.mxu0
      %v4649 = vadd.f32 %v4536, %v4648
      %4650 = vmatmul.f32.gmra.mxu0 %v3513
      %v4651 = vpop.f32.mrf.mxu0
      %v4652 = vadd.f32 %v4539, %v4651
      %4653 = vmatmul.f32.gmra.mxu0 %v3515
      %v4654 = vpop.f32.mrf.mxu0
      %v4655 = vadd.f32 %v4542, %v4654
      %4656 = vmatmul.f32.gmra.mxu0 %v3517
      %v4657 = vpop.f32.mrf.mxu0
      %v4658 = vadd.f32 %v4545, %v4657
      %4659 = vmatmul.f32.gmra.mxu0 %v3519
      %v4660 = vpop.f32.mrf.mxu0
      %v4661 = vadd.f32 %v4548, %v4660
      %4662 = vmatmul.f32.gmra.mxu0 %v3521
      %v4663 = vpop.f32.mrf.mxu0
      %v4664 = vadd.f32 %v4551, %v4663
      %4665 = vdwg.mxu0
      %4666 = vmatpush.msra.mxu0 %v3631
      %4667 = vmatpush.msra.mxu0 %v3624
      %4668 = vmatpush.msra.mxu0 %v3617
      %4669 = vmatpush.msra.mxu0 %v3610
      %4670 = vmatpush.msra.mxu0 %v3603
      %4671 = vmatpush.msra.mxu0 %v3596
      %4672 = vmatpush.msra.mxu0 %v3589
      %4673 = vmatpush.msra.mxu0 %v3582
      %4674 = vmatpush.msra.mxu0 %v3575
      %4675 = vmatpush.msra.mxu0 %v3568
      %4676 = vmatpush.msra.mxu0 %v3561
      %4677 = vmatpush.msra.mxu0 %v3554
      %4678 = vmatpush.msra.mxu0 %v3547
      %4679 = vmatpush.msra.mxu0 %v3540
      %4680 = vmatpush.msra.mxu0 %v3533
      %4681 = vmatpush.msra.mxu0 %v3526
      %4682 = vmatmul.f32.gmra.mxu0 %v3458
      %v4683 = vpop.f32.mrf.mxu0
      %v4684 = vadd.f32 %v3752, %v4683
      %4685 = vmatmul.f32.gmra.mxu0 %v3460
      %v4686 = vpop.f32.mrf.mxu0
      %v4687 = vadd.f32 %v3752, %v4686
      %4688 = vmatmul.f32.gmra.mxu0 %v3462
      %v4689 = vpop.f32.mrf.mxu0
      %v4690 = vadd.f32 %v3752, %v4689
      %4691 = vmatmul.f32.gmra.mxu0 %v3464
      %v4692 = vpop.f32.mrf.mxu0
      %v4693 = vadd.f32 %v3752, %v4692
      %4694 = vmatmul.f32.gmra.mxu0 %v3466
      %v4695 = vpop.f32.mrf.mxu0
      %v4696 = vadd.f32 %v3752, %v4695
      %4697 = vmatmul.f32.gmra.mxu0 %v3468
      %v4698 = vpop.f32.mrf.mxu0
      %v4699 = vadd.f32 %v3752, %v4698
      %4700 = vmatmul.f32.gmra.mxu0 %v3470
      %v4701 = vpop.f32.mrf.mxu0
      %v4702 = vadd.f32 %v3752, %v4701
      %4703 = vmatmul.f32.gmra.mxu0 %v3472
      %v4704 = vpop.f32.mrf.mxu0
      %v4705 = vadd.f32 %v3752, %v4704
      %4706 = vmatmul.f32.gmra.mxu0 %v3474
      %v4707 = vpop.f32.mrf.mxu0
      %v4708 = vadd.f32 %v3752, %v4707
      %4709 = vmatmul.f32.gmra.mxu0 %v3476
      %v4710 = vpop.f32.mrf.mxu0
      %v4711 = vadd.f32 %v3752, %v4710
      %4712 = vmatmul.f32.gmra.mxu0 %v3478
      %v4713 = vpop.f32.mrf.mxu0
      %v4714 = vadd.f32 %v3752, %v4713
      %4715 = vmatmul.f32.gmra.mxu0 %v3480
      %v4716 = vpop.f32.mrf.mxu0
      %v4717 = vadd.f32 %v3752, %v4716
      %4718 = vmatmul.f32.gmra.mxu0 %v3482
      %v4719 = vpop.f32.mrf.mxu0
      %v4720 = vadd.f32 %v3752, %v4719
      %4721 = vmatmul.f32.gmra.mxu0 %v3484
      %v4722 = vpop.f32.mrf.mxu0
      %v4723 = vadd.f32 %v3752, %v4722
      %4724 = vmatmul.f32.gmra.mxu0 %v3486
      %v4725 = vpop.f32.mrf.mxu0
      %v4726 = vadd.f32 %v3752, %v4725
      %4727 = vmatmul.f32.gmra.mxu0 %v3488
      %v4728 = vpop.f32.mrf.mxu0
      %v4729 = vadd.f32 %v3752, %v4728
      %4730 = vmatmul.f32.gmra.mxu0 %v3490
      %v4731 = vpop.f32.mrf.mxu0
      %v4732 = vadd.f32 %v3752, %v4731
      %4733 = vmatmul.f32.gmra.mxu0 %v3492
      %v4734 = vpop.f32.mrf.mxu0
      %v4735 = vadd.f32 %v3752, %v4734
      %4736 = vmatmul.f32.gmra.mxu0 %v3494
      %v4737 = vpop.f32.mrf.mxu0
      %v4738 = vadd.f32 %v3752, %v4737
      %4739 = vmatmul.f32.gmra.mxu0 %v3496
      %v4740 = vpop.f32.mrf.mxu0
      %v4741 = vadd.f32 %v3752, %v4740
      %4742 = vmatmul.f32.gmra.mxu0 %v3498
      %v4743 = vpop.f32.mrf.mxu0
      %v4744 = vadd.f32 %v3752, %v4743
      %4745 = vmatmul.f32.gmra.mxu0 %v3500
      %v4746 = vpop.f32.mrf.mxu0
      %v4747 = vadd.f32 %v3752, %v4746
      %4748 = vmatmul.f32.gmra.mxu0 %v3502
      %v4749 = vpop.f32.mrf.mxu0
      %v4750 = vadd.f32 %v3752, %v4749
      %4751 = vmatmul.f32.gmra.mxu0 %v3504
      %v4752 = vpop.f32.mrf.mxu0
      %v4753 = vadd.f32 %v3752, %v4752
      %4754 = vmatmul.f32.gmra.mxu0 %v3506
      %v4755 = vpop.f32.mrf.mxu0
      %v4756 = vadd.f32 %v3752, %v4755
      %4757 = vmatmul.f32.gmra.mxu0 %v3508
      %v4758 = vpop.f32.mrf.mxu0
      %v4759 = vadd.f32 %v3752, %v4758
      %4760 = vmatmul.f32.gmra.mxu0 %v3510
      %v4761 = vpop.f32.mrf.mxu0
      %v4762 = vadd.f32 %v3752, %v4761
      %4763 = vmatmul.f32.gmra.mxu0 %v3512
      %v4764 = vpop.f32.mrf.mxu0
      %v4765 = vadd.f32 %v3752, %v4764
      %4766 = vmatmul.f32.gmra.mxu0 %v3514
      %v4767 = vpop.f32.mrf.mxu0
      %v4768 = vadd.f32 %v3752, %v4767
      %4769 = vmatmul.f32.gmra.mxu0 %v3516
      %v4770 = vpop.f32.mrf.mxu0
      %v4771 = vadd.f32 %v3752, %v4770
      %4772 = vmatmul.f32.gmra.mxu0 %v3518
      %v4773 = vpop.f32.mrf.mxu0
      %v4774 = vadd.f32 %v3752, %v4773
      %4775 = vmatmul.f32.gmra.mxu0 %v3520
      %v4776 = vpop.f32.mrf.mxu0
      %v4777 = vadd.f32 %v3752, %v4776
      %4778 = vdwg.mxu0
      %4779 = vmatpush.msra.mxu0 %v3743
      %4780 = vmatpush.msra.mxu0 %v3736
      %4781 = vmatpush.msra.mxu0 %v3729
      %4782 = vmatpush.msra.mxu0 %v3722
      %4783 = vmatpush.msra.mxu0 %v3715
      %4784 = vmatpush.msra.mxu0 %v3708
      %4785 = vmatpush.msra.mxu0 %v3701
      %4786 = vmatpush.msra.mxu0 %v3694
      %4787 = vmatpush.msra.mxu0 %v3687
      %4788 = vmatpush.msra.mxu0 %v3680
      %4789 = vmatpush.msra.mxu0 %v3673
      %4790 = vmatpush.msra.mxu0 %v3666
      %4791 = vmatpush.msra.mxu0 %v3659
      %4792 = vmatpush.msra.mxu0 %v3652
      %4793 = vmatpush.msra.mxu0 %v3645
      %4794 = vmatpush.msra.mxu0 %v3638
      %4795 = vmatmul.f32.gmra.mxu0 %v3459
      %v4796 = vpop.f32.mrf.mxu0
      %v4797 = vadd.f32 %v4684, %v4796
      %4798 = vmatmul.f32.gmra.mxu0 %v3461
      %v4799 = vpop.f32.mrf.mxu0
      %v4800 = vadd.f32 %v4687, %v4799
      %4801 = vmatmul.f32.gmra.mxu0 %v3463
      %v4802 = vpop.f32.mrf.mxu0
      %v4803 = vadd.f32 %v4690, %v4802
      %4804 = vmatmul.f32.gmra.mxu0 %v3465
      %v4805 = vpop.f32.mrf.mxu0
      %v4806 = vadd.f32 %v4693, %v4805
      %4807 = vmatmul.f32.gmra.mxu0 %v3467
      %v4808 = vpop.f32.mrf.mxu0
      %v4809 = vadd.f32 %v4696, %v4808
      %4810 = vmatmul.f32.gmra.mxu0 %v3469
      %v4811 = vpop.f32.mrf.mxu0
      %v4812 = vadd.f32 %v4699, %v4811
      %4813 = vmatmul.f32.gmra.mxu0 %v3471
      %v4814 = vpop.f32.mrf.mxu0
      %v4815 = vadd.f32 %v4702, %v4814
      %4816 = vmatmul.f32.gmra.mxu0 %v3473
      %v4817 = vpop.f32.mrf.mxu0
      %v4818 = vadd.f32 %v4705, %v4817
      %4819 = vmatmul.f32.gmra.mxu0 %v3475
      %v4820 = vpop.f32.mrf.mxu0
      %v4821 = vadd.f32 %v4708, %v4820
      %4822 = vmatmul.f32.gmra.mxu0 %v3477
      %v4823 = vpop.f32.mrf.mxu0
      %v4824 = vadd.f32 %v4711, %v4823
      %4825 = vmatmul.f32.gmra.mxu0 %v3479
      %v4826 = vpop.f32.mrf.mxu0
      %v4827 = vadd.f32 %v4714, %v4826
      %4828 = vmatmul.f32.gmra.mxu0 %v3481
      %v4829 = vpop.f32.mrf.mxu0
      %v4830 = vadd.f32 %v4717, %v4829
      %4831 = vmatmul.f32.gmra.mxu0 %v3483
      %v4832 = vpop.f32.mrf.mxu0
      %v4833 = vadd.f32 %v4720, %v4832
      %4834 = vmatmul.f32.gmra.mxu0 %v3485
      %v4835 = vpop.f32.mrf.mxu0
      %v4836 = vadd.f32 %v4723, %v4835
      %4837 = vmatmul.f32.gmra.mxu0 %v3487
      %v4838 = vpop.f32.mrf.mxu0
      %v4839 = vadd.f32 %v4726, %v4838
      %4840 = vmatmul.f32.gmra.mxu0 %v3489
      %v4841 = vpop.f32.mrf.mxu0
      %v4842 = vadd.f32 %v4729, %v4841
      %4843 = vmatmul.f32.gmra.mxu0 %v3491
      %v4844 = vpop.f32.mrf.mxu0
      %v4845 = vadd.f32 %v4732, %v4844
      %4846 = vmatmul.f32.gmra.mxu0 %v3493
      %v4847 = vpop.f32.mrf.mxu0
      %v4848 = vadd.f32 %v4735, %v4847
      %4849 = vmatmul.f32.gmra.mxu0 %v3495
      %v4850 = vpop.f32.mrf.mxu0
      %v4851 = vadd.f32 %v4738, %v4850
      %4852 = vmatmul.f32.gmra.mxu0 %v3497
      %v4853 = vpop.f32.mrf.mxu0
      %v4854 = vadd.f32 %v4741, %v4853
      %4855 = vmatmul.f32.gmra.mxu0 %v3499
      %v4856 = vpop.f32.mrf.mxu0
      %v4857 = vadd.f32 %v4744, %v4856
      %4858 = vmatmul.f32.gmra.mxu0 %v3501
      %v4859 = vpop.f32.mrf.mxu0
      %v4860 = vadd.f32 %v4747, %v4859
      %4861 = vmatmul.f32.gmra.mxu0 %v3503
      %v4862 = vpop.f32.mrf.mxu0
      %v4863 = vadd.f32 %v4750, %v4862
      %4864 = vmatmul.f32.gmra.mxu0 %v3505
      %v4865 = vpop.f32.mrf.mxu0
      %v4866 = vadd.f32 %v4753, %v4865
      %4867 = vmatmul.f32.gmra.mxu0 %v3507
      %v4868 = vpop.f32.mrf.mxu0
      %v4869 = vadd.f32 %v4756, %v4868
      %4870 = vmatmul.f32.gmra.mxu0 %v3509
      %v4871 = vpop.f32.mrf.mxu0
      %v4872 = vadd.f32 %v4759, %v4871
      %4873 = vmatmul.f32.gmra.mxu0 %v3511
      %v4874 = vpop.f32.mrf.mxu0
      %v4875 = vadd.f32 %v4762, %v4874
      %4876 = vmatmul.f32.gmra.mxu0 %v3513
      %v4877 = vpop.f32.mrf.mxu0
      %v4878 = vadd.f32 %v4765, %v4877
      %4879 = vmatmul.f32.gmra.mxu0 %v3515
      %v4880 = vpop.f32.mrf.mxu0
      %v4881 = vadd.f32 %v4768, %v4880
      %4882 = vmatmul.f32.gmra.mxu0 %v3517
      %v4883 = vpop.f32.mrf.mxu0
      %v4884 = vadd.f32 %v4771, %v4883
      %4885 = vmatmul.f32.gmra.mxu0 %v3519
      %v4886 = vpop.f32.mrf.mxu0
      %v4887 = vadd.f32 %v4774, %v4886
      %4888 = vmatmul.f32.gmra.mxu0 %v3521
      %v4889 = vpop.f32.mrf.mxu0
      %v4890 = vadd.f32 %v4777, %v4889
      %4891 = vdwg.mxu0
      %4892 = vmatpush.msra.mxu0 %v3632
      %4893 = vmatpush.msra.mxu0 %v3625
      %4894 = vmatpush.msra.mxu0 %v3618
      %4895 = vmatpush.msra.mxu0 %v3611
      %4896 = vmatpush.msra.mxu0 %v3604
      %4897 = vmatpush.msra.mxu0 %v3597
      %4898 = vmatpush.msra.mxu0 %v3590
      %4899 = vmatpush.msra.mxu0 %v3583
      %4900 = vmatpush.msra.mxu0 %v3576
      %4901 = vmatpush.msra.mxu0 %v3569
      %4902 = vmatpush.msra.mxu0 %v3562
      %4903 = vmatpush.msra.mxu0 %v3555
      %4904 = vmatpush.msra.mxu0 %v3548
      %4905 = vmatpush.msra.mxu0 %v3541
      %4906 = vmatpush.msra.mxu0 %v3534
      %4907 = vmatpush.msra.mxu0 %v3527
      %4908 = vmatmul.f32.gmra.mxu0 %v3458
      %v4909 = vpop.f32.mrf.mxu0
      %v4910 = vadd.f32 %v3753, %v4909
      %4911 = vmatmul.f32.gmra.mxu0 %v3460
      %v4912 = vpop.f32.mrf.mxu0
      %v4913 = vadd.f32 %v3753, %v4912
      %4914 = vmatmul.f32.gmra.mxu0 %v3462
      %v4915 = vpop.f32.mrf.mxu0
      %v4916 = vadd.f32 %v3753, %v4915
      %4917 = vmatmul.f32.gmra.mxu0 %v3464
      %v4918 = vpop.f32.mrf.mxu0
      %v4919 = vadd.f32 %v3753, %v4918
      %4920 = vmatmul.f32.gmra.mxu0 %v3466
      %v4921 = vpop.f32.mrf.mxu0
      %v4922 = vadd.f32 %v3753, %v4921
      %4923 = vmatmul.f32.gmra.mxu0 %v3468
      %v4924 = vpop.f32.mrf.mxu0
      %v4925 = vadd.f32 %v3753, %v4924
      %4926 = vmatmul.f32.gmra.mxu0 %v3470
      %v4927 = vpop.f32.mrf.mxu0
      %v4928 = vadd.f32 %v3753, %v4927
      %4929 = vmatmul.f32.gmra.mxu0 %v3472
      %v4930 = vpop.f32.mrf.mxu0
      %v4931 = vadd.f32 %v3753, %v4930
      %4932 = vmatmul.f32.gmra.mxu0 %v3474
      %v4933 = vpop.f32.mrf.mxu0
      %v4934 = vadd.f32 %v3753, %v4933
      %4935 = vmatmul.f32.gmra.mxu0 %v3476
      %v4936 = vpop.f32.mrf.mxu0
      %v4937 = vadd.f32 %v3753, %v4936
      %4938 = vmatmul.f32.gmra.mxu0 %v3478
      %v4939 = vpop.f32.mrf.mxu0
      %v4940 = vadd.f32 %v3753, %v4939
      %4941 = vmatmul.f32.gmra.mxu0 %v3480
      %v4942 = vpop.f32.mrf.mxu0
      %v4943 = vadd.f32 %v3753, %v4942
      %4944 = vmatmul.f32.gmra.mxu0 %v3482
      %v4945 = vpop.f32.mrf.mxu0
      %v4946 = vadd.f32 %v3753, %v4945
      %4947 = vmatmul.f32.gmra.mxu0 %v3484
      %v4948 = vpop.f32.mrf.mxu0
      %v4949 = vadd.f32 %v3753, %v4948
      %4950 = vmatmul.f32.gmra.mxu0 %v3486
      %v4951 = vpop.f32.mrf.mxu0
      %v4952 = vadd.f32 %v3753, %v4951
      %4953 = vmatmul.f32.gmra.mxu0 %v3488
      %v4954 = vpop.f32.mrf.mxu0
      %v4955 = vadd.f32 %v3753, %v4954
      %4956 = vmatmul.f32.gmra.mxu0 %v3490
      %v4957 = vpop.f32.mrf.mxu0
      %v4958 = vadd.f32 %v3753, %v4957
      %4959 = vmatmul.f32.gmra.mxu0 %v3492
      %v4960 = vpop.f32.mrf.mxu0
      %v4961 = vadd.f32 %v3753, %v4960
      %4962 = vmatmul.f32.gmra.mxu0 %v3494
      %v4963 = vpop.f32.mrf.mxu0
      %v4964 = vadd.f32 %v3753, %v4963
      %4965 = vmatmul.f32.gmra.mxu0 %v3496
      %v4966 = vpop.f32.mrf.mxu0
      %v4967 = vadd.f32 %v3753, %v4966
      %4968 = vmatmul.f32.gmra.mxu0 %v3498
      %v4969 = vpop.f32.mrf.mxu0
      %v4970 = vadd.f32 %v3753, %v4969
      %4971 = vmatmul.f32.gmra.mxu0 %v3500
      %v4972 = vpop.f32.mrf.mxu0
      %v4973 = vadd.f32 %v3753, %v4972
      %4974 = vmatmul.f32.gmra.mxu0 %v3502
      %v4975 = vpop.f32.mrf.mxu0
      %v4976 = vadd.f32 %v3753, %v4975
      %4977 = vmatmul.f32.gmra.mxu0 %v3504
      %v4978 = vpop.f32.mrf.mxu0
      %v4979 = vadd.f32 %v3753, %v4978
      %4980 = vmatmul.f32.gmra.mxu0 %v3506
      %v4981 = vpop.f32.mrf.mxu0
      %v4982 = vadd.f32 %v3753, %v4981
      %4983 = vmatmul.f32.gmra.mxu0 %v3508
      %v4984 = vpop.f32.mrf.mxu0
      %v4985 = vadd.f32 %v3753, %v4984
      %4986 = vmatmul.f32.gmra.mxu0 %v3510
      %v4987 = vpop.f32.mrf.mxu0
      %v4988 = vadd.f32 %v3753, %v4987
      %4989 = vmatmul.f32.gmra.mxu0 %v3512
      %v4990 = vpop.f32.mrf.mxu0
      %v4991 = vadd.f32 %v3753, %v4990
      %4992 = vmatmul.f32.gmra.mxu0 %v3514
      %v4993 = vpop.f32.mrf.mxu0
      %v4994 = vadd.f32 %v3753, %v4993
      %4995 = vmatmul.f32.gmra.mxu0 %v3516
      %v4996 = vpop.f32.mrf.mxu0
      %v4997 = vadd.f32 %v3753, %v4996
      %4998 = vmatmul.f32.gmra.mxu0 %v3518
      %v4999 = vpop.f32.mrf.mxu0
      %v5000 = vadd.f32 %v3753, %v4999
      %5001 = vmatmul.f32.gmra.mxu0 %v3520
      %v5002 = vpop.f32.mrf.mxu0
      %v5003 = vadd.f32 %v3753, %v5002
      %5004 = vdwg.mxu0
      %5005 = vmatpush.msra.mxu0 %v3744
      %5006 = vmatpush.msra.mxu0 %v3737
      %5007 = vmatpush.msra.mxu0 %v3730
      %5008 = vmatpush.msra.mxu0 %v3723
      %5009 = vmatpush.msra.mxu0 %v3716
      %5010 = vmatpush.msra.mxu0 %v3709
      %5011 = vmatpush.msra.mxu0 %v3702
      %5012 = vmatpush.msra.mxu0 %v3695
      %5013 = vmatpush.msra.mxu0 %v3688
      %5014 = vmatpush.msra.mxu0 %v3681
      %5015 = vmatpush.msra.mxu0 %v3674
      %5016 = vmatpush.msra.mxu0 %v3667
      %5017 = vmatpush.msra.mxu0 %v3660
      %5018 = vmatpush.msra.mxu0 %v3653
      %5019 = vmatpush.msra.mxu0 %v3646
      %5020 = vmatpush.msra.mxu0 %v3639
      %5021 = vmatmul.f32.gmra.mxu0 %v3459
      %v5022 = vpop.f32.mrf.mxu0
      %v5023 = vadd.f32 %v4910, %v5022
      %5024 = vmatmul.f32.gmra.mxu0 %v3461
      %v5025 = vpop.f32.mrf.mxu0
      %v5026 = vadd.f32 %v4913, %v5025
      %5027 = vmatmul.f32.gmra.mxu0 %v3463
      %v5028 = vpop.f32.mrf.mxu0
      %v5029 = vadd.f32 %v4916, %v5028
      %5030 = vmatmul.f32.gmra.mxu0 %v3465
      %v5031 = vpop.f32.mrf.mxu0
      %v5032 = vadd.f32 %v4919, %v5031
      %5033 = vmatmul.f32.gmra.mxu0 %v3467
      %v5034 = vpop.f32.mrf.mxu0
      %v5035 = vadd.f32 %v4922, %v5034
      %5036 = vmatmul.f32.gmra.mxu0 %v3469
      %v5037 = vpop.f32.mrf.mxu0
      %v5038 = vadd.f32 %v4925, %v5037
      %5039 = vmatmul.f32.gmra.mxu0 %v3471
      %v5040 = vpop.f32.mrf.mxu0
      %v5041 = vadd.f32 %v4928, %v5040
      %5042 = vmatmul.f32.gmra.mxu0 %v3473
      %v5043 = vpop.f32.mrf.mxu0
      %v5044 = vadd.f32 %v4931, %v5043
      %5045 = vmatmul.f32.gmra.mxu0 %v3475
      %v5046 = vpop.f32.mrf.mxu0
      %v5047 = vadd.f32 %v4934, %v5046
      %5048 = vmatmul.f32.gmra.mxu0 %v3477
      %v5049 = vpop.f32.mrf.mxu0
      %v5050 = vadd.f32 %v4937, %v5049
      %5051 = vmatmul.f32.gmra.mxu0 %v3479
      %v5052 = vpop.f32.mrf.mxu0
      %v5053 = vadd.f32 %v4940, %v5052
      %5054 = vmatmul.f32.gmra.mxu0 %v3481
      %v5055 = vpop.f32.mrf.mxu0
      %v5056 = vadd.f32 %v4943, %v5055
      %5057 = vmatmul.f32.gmra.mxu0 %v3483
      %v5058 = vpop.f32.mrf.mxu0
      %v5059 = vadd.f32 %v4946, %v5058
      %5060 = vmatmul.f32.gmra.mxu0 %v3485
      %v5061 = vpop.f32.mrf.mxu0
      %v5062 = vadd.f32 %v4949, %v5061
      %5063 = vmatmul.f32.gmra.mxu0 %v3487
      %v5064 = vpop.f32.mrf.mxu0
      %v5065 = vadd.f32 %v4952, %v5064
      %5066 = vmatmul.f32.gmra.mxu0 %v3489
      %v5067 = vpop.f32.mrf.mxu0
      %v5068 = vadd.f32 %v4955, %v5067
      %5069 = vmatmul.f32.gmra.mxu0 %v3491
      %v5070 = vpop.f32.mrf.mxu0
      %v5071 = vadd.f32 %v4958, %v5070
      %5072 = vmatmul.f32.gmra.mxu0 %v3493
      %v5073 = vpop.f32.mrf.mxu0
      %v5074 = vadd.f32 %v4961, %v5073
      %5075 = vmatmul.f32.gmra.mxu0 %v3495
      %v5076 = vpop.f32.mrf.mxu0
      %v5077 = vadd.f32 %v4964, %v5076
      %5078 = vmatmul.f32.gmra.mxu0 %v3497
      %v5079 = vpop.f32.mrf.mxu0
      %v5080 = vadd.f32 %v4967, %v5079
      %5081 = vmatmul.f32.gmra.mxu0 %v3499
      %v5082 = vpop.f32.mrf.mxu0
      %v5083 = vadd.f32 %v4970, %v5082
      %5084 = vmatmul.f32.gmra.mxu0 %v3501
      %v5085 = vpop.f32.mrf.mxu0
      %v5086 = vadd.f32 %v4973, %v5085
      %5087 = vmatmul.f32.gmra.mxu0 %v3503
      %v5088 = vpop.f32.mrf.mxu0
      %v5089 = vadd.f32 %v4976, %v5088
      %5090 = vmatmul.f32.gmra.mxu0 %v3505
      %v5091 = vpop.f32.mrf.mxu0
      %v5092 = vadd.f32 %v4979, %v5091
      %5093 = vmatmul.f32.gmra.mxu0 %v3507
      %v5094 = vpop.f32.mrf.mxu0
      %v5095 = vadd.f32 %v4982, %v5094
      %5096 = vmatmul.f32.gmra.mxu0 %v3509
      %v5097 = vpop.f32.mrf.mxu0
      %v5098 = vadd.f32 %v4985, %v5097
      %5099 = vmatmul.f32.gmra.mxu0 %v3511
      %v5100 = vpop.f32.mrf.mxu0
      %v5101 = vadd.f32 %v4988, %v5100
      %5102 = vmatmul.f32.gmra.mxu0 %v3513
      %v5103 = vpop.f32.mrf.mxu0
      %v5104 = vadd.f32 %v4991, %v5103
      %5105 = vmatmul.f32.gmra.mxu0 %v3515
      %v5106 = vpop.f32.mrf.mxu0
      %v5107 = vadd.f32 %v4994, %v5106
      %5108 = vmatmul.f32.gmra.mxu0 %v3517
      %v5109 = vpop.f32.mrf.mxu0
      %v5110 = vadd.f32 %v4997, %v5109
      %5111 = vmatmul.f32.gmra.mxu0 %v3519
      %v5112 = vpop.f32.mrf.mxu0
      %v5113 = vadd.f32 %v5000, %v5112
      %5114 = vmatmul.f32.gmra.mxu0 %v3521
      %v5115 = vpop.f32.mrf.mxu0
      %v5116 = vadd.f32 %v5003, %v5115
      %5117 = vdwg.mxu0
      %5118 = vmatpush.msra.mxu0 %v3633
      %5119 = vmatpush.msra.mxu0 %v3626
      %5120 = vmatpush.msra.mxu0 %v3619
      %5121 = vmatpush.msra.mxu0 %v3612
      %5122 = vmatpush.msra.mxu0 %v3605
      %5123 = vmatpush.msra.mxu0 %v3598
      %5124 = vmatpush.msra.mxu0 %v3591
      %5125 = vmatpush.msra.mxu0 %v3584
      %5126 = vmatpush.msra.mxu0 %v3577
      %5127 = vmatpush.msra.mxu0 %v3570
      %5128 = vmatpush.msra.mxu0 %v3563
      %5129 = vmatpush.msra.mxu0 %v3556
      %5130 = vmatpush.msra.mxu0 %v3549
      %5131 = vmatpush.msra.mxu0 %v3542
      %5132 = vmatpush.msra.mxu0 %v3535
      %5133 = vmatpush.msra.mxu0 %v3528
      %5134 = vmatmul.f32.gmra.mxu0 %v3458
      %v5135 = vpop.f32.mrf.mxu0
      %v5136 = vadd.f32 %v3754, %v5135
      %5137 = vmatmul.f32.gmra.mxu0 %v3460
      %v5138 = vpop.f32.mrf.mxu0
      %v5139 = vadd.f32 %v3754, %v5138
      %5140 = vmatmul.f32.gmra.mxu0 %v3462
      %v5141 = vpop.f32.mrf.mxu0
      %v5142 = vadd.f32 %v3754, %v5141
      %5143 = vmatmul.f32.gmra.mxu0 %v3464
      %v5144 = vpop.f32.mrf.mxu0
      %v5145 = vadd.f32 %v3754, %v5144
      %5146 = vmatmul.f32.gmra.mxu0 %v3466
      %v5147 = vpop.f32.mrf.mxu0
      %v5148 = vadd.f32 %v3754, %v5147
      %5149 = vmatmul.f32.gmra.mxu0 %v3468
      %v5150 = vpop.f32.mrf.mxu0
      %v5151 = vadd.f32 %v3754, %v5150
      %5152 = vmatmul.f32.gmra.mxu0 %v3470
      %v5153 = vpop.f32.mrf.mxu0
      %v5154 = vadd.f32 %v3754, %v5153
      %5155 = vmatmul.f32.gmra.mxu0 %v3472
      %v5156 = vpop.f32.mrf.mxu0
      %v5157 = vadd.f32 %v3754, %v5156
      %5158 = vmatmul.f32.gmra.mxu0 %v3474
      %v5159 = vpop.f32.mrf.mxu0
      %v5160 = vadd.f32 %v3754, %v5159
      %5161 = vmatmul.f32.gmra.mxu0 %v3476
      %v5162 = vpop.f32.mrf.mxu0
      %v5163 = vadd.f32 %v3754, %v5162
      %5164 = vmatmul.f32.gmra.mxu0 %v3478
      %v5165 = vpop.f32.mrf.mxu0
      %v5166 = vadd.f32 %v3754, %v5165
      %5167 = vmatmul.f32.gmra.mxu0 %v3480
      %v5168 = vpop.f32.mrf.mxu0
      %v5169 = vadd.f32 %v3754, %v5168
      %5170 = vmatmul.f32.gmra.mxu0 %v3482
      %v5171 = vpop.f32.mrf.mxu0
      %v5172 = vadd.f32 %v3754, %v5171
      %5173 = vmatmul.f32.gmra.mxu0 %v3484
      %v5174 = vpop.f32.mrf.mxu0
      %v5175 = vadd.f32 %v3754, %v5174
      %5176 = vmatmul.f32.gmra.mxu0 %v3486
      %v5177 = vpop.f32.mrf.mxu0
      %v5178 = vadd.f32 %v3754, %v5177
      %5179 = vmatmul.f32.gmra.mxu0 %v3488
      %v5180 = vpop.f32.mrf.mxu0
      %v5181 = vadd.f32 %v3754, %v5180
      %5182 = vmatmul.f32.gmra.mxu0 %v3490
      %v5183 = vpop.f32.mrf.mxu0
      %v5184 = vadd.f32 %v3754, %v5183
      %5185 = vmatmul.f32.gmra.mxu0 %v3492
      %v5186 = vpop.f32.mrf.mxu0
      %v5187 = vadd.f32 %v3754, %v5186
      %5188 = vmatmul.f32.gmra.mxu0 %v3494
      %v5189 = vpop.f32.mrf.mxu0
      %v5190 = vadd.f32 %v3754, %v5189
      %5191 = vmatmul.f32.gmra.mxu0 %v3496
      %v5192 = vpop.f32.mrf.mxu0
      %v5193 = vadd.f32 %v3754, %v5192
      %5194 = vmatmul.f32.gmra.mxu0 %v3498
      %v5195 = vpop.f32.mrf.mxu0
      %v5196 = vadd.f32 %v3754, %v5195
      %5197 = vmatmul.f32.gmra.mxu0 %v3500
      %v5198 = vpop.f32.mrf.mxu0
      %v5199 = vadd.f32 %v3754, %v5198
      %5200 = vmatmul.f32.gmra.mxu0 %v3502
      %v5201 = vpop.f32.mrf.mxu0
      %v5202 = vadd.f32 %v3754, %v5201
      %5203 = vmatmul.f32.gmra.mxu0 %v3504
      %v5204 = vpop.f32.mrf.mxu0
      %v5205 = vadd.f32 %v3754, %v5204
      %5206 = vmatmul.f32.gmra.mxu0 %v3506
      %v5207 = vpop.f32.mrf.mxu0
      %v5208 = vadd.f32 %v3754, %v5207
      %5209 = vmatmul.f32.gmra.mxu0 %v3508
      %v5210 = vpop.f32.mrf.mxu0
      %v5211 = vadd.f32 %v3754, %v5210
      %5212 = vmatmul.f32.gmra.mxu0 %v3510
      %v5213 = vpop.f32.mrf.mxu0
      %v5214 = vadd.f32 %v3754, %v5213
      %5215 = vmatmul.f32.gmra.mxu0 %v3512
      %v5216 = vpop.f32.mrf.mxu0
      %v5217 = vadd.f32 %v3754, %v5216
      %5218 = vmatmul.f32.gmra.mxu0 %v3514
      %v5219 = vpop.f32.mrf.mxu0
      %v5220 = vadd.f32 %v3754, %v5219
      %5221 = vmatmul.f32.gmra.mxu0 %v3516
      %v5222 = vpop.f32.mrf.mxu0
      %v5223 = vadd.f32 %v3754, %v5222
      %5224 = vmatmul.f32.gmra.mxu0 %v3518
      %v5225 = vpop.f32.mrf.mxu0
      %v5226 = vadd.f32 %v3754, %v5225
      %5227 = vmatmul.f32.gmra.mxu0 %v3520
      %v5228 = vpop.f32.mrf.mxu0
      %v5229 = vadd.f32 %v3754, %v5228
      %5230 = vdwg.mxu0
      %5231 = vmatpush.msra.mxu0 %v3745
      %5232 = vmatpush.msra.mxu0 %v3738
      %5233 = vmatpush.msra.mxu0 %v3731
      %5234 = vmatpush.msra.mxu0 %v3724
      %5235 = vmatpush.msra.mxu0 %v3717
      %5236 = vmatpush.msra.mxu0 %v3710
      %5237 = vmatpush.msra.mxu0 %v3703
      %5238 = vmatpush.msra.mxu0 %v3696
      %5239 = vmatpush.msra.mxu0 %v3689
      %5240 = vmatpush.msra.mxu0 %v3682
      %5241 = vmatpush.msra.mxu0 %v3675
      %5242 = vmatpush.msra.mxu0 %v3668
      %5243 = vmatpush.msra.mxu0 %v3661
      %5244 = vmatpush.msra.mxu0 %v3654
      %5245 = vmatpush.msra.mxu0 %v3647
      %5246 = vmatpush.msra.mxu0 %v3640
      %5247 = vmatmul.f32.gmra.mxu0 %v3459
      %v5248 = vpop.f32.mrf.mxu0
      %v5249 = vadd.f32 %v5136, %v5248
      %5250 = vmatmul.f32.gmra.mxu0 %v3461
      %v5251 = vpop.f32.mrf.mxu0
      %v5252 = vadd.f32 %v5139, %v5251
      %5253 = vmatmul.f32.gmra.mxu0 %v3463
      %v5254 = vpop.f32.mrf.mxu0
      %v5255 = vadd.f32 %v5142, %v5254
      %5256 = vmatmul.f32.gmra.mxu0 %v3465
      %v5257 = vpop.f32.mrf.mxu0
      %v5258 = vadd.f32 %v5145, %v5257
      %5259 = vmatmul.f32.gmra.mxu0 %v3467
      %v5260 = vpop.f32.mrf.mxu0
      %v5261 = vadd.f32 %v5148, %v5260
      %5262 = vmatmul.f32.gmra.mxu0 %v3469
      %v5263 = vpop.f32.mrf.mxu0
      %v5264 = vadd.f32 %v5151, %v5263
      %5265 = vmatmul.f32.gmra.mxu0 %v3471
      %v5266 = vpop.f32.mrf.mxu0
      %v5267 = vadd.f32 %v5154, %v5266
      %5268 = vmatmul.f32.gmra.mxu0 %v3473
      %v5269 = vpop.f32.mrf.mxu0
      %v5270 = vadd.f32 %v5157, %v5269
      %5271 = vmatmul.f32.gmra.mxu0 %v3475
      %v5272 = vpop.f32.mrf.mxu0
      %v5273 = vadd.f32 %v5160, %v5272
      %5274 = vmatmul.f32.gmra.mxu0 %v3477
      %v5275 = vpop.f32.mrf.mxu0
      %v5276 = vadd.f32 %v5163, %v5275
      %5277 = vmatmul.f32.gmra.mxu0 %v3479
      %v5278 = vpop.f32.mrf.mxu0
      %v5279 = vadd.f32 %v5166, %v5278
      %5280 = vmatmul.f32.gmra.mxu0 %v3481
      %v5281 = vpop.f32.mrf.mxu0
      %v5282 = vadd.f32 %v5169, %v5281
      %5283 = vmatmul.f32.gmra.mxu0 %v3483
      %v5284 = vpop.f32.mrf.mxu0
      %v5285 = vadd.f32 %v5172, %v5284
      %5286 = vmatmul.f32.gmra.mxu0 %v3485
      %v5287 = vpop.f32.mrf.mxu0
      %v5288 = vadd.f32 %v5175, %v5287
      %5289 = vmatmul.f32.gmra.mxu0 %v3487
      %v5290 = vpop.f32.mrf.mxu0
      %v5291 = vadd.f32 %v5178, %v5290
      %5292 = vmatmul.f32.gmra.mxu0 %v3489
      %v5293 = vpop.f32.mrf.mxu0
      %v5294 = vadd.f32 %v5181, %v5293
      %5295 = vmatmul.f32.gmra.mxu0 %v3491
      %v5296 = vpop.f32.mrf.mxu0
      %v5297 = vadd.f32 %v5184, %v5296
      %5298 = vmatmul.f32.gmra.mxu0 %v3493
      %v5299 = vpop.f32.mrf.mxu0
      %v5300 = vadd.f32 %v5187, %v5299
      %5301 = vmatmul.f32.gmra.mxu0 %v3495
      %v5302 = vpop.f32.mrf.mxu0
      %v5303 = vadd.f32 %v5190, %v5302
      %5304 = vmatmul.f32.gmra.mxu0 %v3497
      %v5305 = vpop.f32.mrf.mxu0
      %v5306 = vadd.f32 %v5193, %v5305
      %5307 = vmatmul.f32.gmra.mxu0 %v3499
      %v5308 = vpop.f32.mrf.mxu0
      %v5309 = vadd.f32 %v5196, %v5308
      %5310 = vmatmul.f32.gmra.mxu0 %v3501
      %v5311 = vpop.f32.mrf.mxu0
      %v5312 = vadd.f32 %v5199, %v5311
      %5313 = vmatmul.f32.gmra.mxu0 %v3503
      %v5314 = vpop.f32.mrf.mxu0
      %v5315 = vadd.f32 %v5202, %v5314
      %5316 = vmatmul.f32.gmra.mxu0 %v3505
      %v5317 = vpop.f32.mrf.mxu0
      %v5318 = vadd.f32 %v5205, %v5317
      %5319 = vmatmul.f32.gmra.mxu0 %v3507
      %v5320 = vpop.f32.mrf.mxu0
      %v5321 = vadd.f32 %v5208, %v5320
      %5322 = vmatmul.f32.gmra.mxu0 %v3509
      %v5323 = vpop.f32.mrf.mxu0
      %v5324 = vadd.f32 %v5211, %v5323
      %5325 = vmatmul.f32.gmra.mxu0 %v3511
      %v5326 = vpop.f32.mrf.mxu0
      %v5327 = vadd.f32 %v5214, %v5326
      %5328 = vmatmul.f32.gmra.mxu0 %v3513
      %v5329 = vpop.f32.mrf.mxu0
      %v5330 = vadd.f32 %v5217, %v5329
      %5331 = vmatmul.f32.gmra.mxu0 %v3515
      %v5332 = vpop.f32.mrf.mxu0
      %v5333 = vadd.f32 %v5220, %v5332
      %5334 = vmatmul.f32.gmra.mxu0 %v3517
      %v5335 = vpop.f32.mrf.mxu0
      %v5336 = vadd.f32 %v5223, %v5335
      %5337 = vmatmul.f32.gmra.mxu0 %v3519
      %v5338 = vpop.f32.mrf.mxu0
      %v5339 = vadd.f32 %v5226, %v5338
      %5340 = vmatmul.f32.gmra.mxu0 %v3521
      %v5341 = vpop.f32.mrf.mxu0
      %v5342 = vadd.f32 %v5229, %v5341
      %5343 = vdwg.mxu0
      %v5344 = vxor.u32 %v3893, 2147483648
      %v5345 = vxor.u32 %v4119, 2147483648
      %v5346 = vxor.u32 %v4345, 2147483648
      %v5347 = vxor.u32 %v4571, 2147483648
      %v5348 = vxor.u32 %v4797, 2147483648
      %v5349 = vxor.u32 %v5023, 2147483648
      %v5350 = vxor.u32 %v5249, 2147483648
      %v5351 = vxor.u32 %v3896, 2147483648
      %v5352 = vxor.u32 %v4122, 2147483648
      %v5353 = vxor.u32 %v4348, 2147483648
      %v5354 = vxor.u32 %v4574, 2147483648
      %v5355 = vxor.u32 %v4800, 2147483648
      %v5356 = vxor.u32 %v5026, 2147483648
      %v5357 = vxor.u32 %v5252, 2147483648
      %v5358 = vxor.u32 %v3899, 2147483648
      %v5359 = vxor.u32 %v4125, 2147483648
      %v5360 = vxor.u32 %v4351, 2147483648
      %v5361 = vxor.u32 %v4577, 2147483648
      %v5362 = vxor.u32 %v4803, 2147483648
      %v5363 = vxor.u32 %v5029, 2147483648
      %v5364 = vxor.u32 %v5255, 2147483648
      %v5365 = vxor.u32 %v3902, 2147483648
      %v5366 = vxor.u32 %v4128, 2147483648
      %v5367 = vxor.u32 %v4354, 2147483648
      %v5368 = vxor.u32 %v4580, 2147483648
      %v5369 = vxor.u32 %v4806, 2147483648
      %v5370 = vxor.u32 %v5032, 2147483648
      %v5371 = vxor.u32 %v5258, 2147483648
      %v5372 = vxor.u32 %v3905, 2147483648
      %v5373 = vxor.u32 %v4131, 2147483648
      %v5374 = vxor.u32 %v4357, 2147483648
      %v5375 = vxor.u32 %v4583, 2147483648
      %v5376 = vxor.u32 %v4809, 2147483648
      %v5377 = vxor.u32 %v5035, 2147483648
      %v5378 = vxor.u32 %v5261, 2147483648
      %v5379 = vxor.u32 %v3908, 2147483648
      %v5380 = vxor.u32 %v4134, 2147483648
      %v5381 = vxor.u32 %v4360, 2147483648
      %v5382 = vxor.u32 %v4586, 2147483648
      %v5383 = vxor.u32 %v4812, 2147483648
      %v5384 = vxor.u32 %v5038, 2147483648
      %v5385 = vxor.u32 %v5264, 2147483648
      %v5386 = vxor.u32 %v3911, 2147483648
      %v5387 = vxor.u32 %v4137, 2147483648
      %v5388 = vxor.u32 %v4363, 2147483648
      %v5389 = vxor.u32 %v4589, 2147483648
      %v5390 = vxor.u32 %v4815, 2147483648
      %v5391 = vxor.u32 %v5041, 2147483648
      %v5392 = vxor.u32 %v5267, 2147483648
      %v5393 = vxor.u32 %v3914, 2147483648
      %v5394 = vxor.u32 %v4140, 2147483648
      %v5395 = vxor.u32 %v4366, 2147483648
      %v5396 = vxor.u32 %v4592, 2147483648
      %v5397 = vxor.u32 %v4818, 2147483648
      %v5398 = vxor.u32 %v5044, 2147483648
      %v5399 = vxor.u32 %v5270, 2147483648
      %v5400 = vxor.u32 %v3917, 2147483648
      %v5401 = vxor.u32 %v4143, 2147483648
      %v5402 = vxor.u32 %v4369, 2147483648
      %v5403 = vxor.u32 %v4595, 2147483648
      %v5404 = vxor.u32 %v4821, 2147483648
      %v5405 = vxor.u32 %v5047, 2147483648
      %v5406 = vxor.u32 %v5273, 2147483648
      %v5407 = vxor.u32 %v3920, 2147483648
      %v5408 = vxor.u32 %v4146, 2147483648
      %v5409 = vxor.u32 %v4372, 2147483648
      %v5410 = vxor.u32 %v4598, 2147483648
      %v5411 = vxor.u32 %v4824, 2147483648
      %v5412 = vxor.u32 %v5050, 2147483648
      %v5413 = vxor.u32 %v5276, 2147483648
      %v5414 = vxor.u32 %v3923, 2147483648
      %v5415 = vxor.u32 %v4149, 2147483648
      %v5416 = vxor.u32 %v4375, 2147483648
      %v5417 = vxor.u32 %v4601, 2147483648
      %v5418 = vxor.u32 %v4827, 2147483648
      %v5419 = vxor.u32 %v5053, 2147483648
      %v5420 = vxor.u32 %v5279, 2147483648
      %v5421 = vxor.u32 %v3926, 2147483648
      %v5422 = vxor.u32 %v4152, 2147483648
      %v5423 = vxor.u32 %v4378, 2147483648
      %v5424 = vxor.u32 %v4604, 2147483648
      %v5425 = vxor.u32 %v4830, 2147483648
      %v5426 = vxor.u32 %v5056, 2147483648
      %v5427 = vxor.u32 %v5282, 2147483648
      %v5428 = vxor.u32 %v3929, 2147483648
      %v5429 = vxor.u32 %v4155, 2147483648
      %v5430 = vxor.u32 %v4381, 2147483648
      %v5431 = vxor.u32 %v4607, 2147483648
      %v5432 = vxor.u32 %v4833, 2147483648
      %v5433 = vxor.u32 %v5059, 2147483648
      %v5434 = vxor.u32 %v5285, 2147483648
      %v5435 = vxor.u32 %v3932, 2147483648
      %v5436 = vxor.u32 %v4158, 2147483648
      %v5437 = vxor.u32 %v4384, 2147483648
      %v5438 = vxor.u32 %v4610, 2147483648
      %v5439 = vxor.u32 %v4836, 2147483648
      %v5440 = vxor.u32 %v5062, 2147483648
      %v5441 = vxor.u32 %v5288, 2147483648
      %v5442 = vxor.u32 %v3935, 2147483648
      %v5443 = vxor.u32 %v4161, 2147483648
      %v5444 = vxor.u32 %v4387, 2147483648
      %v5445 = vxor.u32 %v4613, 2147483648
      %v5446 = vxor.u32 %v4839, 2147483648
      %v5447 = vxor.u32 %v5065, 2147483648
      %v5448 = vxor.u32 %v5291, 2147483648
      %v5449 = vxor.u32 %v3938, 2147483648
      %v5450 = vxor.u32 %v4164, 2147483648
      %v5451 = vxor.u32 %v4390, 2147483648
      %v5452 = vxor.u32 %v4616, 2147483648
      %v5453 = vxor.u32 %v4842, 2147483648
      %v5454 = vxor.u32 %v5068, 2147483648
      %v5455 = vxor.u32 %v5294, 2147483648
      %v5456 = vxor.u32 %v3941, 2147483648
      %v5457 = vxor.u32 %v4167, 2147483648
      %v5458 = vxor.u32 %v4393, 2147483648
      %v5459 = vxor.u32 %v4619, 2147483648
      %v5460 = vxor.u32 %v4845, 2147483648
      %v5461 = vxor.u32 %v5071, 2147483648
      %v5462 = vxor.u32 %v5297, 2147483648
      %v5463 = vxor.u32 %v3944, 2147483648
      %v5464 = vxor.u32 %v4170, 2147483648
      %v5465 = vxor.u32 %v4396, 2147483648
      %v5466 = vxor.u32 %v4622, 2147483648
      %v5467 = vxor.u32 %v4848, 2147483648
      %v5468 = vxor.u32 %v5074, 2147483648
      %v5469 = vxor.u32 %v5300, 2147483648
      %v5470 = vxor.u32 %v3947, 2147483648
      %v5471 = vxor.u32 %v4173, 2147483648
      %v5472 = vxor.u32 %v4399, 2147483648
      %v5473 = vxor.u32 %v4625, 2147483648
      %v5474 = vxor.u32 %v4851, 2147483648
      %v5475 = vxor.u32 %v5077, 2147483648
      %v5476 = vxor.u32 %v5303, 2147483648
      %v5477 = vxor.u32 %v3950, 2147483648
      %v5478 = vxor.u32 %v4176, 2147483648
      %v5479 = vxor.u32 %v4402, 2147483648
      %v5480 = vxor.u32 %v4628, 2147483648
      %v5481 = vxor.u32 %v4854, 2147483648
      %v5482 = vxor.u32 %v5080, 2147483648
      %v5483 = vxor.u32 %v5306, 2147483648
      %v5484 = vxor.u32 %v3953, 2147483648
      %v5485 = vxor.u32 %v4179, 2147483648
      %v5486 = vxor.u32 %v4405, 2147483648
      %v5487 = vxor.u32 %v4631, 2147483648
      %v5488 = vxor.u32 %v4857, 2147483648
      %v5489 = vxor.u32 %v5083, 2147483648
      %v5490 = vxor.u32 %v5309, 2147483648
      %v5491 = vxor.u32 %v3956, 2147483648
      %v5492 = vxor.u32 %v4182, 2147483648
      %v5493 = vxor.u32 %v4408, 2147483648
      %v5494 = vxor.u32 %v4634, 2147483648
      %v5495 = vxor.u32 %v4860, 2147483648
      %v5496 = vxor.u32 %v5086, 2147483648
      %v5497 = vxor.u32 %v5312, 2147483648
      %v5498 = vxor.u32 %v3959, 2147483648
      %v5499 = vxor.u32 %v4185, 2147483648
      %v5500 = vxor.u32 %v4411, 2147483648
      %v5501 = vxor.u32 %v4637, 2147483648
      %v5502 = vxor.u32 %v4863, 2147483648
      %v5503 = vxor.u32 %v5089, 2147483648
      %v5504 = vxor.u32 %v5315, 2147483648
      %v5505 = vxor.u32 %v3962, 2147483648
      %v5506 = vxor.u32 %v4188, 2147483648
      %v5507 = vxor.u32 %v4414, 2147483648
      %v5508 = vxor.u32 %v4640, 2147483648
      %v5509 = vxor.u32 %v4866, 2147483648
      %v5510 = vxor.u32 %v5092, 2147483648
      %v5511 = vxor.u32 %v5318, 2147483648
      %v5512 = vxor.u32 %v3965, 2147483648
      %v5513 = vxor.u32 %v4191, 2147483648
      %v5514 = vxor.u32 %v4417, 2147483648
      %v5515 = vxor.u32 %v4643, 2147483648
      %v5516 = vxor.u32 %v4869, 2147483648
      %v5517 = vxor.u32 %v5095, 2147483648
      %v5518 = vxor.u32 %v5321, 2147483648
      %v5519 = vxor.u32 %v3968, 2147483648
      %v5520 = vxor.u32 %v4194, 2147483648
      %v5521 = vxor.u32 %v4420, 2147483648
      %v5522 = vxor.u32 %v4646, 2147483648
      %v5523 = vxor.u32 %v4872, 2147483648
      %v5524 = vxor.u32 %v5098, 2147483648
      %v5525 = vxor.u32 %v5324, 2147483648
      %v5526 = vxor.u32 %v3971, 2147483648
      %v5527 = vxor.u32 %v4197, 2147483648
      %v5528 = vxor.u32 %v4423, 2147483648
      %v5529 = vxor.u32 %v4649, 2147483648
      %v5530 = vxor.u32 %v4875, 2147483648
      %v5531 = vxor.u32 %v5101, 2147483648
      %v5532 = vxor.u32 %v5327, 2147483648
      %v5533 = vxor.u32 %v3974, 2147483648
      %v5534 = vxor.u32 %v4200, 2147483648
      %v5535 = vxor.u32 %v4426, 2147483648
      %v5536 = vxor.u32 %v4652, 2147483648
      %v5537 = vxor.u32 %v4878, 2147483648
      %v5538 = vxor.u32 %v5104, 2147483648
      %v5539 = vxor.u32 %v5330, 2147483648
      %v5540 = vxor.u32 %v3977, 2147483648
      %v5541 = vxor.u32 %v4203, 2147483648
      %v5542 = vxor.u32 %v4429, 2147483648
      %v5543 = vxor.u32 %v4655, 2147483648
      %v5544 = vxor.u32 %v4881, 2147483648
      %v5545 = vxor.u32 %v5107, 2147483648
      %v5546 = vxor.u32 %v5333, 2147483648
      %v5547 = vxor.u32 %v3980, 2147483648
      %v5548 = vxor.u32 %v4206, 2147483648
      %v5549 = vxor.u32 %v4432, 2147483648
      %v5550 = vxor.u32 %v4658, 2147483648
      %v5551 = vxor.u32 %v4884, 2147483648
      %v5552 = vxor.u32 %v5110, 2147483648
      %v5553 = vxor.u32 %v5336, 2147483648
      %v5554 = vxor.u32 %v3983, 2147483648
      %v5555 = vxor.u32 %v4209, 2147483648
      %v5556 = vxor.u32 %v4435, 2147483648
      %v5557 = vxor.u32 %v4661, 2147483648
      %v5558 = vxor.u32 %v4887, 2147483648
      %v5559 = vxor.u32 %v5113, 2147483648
      %v5560 = vxor.u32 %v5339, 2147483648
      %v5561 = vxor.u32 %v3986, 2147483648
      %v5562 = vxor.u32 %v4212, 2147483648
      %v5563 = vxor.u32 %v4438, 2147483648
      %v5564 = vxor.u32 %v4664, 2147483648
      %v5565 = vxor.u32 %v4890, 2147483648
      %v5566 = vxor.u32 %v5116, 2147483648
      %v5567 = vxor.u32 %v5342, 2147483648
      %v5568 = vmul.f32 %v5344, 1.442695
      %v5569 = vpow.pop %v5568
      %v5570 = vmul.f32 %v5345, 1.442695
      %v5571 = vpow.pop %v5570
      %v5572 = vmul.f32 %v5346, 1.442695
      %v5573 = vpow.pop %v5572
      %v5574 = vmul.f32 %v5347, 1.442695
      %v5575 = vpow.pop %v5574
      %v5576 = vmul.f32 %v5348, 1.442695
      %v5577 = vpow.pop %v5576
      %v5578 = vmul.f32 %v5349, 1.442695
      %v5579 = vpow.pop %v5578
      %v5580 = vmul.f32 %v5350, 1.442695
      %v5581 = vpow.pop %v5580
      %v5582 = vmul.f32 %v5351, 1.442695
      %v5583 = vpow.pop %v5582
      %v5584 = vmul.f32 %v5352, 1.442695
      %v5585 = vpow.pop %v5584
      %v5586 = vmul.f32 %v5353, 1.442695
      %v5587 = vpow.pop %v5586
      %v5588 = vmul.f32 %v5354, 1.442695
      %v5589 = vpow.pop %v5588
      %v5590 = vmul.f32 %v5355, 1.442695
      %v5591 = vpow.pop %v5590
      %v5592 = vmul.f32 %v5356, 1.442695
      %v5593 = vpow.pop %v5592
      %v5594 = vmul.f32 %v5357, 1.442695
      %v5595 = vpow.pop %v5594
      %v5596 = vmul.f32 %v5358, 1.442695
      %v5597 = vpow.pop %v5596
      %v5598 = vmul.f32 %v5359, 1.442695
      %v5599 = vpow.pop %v5598
      %v5600 = vmul.f32 %v5360, 1.442695
      %v5601 = vpow.pop %v5600
      %v5602 = vmul.f32 %v5361, 1.442695
      %v5603 = vpow.pop %v5602
      %v5604 = vmul.f32 %v5362, 1.442695
      %v5605 = vpow.pop %v5604
      %v5606 = vmul.f32 %v5363, 1.442695
      %v5607 = vpow.pop %v5606
      %v5608 = vmul.f32 %v5364, 1.442695
      %v5609 = vpow.pop %v5608
      %v5610 = vmul.f32 %v5365, 1.442695
      %v5611 = vpow.pop %v5610
      %v5612 = vmul.f32 %v5366, 1.442695
      %v5613 = vpow.pop %v5612
      %v5614 = vmul.f32 %v5367, 1.442695
      %v5615 = vpow.pop %v5614
      %v5616 = vmul.f32 %v5368, 1.442695
      %v5617 = vpow.pop %v5616
      %v5618 = vmul.f32 %v5369, 1.442695
      %v5619 = vpow.pop %v5618
      %v5620 = vmul.f32 %v5370, 1.442695
      %v5621 = vpow.pop %v5620
      %v5622 = vmul.f32 %v5371, 1.442695
      %v5623 = vpow.pop %v5622
      %v5624 = vmul.f32 %v5372, 1.442695
      %v5625 = vpow.pop %v5624
      %v5626 = vmul.f32 %v5373, 1.442695
      %v5627 = vpow.pop %v5626
      %v5628 = vmul.f32 %v5374, 1.442695
      %v5629 = vpow.pop %v5628
      %v5630 = vmul.f32 %v5375, 1.442695
      %v5631 = vpow.pop %v5630
      %v5632 = vmul.f32 %v5376, 1.442695
      %v5633 = vpow.pop %v5632
      %v5634 = vmul.f32 %v5377, 1.442695
      %v5635 = vpow.pop %v5634
      %v5636 = vmul.f32 %v5378, 1.442695
      %v5637 = vpow.pop %v5636
      %v5638 = vmul.f32 %v5379, 1.442695
      %v5639 = vpow.pop %v5638
      %v5640 = vmul.f32 %v5380, 1.442695
      %v5641 = vpow.pop %v5640
      %v5642 = vmul.f32 %v5381, 1.442695
      %v5643 = vpow.pop %v5642
      %v5644 = vmul.f32 %v5382, 1.442695
      %v5645 = vpow.pop %v5644
      %v5646 = vmul.f32 %v5383, 1.442695
      %v5647 = vpow.pop %v5646
      %v5648 = vmul.f32 %v5384, 1.442695
      %v5649 = vpow.pop %v5648
      %v5650 = vmul.f32 %v5385, 1.442695
      %v5651 = vpow.pop %v5650
      %v5652 = vmul.f32 %v5386, 1.442695
      %v5653 = vpow.pop %v5652
      %v5654 = vmul.f32 %v5387, 1.442695
      %v5655 = vpow.pop %v5654
      %v5656 = vmul.f32 %v5388, 1.442695
      %v5657 = vpow.pop %v5656
      %v5658 = vmul.f32 %v5389, 1.442695
      %v5659 = vpow.pop %v5658
      %v5660 = vmul.f32 %v5390, 1.442695
      %v5661 = vpow.pop %v5660
      %v5662 = vmul.f32 %v5391, 1.442695
      %v5663 = vpow.pop %v5662
      %v5664 = vmul.f32 %v5392, 1.442695
      %v5665 = vpow.pop %v5664
      %v5666 = vmul.f32 %v5393, 1.442695
      %v5667 = vpow.pop %v5666
      %v5668 = vmul.f32 %v5394, 1.442695
      %v5669 = vpow.pop %v5668
      %v5670 = vmul.f32 %v5395, 1.442695
      %v5671 = vpow.pop %v5670
      %v5672 = vmul.f32 %v5396, 1.442695
      %v5673 = vpow.pop %v5672
      %v5674 = vmul.f32 %v5397, 1.442695
      %v5675 = vpow.pop %v5674
      %v5676 = vmul.f32 %v5398, 1.442695
      %v5677 = vpow.pop %v5676
      %v5678 = vmul.f32 %v5399, 1.442695
      %v5679 = vpow.pop %v5678
      %v5680 = vmul.f32 %v5400, 1.442695
      %v5681 = vpow.pop %v5680
      %v5682 = vmul.f32 %v5401, 1.442695
      %v5683 = vpow.pop %v5682
      %v5684 = vmul.f32 %v5402, 1.442695
      %v5685 = vpow.pop %v5684
      %v5686 = vmul.f32 %v5403, 1.442695
      %v5687 = vpow.pop %v5686
      %v5688 = vmul.f32 %v5404, 1.442695
      %v5689 = vpow.pop %v5688
      %v5690 = vmul.f32 %v5405, 1.442695
      %v5691 = vpow.pop %v5690
      %v5692 = vmul.f32 %v5406, 1.442695
      %v5693 = vpow.pop %v5692
      %v5694 = vmul.f32 %v5407, 1.442695
      %v5695 = vpow.pop %v5694
      %v5696 = vmul.f32 %v5408, 1.442695
      %v5697 = vpow.pop %v5696
      %v5698 = vmul.f32 %v5409, 1.442695
      %v5699 = vpow.pop %v5698
      %v5700 = vmul.f32 %v5410, 1.442695
      %v5701 = vpow.pop %v5700
      %v5702 = vmul.f32 %v5411, 1.442695
      %v5703 = vpow.pop %v5702
      %v5704 = vmul.f32 %v5412, 1.442695
      %v5705 = vpow.pop %v5704
      %v5706 = vmul.f32 %v5413, 1.442695
      %v5707 = vpow.pop %v5706
      %v5708 = vmul.f32 %v5414, 1.442695
      %v5709 = vpow.pop %v5708
      %v5710 = vmul.f32 %v5415, 1.442695
      %v5711 = vpow.pop %v5710
      %v5712 = vmul.f32 %v5416, 1.442695
      %v5713 = vpow.pop %v5712
      %v5714 = vmul.f32 %v5417, 1.442695
      %v5715 = vpow.pop %v5714
      %v5716 = vmul.f32 %v5418, 1.442695
      %v5717 = vpow.pop %v5716
      %v5718 = vmul.f32 %v5419, 1.442695
      %v5719 = vpow.pop %v5718
      %v5720 = vmul.f32 %v5420, 1.442695
      %v5721 = vpow.pop %v5720
      %v5722 = vmul.f32 %v5421, 1.442695
      %v5723 = vpow.pop %v5722
      %v5724 = vmul.f32 %v5422, 1.442695
      %v5725 = vpow.pop %v5724
      %v5726 = vmul.f32 %v5423, 1.442695
      %v5727 = vpow.pop %v5726
      %v5728 = vmul.f32 %v5424, 1.442695
      %v5729 = vpow.pop %v5728
      %v5730 = vmul.f32 %v5425, 1.442695
      %v5731 = vpow.pop %v5730
      %v5732 = vmul.f32 %v5426, 1.442695
      %v5733 = vpow.pop %v5732
      %v5734 = vmul.f32 %v5427, 1.442695
      %v5735 = vpow.pop %v5734
      %v5736 = vmul.f32 %v5428, 1.442695
      %v5737 = vpow.pop %v5736
      %v5738 = vmul.f32 %v5429, 1.442695
      %v5739 = vpow.pop %v5738
      %v5740 = vmul.f32 %v5430, 1.442695
      %v5741 = vpow.pop %v5740
      %v5742 = vmul.f32 %v5431, 1.442695
      %v5743 = vpow.pop %v5742
      %v5744 = vmul.f32 %v5432, 1.442695
      %v5745 = vpow.pop %v5744
      %v5746 = vmul.f32 %v5433, 1.442695
      %v5747 = vpow.pop %v5746
      %v5748 = vmul.f32 %v5434, 1.442695
      %v5749 = vpow.pop %v5748
      %v5750 = vmul.f32 %v5435, 1.442695
      %v5751 = vpow.pop %v5750
      %v5752 = vmul.f32 %v5436, 1.442695
      %v5753 = vpow.pop %v5752
      %v5754 = vmul.f32 %v5437, 1.442695
      %v5755 = vpow.pop %v5754
      %v5756 = vmul.f32 %v5438, 1.442695
      %v5757 = vpow.pop %v5756
      %v5758 = vmul.f32 %v5439, 1.442695
      %v5759 = vpow.pop %v5758
      %v5760 = vmul.f32 %v5440, 1.442695
      %v5761 = vpow.pop %v5760
      %v5762 = vmul.f32 %v5441, 1.442695
      %v5763 = vpow.pop %v5762
      %v5764 = vmul.f32 %v5442, 1.442695
      %v5765 = vpow.pop %v5764
      %v5766 = vmul.f32 %v5443, 1.442695
      %v5767 = vpow.pop %v5766
      %v5768 = vmul.f32 %v5444, 1.442695
      %v5769 = vpow.pop %v5768
      %v5770 = vmul.f32 %v5445, 1.442695
      %v5771 = vpow.pop %v5770
      %v5772 = vmul.f32 %v5446, 1.442695
      %v5773 = vpow.pop %v5772
      %v5774 = vmul.f32 %v5447, 1.442695
      %v5775 = vpow.pop %v5774
      %v5776 = vmul.f32 %v5448, 1.442695
      %v5777 = vpow.pop %v5776
      %v5778 = vmul.f32 %v5449, 1.442695
      %v5779 = vpow.pop %v5778
      %v5780 = vmul.f32 %v5450, 1.442695
      %v5781 = vpow.pop %v5780
      %v5782 = vmul.f32 %v5451, 1.442695
      %v5783 = vpow.pop %v5782
      %v5784 = vmul.f32 %v5452, 1.442695
      %v5785 = vpow.pop %v5784
      %v5786 = vmul.f32 %v5453, 1.442695
      %v5787 = vpow.pop %v5786
      %v5788 = vmul.f32 %v5454, 1.442695
      %v5789 = vpow.pop %v5788
      %v5790 = vmul.f32 %v5455, 1.442695
      %v5791 = vpow.pop %v5790
      %v5792 = vmul.f32 %v5456, 1.442695
      %v5793 = vpow.pop %v5792
      %v5794 = vmul.f32 %v5457, 1.442695
      %v5795 = vpow.pop %v5794
      %v5796 = vmul.f32 %v5458, 1.442695
      %v5797 = vpow.pop %v5796
      %v5798 = vmul.f32 %v5459, 1.442695
      %v5799 = vpow.pop %v5798
      %v5800 = vmul.f32 %v5460, 1.442695
      %v5801 = vpow.pop %v5800
      %v5802 = vmul.f32 %v5461, 1.442695
      %v5803 = vpow.pop %v5802
      %v5804 = vmul.f32 %v5462, 1.442695
      %v5805 = vpow.pop %v5804
      %v5806 = vmul.f32 %v5463, 1.442695
      %v5807 = vpow.pop %v5806
      %v5808 = vmul.f32 %v5464, 1.442695
      %v5809 = vpow.pop %v5808
      %v5810 = vmul.f32 %v5465, 1.442695
      %v5811 = vpow.pop %v5810
      %v5812 = vmul.f32 %v5466, 1.442695
      %v5813 = vpow.pop %v5812
      %v5814 = vmul.f32 %v5467, 1.442695
      %v5815 = vpow.pop %v5814
      %v5816 = vmul.f32 %v5468, 1.442695
      %v5817 = vpow.pop %v5816
      %v5818 = vmul.f32 %v5469, 1.442695
      %v5819 = vpow.pop %v5818
      %v5820 = vmul.f32 %v5470, 1.442695
      %v5821 = vpow.pop %v5820
      %v5822 = vmul.f32 %v5471, 1.442695
      %v5823 = vpow.pop %v5822
      %v5824 = vmul.f32 %v5472, 1.442695
      %v5825 = vpow.pop %v5824
      %v5826 = vmul.f32 %v5473, 1.442695
      %v5827 = vpow.pop %v5826
      %v5828 = vmul.f32 %v5474, 1.442695
      %v5829 = vpow.pop %v5828
      %v5830 = vmul.f32 %v5475, 1.442695
      %v5831 = vpow.pop %v5830
      %v5832 = vmul.f32 %v5476, 1.442695
      %v5833 = vpow.pop %v5832
      %v5834 = vmul.f32 %v5477, 1.442695
      %v5835 = vpow.pop %v5834
      %v5836 = vmul.f32 %v5478, 1.442695
      %v5837 = vpow.pop %v5836
      %v5838 = vmul.f32 %v5479, 1.442695
      %v5839 = vpow.pop %v5838
      %v5840 = vmul.f32 %v5480, 1.442695
      %v5841 = vpow.pop %v5840
      %v5842 = vmul.f32 %v5481, 1.442695
      %v5843 = vpow.pop %v5842
      %v5844 = vmul.f32 %v5482, 1.442695
      %v5845 = vpow.pop %v5844
      %v5846 = vmul.f32 %v5483, 1.442695
      %v5847 = vpow.pop %v5846
      %v5848 = vmul.f32 %v5484, 1.442695
      %v5849 = vpow.pop %v5848
      %v5850 = vmul.f32 %v5485, 1.442695
      %v5851 = vpow.pop %v5850
      %v5852 = vmul.f32 %v5486, 1.442695
      %v5853 = vpow.pop %v5852
      %v5854 = vmul.f32 %v5487, 1.442695
      %v5855 = vpow.pop %v5854
      %v5856 = vmul.f32 %v5488, 1.442695
      %v5857 = vpow.pop %v5856
      %v5858 = vmul.f32 %v5489, 1.442695
      %v5859 = vpow.pop %v5858
      %v5860 = vmul.f32 %v5490, 1.442695
      %v5861 = vpow.pop %v5860
      %v5862 = vmul.f32 %v5491, 1.442695
      %v5863 = vpow.pop %v5862
      %v5864 = vmul.f32 %v5492, 1.442695
      %v5865 = vpow.pop %v5864
      %v5866 = vmul.f32 %v5493, 1.442695
      %v5867 = vpow.pop %v5866
      %v5868 = vmul.f32 %v5494, 1.442695
      %v5869 = vpow.pop %v5868
      %v5870 = vmul.f32 %v5495, 1.442695
      %v5871 = vpow.pop %v5870
      %v5872 = vmul.f32 %v5496, 1.442695
      %v5873 = vpow.pop %v5872
      %v5874 = vmul.f32 %v5497, 1.442695
      %v5875 = vpow.pop %v5874
      %v5876 = vmul.f32 %v5498, 1.442695
      %v5877 = vpow.pop %v5876
      %v5878 = vmul.f32 %v5499, 1.442695
      %v5879 = vpow.pop %v5878
      %v5880 = vmul.f32 %v5500, 1.442695
      %v5881 = vpow.pop %v5880
      %v5882 = vmul.f32 %v5501, 1.442695
      %v5883 = vpow.pop %v5882
      %v5884 = vmul.f32 %v5502, 1.442695
      %v5885 = vpow.pop %v5884
      %v5886 = vmul.f32 %v5503, 1.442695
      %v5887 = vpow.pop %v5886
      %v5888 = vmul.f32 %v5504, 1.442695
      %v5889 = vpow.pop %v5888
      %v5890 = vmul.f32 %v5505, 1.442695
      %v5891 = vpow.pop %v5890
      %v5892 = vmul.f32 %v5506, 1.442695
      %v5893 = vpow.pop %v5892
      %v5894 = vmul.f32 %v5507, 1.442695
      %v5895 = vpow.pop %v5894
      %v5896 = vmul.f32 %v5508, 1.442695
      %v5897 = vpow.pop %v5896
      %v5898 = vmul.f32 %v5509, 1.442695
      %v5899 = vpow.pop %v5898
      %v5900 = vmul.f32 %v5510, 1.442695
      %v5901 = vpow.pop %v5900
      %v5902 = vmul.f32 %v5511, 1.442695
      %v5903 = vpow.pop %v5902
      %v5904 = vmul.f32 %v5512, 1.442695
      %v5905 = vpow.pop %v5904
      %v5906 = vmul.f32 %v5513, 1.442695
      %v5907 = vpow.pop %v5906
      %v5908 = vmul.f32 %v5514, 1.442695
      %v5909 = vpow.pop %v5908
      %v5910 = vmul.f32 %v5515, 1.442695
      %v5911 = vpow.pop %v5910
      %v5912 = vmul.f32 %v5516, 1.442695
      %v5913 = vpow.pop %v5912
      %v5914 = vmul.f32 %v5517, 1.442695
      %v5915 = vpow.pop %v5914
      %v5916 = vmul.f32 %v5518, 1.442695
      %v5917 = vpow.pop %v5916
      %v5918 = vmul.f32 %v5519, 1.442695
      %v5919 = vpow.pop %v5918
      %v5920 = vmul.f32 %v5520, 1.442695
      %v5921 = vpow.pop %v5920
      %v5922 = vmul.f32 %v5521, 1.442695
      %v5923 = vpow.pop %v5922
      %v5924 = vmul.f32 %v5522, 1.442695
      %v5925 = vpow.pop %v5924
      %v5926 = vmul.f32 %v5523, 1.442695
      %v5927 = vpow.pop %v5926
      %v5928 = vmul.f32 %v5524, 1.442695
      %v5929 = vpow.pop %v5928
      %v5930 = vmul.f32 %v5525, 1.442695
      %v5931 = vpow.pop %v5930
      %v5932 = vmul.f32 %v5526, 1.442695
      %v5933 = vpow.pop %v5932
      %v5934 = vmul.f32 %v5527, 1.442695
      %v5935 = vpow.pop %v5934
      %v5936 = vmul.f32 %v5528, 1.442695
      %v5937 = vpow.pop %v5936
      %v5938 = vmul.f32 %v5529, 1.442695
      %v5939 = vpow.pop %v5938
      %v5940 = vmul.f32 %v5530, 1.442695
      %v5941 = vpow.pop %v5940
      %v5942 = vmul.f32 %v5531, 1.442695
      %v5943 = vpow.pop %v5942
      %v5944 = vmul.f32 %v5532, 1.442695
      %v5945 = vpow.pop %v5944
      %v5946 = vmul.f32 %v5533, 1.442695
      %v5947 = vpow.pop %v5946
      %v5948 = vmul.f32 %v5534, 1.442695
      %v5949 = vpow.pop %v5948
      %v5950 = vmul.f32 %v5535, 1.442695
      %v5951 = vpow.pop %v5950
      %v5952 = vmul.f32 %v5536, 1.442695
      %v5953 = vpow.pop %v5952
      %v5954 = vmul.f32 %v5537, 1.442695
      %v5955 = vpow.pop %v5954
      %v5956 = vmul.f32 %v5538, 1.442695
      %v5957 = vpow.pop %v5956
      %v5958 = vmul.f32 %v5539, 1.442695
      %v5959 = vpow.pop %v5958
      %v5960 = vmul.f32 %v5540, 1.442695
      %v5961 = vpow.pop %v5960
      %v5962 = vmul.f32 %v5541, 1.442695
      %v5963 = vpow.pop %v5962
      %v5964 = vmul.f32 %v5542, 1.442695
      %v5965 = vpow.pop %v5964
      %v5966 = vmul.f32 %v5543, 1.442695
      %v5967 = vpow.pop %v5966
      %v5968 = vmul.f32 %v5544, 1.442695
      %v5969 = vpow.pop %v5968
      %v5970 = vmul.f32 %v5545, 1.442695
      %v5971 = vpow.pop %v5970
      %v5972 = vmul.f32 %v5546, 1.442695
      %v5973 = vpow.pop %v5972
      %v5974 = vmul.f32 %v5547, 1.442695
      %v5975 = vpow.pop %v5974
      %v5976 = vmul.f32 %v5548, 1.442695
      %v5977 = vpow.pop %v5976
      %v5978 = vmul.f32 %v5549, 1.442695
      %v5979 = vpow.pop %v5978
      %v5980 = vmul.f32 %v5550, 1.442695
      %v5981 = vpow.pop %v5980
      %v5982 = vmul.f32 %v5551, 1.442695
      %v5983 = vpow.pop %v5982
      %v5984 = vmul.f32 %v5552, 1.442695
      %v5985 = vpow.pop %v5984
      %v5986 = vmul.f32 %v5553, 1.442695
      %v5987 = vpow.pop %v5986
      %v5988 = vmul.f32 %v5554, 1.442695
      %v5989 = vpow.pop %v5988
      %v5990 = vmul.f32 %v5555, 1.442695
      %v5991 = vpow.pop %v5990
      %v5992 = vmul.f32 %v5556, 1.442695
      %v5993 = vpow.pop %v5992
      %v5994 = vmul.f32 %v5557, 1.442695
      %v5995 = vpow.pop %v5994
      %v5996 = vmul.f32 %v5558, 1.442695
      %v5997 = vpow.pop %v5996
      %v5998 = vmul.f32 %v5559, 1.442695
      %v5999 = vpow.pop %v5998
      %v6000 = vmul.f32 %v5560, 1.442695
      %v6001 = vpow.pop %v6000
      %v6002 = vmul.f32 %v5561, 1.442695
      %v6003 = vpow.pop %v6002
      %v6004 = vmul.f32 %v5562, 1.442695
      %v6005 = vpow.pop %v6004
      %v6006 = vmul.f32 %v5563, 1.442695
      %v6007 = vpow.pop %v6006
      %v6008 = vmul.f32 %v5564, 1.442695
      %v6009 = vpow.pop %v6008
      %v6010 = vmul.f32 %v5565, 1.442695
      %v6011 = vpow.pop %v6010
      %v6012 = vmul.f32 %v5566, 1.442695
      %v6013 = vpow.pop %v6012
      %v6014 = vmul.f32 %v5567, 1.442695
      %v6015 = vpow.pop %v6014
      %v6016 = vadd.f32 %v5569, 1.0
      %v6017 = vadd.f32 %v5571, 1.0
      %v6018 = vadd.f32 %v5573, 1.0
      %v6019 = vadd.f32 %v5575, 1.0
      %v6020 = vadd.f32 %v5577, 1.0
      %v6021 = vadd.f32 %v5579, 1.0
      %v6022 = vadd.f32 %v5581, 1.0
      %v6023 = vadd.f32 %v5583, 1.0
      %v6024 = vadd.f32 %v5585, 1.0
      %v6025 = vadd.f32 %v5587, 1.0
      %v6026 = vadd.f32 %v5589, 1.0
      %v6027 = vadd.f32 %v5591, 1.0
      %v6028 = vadd.f32 %v5593, 1.0
      %v6029 = vadd.f32 %v5595, 1.0
      %v6030 = vadd.f32 %v5597, 1.0
      %v6031 = vadd.f32 %v5599, 1.0
      %v6032 = vadd.f32 %v5601, 1.0
      %v6033 = vadd.f32 %v5603, 1.0
      %v6034 = vadd.f32 %v5605, 1.0
      %v6035 = vadd.f32 %v5607, 1.0
      %v6036 = vadd.f32 %v5609, 1.0
      %v6037 = vadd.f32 %v5611, 1.0
      %v6038 = vadd.f32 %v5613, 1.0
      %v6039 = vadd.f32 %v5615, 1.0
      %v6040 = vadd.f32 %v5617, 1.0
      %v6041 = vadd.f32 %v5619, 1.0
      %v6042 = vadd.f32 %v5621, 1.0
      %v6043 = vadd.f32 %v5623, 1.0
      %v6044 = vadd.f32 %v5625, 1.0
      %v6045 = vadd.f32 %v5627, 1.0
      %v6046 = vadd.f32 %v5629, 1.0
      %v6047 = vadd.f32 %v5631, 1.0
      %v6048 = vadd.f32 %v5633, 1.0
      %v6049 = vadd.f32 %v5635, 1.0
      %v6050 = vadd.f32 %v5637, 1.0
      %v6051 = vadd.f32 %v5639, 1.0
      %v6052 = vadd.f32 %v5641, 1.0
      %v6053 = vadd.f32 %v5643, 1.0
      %v6054 = vadd.f32 %v5645, 1.0
      %v6055 = vadd.f32 %v5647, 1.0
      %v6056 = vadd.f32 %v5649, 1.0
      %v6057 = vadd.f32 %v5651, 1.0
      %v6058 = vadd.f32 %v5653, 1.0
      %v6059 = vadd.f32 %v5655, 1.0
      %v6060 = vadd.f32 %v5657, 1.0
      %v6061 = vadd.f32 %v5659, 1.0
      %v6062 = vadd.f32 %v5661, 1.0
      %v6063 = vadd.f32 %v5663, 1.0
      %v6064 = vadd.f32 %v5665, 1.0
      %v6065 = vadd.f32 %v5667, 1.0
      %v6066 = vadd.f32 %v5669, 1.0
      %v6067 = vadd.f32 %v5671, 1.0
      %v6068 = vadd.f32 %v5673, 1.0
      %v6069 = vadd.f32 %v5675, 1.0
      %v6070 = vadd.f32 %v5677, 1.0
      %v6071 = vadd.f32 %v5679, 1.0
      %v6072 = vadd.f32 %v5681, 1.0
      %v6073 = vadd.f32 %v5683, 1.0
      %v6074 = vadd.f32 %v5685, 1.0
      %v6075 = vadd.f32 %v5687, 1.0
      %v6076 = vadd.f32 %v5689, 1.0
      %v6077 = vadd.f32 %v5691, 1.0
      %v6078 = vadd.f32 %v5693, 1.0
      %v6079 = vadd.f32 %v5695, 1.0
      %v6080 = vadd.f32 %v5697, 1.0
      %v6081 = vadd.f32 %v5699, 1.0
      %v6082 = vadd.f32 %v5701, 1.0
      %v6083 = vadd.f32 %v5703, 1.0
      %v6084 = vadd.f32 %v5705, 1.0
      %v6085 = vadd.f32 %v5707, 1.0
      %v6086 = vadd.f32 %v5709, 1.0
      %v6087 = vadd.f32 %v5711, 1.0
      %v6088 = vadd.f32 %v5713, 1.0
      %v6089 = vadd.f32 %v5715, 1.0
      %v6090 = vadd.f32 %v5717, 1.0
      %v6091 = vadd.f32 %v5719, 1.0
      %v6092 = vadd.f32 %v5721, 1.0
      %v6093 = vadd.f32 %v5723, 1.0
      %v6094 = vadd.f32 %v5725, 1.0
      %v6095 = vadd.f32 %v5727, 1.0
      %v6096 = vadd.f32 %v5729, 1.0
      %v6097 = vadd.f32 %v5731, 1.0
      %v6098 = vadd.f32 %v5733, 1.0
      %v6099 = vadd.f32 %v5735, 1.0
      %v6100 = vadd.f32 %v5737, 1.0
      %v6101 = vadd.f32 %v5739, 1.0
      %v6102 = vadd.f32 %v5741, 1.0
      %v6103 = vadd.f32 %v5743, 1.0
      %v6104 = vadd.f32 %v5745, 1.0
      %v6105 = vadd.f32 %v5747, 1.0
      %v6106 = vadd.f32 %v5749, 1.0
      %v6107 = vadd.f32 %v5751, 1.0
      %v6108 = vadd.f32 %v5753, 1.0
      %v6109 = vadd.f32 %v5755, 1.0
      %v6110 = vadd.f32 %v5757, 1.0
      %v6111 = vadd.f32 %v5759, 1.0
      %v6112 = vadd.f32 %v5761, 1.0
      %v6113 = vadd.f32 %v5763, 1.0
      %v6114 = vadd.f32 %v5765, 1.0
      %v6115 = vadd.f32 %v5767, 1.0
      %v6116 = vadd.f32 %v5769, 1.0
      %v6117 = vadd.f32 %v5771, 1.0
      %v6118 = vadd.f32 %v5773, 1.0
      %v6119 = vadd.f32 %v5775, 1.0
      %v6120 = vadd.f32 %v5777, 1.0
      %v6121 = vadd.f32 %v5779, 1.0
      %v6122 = vadd.f32 %v5781, 1.0
      %v6123 = vadd.f32 %v5783, 1.0
      %v6124 = vadd.f32 %v5785, 1.0
      %v6125 = vadd.f32 %v5787, 1.0
      %v6126 = vadd.f32 %v5789, 1.0
      %v6127 = vadd.f32 %v5791, 1.0
      %v6128 = vadd.f32 %v5793, 1.0
      %v6129 = vadd.f32 %v5795, 1.0
      %v6130 = vadd.f32 %v5797, 1.0
      %v6131 = vadd.f32 %v5799, 1.0
      %v6132 = vadd.f32 %v5801, 1.0
      %v6133 = vadd.f32 %v5803, 1.0
      %v6134 = vadd.f32 %v5805, 1.0
      %v6135 = vadd.f32 %v5807, 1.0
      %v6136 = vadd.f32 %v5809, 1.0
      %v6137 = vadd.f32 %v5811, 1.0
      %v6138 = vadd.f32 %v5813, 1.0
      %v6139 = vadd.f32 %v5815, 1.0
      %v6140 = vadd.f32 %v5817, 1.0
      %v6141 = vadd.f32 %v5819, 1.0
      %v6142 = vadd.f32 %v5821, 1.0
      %v6143 = vadd.f32 %v5823, 1.0
      %v6144 = vadd.f32 %v5825, 1.0
      %v6145 = vadd.f32 %v5827, 1.0
      %v6146 = vadd.f32 %v5829, 1.0
      %v6147 = vadd.f32 %v5831, 1.0
      %v6148 = vadd.f32 %v5833, 1.0
      %v6149 = vadd.f32 %v5835, 1.0
      %v6150 = vadd.f32 %v5837, 1.0
      %v6151 = vadd.f32 %v5839, 1.0
      %v6152 = vadd.f32 %v5841, 1.0
      %v6153 = vadd.f32 %v5843, 1.0
      %v6154 = vadd.f32 %v5845, 1.0
      %v6155 = vadd.f32 %v5847, 1.0
      %v6156 = vadd.f32 %v5849, 1.0
      %v6157 = vadd.f32 %v5851, 1.0
      %v6158 = vadd.f32 %v5853, 1.0
      %v6159 = vadd.f32 %v5855, 1.0
      %v6160 = vadd.f32 %v5857, 1.0
      %v6161 = vadd.f32 %v5859, 1.0
      %v6162 = vadd.f32 %v5861, 1.0
      %v6163 = vadd.f32 %v5863, 1.0
      %v6164 = vadd.f32 %v5865, 1.0
      %v6165 = vadd.f32 %v5867, 1.0
      %v6166 = vadd.f32 %v5869, 1.0
      %v6167 = vadd.f32 %v5871, 1.0
      %v6168 = vadd.f32 %v5873, 1.0
      %v6169 = vadd.f32 %v5875, 1.0
      %v6170 = vadd.f32 %v5877, 1.0
      %v6171 = vadd.f32 %v5879, 1.0
      %v6172 = vadd.f32 %v5881, 1.0
      %v6173 = vadd.f32 %v5883, 1.0
      %v6174 = vadd.f32 %v5885, 1.0
      %v6175 = vadd.f32 %v5887, 1.0
      %v6176 = vadd.f32 %v5889, 1.0
      %v6177 = vadd.f32 %v5891, 1.0
      %v6178 = vadd.f32 %v5893, 1.0
      %v6179 = vadd.f32 %v5895, 1.0
      %v6180 = vadd.f32 %v5897, 1.0
      %v6181 = vadd.f32 %v5899, 1.0
      %v6182 = vadd.f32 %v5901, 1.0
      %v6183 = vadd.f32 %v5903, 1.0
      %v6184 = vadd.f32 %v5905, 1.0
      %v6185 = vadd.f32 %v5907, 1.0
      %v6186 = vadd.f32 %v5909, 1.0
      %v6187 = vadd.f32 %v5911, 1.0
      %v6188 = vadd.f32 %v5913, 1.0
      %v6189 = vadd.f32 %v5915, 1.0
      %v6190 = vadd.f32 %v5917, 1.0
      %v6191 = vadd.f32 %v5919, 1.0
      %v6192 = vadd.f32 %v5921, 1.0
      %v6193 = vadd.f32 %v5923, 1.0
      %v6194 = vadd.f32 %v5925, 1.0
      %v6195 = vadd.f32 %v5927, 1.0
      %v6196 = vadd.f32 %v5929, 1.0
      %v6197 = vadd.f32 %v5931, 1.0
      %v6198 = vadd.f32 %v5933, 1.0
      %v6199 = vadd.f32 %v5935, 1.0
      %v6200 = vadd.f32 %v5937, 1.0
      %v6201 = vadd.f32 %v5939, 1.0
      %v6202 = vadd.f32 %v5941, 1.0
      %v6203 = vadd.f32 %v5943, 1.0
      %v6204 = vadd.f32 %v5945, 1.0
      %v6205 = vadd.f32 %v5947, 1.0
      %v6206 = vadd.f32 %v5949, 1.0
      %v6207 = vadd.f32 %v5951, 1.0
      %v6208 = vadd.f32 %v5953, 1.0
      %v6209 = vadd.f32 %v5955, 1.0
      %v6210 = vadd.f32 %v5957, 1.0
      %v6211 = vadd.f32 %v5959, 1.0
      %v6212 = vadd.f32 %v5961, 1.0
      %v6213 = vadd.f32 %v5963, 1.0
      %v6214 = vadd.f32 %v5965, 1.0
      %v6215 = vadd.f32 %v5967, 1.0
      %v6216 = vadd.f32 %v5969, 1.0
      %v6217 = vadd.f32 %v5971, 1.0
      %v6218 = vadd.f32 %v5973, 1.0
      %v6219 = vadd.f32 %v5975, 1.0
      %v6220 = vadd.f32 %v5977, 1.0
      %v6221 = vadd.f32 %v5979, 1.0
      %v6222 = vadd.f32 %v5981, 1.0
      %v6223 = vadd.f32 %v5983, 1.0
      %v6224 = vadd.f32 %v5985, 1.0
      %v6225 = vadd.f32 %v5987, 1.0
      %v6226 = vadd.f32 %v5989, 1.0
      %v6227 = vadd.f32 %v5991, 1.0
      %v6228 = vadd.f32 %v5993, 1.0
      %v6229 = vadd.f32 %v5995, 1.0
      %v6230 = vadd.f32 %v5997, 1.0
      %v6231 = vadd.f32 %v5999, 1.0
      %v6232 = vadd.f32 %v6001, 1.0
      %v6233 = vadd.f32 %v6003, 1.0
      %v6234 = vadd.f32 %v6005, 1.0
      %v6235 = vadd.f32 %v6007, 1.0
      %v6236 = vadd.f32 %v6009, 1.0
      %v6237 = vadd.f32 %v6011, 1.0
      %v6238 = vadd.f32 %v6013, 1.0
      %v6239 = vadd.f32 %v6015, 1.0
      %v6240 = vrcp.pop %v6016
      %v6241 = vmul.f32 %v6016, %v6240
      %v6242 = vsub.f32 1.0, %v6241
      %v6243 = vmul.f32 %v6240, %v6242
      %v6244 = vadd.f32 %v6240, %v6243
      %vm6245 = vweird.f32 %v6016
      %vm6246 = vweird.f32 %v6240
      %vm6247 = vmor %vm6245, %vm6246
      %v6248 = vsel %vm6247, %v6240, %v6244
      %v6249 = vand.u32 2147483647, %v6016
      %vm6250 = vcmp.eq.f32.partialorder %v6249, 8.507059e+37
      %v6251 = vand.u32 %v6016, 2147483648
      %v6252 = vor.u32 1.1754944e-38, %v6251
      %v6253 = vsel %vm6250, %v6252, %v6248
      %v6254 = vmul.f32 1.0, %v6253
      %v6255 = vrcp.pop %v6017
      %v6256 = vmul.f32 %v6017, %v6255
      %v6257 = vsub.f32 1.0, %v6256
      %v6258 = vmul.f32 %v6255, %v6257
      %v6259 = vadd.f32 %v6255, %v6258
      %vm6260 = vweird.f32 %v6017
      %vm6261 = vweird.f32 %v6255
      %vm6262 = vmor %vm6260, %vm6261
      %v6263 = vsel %vm6262, %v6255, %v6259
      %v6264 = vand.u32 2147483647, %v6017
      %vm6265 = vcmp.eq.f32.partialorder %v6264, 8.507059e+37
      %v6266 = vand.u32 %v6017, 2147483648
      %v6267 = vor.u32 1.1754944e-38, %v6266
      %v6268 = vsel %vm6265, %v6267, %v6263
      %v6269 = vmul.f32 1.0, %v6268
      %v6270 = vrcp.pop %v6018
      %v6271 = vmul.f32 %v6018, %v6270
      %v6272 = vsub.f32 1.0, %v6271
      %v6273 = vmul.f32 %v6270, %v6272
      %v6274 = vadd.f32 %v6270, %v6273
      %vm6275 = vweird.f32 %v6018
      %vm6276 = vweird.f32 %v6270
      %vm6277 = vmor %vm6275, %vm6276
      %v6278 = vsel %vm6277, %v6270, %v6274
      %v6279 = vand.u32 2147483647, %v6018
      %vm6280 = vcmp.eq.f32.partialorder %v6279, 8.507059e+37
      %v6281 = vand.u32 %v6018, 2147483648
      %v6282 = vor.u32 1.1754944e-38, %v6281
      %v6283 = vsel %vm6280, %v6282, %v6278
      %v6284 = vmul.f32 1.0, %v6283
      %v6285 = vrcp.pop %v6019
      %v6286 = vmul.f32 %v6019, %v6285
      %v6287 = vsub.f32 1.0, %v6286
      %v6288 = vmul.f32 %v6285, %v6287
      %v6289 = vadd.f32 %v6285, %v6288
      %vm6290 = vweird.f32 %v6019
      %vm6291 = vweird.f32 %v6285
      %vm6292 = vmor %vm6290, %vm6291
      %v6293 = vsel %vm6292, %v6285, %v6289
      %v6294 = vand.u32 2147483647, %v6019
      %vm6295 = vcmp.eq.f32.partialorder %v6294, 8.507059e+37
      %v6296 = vand.u32 %v6019, 2147483648
      %v6297 = vor.u32 1.1754944e-38, %v6296
      %v6298 = vsel %vm6295, %v6297, %v6293
      %v6299 = vmul.f32 1.0, %v6298
      %v6300 = vrcp.pop %v6020
      %v6301 = vmul.f32 %v6020, %v6300
      %v6302 = vsub.f32 1.0, %v6301
      %v6303 = vmul.f32 %v6300, %v6302
      %v6304 = vadd.f32 %v6300, %v6303
      %vm6305 = vweird.f32 %v6020
      %vm6306 = vweird.f32 %v6300
      %vm6307 = vmor %vm6305, %vm6306
      %v6308 = vsel %vm6307, %v6300, %v6304
      %v6309 = vand.u32 2147483647, %v6020
      %vm6310 = vcmp.eq.f32.partialorder %v6309, 8.507059e+37
      %v6311 = vand.u32 %v6020, 2147483648
      %v6312 = vor.u32 1.1754944e-38, %v6311
      %v6313 = vsel %vm6310, %v6312, %v6308
      %v6314 = vmul.f32 1.0, %v6313
      %v6315 = vrcp.pop %v6021
      %v6316 = vmul.f32 %v6021, %v6315
      %v6317 = vsub.f32 1.0, %v6316
      %v6318 = vmul.f32 %v6315, %v6317
      %v6319 = vadd.f32 %v6315, %v6318
      %vm6320 = vweird.f32 %v6021
      %vm6321 = vweird.f32 %v6315
      %vm6322 = vmor %vm6320, %vm6321
      %v6323 = vsel %vm6322, %v6315, %v6319
      %v6324 = vand.u32 2147483647, %v6021
      %vm6325 = vcmp.eq.f32.partialorder %v6324, 8.507059e+37
      %v6326 = vand.u32 %v6021, 2147483648
      %v6327 = vor.u32 1.1754944e-38, %v6326
      %v6328 = vsel %vm6325, %v6327, %v6323
      %v6329 = vmul.f32 1.0, %v6328
      %v6330 = vrcp.pop %v6022
      %v6331 = vmul.f32 %v6022, %v6330
      %v6332 = vsub.f32 1.0, %v6331
      %v6333 = vmul.f32 %v6330, %v6332
      %v6334 = vadd.f32 %v6330, %v6333
      %vm6335 = vweird.f32 %v6022
      %vm6336 = vweird.f32 %v6330
      %vm6337 = vmor %vm6335, %vm6336
      %v6338 = vsel %vm6337, %v6330, %v6334
      %v6339 = vand.u32 2147483647, %v6022
      %vm6340 = vcmp.eq.f32.partialorder %v6339, 8.507059e+37
      %v6341 = vand.u32 %v6022, 2147483648
      %v6342 = vor.u32 1.1754944e-38, %v6341
      %v6343 = vsel %vm6340, %v6342, %v6338
      %v6344 = vmul.f32 1.0, %v6343
      %v6345 = vrcp.pop %v6023
      %v6346 = vmul.f32 %v6023, %v6345
      %v6347 = vsub.f32 1.0, %v6346
      %v6348 = vmul.f32 %v6345, %v6347
      %v6349 = vadd.f32 %v6345, %v6348
      %vm6350 = vweird.f32 %v6023
      %vm6351 = vweird.f32 %v6345
      %vm6352 = vmor %vm6350, %vm6351
      %v6353 = vsel %vm6352, %v6345, %v6349
      %v6354 = vand.u32 2147483647, %v6023
      %vm6355 = vcmp.eq.f32.partialorder %v6354, 8.507059e+37
      %v6356 = vand.u32 %v6023, 2147483648
      %v6357 = vor.u32 1.1754944e-38, %v6356
      %v6358 = vsel %vm6355, %v6357, %v6353
      %v6359 = vmul.f32 1.0, %v6358
      %v6360 = vrcp.pop %v6024
      %v6361 = vmul.f32 %v6024, %v6360
      %v6362 = vsub.f32 1.0, %v6361
      %v6363 = vmul.f32 %v6360, %v6362
      %v6364 = vadd.f32 %v6360, %v6363
      %vm6365 = vweird.f32 %v6024
      %vm6366 = vweird.f32 %v6360
      %vm6367 = vmor %vm6365, %vm6366
      %v6368 = vsel %vm6367, %v6360, %v6364
      %v6369 = vand.u32 2147483647, %v6024
      %vm6370 = vcmp.eq.f32.partialorder %v6369, 8.507059e+37
      %v6371 = vand.u32 %v6024, 2147483648
      %v6372 = vor.u32 1.1754944e-38, %v6371
      %v6373 = vsel %vm6370, %v6372, %v6368
      %v6374 = vmul.f32 1.0, %v6373
      %v6375 = vrcp.pop %v6025
      %v6376 = vmul.f32 %v6025, %v6375
      %v6377 = vsub.f32 1.0, %v6376
      %v6378 = vmul.f32 %v6375, %v6377
      %v6379 = vadd.f32 %v6375, %v6378
      %vm6380 = vweird.f32 %v6025
      %vm6381 = vweird.f32 %v6375
      %vm6382 = vmor %vm6380, %vm6381
      %v6383 = vsel %vm6382, %v6375, %v6379
      %v6384 = vand.u32 2147483647, %v6025
      %vm6385 = vcmp.eq.f32.partialorder %v6384, 8.507059e+37
      %v6386 = vand.u32 %v6025, 2147483648
      %v6387 = vor.u32 1.1754944e-38, %v6386
      %v6388 = vsel %vm6385, %v6387, %v6383
      %v6389 = vmul.f32 1.0, %v6388
      %v6390 = vrcp.pop %v6026
      %v6391 = vmul.f32 %v6026, %v6390
      %v6392 = vsub.f32 1.0, %v6391
      %v6393 = vmul.f32 %v6390, %v6392
      %v6394 = vadd.f32 %v6390, %v6393
      %vm6395 = vweird.f32 %v6026
      %vm6396 = vweird.f32 %v6390
      %vm6397 = vmor %vm6395, %vm6396
      %v6398 = vsel %vm6397, %v6390, %v6394
      %v6399 = vand.u32 2147483647, %v6026
      %vm6400 = vcmp.eq.f32.partialorder %v6399, 8.507059e+37
      %v6401 = vand.u32 %v6026, 2147483648
      %v6402 = vor.u32 1.1754944e-38, %v6401
      %v6403 = vsel %vm6400, %v6402, %v6398
      %v6404 = vmul.f32 1.0, %v6403
      %v6405 = vrcp.pop %v6027
      %v6406 = vmul.f32 %v6027, %v6405
      %v6407 = vsub.f32 1.0, %v6406
      %v6408 = vmul.f32 %v6405, %v6407
      %v6409 = vadd.f32 %v6405, %v6408
      %vm6410 = vweird.f32 %v6027
      %vm6411 = vweird.f32 %v6405
      %vm6412 = vmor %vm6410, %vm6411
      %v6413 = vsel %vm6412, %v6405, %v6409
      %v6414 = vand.u32 2147483647, %v6027
      %vm6415 = vcmp.eq.f32.partialorder %v6414, 8.507059e+37
      %v6416 = vand.u32 %v6027, 2147483648
      %v6417 = vor.u32 1.1754944e-38, %v6416
      %v6418 = vsel %vm6415, %v6417, %v6413
      %v6419 = vmul.f32 1.0, %v6418
      %v6420 = vrcp.pop %v6028
      %v6421 = vmul.f32 %v6028, %v6420
      %v6422 = vsub.f32 1.0, %v6421
      %v6423 = vmul.f32 %v6420, %v6422
      %v6424 = vadd.f32 %v6420, %v6423
      %vm6425 = vweird.f32 %v6028
      %vm6426 = vweird.f32 %v6420
      %vm6427 = vmor %vm6425, %vm6426
      %v6428 = vsel %vm6427, %v6420, %v6424
      %v6429 = vand.u32 2147483647, %v6028
      %vm6430 = vcmp.eq.f32.partialorder %v6429, 8.507059e+37
      %v6431 = vand.u32 %v6028, 2147483648
      %v6432 = vor.u32 1.1754944e-38, %v6431
      %v6433 = vsel %vm6430, %v6432, %v6428
      %v6434 = vmul.f32 1.0, %v6433
      %v6435 = vrcp.pop %v6029
      %v6436 = vmul.f32 %v6029, %v6435
      %v6437 = vsub.f32 1.0, %v6436
      %v6438 = vmul.f32 %v6435, %v6437
      %v6439 = vadd.f32 %v6435, %v6438
      %vm6440 = vweird.f32 %v6029
      %vm6441 = vweird.f32 %v6435
      %vm6442 = vmor %vm6440, %vm6441
      %v6443 = vsel %vm6442, %v6435, %v6439
      %v6444 = vand.u32 2147483647, %v6029
      %vm6445 = vcmp.eq.f32.partialorder %v6444, 8.507059e+37
      %v6446 = vand.u32 %v6029, 2147483648
      %v6447 = vor.u32 1.1754944e-38, %v6446
      %v6448 = vsel %vm6445, %v6447, %v6443
      %v6449 = vmul.f32 1.0, %v6448
      %v6450 = vrcp.pop %v6030
      %v6451 = vmul.f32 %v6030, %v6450
      %v6452 = vsub.f32 1.0, %v6451
      %v6453 = vmul.f32 %v6450, %v6452
      %v6454 = vadd.f32 %v6450, %v6453
      %vm6455 = vweird.f32 %v6030
      %vm6456 = vweird.f32 %v6450
      %vm6457 = vmor %vm6455, %vm6456
      %v6458 = vsel %vm6457, %v6450, %v6454
      %v6459 = vand.u32 2147483647, %v6030
      %vm6460 = vcmp.eq.f32.partialorder %v6459, 8.507059e+37
      %v6461 = vand.u32 %v6030, 2147483648
      %v6462 = vor.u32 1.1754944e-38, %v6461
      %v6463 = vsel %vm6460, %v6462, %v6458
      %v6464 = vmul.f32 1.0, %v6463
      %v6465 = vrcp.pop %v6031
      %v6466 = vmul.f32 %v6031, %v6465
      %v6467 = vsub.f32 1.0, %v6466
      %v6468 = vmul.f32 %v6465, %v6467
      %v6469 = vadd.f32 %v6465, %v6468
      %vm6470 = vweird.f32 %v6031
      %vm6471 = vweird.f32 %v6465
      %vm6472 = vmor %vm6470, %vm6471
      %v6473 = vsel %vm6472, %v6465, %v6469
      %v6474 = vand.u32 2147483647, %v6031
      %vm6475 = vcmp.eq.f32.partialorder %v6474, 8.507059e+37
      %v6476 = vand.u32 %v6031, 2147483648
      %v6477 = vor.u32 1.1754944e-38, %v6476
      %v6478 = vsel %vm6475, %v6477, %v6473
      %v6479 = vmul.f32 1.0, %v6478
      %v6480 = vrcp.pop %v6032
      %v6481 = vmul.f32 %v6032, %v6480
      %v6482 = vsub.f32 1.0, %v6481
      %v6483 = vmul.f32 %v6480, %v6482
      %v6484 = vadd.f32 %v6480, %v6483
      %vm6485 = vweird.f32 %v6032
      %vm6486 = vweird.f32 %v6480
      %vm6487 = vmor %vm6485, %vm6486
      %v6488 = vsel %vm6487, %v6480, %v6484
      %v6489 = vand.u32 2147483647, %v6032
      %vm6490 = vcmp.eq.f32.partialorder %v6489, 8.507059e+37
      %v6491 = vand.u32 %v6032, 2147483648
      %v6492 = vor.u32 1.1754944e-38, %v6491
      %v6493 = vsel %vm6490, %v6492, %v6488
      %v6494 = vmul.f32 1.0, %v6493
      %v6495 = vrcp.pop %v6033
      %v6496 = vmul.f32 %v6033, %v6495
      %v6497 = vsub.f32 1.0, %v6496
      %v6498 = vmul.f32 %v6495, %v6497
      %v6499 = vadd.f32 %v6495, %v6498
      %vm6500 = vweird.f32 %v6033
      %vm6501 = vweird.f32 %v6495
      %vm6502 = vmor %vm6500, %vm6501
      %v6503 = vsel %vm6502, %v6495, %v6499
      %v6504 = vand.u32 2147483647, %v6033
      %vm6505 = vcmp.eq.f32.partialorder %v6504, 8.507059e+37
      %v6506 = vand.u32 %v6033, 2147483648
      %v6507 = vor.u32 1.1754944e-38, %v6506
      %v6508 = vsel %vm6505, %v6507, %v6503
      %v6509 = vmul.f32 1.0, %v6508
      %v6510 = vrcp.pop %v6034
      %v6511 = vmul.f32 %v6034, %v6510
      %v6512 = vsub.f32 1.0, %v6511
      %v6513 = vmul.f32 %v6510, %v6512
      %v6514 = vadd.f32 %v6510, %v6513
      %vm6515 = vweird.f32 %v6034
      %vm6516 = vweird.f32 %v6510
      %vm6517 = vmor %vm6515, %vm6516
      %v6518 = vsel %vm6517, %v6510, %v6514
      %v6519 = vand.u32 2147483647, %v6034
      %vm6520 = vcmp.eq.f32.partialorder %v6519, 8.507059e+37
      %v6521 = vand.u32 %v6034, 2147483648
      %v6522 = vor.u32 1.1754944e-38, %v6521
      %v6523 = vsel %vm6520, %v6522, %v6518
      %v6524 = vmul.f32 1.0, %v6523
      %v6525 = vrcp.pop %v6035
      %v6526 = vmul.f32 %v6035, %v6525
      %v6527 = vsub.f32 1.0, %v6526
      %v6528 = vmul.f32 %v6525, %v6527
      %v6529 = vadd.f32 %v6525, %v6528
      %vm6530 = vweird.f32 %v6035
      %vm6531 = vweird.f32 %v6525
      %vm6532 = vmor %vm6530, %vm6531
      %v6533 = vsel %vm6532, %v6525, %v6529
      %v6534 = vand.u32 2147483647, %v6035
      %vm6535 = vcmp.eq.f32.partialorder %v6534, 8.507059e+37
      %v6536 = vand.u32 %v6035, 2147483648
      %v6537 = vor.u32 1.1754944e-38, %v6536
      %v6538 = vsel %vm6535, %v6537, %v6533
      %v6539 = vmul.f32 1.0, %v6538
      %v6540 = vrcp.pop %v6036
      %v6541 = vmul.f32 %v6036, %v6540
      %v6542 = vsub.f32 1.0, %v6541
      %v6543 = vmul.f32 %v6540, %v6542
      %v6544 = vadd.f32 %v6540, %v6543
      %vm6545 = vweird.f32 %v6036
      %vm6546 = vweird.f32 %v6540
      %vm6547 = vmor %vm6545, %vm6546
      %v6548 = vsel %vm6547, %v6540, %v6544
      %v6549 = vand.u32 2147483647, %v6036
      %vm6550 = vcmp.eq.f32.partialorder %v6549, 8.507059e+37
      %v6551 = vand.u32 %v6036, 2147483648
      %v6552 = vor.u32 1.1754944e-38, %v6551
      %v6553 = vsel %vm6550, %v6552, %v6548
      %v6554 = vmul.f32 1.0, %v6553
      %v6555 = vrcp.pop %v6037
      %v6556 = vmul.f32 %v6037, %v6555
      %v6557 = vsub.f32 1.0, %v6556
      %v6558 = vmul.f32 %v6555, %v6557
      %v6559 = vadd.f32 %v6555, %v6558
      %vm6560 = vweird.f32 %v6037
      %vm6561 = vweird.f32 %v6555
      %vm6562 = vmor %vm6560, %vm6561
      %v6563 = vsel %vm6562, %v6555, %v6559
      %v6564 = vand.u32 2147483647, %v6037
      %vm6565 = vcmp.eq.f32.partialorder %v6564, 8.507059e+37
      %v6566 = vand.u32 %v6037, 2147483648
      %v6567 = vor.u32 1.1754944e-38, %v6566
      %v6568 = vsel %vm6565, %v6567, %v6563
      %v6569 = vmul.f32 1.0, %v6568
      %v6570 = vrcp.pop %v6038
      %v6571 = vmul.f32 %v6038, %v6570
      %v6572 = vsub.f32 1.0, %v6571
      %v6573 = vmul.f32 %v6570, %v6572
      %v6574 = vadd.f32 %v6570, %v6573
      %vm6575 = vweird.f32 %v6038
      %vm6576 = vweird.f32 %v6570
      %vm6577 = vmor %vm6575, %vm6576
      %v6578 = vsel %vm6577, %v6570, %v6574
      %v6579 = vand.u32 2147483647, %v6038
      %vm6580 = vcmp.eq.f32.partialorder %v6579, 8.507059e+37
      %v6581 = vand.u32 %v6038, 2147483648
      %v6582 = vor.u32 1.1754944e-38, %v6581
      %v6583 = vsel %vm6580, %v6582, %v6578
      %v6584 = vmul.f32 1.0, %v6583
      %v6585 = vrcp.pop %v6039
      %v6586 = vmul.f32 %v6039, %v6585
      %v6587 = vsub.f32 1.0, %v6586
      %v6588 = vmul.f32 %v6585, %v6587
      %v6589 = vadd.f32 %v6585, %v6588
      %vm6590 = vweird.f32 %v6039
      %vm6591 = vweird.f32 %v6585
      %vm6592 = vmor %vm6590, %vm6591
      %v6593 = vsel %vm6592, %v6585, %v6589
      %v6594 = vand.u32 2147483647, %v6039
      %vm6595 = vcmp.eq.f32.partialorder %v6594, 8.507059e+37
      %v6596 = vand.u32 %v6039, 2147483648
      %v6597 = vor.u32 1.1754944e-38, %v6596
      %v6598 = vsel %vm6595, %v6597, %v6593
      %v6599 = vmul.f32 1.0, %v6598
      %v6600 = vrcp.pop %v6040
      %v6601 = vmul.f32 %v6040, %v6600
      %v6602 = vsub.f32 1.0, %v6601
      %v6603 = vmul.f32 %v6600, %v6602
      %v6604 = vadd.f32 %v6600, %v6603
      %vm6605 = vweird.f32 %v6040
      %vm6606 = vweird.f32 %v6600
      %vm6607 = vmor %vm6605, %vm6606
      %v6608 = vsel %vm6607, %v6600, %v6604
      %v6609 = vand.u32 2147483647, %v6040
      %vm6610 = vcmp.eq.f32.partialorder %v6609, 8.507059e+37
      %v6611 = vand.u32 %v6040, 2147483648
      %v6612 = vor.u32 1.1754944e-38, %v6611
      %v6613 = vsel %vm6610, %v6612, %v6608
      %v6614 = vmul.f32 1.0, %v6613
      %v6615 = vrcp.pop %v6041
      %v6616 = vmul.f32 %v6041, %v6615
      %v6617 = vsub.f32 1.0, %v6616
      %v6618 = vmul.f32 %v6615, %v6617
      %v6619 = vadd.f32 %v6615, %v6618
      %vm6620 = vweird.f32 %v6041
      %vm6621 = vweird.f32 %v6615
      %vm6622 = vmor %vm6620, %vm6621
      %v6623 = vsel %vm6622, %v6615, %v6619
      %v6624 = vand.u32 2147483647, %v6041
      %vm6625 = vcmp.eq.f32.partialorder %v6624, 8.507059e+37
      %v6626 = vand.u32 %v6041, 2147483648
      %v6627 = vor.u32 1.1754944e-38, %v6626
      %v6628 = vsel %vm6625, %v6627, %v6623
      %v6629 = vmul.f32 1.0, %v6628
      %v6630 = vrcp.pop %v6042
      %v6631 = vmul.f32 %v6042, %v6630
      %v6632 = vsub.f32 1.0, %v6631
      %v6633 = vmul.f32 %v6630, %v6632
      %v6634 = vadd.f32 %v6630, %v6633
      %vm6635 = vweird.f32 %v6042
      %vm6636 = vweird.f32 %v6630
      %vm6637 = vmor %vm6635, %vm6636
      %v6638 = vsel %vm6637, %v6630, %v6634
      %v6639 = vand.u32 2147483647, %v6042
      %vm6640 = vcmp.eq.f32.partialorder %v6639, 8.507059e+37
      %v6641 = vand.u32 %v6042, 2147483648
      %v6642 = vor.u32 1.1754944e-38, %v6641
      %v6643 = vsel %vm6640, %v6642, %v6638
      %v6644 = vmul.f32 1.0, %v6643
      %v6645 = vrcp.pop %v6043
      %v6646 = vmul.f32 %v6043, %v6645
      %v6647 = vsub.f32 1.0, %v6646
      %v6648 = vmul.f32 %v6645, %v6647
      %v6649 = vadd.f32 %v6645, %v6648
      %vm6650 = vweird.f32 %v6043
      %vm6651 = vweird.f32 %v6645
      %vm6652 = vmor %vm6650, %vm6651
      %v6653 = vsel %vm6652, %v6645, %v6649
      %v6654 = vand.u32 2147483647, %v6043
      %vm6655 = vcmp.eq.f32.partialorder %v6654, 8.507059e+37
      %v6656 = vand.u32 %v6043, 2147483648
      %v6657 = vor.u32 1.1754944e-38, %v6656
      %v6658 = vsel %vm6655, %v6657, %v6653
      %v6659 = vmul.f32 1.0, %v6658
      %v6660 = vrcp.pop %v6044
      %v6661 = vmul.f32 %v6044, %v6660
      %v6662 = vsub.f32 1.0, %v6661
      %v6663 = vmul.f32 %v6660, %v6662
      %v6664 = vadd.f32 %v6660, %v6663
      %vm6665 = vweird.f32 %v6044
      %vm6666 = vweird.f32 %v6660
      %vm6667 = vmor %vm6665, %vm6666
      %v6668 = vsel %vm6667, %v6660, %v6664
      %v6669 = vand.u32 2147483647, %v6044
      %vm6670 = vcmp.eq.f32.partialorder %v6669, 8.507059e+37
      %v6671 = vand.u32 %v6044, 2147483648
      %v6672 = vor.u32 1.1754944e-38, %v6671
      %v6673 = vsel %vm6670, %v6672, %v6668
      %v6674 = vmul.f32 1.0, %v6673
      %v6675 = vrcp.pop %v6045
      %v6676 = vmul.f32 %v6045, %v6675
      %v6677 = vsub.f32 1.0, %v6676
      %v6678 = vmul.f32 %v6675, %v6677
      %v6679 = vadd.f32 %v6675, %v6678
      %vm6680 = vweird.f32 %v6045
      %vm6681 = vweird.f32 %v6675
      %vm6682 = vmor %vm6680, %vm6681
      %v6683 = vsel %vm6682, %v6675, %v6679
      %v6684 = vand.u32 2147483647, %v6045
      %vm6685 = vcmp.eq.f32.partialorder %v6684, 8.507059e+37
      %v6686 = vand.u32 %v6045, 2147483648
      %v6687 = vor.u32 1.1754944e-38, %v6686
      %v6688 = vsel %vm6685, %v6687, %v6683
      %v6689 = vmul.f32 1.0, %v6688
      %v6690 = vrcp.pop %v6046
      %v6691 = vmul.f32 %v6046, %v6690
      %v6692 = vsub.f32 1.0, %v6691
      %v6693 = vmul.f32 %v6690, %v6692
      %v6694 = vadd.f32 %v6690, %v6693
      %vm6695 = vweird.f32 %v6046
      %vm6696 = vweird.f32 %v6690
      %vm6697 = vmor %vm6695, %vm6696
      %v6698 = vsel %vm6697, %v6690, %v6694
      %v6699 = vand.u32 2147483647, %v6046
      %vm6700 = vcmp.eq.f32.partialorder %v6699, 8.507059e+37
      %v6701 = vand.u32 %v6046, 2147483648
      %v6702 = vor.u32 1.1754944e-38, %v6701
      %v6703 = vsel %vm6700, %v6702, %v6698
      %v6704 = vmul.f32 1.0, %v6703
      %v6705 = vrcp.pop %v6047
      %v6706 = vmul.f32 %v6047, %v6705
      %v6707 = vsub.f32 1.0, %v6706
      %v6708 = vmul.f32 %v6705, %v6707
      %v6709 = vadd.f32 %v6705, %v6708
      %vm6710 = vweird.f32 %v6047
      %vm6711 = vweird.f32 %v6705
      %vm6712 = vmor %vm6710, %vm6711
      %v6713 = vsel %vm6712, %v6705, %v6709
      %v6714 = vand.u32 2147483647, %v6047
      %vm6715 = vcmp.eq.f32.partialorder %v6714, 8.507059e+37
      %v6716 = vand.u32 %v6047, 2147483648
      %v6717 = vor.u32 1.1754944e-38, %v6716
      %v6718 = vsel %vm6715, %v6717, %v6713
      %v6719 = vmul.f32 1.0, %v6718
      %v6720 = vrcp.pop %v6048
      %v6721 = vmul.f32 %v6048, %v6720
      %v6722 = vsub.f32 1.0, %v6721
      %v6723 = vmul.f32 %v6720, %v6722
      %v6724 = vadd.f32 %v6720, %v6723
      %vm6725 = vweird.f32 %v6048
      %vm6726 = vweird.f32 %v6720
      %vm6727 = vmor %vm6725, %vm6726
      %v6728 = vsel %vm6727, %v6720, %v6724
      %v6729 = vand.u32 2147483647, %v6048
      %vm6730 = vcmp.eq.f32.partialorder %v6729, 8.507059e+37
      %v6731 = vand.u32 %v6048, 2147483648
      %v6732 = vor.u32 1.1754944e-38, %v6731
      %v6733 = vsel %vm6730, %v6732, %v6728
      %v6734 = vmul.f32 1.0, %v6733
      %v6735 = vrcp.pop %v6049
      %v6736 = vmul.f32 %v6049, %v6735
      %v6737 = vsub.f32 1.0, %v6736
      %v6738 = vmul.f32 %v6735, %v6737
      %v6739 = vadd.f32 %v6735, %v6738
      %vm6740 = vweird.f32 %v6049
      %vm6741 = vweird.f32 %v6735
      %vm6742 = vmor %vm6740, %vm6741
      %v6743 = vsel %vm6742, %v6735, %v6739
      %v6744 = vand.u32 2147483647, %v6049
      %vm6745 = vcmp.eq.f32.partialorder %v6744, 8.507059e+37
      %v6746 = vand.u32 %v6049, 2147483648
      %v6747 = vor.u32 1.1754944e-38, %v6746
      %v6748 = vsel %vm6745, %v6747, %v6743
      %v6749 = vmul.f32 1.0, %v6748
      %v6750 = vrcp.pop %v6050
      %v6751 = vmul.f32 %v6050, %v6750
      %v6752 = vsub.f32 1.0, %v6751
      %v6753 = vmul.f32 %v6750, %v6752
      %v6754 = vadd.f32 %v6750, %v6753
      %vm6755 = vweird.f32 %v6050
      %vm6756 = vweird.f32 %v6750
      %vm6757 = vmor %vm6755, %vm6756
      %v6758 = vsel %vm6757, %v6750, %v6754
      %v6759 = vand.u32 2147483647, %v6050
      %vm6760 = vcmp.eq.f32.partialorder %v6759, 8.507059e+37
      %v6761 = vand.u32 %v6050, 2147483648
      %v6762 = vor.u32 1.1754944e-38, %v6761
      %v6763 = vsel %vm6760, %v6762, %v6758
      %v6764 = vmul.f32 1.0, %v6763
      %v6765 = vrcp.pop %v6051
      %v6766 = vmul.f32 %v6051, %v6765
      %v6767 = vsub.f32 1.0, %v6766
      %v6768 = vmul.f32 %v6765, %v6767
      %v6769 = vadd.f32 %v6765, %v6768
      %vm6770 = vweird.f32 %v6051
      %vm6771 = vweird.f32 %v6765
      %vm6772 = vmor %vm6770, %vm6771
      %v6773 = vsel %vm6772, %v6765, %v6769
      %v6774 = vand.u32 2147483647, %v6051
      %vm6775 = vcmp.eq.f32.partialorder %v6774, 8.507059e+37
      %v6776 = vand.u32 %v6051, 2147483648
      %v6777 = vor.u32 1.1754944e-38, %v6776
      %v6778 = vsel %vm6775, %v6777, %v6773
      %v6779 = vmul.f32 1.0, %v6778
      %v6780 = vrcp.pop %v6052
      %v6781 = vmul.f32 %v6052, %v6780
      %v6782 = vsub.f32 1.0, %v6781
      %v6783 = vmul.f32 %v6780, %v6782
      %v6784 = vadd.f32 %v6780, %v6783
      %vm6785 = vweird.f32 %v6052
      %vm6786 = vweird.f32 %v6780
      %vm6787 = vmor %vm6785, %vm6786
      %v6788 = vsel %vm6787, %v6780, %v6784
      %v6789 = vand.u32 2147483647, %v6052
      %vm6790 = vcmp.eq.f32.partialorder %v6789, 8.507059e+37
      %v6791 = vand.u32 %v6052, 2147483648
      %v6792 = vor.u32 1.1754944e-38, %v6791
      %v6793 = vsel %vm6790, %v6792, %v6788
      %v6794 = vmul.f32 1.0, %v6793
      %v6795 = vrcp.pop %v6053
      %v6796 = vmul.f32 %v6053, %v6795
      %v6797 = vsub.f32 1.0, %v6796
      %v6798 = vmul.f32 %v6795, %v6797
      %v6799 = vadd.f32 %v6795, %v6798
      %vm6800 = vweird.f32 %v6053
      %vm6801 = vweird.f32 %v6795
      %vm6802 = vmor %vm6800, %vm6801
      %v6803 = vsel %vm6802, %v6795, %v6799
      %v6804 = vand.u32 2147483647, %v6053
      %vm6805 = vcmp.eq.f32.partialorder %v6804, 8.507059e+37
      %v6806 = vand.u32 %v6053, 2147483648
      %v6807 = vor.u32 1.1754944e-38, %v6806
      %v6808 = vsel %vm6805, %v6807, %v6803
      %v6809 = vmul.f32 1.0, %v6808
      %v6810 = vrcp.pop %v6054
      %v6811 = vmul.f32 %v6054, %v6810
      %v6812 = vsub.f32 1.0, %v6811
      %v6813 = vmul.f32 %v6810, %v6812
      %v6814 = vadd.f32 %v6810, %v6813
      %vm6815 = vweird.f32 %v6054
      %vm6816 = vweird.f32 %v6810
      %vm6817 = vmor %vm6815, %vm6816
      %v6818 = vsel %vm6817, %v6810, %v6814
      %v6819 = vand.u32 2147483647, %v6054
      %vm6820 = vcmp.eq.f32.partialorder %v6819, 8.507059e+37
      %v6821 = vand.u32 %v6054, 2147483648
      %v6822 = vor.u32 1.1754944e-38, %v6821
      %v6823 = vsel %vm6820, %v6822, %v6818
      %v6824 = vmul.f32 1.0, %v6823
      %v6825 = vrcp.pop %v6055
      %v6826 = vmul.f32 %v6055, %v6825
      %v6827 = vsub.f32 1.0, %v6826
      %v6828 = vmul.f32 %v6825, %v6827
      %v6829 = vadd.f32 %v6825, %v6828
      %vm6830 = vweird.f32 %v6055
      %vm6831 = vweird.f32 %v6825
      %vm6832 = vmor %vm6830, %vm6831
      %v6833 = vsel %vm6832, %v6825, %v6829
      %v6834 = vand.u32 2147483647, %v6055
      %vm6835 = vcmp.eq.f32.partialorder %v6834, 8.507059e+37
      %v6836 = vand.u32 %v6055, 2147483648
      %v6837 = vor.u32 1.1754944e-38, %v6836
      %v6838 = vsel %vm6835, %v6837, %v6833
      %v6839 = vmul.f32 1.0, %v6838
      %v6840 = vrcp.pop %v6056
      %v6841 = vmul.f32 %v6056, %v6840
      %v6842 = vsub.f32 1.0, %v6841
      %v6843 = vmul.f32 %v6840, %v6842
      %v6844 = vadd.f32 %v6840, %v6843
      %vm6845 = vweird.f32 %v6056
      %vm6846 = vweird.f32 %v6840
      %vm6847 = vmor %vm6845, %vm6846
      %v6848 = vsel %vm6847, %v6840, %v6844
      %v6849 = vand.u32 2147483647, %v6056
      %vm6850 = vcmp.eq.f32.partialorder %v6849, 8.507059e+37
      %v6851 = vand.u32 %v6056, 2147483648
      %v6852 = vor.u32 1.1754944e-38, %v6851
      %v6853 = vsel %vm6850, %v6852, %v6848
      %v6854 = vmul.f32 1.0, %v6853
      %v6855 = vrcp.pop %v6057
      %v6856 = vmul.f32 %v6057, %v6855
      %v6857 = vsub.f32 1.0, %v6856
      %v6858 = vmul.f32 %v6855, %v6857
      %v6859 = vadd.f32 %v6855, %v6858
      %vm6860 = vweird.f32 %v6057
      %vm6861 = vweird.f32 %v6855
      %vm6862 = vmor %vm6860, %vm6861
      %v6863 = vsel %vm6862, %v6855, %v6859
      %v6864 = vand.u32 2147483647, %v6057
      %vm6865 = vcmp.eq.f32.partialorder %v6864, 8.507059e+37
      %v6866 = vand.u32 %v6057, 2147483648
      %v6867 = vor.u32 1.1754944e-38, %v6866
      %v6868 = vsel %vm6865, %v6867, %v6863
      %v6869 = vmul.f32 1.0, %v6868
      %v6870 = vrcp.pop %v6058
      %v6871 = vmul.f32 %v6058, %v6870
      %v6872 = vsub.f32 1.0, %v6871
      %v6873 = vmul.f32 %v6870, %v6872
      %v6874 = vadd.f32 %v6870, %v6873
      %vm6875 = vweird.f32 %v6058
      %vm6876 = vweird.f32 %v6870
      %vm6877 = vmor %vm6875, %vm6876
      %v6878 = vsel %vm6877, %v6870, %v6874
      %v6879 = vand.u32 2147483647, %v6058
      %vm6880 = vcmp.eq.f32.partialorder %v6879, 8.507059e+37
      %v6881 = vand.u32 %v6058, 2147483648
      %v6882 = vor.u32 1.1754944e-38, %v6881
      %v6883 = vsel %vm6880, %v6882, %v6878
      %v6884 = vmul.f32 1.0, %v6883
      %v6885 = vrcp.pop %v6059
      %v6886 = vmul.f32 %v6059, %v6885
      %v6887 = vsub.f32 1.0, %v6886
      %v6888 = vmul.f32 %v6885, %v6887
      %v6889 = vadd.f32 %v6885, %v6888
      %vm6890 = vweird.f32 %v6059
      %vm6891 = vweird.f32 %v6885
      %vm6892 = vmor %vm6890, %vm6891
      %v6893 = vsel %vm6892, %v6885, %v6889
      %v6894 = vand.u32 2147483647, %v6059
      %vm6895 = vcmp.eq.f32.partialorder %v6894, 8.507059e+37
      %v6896 = vand.u32 %v6059, 2147483648
      %v6897 = vor.u32 1.1754944e-38, %v6896
      %v6898 = vsel %vm6895, %v6897, %v6893
      %v6899 = vmul.f32 1.0, %v6898
      %v6900 = vrcp.pop %v6060
      %v6901 = vmul.f32 %v6060, %v6900
      %v6902 = vsub.f32 1.0, %v6901
      %v6903 = vmul.f32 %v6900, %v6902
      %v6904 = vadd.f32 %v6900, %v6903
      %vm6905 = vweird.f32 %v6060
      %vm6906 = vweird.f32 %v6900
      %vm6907 = vmor %vm6905, %vm6906
      %v6908 = vsel %vm6907, %v6900, %v6904
      %v6909 = vand.u32 2147483647, %v6060
      %vm6910 = vcmp.eq.f32.partialorder %v6909, 8.507059e+37
      %v6911 = vand.u32 %v6060, 2147483648
      %v6912 = vor.u32 1.1754944e-38, %v6911
      %v6913 = vsel %vm6910, %v6912, %v6908
      %v6914 = vmul.f32 1.0, %v6913
      %v6915 = vrcp.pop %v6061
      %v6916 = vmul.f32 %v6061, %v6915
      %v6917 = vsub.f32 1.0, %v6916
      %v6918 = vmul.f32 %v6915, %v6917
      %v6919 = vadd.f32 %v6915, %v6918
      %vm6920 = vweird.f32 %v6061
      %vm6921 = vweird.f32 %v6915
      %vm6922 = vmor %vm6920, %vm6921
      %v6923 = vsel %vm6922, %v6915, %v6919
      %v6924 = vand.u32 2147483647, %v6061
      %vm6925 = vcmp.eq.f32.partialorder %v6924, 8.507059e+37
      %v6926 = vand.u32 %v6061, 2147483648
      %v6927 = vor.u32 1.1754944e-38, %v6926
      %v6928 = vsel %vm6925, %v6927, %v6923
      %v6929 = vmul.f32 1.0, %v6928
      %v6930 = vrcp.pop %v6062
      %v6931 = vmul.f32 %v6062, %v6930
      %v6932 = vsub.f32 1.0, %v6931
      %v6933 = vmul.f32 %v6930, %v6932
      %v6934 = vadd.f32 %v6930, %v6933
      %vm6935 = vweird.f32 %v6062
      %vm6936 = vweird.f32 %v6930
      %vm6937 = vmor %vm6935, %vm6936
      %v6938 = vsel %vm6937, %v6930, %v6934
      %v6939 = vand.u32 2147483647, %v6062
      %vm6940 = vcmp.eq.f32.partialorder %v6939, 8.507059e+37
      %v6941 = vand.u32 %v6062, 2147483648
      %v6942 = vor.u32 1.1754944e-38, %v6941
      %v6943 = vsel %vm6940, %v6942, %v6938
      %v6944 = vmul.f32 1.0, %v6943
      %v6945 = vrcp.pop %v6063
      %v6946 = vmul.f32 %v6063, %v6945
      %v6947 = vsub.f32 1.0, %v6946
      %v6948 = vmul.f32 %v6945, %v6947
      %v6949 = vadd.f32 %v6945, %v6948
      %vm6950 = vweird.f32 %v6063
      %vm6951 = vweird.f32 %v6945
      %vm6952 = vmor %vm6950, %vm6951
      %v6953 = vsel %vm6952, %v6945, %v6949
      %v6954 = vand.u32 2147483647, %v6063
      %vm6955 = vcmp.eq.f32.partialorder %v6954, 8.507059e+37
      %v6956 = vand.u32 %v6063, 2147483648
      %v6957 = vor.u32 1.1754944e-38, %v6956
      %v6958 = vsel %vm6955, %v6957, %v6953
      %v6959 = vmul.f32 1.0, %v6958
      %v6960 = vrcp.pop %v6064
      %v6961 = vmul.f32 %v6064, %v6960
      %v6962 = vsub.f32 1.0, %v6961
      %v6963 = vmul.f32 %v6960, %v6962
      %v6964 = vadd.f32 %v6960, %v6963
      %vm6965 = vweird.f32 %v6064
      %vm6966 = vweird.f32 %v6960
      %vm6967 = vmor %vm6965, %vm6966
      %v6968 = vsel %vm6967, %v6960, %v6964
      %v6969 = vand.u32 2147483647, %v6064
      %vm6970 = vcmp.eq.f32.partialorder %v6969, 8.507059e+37
      %v6971 = vand.u32 %v6064, 2147483648
      %v6972 = vor.u32 1.1754944e-38, %v6971
      %v6973 = vsel %vm6970, %v6972, %v6968
      %v6974 = vmul.f32 1.0, %v6973
      %v6975 = vrcp.pop %v6065
      %v6976 = vmul.f32 %v6065, %v6975
      %v6977 = vsub.f32 1.0, %v6976
      %v6978 = vmul.f32 %v6975, %v6977
      %v6979 = vadd.f32 %v6975, %v6978
      %vm6980 = vweird.f32 %v6065
      %vm6981 = vweird.f32 %v6975
      %vm6982 = vmor %vm6980, %vm6981
      %v6983 = vsel %vm6982, %v6975, %v6979
      %v6984 = vand.u32 2147483647, %v6065
      %vm6985 = vcmp.eq.f32.partialorder %v6984, 8.507059e+37
      %v6986 = vand.u32 %v6065, 2147483648
      %v6987 = vor.u32 1.1754944e-38, %v6986
      %v6988 = vsel %vm6985, %v6987, %v6983
      %v6989 = vmul.f32 1.0, %v6988
      %v6990 = vrcp.pop %v6066
      %v6991 = vmul.f32 %v6066, %v6990
      %v6992 = vsub.f32 1.0, %v6991
      %v6993 = vmul.f32 %v6990, %v6992
      %v6994 = vadd.f32 %v6990, %v6993
      %vm6995 = vweird.f32 %v6066
      %vm6996 = vweird.f32 %v6990
      %vm6997 = vmor %vm6995, %vm6996
      %v6998 = vsel %vm6997, %v6990, %v6994
      %v6999 = vand.u32 2147483647, %v6066
      %vm7000 = vcmp.eq.f32.partialorder %v6999, 8.507059e+37
      %v7001 = vand.u32 %v6066, 2147483648
      %v7002 = vor.u32 1.1754944e-38, %v7001
      %v7003 = vsel %vm7000, %v7002, %v6998
      %v7004 = vmul.f32 1.0, %v7003
      %v7005 = vrcp.pop %v6067
      %v7006 = vmul.f32 %v6067, %v7005
      %v7007 = vsub.f32 1.0, %v7006
      %v7008 = vmul.f32 %v7005, %v7007
      %v7009 = vadd.f32 %v7005, %v7008
      %vm7010 = vweird.f32 %v6067
      %vm7011 = vweird.f32 %v7005
      %vm7012 = vmor %vm7010, %vm7011
      %v7013 = vsel %vm7012, %v7005, %v7009
      %v7014 = vand.u32 2147483647, %v6067
      %vm7015 = vcmp.eq.f32.partialorder %v7014, 8.507059e+37
      %v7016 = vand.u32 %v6067, 2147483648
      %v7017 = vor.u32 1.1754944e-38, %v7016
      %v7018 = vsel %vm7015, %v7017, %v7013
      %v7019 = vmul.f32 1.0, %v7018
      %v7020 = vrcp.pop %v6068
      %v7021 = vmul.f32 %v6068, %v7020
      %v7022 = vsub.f32 1.0, %v7021
      %v7023 = vmul.f32 %v7020, %v7022
      %v7024 = vadd.f32 %v7020, %v7023
      %vm7025 = vweird.f32 %v6068
      %vm7026 = vweird.f32 %v7020
      %vm7027 = vmor %vm7025, %vm7026
      %v7028 = vsel %vm7027, %v7020, %v7024
      %v7029 = vand.u32 2147483647, %v6068
      %vm7030 = vcmp.eq.f32.partialorder %v7029, 8.507059e+37
      %v7031 = vand.u32 %v6068, 2147483648
      %v7032 = vor.u32 1.1754944e-38, %v7031
      %v7033 = vsel %vm7030, %v7032, %v7028
      %v7034 = vmul.f32 1.0, %v7033
      %v7035 = vrcp.pop %v6069
      %v7036 = vmul.f32 %v6069, %v7035
      %v7037 = vsub.f32 1.0, %v7036
      %v7038 = vmul.f32 %v7035, %v7037
      %v7039 = vadd.f32 %v7035, %v7038
      %vm7040 = vweird.f32 %v6069
      %vm7041 = vweird.f32 %v7035
      %vm7042 = vmor %vm7040, %vm7041
      %v7043 = vsel %vm7042, %v7035, %v7039
      %v7044 = vand.u32 2147483647, %v6069
      %vm7045 = vcmp.eq.f32.partialorder %v7044, 8.507059e+37
      %v7046 = vand.u32 %v6069, 2147483648
      %v7047 = vor.u32 1.1754944e-38, %v7046
      %v7048 = vsel %vm7045, %v7047, %v7043
      %v7049 = vmul.f32 1.0, %v7048
      %v7050 = vrcp.pop %v6070
      %v7051 = vmul.f32 %v6070, %v7050
      %v7052 = vsub.f32 1.0, %v7051
      %v7053 = vmul.f32 %v7050, %v7052
      %v7054 = vadd.f32 %v7050, %v7053
      %vm7055 = vweird.f32 %v6070
      %vm7056 = vweird.f32 %v7050
      %vm7057 = vmor %vm7055, %vm7056
      %v7058 = vsel %vm7057, %v7050, %v7054
      %v7059 = vand.u32 2147483647, %v6070
      %vm7060 = vcmp.eq.f32.partialorder %v7059, 8.507059e+37
      %v7061 = vand.u32 %v6070, 2147483648
      %v7062 = vor.u32 1.1754944e-38, %v7061
      %v7063 = vsel %vm7060, %v7062, %v7058
      %v7064 = vmul.f32 1.0, %v7063
      %v7065 = vrcp.pop %v6071
      %v7066 = vmul.f32 %v6071, %v7065
      %v7067 = vsub.f32 1.0, %v7066
      %v7068 = vmul.f32 %v7065, %v7067
      %v7069 = vadd.f32 %v7065, %v7068
      %vm7070 = vweird.f32 %v6071
      %vm7071 = vweird.f32 %v7065
      %vm7072 = vmor %vm7070, %vm7071
      %v7073 = vsel %vm7072, %v7065, %v7069
      %v7074 = vand.u32 2147483647, %v6071
      %vm7075 = vcmp.eq.f32.partialorder %v7074, 8.507059e+37
      %v7076 = vand.u32 %v6071, 2147483648
      %v7077 = vor.u32 1.1754944e-38, %v7076
      %v7078 = vsel %vm7075, %v7077, %v7073
      %v7079 = vmul.f32 1.0, %v7078
      %v7080 = vrcp.pop %v6072
      %v7081 = vmul.f32 %v6072, %v7080
      %v7082 = vsub.f32 1.0, %v7081
      %v7083 = vmul.f32 %v7080, %v7082
      %v7084 = vadd.f32 %v7080, %v7083
      %vm7085 = vweird.f32 %v6072
      %vm7086 = vweird.f32 %v7080
      %vm7087 = vmor %vm7085, %vm7086
      %v7088 = vsel %vm7087, %v7080, %v7084
      %v7089 = vand.u32 2147483647, %v6072
      %vm7090 = vcmp.eq.f32.partialorder %v7089, 8.507059e+37
      %v7091 = vand.u32 %v6072, 2147483648
      %v7092 = vor.u32 1.1754944e-38, %v7091
      %v7093 = vsel %vm7090, %v7092, %v7088
      %v7094 = vmul.f32 1.0, %v7093
      %v7095 = vrcp.pop %v6073
      %v7096 = vmul.f32 %v6073, %v7095
      %v7097 = vsub.f32 1.0, %v7096
      %v7098 = vmul.f32 %v7095, %v7097
      %v7099 = vadd.f32 %v7095, %v7098
      %vm7100 = vweird.f32 %v6073
      %vm7101 = vweird.f32 %v7095
      %vm7102 = vmor %vm7100, %vm7101
      %v7103 = vsel %vm7102, %v7095, %v7099
      %v7104 = vand.u32 2147483647, %v6073
      %vm7105 = vcmp.eq.f32.partialorder %v7104, 8.507059e+37
      %v7106 = vand.u32 %v6073, 2147483648
      %v7107 = vor.u32 1.1754944e-38, %v7106
      %v7108 = vsel %vm7105, %v7107, %v7103
      %v7109 = vmul.f32 1.0, %v7108
      %v7110 = vrcp.pop %v6074
      %v7111 = vmul.f32 %v6074, %v7110
      %v7112 = vsub.f32 1.0, %v7111
      %v7113 = vmul.f32 %v7110, %v7112
      %v7114 = vadd.f32 %v7110, %v7113
      %vm7115 = vweird.f32 %v6074
      %vm7116 = vweird.f32 %v7110
      %vm7117 = vmor %vm7115, %vm7116
      %v7118 = vsel %vm7117, %v7110, %v7114
      %v7119 = vand.u32 2147483647, %v6074
      %vm7120 = vcmp.eq.f32.partialorder %v7119, 8.507059e+37
      %v7121 = vand.u32 %v6074, 2147483648
      %v7122 = vor.u32 1.1754944e-38, %v7121
      %v7123 = vsel %vm7120, %v7122, %v7118
      %v7124 = vmul.f32 1.0, %v7123
      %v7125 = vrcp.pop %v6075
      %v7126 = vmul.f32 %v6075, %v7125
      %v7127 = vsub.f32 1.0, %v7126
      %v7128 = vmul.f32 %v7125, %v7127
      %v7129 = vadd.f32 %v7125, %v7128
      %vm7130 = vweird.f32 %v6075
      %vm7131 = vweird.f32 %v7125
      %vm7132 = vmor %vm7130, %vm7131
      %v7133 = vsel %vm7132, %v7125, %v7129
      %v7134 = vand.u32 2147483647, %v6075
      %vm7135 = vcmp.eq.f32.partialorder %v7134, 8.507059e+37
      %v7136 = vand.u32 %v6075, 2147483648
      %v7137 = vor.u32 1.1754944e-38, %v7136
      %v7138 = vsel %vm7135, %v7137, %v7133
      %v7139 = vmul.f32 1.0, %v7138
      %v7140 = vrcp.pop %v6076
      %v7141 = vmul.f32 %v6076, %v7140
      %v7142 = vsub.f32 1.0, %v7141
      %v7143 = vmul.f32 %v7140, %v7142
      %v7144 = vadd.f32 %v7140, %v7143
      %vm7145 = vweird.f32 %v6076
      %vm7146 = vweird.f32 %v7140
      %vm7147 = vmor %vm7145, %vm7146
      %v7148 = vsel %vm7147, %v7140, %v7144
      %v7149 = vand.u32 2147483647, %v6076
      %vm7150 = vcmp.eq.f32.partialorder %v7149, 8.507059e+37
      %v7151 = vand.u32 %v6076, 2147483648
      %v7152 = vor.u32 1.1754944e-38, %v7151
      %v7153 = vsel %vm7150, %v7152, %v7148
      %v7154 = vmul.f32 1.0, %v7153
      %v7155 = vrcp.pop %v6077
      %v7156 = vmul.f32 %v6077, %v7155
      %v7157 = vsub.f32 1.0, %v7156
      %v7158 = vmul.f32 %v7155, %v7157
      %v7159 = vadd.f32 %v7155, %v7158
      %vm7160 = vweird.f32 %v6077
      %vm7161 = vweird.f32 %v7155
      %vm7162 = vmor %vm7160, %vm7161
      %v7163 = vsel %vm7162, %v7155, %v7159
      %v7164 = vand.u32 2147483647, %v6077
      %vm7165 = vcmp.eq.f32.partialorder %v7164, 8.507059e+37
      %v7166 = vand.u32 %v6077, 2147483648
      %v7167 = vor.u32 1.1754944e-38, %v7166
      %v7168 = vsel %vm7165, %v7167, %v7163
      %v7169 = vmul.f32 1.0, %v7168
      %v7170 = vrcp.pop %v6078
      %v7171 = vmul.f32 %v6078, %v7170
      %v7172 = vsub.f32 1.0, %v7171
      %v7173 = vmul.f32 %v7170, %v7172
      %v7174 = vadd.f32 %v7170, %v7173
      %vm7175 = vweird.f32 %v6078
      %vm7176 = vweird.f32 %v7170
      %vm7177 = vmor %vm7175, %vm7176
      %v7178 = vsel %vm7177, %v7170, %v7174
      %v7179 = vand.u32 2147483647, %v6078
      %vm7180 = vcmp.eq.f32.partialorder %v7179, 8.507059e+37
      %v7181 = vand.u32 %v6078, 2147483648
      %v7182 = vor.u32 1.1754944e-38, %v7181
      %v7183 = vsel %vm7180, %v7182, %v7178
      %v7184 = vmul.f32 1.0, %v7183
      %v7185 = vrcp.pop %v6079
      %v7186 = vmul.f32 %v6079, %v7185
      %v7187 = vsub.f32 1.0, %v7186
      %v7188 = vmul.f32 %v7185, %v7187
      %v7189 = vadd.f32 %v7185, %v7188
      %vm7190 = vweird.f32 %v6079
      %vm7191 = vweird.f32 %v7185
      %vm7192 = vmor %vm7190, %vm7191
      %v7193 = vsel %vm7192, %v7185, %v7189
      %v7194 = vand.u32 2147483647, %v6079
      %vm7195 = vcmp.eq.f32.partialorder %v7194, 8.507059e+37
      %v7196 = vand.u32 %v6079, 2147483648
      %v7197 = vor.u32 1.1754944e-38, %v7196
      %v7198 = vsel %vm7195, %v7197, %v7193
      %v7199 = vmul.f32 1.0, %v7198
      %v7200 = vrcp.pop %v6080
      %v7201 = vmul.f32 %v6080, %v7200
      %v7202 = vsub.f32 1.0, %v7201
      %v7203 = vmul.f32 %v7200, %v7202
      %v7204 = vadd.f32 %v7200, %v7203
      %vm7205 = vweird.f32 %v6080
      %vm7206 = vweird.f32 %v7200
      %vm7207 = vmor %vm7205, %vm7206
      %v7208 = vsel %vm7207, %v7200, %v7204
      %v7209 = vand.u32 2147483647, %v6080
      %vm7210 = vcmp.eq.f32.partialorder %v7209, 8.507059e+37
      %v7211 = vand.u32 %v6080, 2147483648
      %v7212 = vor.u32 1.1754944e-38, %v7211
      %v7213 = vsel %vm7210, %v7212, %v7208
      %v7214 = vmul.f32 1.0, %v7213
      %v7215 = vrcp.pop %v6081
      %v7216 = vmul.f32 %v6081, %v7215
      %v7217 = vsub.f32 1.0, %v7216
      %v7218 = vmul.f32 %v7215, %v7217
      %v7219 = vadd.f32 %v7215, %v7218
      %vm7220 = vweird.f32 %v6081
      %vm7221 = vweird.f32 %v7215
      %vm7222 = vmor %vm7220, %vm7221
      %v7223 = vsel %vm7222, %v7215, %v7219
      %v7224 = vand.u32 2147483647, %v6081
      %vm7225 = vcmp.eq.f32.partialorder %v7224, 8.507059e+37
      %v7226 = vand.u32 %v6081, 2147483648
      %v7227 = vor.u32 1.1754944e-38, %v7226
      %v7228 = vsel %vm7225, %v7227, %v7223
      %v7229 = vmul.f32 1.0, %v7228
      %v7230 = vrcp.pop %v6082
      %v7231 = vmul.f32 %v6082, %v7230
      %v7232 = vsub.f32 1.0, %v7231
      %v7233 = vmul.f32 %v7230, %v7232
      %v7234 = vadd.f32 %v7230, %v7233
      %vm7235 = vweird.f32 %v6082
      %vm7236 = vweird.f32 %v7230
      %vm7237 = vmor %vm7235, %vm7236
      %v7238 = vsel %vm7237, %v7230, %v7234
      %v7239 = vand.u32 2147483647, %v6082
      %vm7240 = vcmp.eq.f32.partialorder %v7239, 8.507059e+37
      %v7241 = vand.u32 %v6082, 2147483648
      %v7242 = vor.u32 1.1754944e-38, %v7241
      %v7243 = vsel %vm7240, %v7242, %v7238
      %v7244 = vmul.f32 1.0, %v7243
      %v7245 = vrcp.pop %v6083
      %v7246 = vmul.f32 %v6083, %v7245
      %v7247 = vsub.f32 1.0, %v7246
      %v7248 = vmul.f32 %v7245, %v7247
      %v7249 = vadd.f32 %v7245, %v7248
      %vm7250 = vweird.f32 %v6083
      %vm7251 = vweird.f32 %v7245
      %vm7252 = vmor %vm7250, %vm7251
      %v7253 = vsel %vm7252, %v7245, %v7249
      %v7254 = vand.u32 2147483647, %v6083
      %vm7255 = vcmp.eq.f32.partialorder %v7254, 8.507059e+37
      %v7256 = vand.u32 %v6083, 2147483648
      %v7257 = vor.u32 1.1754944e-38, %v7256
      %v7258 = vsel %vm7255, %v7257, %v7253
      %v7259 = vmul.f32 1.0, %v7258
      %v7260 = vrcp.pop %v6084
      %v7261 = vmul.f32 %v6084, %v7260
      %v7262 = vsub.f32 1.0, %v7261
      %v7263 = vmul.f32 %v7260, %v7262
      %v7264 = vadd.f32 %v7260, %v7263
      %vm7265 = vweird.f32 %v6084
      %vm7266 = vweird.f32 %v7260
      %vm7267 = vmor %vm7265, %vm7266
      %v7268 = vsel %vm7267, %v7260, %v7264
      %v7269 = vand.u32 2147483647, %v6084
      %vm7270 = vcmp.eq.f32.partialorder %v7269, 8.507059e+37
      %v7271 = vand.u32 %v6084, 2147483648
      %v7272 = vor.u32 1.1754944e-38, %v7271
      %v7273 = vsel %vm7270, %v7272, %v7268
      %v7274 = vmul.f32 1.0, %v7273
      %v7275 = vrcp.pop %v6085
      %v7276 = vmul.f32 %v6085, %v7275
      %v7277 = vsub.f32 1.0, %v7276
      %v7278 = vmul.f32 %v7275, %v7277
      %v7279 = vadd.f32 %v7275, %v7278
      %vm7280 = vweird.f32 %v6085
      %vm7281 = vweird.f32 %v7275
      %vm7282 = vmor %vm7280, %vm7281
      %v7283 = vsel %vm7282, %v7275, %v7279
      %v7284 = vand.u32 2147483647, %v6085
      %vm7285 = vcmp.eq.f32.partialorder %v7284, 8.507059e+37
      %v7286 = vand.u32 %v6085, 2147483648
      %v7287 = vor.u32 1.1754944e-38, %v7286
      %v7288 = vsel %vm7285, %v7287, %v7283
      %v7289 = vmul.f32 1.0, %v7288
      %v7290 = vrcp.pop %v6086
      %v7291 = vmul.f32 %v6086, %v7290
      %v7292 = vsub.f32 1.0, %v7291
      %v7293 = vmul.f32 %v7290, %v7292
      %v7294 = vadd.f32 %v7290, %v7293
      %vm7295 = vweird.f32 %v6086
      %vm7296 = vweird.f32 %v7290
      %vm7297 = vmor %vm7295, %vm7296
      %v7298 = vsel %vm7297, %v7290, %v7294
      %v7299 = vand.u32 2147483647, %v6086
      %vm7300 = vcmp.eq.f32.partialorder %v7299, 8.507059e+37
      %v7301 = vand.u32 %v6086, 2147483648
      %v7302 = vor.u32 1.1754944e-38, %v7301
      %v7303 = vsel %vm7300, %v7302, %v7298
      %v7304 = vmul.f32 1.0, %v7303
      %v7305 = vrcp.pop %v6087
      %v7306 = vmul.f32 %v6087, %v7305
      %v7307 = vsub.f32 1.0, %v7306
      %v7308 = vmul.f32 %v7305, %v7307
      %v7309 = vadd.f32 %v7305, %v7308
      %vm7310 = vweird.f32 %v6087
      %vm7311 = vweird.f32 %v7305
      %vm7312 = vmor %vm7310, %vm7311
      %v7313 = vsel %vm7312, %v7305, %v7309
      %v7314 = vand.u32 2147483647, %v6087
      %vm7315 = vcmp.eq.f32.partialorder %v7314, 8.507059e+37
      %v7316 = vand.u32 %v6087, 2147483648
      %v7317 = vor.u32 1.1754944e-38, %v7316
      %v7318 = vsel %vm7315, %v7317, %v7313
      %v7319 = vmul.f32 1.0, %v7318
      %v7320 = vrcp.pop %v6088
      %v7321 = vmul.f32 %v6088, %v7320
      %v7322 = vsub.f32 1.0, %v7321
      %v7323 = vmul.f32 %v7320, %v7322
      %v7324 = vadd.f32 %v7320, %v7323
      %vm7325 = vweird.f32 %v6088
      %vm7326 = vweird.f32 %v7320
      %vm7327 = vmor %vm7325, %vm7326
      %v7328 = vsel %vm7327, %v7320, %v7324
      %v7329 = vand.u32 2147483647, %v6088
      %vm7330 = vcmp.eq.f32.partialorder %v7329, 8.507059e+37
      %v7331 = vand.u32 %v6088, 2147483648
      %v7332 = vor.u32 1.1754944e-38, %v7331
      %v7333 = vsel %vm7330, %v7332, %v7328
      %v7334 = vmul.f32 1.0, %v7333
      %v7335 = vrcp.pop %v6089
      %v7336 = vmul.f32 %v6089, %v7335
      %v7337 = vsub.f32 1.0, %v7336
      %v7338 = vmul.f32 %v7335, %v7337
      %v7339 = vadd.f32 %v7335, %v7338
      %vm7340 = vweird.f32 %v6089
      %vm7341 = vweird.f32 %v7335
      %vm7342 = vmor %vm7340, %vm7341
      %v7343 = vsel %vm7342, %v7335, %v7339
      %v7344 = vand.u32 2147483647, %v6089
      %vm7345 = vcmp.eq.f32.partialorder %v7344, 8.507059e+37
      %v7346 = vand.u32 %v6089, 2147483648
      %v7347 = vor.u32 1.1754944e-38, %v7346
      %v7348 = vsel %vm7345, %v7347, %v7343
      %v7349 = vmul.f32 1.0, %v7348
      %v7350 = vrcp.pop %v6090
      %v7351 = vmul.f32 %v6090, %v7350
      %v7352 = vsub.f32 1.0, %v7351
      %v7353 = vmul.f32 %v7350, %v7352
      %v7354 = vadd.f32 %v7350, %v7353
      %vm7355 = vweird.f32 %v6090
      %vm7356 = vweird.f32 %v7350
      %vm7357 = vmor %vm7355, %vm7356
      %v7358 = vsel %vm7357, %v7350, %v7354
      %v7359 = vand.u32 2147483647, %v6090
      %vm7360 = vcmp.eq.f32.partialorder %v7359, 8.507059e+37
      %v7361 = vand.u32 %v6090, 2147483648
      %v7362 = vor.u32 1.1754944e-38, %v7361
      %v7363 = vsel %vm7360, %v7362, %v7358
      %v7364 = vmul.f32 1.0, %v7363
      %v7365 = vrcp.pop %v6091
      %v7366 = vmul.f32 %v6091, %v7365
      %v7367 = vsub.f32 1.0, %v7366
      %v7368 = vmul.f32 %v7365, %v7367
      %v7369 = vadd.f32 %v7365, %v7368
      %vm7370 = vweird.f32 %v6091
      %vm7371 = vweird.f32 %v7365
      %vm7372 = vmor %vm7370, %vm7371
      %v7373 = vsel %vm7372, %v7365, %v7369
      %v7374 = vand.u32 2147483647, %v6091
      %vm7375 = vcmp.eq.f32.partialorder %v7374, 8.507059e+37
      %v7376 = vand.u32 %v6091, 2147483648
      %v7377 = vor.u32 1.1754944e-38, %v7376
      %v7378 = vsel %vm7375, %v7377, %v7373
      %v7379 = vmul.f32 1.0, %v7378
      %v7380 = vrcp.pop %v6092
      %v7381 = vmul.f32 %v6092, %v7380
      %v7382 = vsub.f32 1.0, %v7381
      %v7383 = vmul.f32 %v7380, %v7382
      %v7384 = vadd.f32 %v7380, %v7383
      %vm7385 = vweird.f32 %v6092
      %vm7386 = vweird.f32 %v7380
      %vm7387 = vmor %vm7385, %vm7386
      %v7388 = vsel %vm7387, %v7380, %v7384
      %v7389 = vand.u32 2147483647, %v6092
      %vm7390 = vcmp.eq.f32.partialorder %v7389, 8.507059e+37
      %v7391 = vand.u32 %v6092, 2147483648
      %v7392 = vor.u32 1.1754944e-38, %v7391
      %v7393 = vsel %vm7390, %v7392, %v7388
      %v7394 = vmul.f32 1.0, %v7393
      %v7395 = vrcp.pop %v6093
      %v7396 = vmul.f32 %v6093, %v7395
      %v7397 = vsub.f32 1.0, %v7396
      %v7398 = vmul.f32 %v7395, %v7397
      %v7399 = vadd.f32 %v7395, %v7398
      %vm7400 = vweird.f32 %v6093
      %vm7401 = vweird.f32 %v7395
      %vm7402 = vmor %vm7400, %vm7401
      %v7403 = vsel %vm7402, %v7395, %v7399
      %v7404 = vand.u32 2147483647, %v6093
      %vm7405 = vcmp.eq.f32.partialorder %v7404, 8.507059e+37
      %v7406 = vand.u32 %v6093, 2147483648
      %v7407 = vor.u32 1.1754944e-38, %v7406
      %v7408 = vsel %vm7405, %v7407, %v7403
      %v7409 = vmul.f32 1.0, %v7408
      %v7410 = vrcp.pop %v6094
      %v7411 = vmul.f32 %v6094, %v7410
      %v7412 = vsub.f32 1.0, %v7411
      %v7413 = vmul.f32 %v7410, %v7412
      %v7414 = vadd.f32 %v7410, %v7413
      %vm7415 = vweird.f32 %v6094
      %vm7416 = vweird.f32 %v7410
      %vm7417 = vmor %vm7415, %vm7416
      %v7418 = vsel %vm7417, %v7410, %v7414
      %v7419 = vand.u32 2147483647, %v6094
      %vm7420 = vcmp.eq.f32.partialorder %v7419, 8.507059e+37
      %v7421 = vand.u32 %v6094, 2147483648
      %v7422 = vor.u32 1.1754944e-38, %v7421
      %v7423 = vsel %vm7420, %v7422, %v7418
      %v7424 = vmul.f32 1.0, %v7423
      %v7425 = vrcp.pop %v6095
      %v7426 = vmul.f32 %v6095, %v7425
      %v7427 = vsub.f32 1.0, %v7426
      %v7428 = vmul.f32 %v7425, %v7427
      %v7429 = vadd.f32 %v7425, %v7428
      %vm7430 = vweird.f32 %v6095
      %vm7431 = vweird.f32 %v7425
      %vm7432 = vmor %vm7430, %vm7431
      %v7433 = vsel %vm7432, %v7425, %v7429
      %v7434 = vand.u32 2147483647, %v6095
      %vm7435 = vcmp.eq.f32.partialorder %v7434, 8.507059e+37
      %v7436 = vand.u32 %v6095, 2147483648
      %v7437 = vor.u32 1.1754944e-38, %v7436
      %v7438 = vsel %vm7435, %v7437, %v7433
      %v7439 = vmul.f32 1.0, %v7438
      %v7440 = vrcp.pop %v6096
      %v7441 = vmul.f32 %v6096, %v7440
      %v7442 = vsub.f32 1.0, %v7441
      %v7443 = vmul.f32 %v7440, %v7442
      %v7444 = vadd.f32 %v7440, %v7443
      %vm7445 = vweird.f32 %v6096
      %vm7446 = vweird.f32 %v7440
      %vm7447 = vmor %vm7445, %vm7446
      %v7448 = vsel %vm7447, %v7440, %v7444
      %v7449 = vand.u32 2147483647, %v6096
      %vm7450 = vcmp.eq.f32.partialorder %v7449, 8.507059e+37
      %v7451 = vand.u32 %v6096, 2147483648
      %v7452 = vor.u32 1.1754944e-38, %v7451
      %v7453 = vsel %vm7450, %v7452, %v7448
      %v7454 = vmul.f32 1.0, %v7453
      %v7455 = vrcp.pop %v6097
      %v7456 = vmul.f32 %v6097, %v7455
      %v7457 = vsub.f32 1.0, %v7456
      %v7458 = vmul.f32 %v7455, %v7457
      %v7459 = vadd.f32 %v7455, %v7458
      %vm7460 = vweird.f32 %v6097
      %vm7461 = vweird.f32 %v7455
      %vm7462 = vmor %vm7460, %vm7461
      %v7463 = vsel %vm7462, %v7455, %v7459
      %v7464 = vand.u32 2147483647, %v6097
      %vm7465 = vcmp.eq.f32.partialorder %v7464, 8.507059e+37
      %v7466 = vand.u32 %v6097, 2147483648
      %v7467 = vor.u32 1.1754944e-38, %v7466
      %v7468 = vsel %vm7465, %v7467, %v7463
      %v7469 = vmul.f32 1.0, %v7468
      %v7470 = vrcp.pop %v6098
      %v7471 = vmul.f32 %v6098, %v7470
      %v7472 = vsub.f32 1.0, %v7471
      %v7473 = vmul.f32 %v7470, %v7472
      %v7474 = vadd.f32 %v7470, %v7473
      %vm7475 = vweird.f32 %v6098
      %vm7476 = vweird.f32 %v7470
      %vm7477 = vmor %vm7475, %vm7476
      %v7478 = vsel %vm7477, %v7470, %v7474
      %v7479 = vand.u32 2147483647, %v6098
      %vm7480 = vcmp.eq.f32.partialorder %v7479, 8.507059e+37
      %v7481 = vand.u32 %v6098, 2147483648
      %v7482 = vor.u32 1.1754944e-38, %v7481
      %v7483 = vsel %vm7480, %v7482, %v7478
      %v7484 = vmul.f32 1.0, %v7483
      %v7485 = vrcp.pop %v6099
      %v7486 = vmul.f32 %v6099, %v7485
      %v7487 = vsub.f32 1.0, %v7486
      %v7488 = vmul.f32 %v7485, %v7487
      %v7489 = vadd.f32 %v7485, %v7488
      %vm7490 = vweird.f32 %v6099
      %vm7491 = vweird.f32 %v7485
      %vm7492 = vmor %vm7490, %vm7491
      %v7493 = vsel %vm7492, %v7485, %v7489
      %v7494 = vand.u32 2147483647, %v6099
      %vm7495 = vcmp.eq.f32.partialorder %v7494, 8.507059e+37
      %v7496 = vand.u32 %v6099, 2147483648
      %v7497 = vor.u32 1.1754944e-38, %v7496
      %v7498 = vsel %vm7495, %v7497, %v7493
      %v7499 = vmul.f32 1.0, %v7498
      %v7500 = vrcp.pop %v6100
      %v7501 = vmul.f32 %v6100, %v7500
      %v7502 = vsub.f32 1.0, %v7501
      %v7503 = vmul.f32 %v7500, %v7502
      %v7504 = vadd.f32 %v7500, %v7503
      %vm7505 = vweird.f32 %v6100
      %vm7506 = vweird.f32 %v7500
      %vm7507 = vmor %vm7505, %vm7506
      %v7508 = vsel %vm7507, %v7500, %v7504
      %v7509 = vand.u32 2147483647, %v6100
      %vm7510 = vcmp.eq.f32.partialorder %v7509, 8.507059e+37
      %v7511 = vand.u32 %v6100, 2147483648
      %v7512 = vor.u32 1.1754944e-38, %v7511
      %v7513 = vsel %vm7510, %v7512, %v7508
      %v7514 = vmul.f32 1.0, %v7513
      %v7515 = vrcp.pop %v6101
      %v7516 = vmul.f32 %v6101, %v7515
      %v7517 = vsub.f32 1.0, %v7516
      %v7518 = vmul.f32 %v7515, %v7517
      %v7519 = vadd.f32 %v7515, %v7518
      %vm7520 = vweird.f32 %v6101
      %vm7521 = vweird.f32 %v7515
      %vm7522 = vmor %vm7520, %vm7521
      %v7523 = vsel %vm7522, %v7515, %v7519
      %v7524 = vand.u32 2147483647, %v6101
      %vm7525 = vcmp.eq.f32.partialorder %v7524, 8.507059e+37
      %v7526 = vand.u32 %v6101, 2147483648
      %v7527 = vor.u32 1.1754944e-38, %v7526
      %v7528 = vsel %vm7525, %v7527, %v7523
      %v7529 = vmul.f32 1.0, %v7528
      %v7530 = vrcp.pop %v6102
      %v7531 = vmul.f32 %v6102, %v7530
      %v7532 = vsub.f32 1.0, %v7531
      %v7533 = vmul.f32 %v7530, %v7532
      %v7534 = vadd.f32 %v7530, %v7533
      %vm7535 = vweird.f32 %v6102
      %vm7536 = vweird.f32 %v7530
      %vm7537 = vmor %vm7535, %vm7536
      %v7538 = vsel %vm7537, %v7530, %v7534
      %v7539 = vand.u32 2147483647, %v6102
      %vm7540 = vcmp.eq.f32.partialorder %v7539, 8.507059e+37
      %v7541 = vand.u32 %v6102, 2147483648
      %v7542 = vor.u32 1.1754944e-38, %v7541
      %v7543 = vsel %vm7540, %v7542, %v7538
      %v7544 = vmul.f32 1.0, %v7543
      %v7545 = vrcp.pop %v6103
      %v7546 = vmul.f32 %v6103, %v7545
      %v7547 = vsub.f32 1.0, %v7546
      %v7548 = vmul.f32 %v7545, %v7547
      %v7549 = vadd.f32 %v7545, %v7548
      %vm7550 = vweird.f32 %v6103
      %vm7551 = vweird.f32 %v7545
      %vm7552 = vmor %vm7550, %vm7551
      %v7553 = vsel %vm7552, %v7545, %v7549
      %v7554 = vand.u32 2147483647, %v6103
      %vm7555 = vcmp.eq.f32.partialorder %v7554, 8.507059e+37
      %v7556 = vand.u32 %v6103, 2147483648
      %v7557 = vor.u32 1.1754944e-38, %v7556
      %v7558 = vsel %vm7555, %v7557, %v7553
      %v7559 = vmul.f32 1.0, %v7558
      %v7560 = vrcp.pop %v6104
      %v7561 = vmul.f32 %v6104, %v7560
      %v7562 = vsub.f32 1.0, %v7561
      %v7563 = vmul.f32 %v7560, %v7562
      %v7564 = vadd.f32 %v7560, %v7563
      %vm7565 = vweird.f32 %v6104
      %vm7566 = vweird.f32 %v7560
      %vm7567 = vmor %vm7565, %vm7566
      %v7568 = vsel %vm7567, %v7560, %v7564
      %v7569 = vand.u32 2147483647, %v6104
      %vm7570 = vcmp.eq.f32.partialorder %v7569, 8.507059e+37
      %v7571 = vand.u32 %v6104, 2147483648
      %v7572 = vor.u32 1.1754944e-38, %v7571
      %v7573 = vsel %vm7570, %v7572, %v7568
      %v7574 = vmul.f32 1.0, %v7573
      %v7575 = vrcp.pop %v6105
      %v7576 = vmul.f32 %v6105, %v7575
      %v7577 = vsub.f32 1.0, %v7576
      %v7578 = vmul.f32 %v7575, %v7577
      %v7579 = vadd.f32 %v7575, %v7578
      %vm7580 = vweird.f32 %v6105
      %vm7581 = vweird.f32 %v7575
      %vm7582 = vmor %vm7580, %vm7581
      %v7583 = vsel %vm7582, %v7575, %v7579
      %v7584 = vand.u32 2147483647, %v6105
      %vm7585 = vcmp.eq.f32.partialorder %v7584, 8.507059e+37
      %v7586 = vand.u32 %v6105, 2147483648
      %v7587 = vor.u32 1.1754944e-38, %v7586
      %v7588 = vsel %vm7585, %v7587, %v7583
      %v7589 = vmul.f32 1.0, %v7588
      %v7590 = vrcp.pop %v6106
      %v7591 = vmul.f32 %v6106, %v7590
      %v7592 = vsub.f32 1.0, %v7591
      %v7593 = vmul.f32 %v7590, %v7592
      %v7594 = vadd.f32 %v7590, %v7593
      %vm7595 = vweird.f32 %v6106
      %vm7596 = vweird.f32 %v7590
      %vm7597 = vmor %vm7595, %vm7596
      %v7598 = vsel %vm7597, %v7590, %v7594
      %v7599 = vand.u32 2147483647, %v6106
      %vm7600 = vcmp.eq.f32.partialorder %v7599, 8.507059e+37
      %v7601 = vand.u32 %v6106, 2147483648
      %v7602 = vor.u32 1.1754944e-38, %v7601
      %v7603 = vsel %vm7600, %v7602, %v7598
      %v7604 = vmul.f32 1.0, %v7603
      %v7605 = vrcp.pop %v6107
      %v7606 = vmul.f32 %v6107, %v7605
      %v7607 = vsub.f32 1.0, %v7606
      %v7608 = vmul.f32 %v7605, %v7607
      %v7609 = vadd.f32 %v7605, %v7608
      %vm7610 = vweird.f32 %v6107
      %vm7611 = vweird.f32 %v7605
      %vm7612 = vmor %vm7610, %vm7611
      %v7613 = vsel %vm7612, %v7605, %v7609
      %v7614 = vand.u32 2147483647, %v6107
      %vm7615 = vcmp.eq.f32.partialorder %v7614, 8.507059e+37
      %v7616 = vand.u32 %v6107, 2147483648
      %v7617 = vor.u32 1.1754944e-38, %v7616
      %v7618 = vsel %vm7615, %v7617, %v7613
      %v7619 = vmul.f32 1.0, %v7618
      %v7620 = vrcp.pop %v6108
      %v7621 = vmul.f32 %v6108, %v7620
      %v7622 = vsub.f32 1.0, %v7621
      %v7623 = vmul.f32 %v7620, %v7622
      %v7624 = vadd.f32 %v7620, %v7623
      %vm7625 = vweird.f32 %v6108
      %vm7626 = vweird.f32 %v7620
      %vm7627 = vmor %vm7625, %vm7626
      %v7628 = vsel %vm7627, %v7620, %v7624
      %v7629 = vand.u32 2147483647, %v6108
      %vm7630 = vcmp.eq.f32.partialorder %v7629, 8.507059e+37
      %v7631 = vand.u32 %v6108, 2147483648
      %v7632 = vor.u32 1.1754944e-38, %v7631
      %v7633 = vsel %vm7630, %v7632, %v7628
      %v7634 = vmul.f32 1.0, %v7633
      %v7635 = vrcp.pop %v6109
      %v7636 = vmul.f32 %v6109, %v7635
      %v7637 = vsub.f32 1.0, %v7636
      %v7638 = vmul.f32 %v7635, %v7637
      %v7639 = vadd.f32 %v7635, %v7638
      %vm7640 = vweird.f32 %v6109
      %vm7641 = vweird.f32 %v7635
      %vm7642 = vmor %vm7640, %vm7641
      %v7643 = vsel %vm7642, %v7635, %v7639
      %v7644 = vand.u32 2147483647, %v6109
      %vm7645 = vcmp.eq.f32.partialorder %v7644, 8.507059e+37
      %v7646 = vand.u32 %v6109, 2147483648
      %v7647 = vor.u32 1.1754944e-38, %v7646
      %v7648 = vsel %vm7645, %v7647, %v7643
      %v7649 = vmul.f32 1.0, %v7648
      %v7650 = vrcp.pop %v6110
      %v7651 = vmul.f32 %v6110, %v7650
      %v7652 = vsub.f32 1.0, %v7651
      %v7653 = vmul.f32 %v7650, %v7652
      %v7654 = vadd.f32 %v7650, %v7653
      %vm7655 = vweird.f32 %v6110
      %vm7656 = vweird.f32 %v7650
      %vm7657 = vmor %vm7655, %vm7656
      %v7658 = vsel %vm7657, %v7650, %v7654
      %v7659 = vand.u32 2147483647, %v6110
      %vm7660 = vcmp.eq.f32.partialorder %v7659, 8.507059e+37
      %v7661 = vand.u32 %v6110, 2147483648
      %v7662 = vor.u32 1.1754944e-38, %v7661
      %v7663 = vsel %vm7660, %v7662, %v7658
      %v7664 = vmul.f32 1.0, %v7663
      %v7665 = vrcp.pop %v6111
      %v7666 = vmul.f32 %v6111, %v7665
      %v7667 = vsub.f32 1.0, %v7666
      %v7668 = vmul.f32 %v7665, %v7667
      %v7669 = vadd.f32 %v7665, %v7668
      %vm7670 = vweird.f32 %v6111
      %vm7671 = vweird.f32 %v7665
      %vm7672 = vmor %vm7670, %vm7671
      %v7673 = vsel %vm7672, %v7665, %v7669
      %v7674 = vand.u32 2147483647, %v6111
      %vm7675 = vcmp.eq.f32.partialorder %v7674, 8.507059e+37
      %v7676 = vand.u32 %v6111, 2147483648
      %v7677 = vor.u32 1.1754944e-38, %v7676
      %v7678 = vsel %vm7675, %v7677, %v7673
      %v7679 = vmul.f32 1.0, %v7678
      %v7680 = vrcp.pop %v6112
      %v7681 = vmul.f32 %v6112, %v7680
      %v7682 = vsub.f32 1.0, %v7681
      %v7683 = vmul.f32 %v7680, %v7682
      %v7684 = vadd.f32 %v7680, %v7683
      %vm7685 = vweird.f32 %v6112
      %vm7686 = vweird.f32 %v7680
      %vm7687 = vmor %vm7685, %vm7686
      %v7688 = vsel %vm7687, %v7680, %v7684
      %v7689 = vand.u32 2147483647, %v6112
      %vm7690 = vcmp.eq.f32.partialorder %v7689, 8.507059e+37
      %v7691 = vand.u32 %v6112, 2147483648
      %v7692 = vor.u32 1.1754944e-38, %v7691
      %v7693 = vsel %vm7690, %v7692, %v7688
      %v7694 = vmul.f32 1.0, %v7693
      %v7695 = vrcp.pop %v6113
      %v7696 = vmul.f32 %v6113, %v7695
      %v7697 = vsub.f32 1.0, %v7696
      %v7698 = vmul.f32 %v7695, %v7697
      %v7699 = vadd.f32 %v7695, %v7698
      %vm7700 = vweird.f32 %v6113
      %vm7701 = vweird.f32 %v7695
      %vm7702 = vmor %vm7700, %vm7701
      %v7703 = vsel %vm7702, %v7695, %v7699
      %v7704 = vand.u32 2147483647, %v6113
      %vm7705 = vcmp.eq.f32.partialorder %v7704, 8.507059e+37
      %v7706 = vand.u32 %v6113, 2147483648
      %v7707 = vor.u32 1.1754944e-38, %v7706
      %v7708 = vsel %vm7705, %v7707, %v7703
      %v7709 = vmul.f32 1.0, %v7708
      %v7710 = vrcp.pop %v6114
      %v7711 = vmul.f32 %v6114, %v7710
      %v7712 = vsub.f32 1.0, %v7711
      %v7713 = vmul.f32 %v7710, %v7712
      %v7714 = vadd.f32 %v7710, %v7713
      %vm7715 = vweird.f32 %v6114
      %vm7716 = vweird.f32 %v7710
      %vm7717 = vmor %vm7715, %vm7716
      %v7718 = vsel %vm7717, %v7710, %v7714
      %v7719 = vand.u32 2147483647, %v6114
      %vm7720 = vcmp.eq.f32.partialorder %v7719, 8.507059e+37
      %v7721 = vand.u32 %v6114, 2147483648
      %v7722 = vor.u32 1.1754944e-38, %v7721
      %v7723 = vsel %vm7720, %v7722, %v7718
      %v7724 = vmul.f32 1.0, %v7723
      %v7725 = vrcp.pop %v6115
      %v7726 = vmul.f32 %v6115, %v7725
      %v7727 = vsub.f32 1.0, %v7726
      %v7728 = vmul.f32 %v7725, %v7727
      %v7729 = vadd.f32 %v7725, %v7728
      %vm7730 = vweird.f32 %v6115
      %vm7731 = vweird.f32 %v7725
      %vm7732 = vmor %vm7730, %vm7731
      %v7733 = vsel %vm7732, %v7725, %v7729
      %v7734 = vand.u32 2147483647, %v6115
      %vm7735 = vcmp.eq.f32.partialorder %v7734, 8.507059e+37
      %v7736 = vand.u32 %v6115, 2147483648
      %v7737 = vor.u32 1.1754944e-38, %v7736
      %v7738 = vsel %vm7735, %v7737, %v7733
      %v7739 = vmul.f32 1.0, %v7738
      %v7740 = vrcp.pop %v6116
      %v7741 = vmul.f32 %v6116, %v7740
      %v7742 = vsub.f32 1.0, %v7741
      %v7743 = vmul.f32 %v7740, %v7742
      %v7744 = vadd.f32 %v7740, %v7743
      %vm7745 = vweird.f32 %v6116
      %vm7746 = vweird.f32 %v7740
      %vm7747 = vmor %vm7745, %vm7746
      %v7748 = vsel %vm7747, %v7740, %v7744
      %v7749 = vand.u32 2147483647, %v6116
      %vm7750 = vcmp.eq.f32.partialorder %v7749, 8.507059e+37
      %v7751 = vand.u32 %v6116, 2147483648
      %v7752 = vor.u32 1.1754944e-38, %v7751
      %v7753 = vsel %vm7750, %v7752, %v7748
      %v7754 = vmul.f32 1.0, %v7753
      %v7755 = vrcp.pop %v6117
      %v7756 = vmul.f32 %v6117, %v7755
      %v7757 = vsub.f32 1.0, %v7756
      %v7758 = vmul.f32 %v7755, %v7757
      %v7759 = vadd.f32 %v7755, %v7758
      %vm7760 = vweird.f32 %v6117
      %vm7761 = vweird.f32 %v7755
      %vm7762 = vmor %vm7760, %vm7761
      %v7763 = vsel %vm7762, %v7755, %v7759
      %v7764 = vand.u32 2147483647, %v6117
      %vm7765 = vcmp.eq.f32.partialorder %v7764, 8.507059e+37
      %v7766 = vand.u32 %v6117, 2147483648
      %v7767 = vor.u32 1.1754944e-38, %v7766
      %v7768 = vsel %vm7765, %v7767, %v7763
      %v7769 = vmul.f32 1.0, %v7768
      %v7770 = vrcp.pop %v6118
      %v7771 = vmul.f32 %v6118, %v7770
      %v7772 = vsub.f32 1.0, %v7771
      %v7773 = vmul.f32 %v7770, %v7772
      %v7774 = vadd.f32 %v7770, %v7773
      %vm7775 = vweird.f32 %v6118
      %vm7776 = vweird.f32 %v7770
      %vm7777 = vmor %vm7775, %vm7776
      %v7778 = vsel %vm7777, %v7770, %v7774
      %v7779 = vand.u32 2147483647, %v6118
      %vm7780 = vcmp.eq.f32.partialorder %v7779, 8.507059e+37
      %v7781 = vand.u32 %v6118, 2147483648
      %v7782 = vor.u32 1.1754944e-38, %v7781
      %v7783 = vsel %vm7780, %v7782, %v7778
      %v7784 = vmul.f32 1.0, %v7783
      %v7785 = vrcp.pop %v6119
      %v7786 = vmul.f32 %v6119, %v7785
      %v7787 = vsub.f32 1.0, %v7786
      %v7788 = vmul.f32 %v7785, %v7787
      %v7789 = vadd.f32 %v7785, %v7788
      %vm7790 = vweird.f32 %v6119
      %vm7791 = vweird.f32 %v7785
      %vm7792 = vmor %vm7790, %vm7791
      %v7793 = vsel %vm7792, %v7785, %v7789
      %v7794 = vand.u32 2147483647, %v6119
      %vm7795 = vcmp.eq.f32.partialorder %v7794, 8.507059e+37
      %v7796 = vand.u32 %v6119, 2147483648
      %v7797 = vor.u32 1.1754944e-38, %v7796
      %v7798 = vsel %vm7795, %v7797, %v7793
      %v7799 = vmul.f32 1.0, %v7798
      %v7800 = vrcp.pop %v6120
      %v7801 = vmul.f32 %v6120, %v7800
      %v7802 = vsub.f32 1.0, %v7801
      %v7803 = vmul.f32 %v7800, %v7802
      %v7804 = vadd.f32 %v7800, %v7803
      %vm7805 = vweird.f32 %v6120
      %vm7806 = vweird.f32 %v7800
      %vm7807 = vmor %vm7805, %vm7806
      %v7808 = vsel %vm7807, %v7800, %v7804
      %v7809 = vand.u32 2147483647, %v6120
      %vm7810 = vcmp.eq.f32.partialorder %v7809, 8.507059e+37
      %v7811 = vand.u32 %v6120, 2147483648
      %v7812 = vor.u32 1.1754944e-38, %v7811
      %v7813 = vsel %vm7810, %v7812, %v7808
      %v7814 = vmul.f32 1.0, %v7813
      %v7815 = vrcp.pop %v6121
      %v7816 = vmul.f32 %v6121, %v7815
      %v7817 = vsub.f32 1.0, %v7816
      %v7818 = vmul.f32 %v7815, %v7817
      %v7819 = vadd.f32 %v7815, %v7818
      %vm7820 = vweird.f32 %v6121
      %vm7821 = vweird.f32 %v7815
      %vm7822 = vmor %vm7820, %vm7821
      %v7823 = vsel %vm7822, %v7815, %v7819
      %v7824 = vand.u32 2147483647, %v6121
      %vm7825 = vcmp.eq.f32.partialorder %v7824, 8.507059e+37
      %v7826 = vand.u32 %v6121, 2147483648
      %v7827 = vor.u32 1.1754944e-38, %v7826
      %v7828 = vsel %vm7825, %v7827, %v7823
      %v7829 = vmul.f32 1.0, %v7828
      %v7830 = vrcp.pop %v6122
      %v7831 = vmul.f32 %v6122, %v7830
      %v7832 = vsub.f32 1.0, %v7831
      %v7833 = vmul.f32 %v7830, %v7832
      %v7834 = vadd.f32 %v7830, %v7833
      %vm7835 = vweird.f32 %v6122
      %vm7836 = vweird.f32 %v7830
      %vm7837 = vmor %vm7835, %vm7836
      %v7838 = vsel %vm7837, %v7830, %v7834
      %v7839 = vand.u32 2147483647, %v6122
      %vm7840 = vcmp.eq.f32.partialorder %v7839, 8.507059e+37
      %v7841 = vand.u32 %v6122, 2147483648
      %v7842 = vor.u32 1.1754944e-38, %v7841
      %v7843 = vsel %vm7840, %v7842, %v7838
      %v7844 = vmul.f32 1.0, %v7843
      %v7845 = vrcp.pop %v6123
      %v7846 = vmul.f32 %v6123, %v7845
      %v7847 = vsub.f32 1.0, %v7846
      %v7848 = vmul.f32 %v7845, %v7847
      %v7849 = vadd.f32 %v7845, %v7848
      %vm7850 = vweird.f32 %v6123
      %vm7851 = vweird.f32 %v7845
      %vm7852 = vmor %vm7850, %vm7851
      %v7853 = vsel %vm7852, %v7845, %v7849
      %v7854 = vand.u32 2147483647, %v6123
      %vm7855 = vcmp.eq.f32.partialorder %v7854, 8.507059e+37
      %v7856 = vand.u32 %v6123, 2147483648
      %v7857 = vor.u32 1.1754944e-38, %v7856
      %v7858 = vsel %vm7855, %v7857, %v7853
      %v7859 = vmul.f32 1.0, %v7858
      %v7860 = vrcp.pop %v6124
      %v7861 = vmul.f32 %v6124, %v7860
      %v7862 = vsub.f32 1.0, %v7861
      %v7863 = vmul.f32 %v7860, %v7862
      %v7864 = vadd.f32 %v7860, %v7863
      %vm7865 = vweird.f32 %v6124
      %vm7866 = vweird.f32 %v7860
      %vm7867 = vmor %vm7865, %vm7866
      %v7868 = vsel %vm7867, %v7860, %v7864
      %v7869 = vand.u32 2147483647, %v6124
      %vm7870 = vcmp.eq.f32.partialorder %v7869, 8.507059e+37
      %v7871 = vand.u32 %v6124, 2147483648
      %v7872 = vor.u32 1.1754944e-38, %v7871
      %v7873 = vsel %vm7870, %v7872, %v7868
      %v7874 = vmul.f32 1.0, %v7873
      %v7875 = vrcp.pop %v6125
      %v7876 = vmul.f32 %v6125, %v7875
      %v7877 = vsub.f32 1.0, %v7876
      %v7878 = vmul.f32 %v7875, %v7877
      %v7879 = vadd.f32 %v7875, %v7878
      %vm7880 = vweird.f32 %v6125
      %vm7881 = vweird.f32 %v7875
      %vm7882 = vmor %vm7880, %vm7881
      %v7883 = vsel %vm7882, %v7875, %v7879
      %v7884 = vand.u32 2147483647, %v6125
      %vm7885 = vcmp.eq.f32.partialorder %v7884, 8.507059e+37
      %v7886 = vand.u32 %v6125, 2147483648
      %v7887 = vor.u32 1.1754944e-38, %v7886
      %v7888 = vsel %vm7885, %v7887, %v7883
      %v7889 = vmul.f32 1.0, %v7888
      %v7890 = vrcp.pop %v6126
      %v7891 = vmul.f32 %v6126, %v7890
      %v7892 = vsub.f32 1.0, %v7891
      %v7893 = vmul.f32 %v7890, %v7892
      %v7894 = vadd.f32 %v7890, %v7893
      %vm7895 = vweird.f32 %v6126
      %vm7896 = vweird.f32 %v7890
      %vm7897 = vmor %vm7895, %vm7896
      %v7898 = vsel %vm7897, %v7890, %v7894
      %v7899 = vand.u32 2147483647, %v6126
      %vm7900 = vcmp.eq.f32.partialorder %v7899, 8.507059e+37
      %v7901 = vand.u32 %v6126, 2147483648
      %v7902 = vor.u32 1.1754944e-38, %v7901
      %v7903 = vsel %vm7900, %v7902, %v7898
      %v7904 = vmul.f32 1.0, %v7903
      %v7905 = vrcp.pop %v6127
      %v7906 = vmul.f32 %v6127, %v7905
      %v7907 = vsub.f32 1.0, %v7906
      %v7908 = vmul.f32 %v7905, %v7907
      %v7909 = vadd.f32 %v7905, %v7908
      %vm7910 = vweird.f32 %v6127
      %vm7911 = vweird.f32 %v7905
      %vm7912 = vmor %vm7910, %vm7911
      %v7913 = vsel %vm7912, %v7905, %v7909
      %v7914 = vand.u32 2147483647, %v6127
      %vm7915 = vcmp.eq.f32.partialorder %v7914, 8.507059e+37
      %v7916 = vand.u32 %v6127, 2147483648
      %v7917 = vor.u32 1.1754944e-38, %v7916
      %v7918 = vsel %vm7915, %v7917, %v7913
      %v7919 = vmul.f32 1.0, %v7918
      %v7920 = vrcp.pop %v6128
      %v7921 = vmul.f32 %v6128, %v7920
      %v7922 = vsub.f32 1.0, %v7921
      %v7923 = vmul.f32 %v7920, %v7922
      %v7924 = vadd.f32 %v7920, %v7923
      %vm7925 = vweird.f32 %v6128
      %vm7926 = vweird.f32 %v7920
      %vm7927 = vmor %vm7925, %vm7926
      %v7928 = vsel %vm7927, %v7920, %v7924
      %v7929 = vand.u32 2147483647, %v6128
      %vm7930 = vcmp.eq.f32.partialorder %v7929, 8.507059e+37
      %v7931 = vand.u32 %v6128, 2147483648
      %v7932 = vor.u32 1.1754944e-38, %v7931
      %v7933 = vsel %vm7930, %v7932, %v7928
      %v7934 = vmul.f32 1.0, %v7933
      %v7935 = vrcp.pop %v6129
      %v7936 = vmul.f32 %v6129, %v7935
      %v7937 = vsub.f32 1.0, %v7936
      %v7938 = vmul.f32 %v7935, %v7937
      %v7939 = vadd.f32 %v7935, %v7938
      %vm7940 = vweird.f32 %v6129
      %vm7941 = vweird.f32 %v7935
      %vm7942 = vmor %vm7940, %vm7941
      %v7943 = vsel %vm7942, %v7935, %v7939
      %v7944 = vand.u32 2147483647, %v6129
      %vm7945 = vcmp.eq.f32.partialorder %v7944, 8.507059e+37
      %v7946 = vand.u32 %v6129, 2147483648
      %v7947 = vor.u32 1.1754944e-38, %v7946
      %v7948 = vsel %vm7945, %v7947, %v7943
      %v7949 = vmul.f32 1.0, %v7948
      %v7950 = vrcp.pop %v6130
      %v7951 = vmul.f32 %v6130, %v7950
      %v7952 = vsub.f32 1.0, %v7951
      %v7953 = vmul.f32 %v7950, %v7952
      %v7954 = vadd.f32 %v7950, %v7953
      %vm7955 = vweird.f32 %v6130
      %vm7956 = vweird.f32 %v7950
      %vm7957 = vmor %vm7955, %vm7956
      %v7958 = vsel %vm7957, %v7950, %v7954
      %v7959 = vand.u32 2147483647, %v6130
      %vm7960 = vcmp.eq.f32.partialorder %v7959, 8.507059e+37
      %v7961 = vand.u32 %v6130, 2147483648
      %v7962 = vor.u32 1.1754944e-38, %v7961
      %v7963 = vsel %vm7960, %v7962, %v7958
      %v7964 = vmul.f32 1.0, %v7963
      %v7965 = vrcp.pop %v6131
      %v7966 = vmul.f32 %v6131, %v7965
      %v7967 = vsub.f32 1.0, %v7966
      %v7968 = vmul.f32 %v7965, %v7967
      %v7969 = vadd.f32 %v7965, %v7968
      %vm7970 = vweird.f32 %v6131
      %vm7971 = vweird.f32 %v7965
      %vm7972 = vmor %vm7970, %vm7971
      %v7973 = vsel %vm7972, %v7965, %v7969
      %v7974 = vand.u32 2147483647, %v6131
      %vm7975 = vcmp.eq.f32.partialorder %v7974, 8.507059e+37
      %v7976 = vand.u32 %v6131, 2147483648
      %v7977 = vor.u32 1.1754944e-38, %v7976
      %v7978 = vsel %vm7975, %v7977, %v7973
      %v7979 = vmul.f32 1.0, %v7978
      %v7980 = vrcp.pop %v6132
      %v7981 = vmul.f32 %v6132, %v7980
      %v7982 = vsub.f32 1.0, %v7981
      %v7983 = vmul.f32 %v7980, %v7982
      %v7984 = vadd.f32 %v7980, %v7983
      %vm7985 = vweird.f32 %v6132
      %vm7986 = vweird.f32 %v7980
      %vm7987 = vmor %vm7985, %vm7986
      %v7988 = vsel %vm7987, %v7980, %v7984
      %v7989 = vand.u32 2147483647, %v6132
      %vm7990 = vcmp.eq.f32.partialorder %v7989, 8.507059e+37
      %v7991 = vand.u32 %v6132, 2147483648
      %v7992 = vor.u32 1.1754944e-38, %v7991
      %v7993 = vsel %vm7990, %v7992, %v7988
      %v7994 = vmul.f32 1.0, %v7993
      %v7995 = vrcp.pop %v6133
      %v7996 = vmul.f32 %v6133, %v7995
      %v7997 = vsub.f32 1.0, %v7996
      %v7998 = vmul.f32 %v7995, %v7997
      %v7999 = vadd.f32 %v7995, %v7998
      %vm8000 = vweird.f32 %v6133
      %vm8001 = vweird.f32 %v7995
      %vm8002 = vmor %vm8000, %vm8001
      %v8003 = vsel %vm8002, %v7995, %v7999
      %v8004 = vand.u32 2147483647, %v6133
      %vm8005 = vcmp.eq.f32.partialorder %v8004, 8.507059e+37
      %v8006 = vand.u32 %v6133, 2147483648
      %v8007 = vor.u32 1.1754944e-38, %v8006
      %v8008 = vsel %vm8005, %v8007, %v8003
      %v8009 = vmul.f32 1.0, %v8008
      %v8010 = vrcp.pop %v6134
      %v8011 = vmul.f32 %v6134, %v8010
      %v8012 = vsub.f32 1.0, %v8011
      %v8013 = vmul.f32 %v8010, %v8012
      %v8014 = vadd.f32 %v8010, %v8013
      %vm8015 = vweird.f32 %v6134
      %vm8016 = vweird.f32 %v8010
      %vm8017 = vmor %vm8015, %vm8016
      %v8018 = vsel %vm8017, %v8010, %v8014
      %v8019 = vand.u32 2147483647, %v6134
      %vm8020 = vcmp.eq.f32.partialorder %v8019, 8.507059e+37
      %v8021 = vand.u32 %v6134, 2147483648
      %v8022 = vor.u32 1.1754944e-38, %v8021
      %v8023 = vsel %vm8020, %v8022, %v8018
      %v8024 = vmul.f32 1.0, %v8023
      %v8025 = vrcp.pop %v6135
      %v8026 = vmul.f32 %v6135, %v8025
      %v8027 = vsub.f32 1.0, %v8026
      %v8028 = vmul.f32 %v8025, %v8027
      %v8029 = vadd.f32 %v8025, %v8028
      %vm8030 = vweird.f32 %v6135
      %vm8031 = vweird.f32 %v8025
      %vm8032 = vmor %vm8030, %vm8031
      %v8033 = vsel %vm8032, %v8025, %v8029
      %v8034 = vand.u32 2147483647, %v6135
      %vm8035 = vcmp.eq.f32.partialorder %v8034, 8.507059e+37
      %v8036 = vand.u32 %v6135, 2147483648
      %v8037 = vor.u32 1.1754944e-38, %v8036
      %v8038 = vsel %vm8035, %v8037, %v8033
      %v8039 = vmul.f32 1.0, %v8038
      %v8040 = vrcp.pop %v6136
      %v8041 = vmul.f32 %v6136, %v8040
      %v8042 = vsub.f32 1.0, %v8041
      %v8043 = vmul.f32 %v8040, %v8042
      %v8044 = vadd.f32 %v8040, %v8043
      %vm8045 = vweird.f32 %v6136
      %vm8046 = vweird.f32 %v8040
      %vm8047 = vmor %vm8045, %vm8046
      %v8048 = vsel %vm8047, %v8040, %v8044
      %v8049 = vand.u32 2147483647, %v6136
      %vm8050 = vcmp.eq.f32.partialorder %v8049, 8.507059e+37
      %v8051 = vand.u32 %v6136, 2147483648
      %v8052 = vor.u32 1.1754944e-38, %v8051
      %v8053 = vsel %vm8050, %v8052, %v8048
      %v8054 = vmul.f32 1.0, %v8053
      %v8055 = vrcp.pop %v6137
      %v8056 = vmul.f32 %v6137, %v8055
      %v8057 = vsub.f32 1.0, %v8056
      %v8058 = vmul.f32 %v8055, %v8057
      %v8059 = vadd.f32 %v8055, %v8058
      %vm8060 = vweird.f32 %v6137
      %vm8061 = vweird.f32 %v8055
      %vm8062 = vmor %vm8060, %vm8061
      %v8063 = vsel %vm8062, %v8055, %v8059
      %v8064 = vand.u32 2147483647, %v6137
      %vm8065 = vcmp.eq.f32.partialorder %v8064, 8.507059e+37
      %v8066 = vand.u32 %v6137, 2147483648
      %v8067 = vor.u32 1.1754944e-38, %v8066
      %v8068 = vsel %vm8065, %v8067, %v8063
      %v8069 = vmul.f32 1.0, %v8068
      %v8070 = vrcp.pop %v6138
      %v8071 = vmul.f32 %v6138, %v8070
      %v8072 = vsub.f32 1.0, %v8071
      %v8073 = vmul.f32 %v8070, %v8072
      %v8074 = vadd.f32 %v8070, %v8073
      %vm8075 = vweird.f32 %v6138
      %vm8076 = vweird.f32 %v8070
      %vm8077 = vmor %vm8075, %vm8076
      %v8078 = vsel %vm8077, %v8070, %v8074
      %v8079 = vand.u32 2147483647, %v6138
      %vm8080 = vcmp.eq.f32.partialorder %v8079, 8.507059e+37
      %v8081 = vand.u32 %v6138, 2147483648
      %v8082 = vor.u32 1.1754944e-38, %v8081
      %v8083 = vsel %vm8080, %v8082, %v8078
      %v8084 = vmul.f32 1.0, %v8083
      %v8085 = vrcp.pop %v6139
      %v8086 = vmul.f32 %v6139, %v8085
      %v8087 = vsub.f32 1.0, %v8086
      %v8088 = vmul.f32 %v8085, %v8087
      %v8089 = vadd.f32 %v8085, %v8088
      %vm8090 = vweird.f32 %v6139
      %vm8091 = vweird.f32 %v8085
      %vm8092 = vmor %vm8090, %vm8091
      %v8093 = vsel %vm8092, %v8085, %v8089
      %v8094 = vand.u32 2147483647, %v6139
      %vm8095 = vcmp.eq.f32.partialorder %v8094, 8.507059e+37
      %v8096 = vand.u32 %v6139, 2147483648
      %v8097 = vor.u32 1.1754944e-38, %v8096
      %v8098 = vsel %vm8095, %v8097, %v8093
      %v8099 = vmul.f32 1.0, %v8098
      %v8100 = vrcp.pop %v6140
      %v8101 = vmul.f32 %v6140, %v8100
      %v8102 = vsub.f32 1.0, %v8101
      %v8103 = vmul.f32 %v8100, %v8102
      %v8104 = vadd.f32 %v8100, %v8103
      %vm8105 = vweird.f32 %v6140
      %vm8106 = vweird.f32 %v8100
      %vm8107 = vmor %vm8105, %vm8106
      %v8108 = vsel %vm8107, %v8100, %v8104
      %v8109 = vand.u32 2147483647, %v6140
      %vm8110 = vcmp.eq.f32.partialorder %v8109, 8.507059e+37
      %v8111 = vand.u32 %v6140, 2147483648
      %v8112 = vor.u32 1.1754944e-38, %v8111
      %v8113 = vsel %vm8110, %v8112, %v8108
      %v8114 = vmul.f32 1.0, %v8113
      %v8115 = vrcp.pop %v6141
      %v8116 = vmul.f32 %v6141, %v8115
      %v8117 = vsub.f32 1.0, %v8116
      %v8118 = vmul.f32 %v8115, %v8117
      %v8119 = vadd.f32 %v8115, %v8118
      %vm8120 = vweird.f32 %v6141
      %vm8121 = vweird.f32 %v8115
      %vm8122 = vmor %vm8120, %vm8121
      %v8123 = vsel %vm8122, %v8115, %v8119
      %v8124 = vand.u32 2147483647, %v6141
      %vm8125 = vcmp.eq.f32.partialorder %v8124, 8.507059e+37
      %v8126 = vand.u32 %v6141, 2147483648
      %v8127 = vor.u32 1.1754944e-38, %v8126
      %v8128 = vsel %vm8125, %v8127, %v8123
      %v8129 = vmul.f32 1.0, %v8128
      %v8130 = vrcp.pop %v6142
      %v8131 = vmul.f32 %v6142, %v8130
      %v8132 = vsub.f32 1.0, %v8131
      %v8133 = vmul.f32 %v8130, %v8132
      %v8134 = vadd.f32 %v8130, %v8133
      %vm8135 = vweird.f32 %v6142
      %vm8136 = vweird.f32 %v8130
      %vm8137 = vmor %vm8135, %vm8136
      %v8138 = vsel %vm8137, %v8130, %v8134
      %v8139 = vand.u32 2147483647, %v6142
      %vm8140 = vcmp.eq.f32.partialorder %v8139, 8.507059e+37
      %v8141 = vand.u32 %v6142, 2147483648
      %v8142 = vor.u32 1.1754944e-38, %v8141
      %v8143 = vsel %vm8140, %v8142, %v8138
      %v8144 = vmul.f32 1.0, %v8143
      %v8145 = vrcp.pop %v6143
      %v8146 = vmul.f32 %v6143, %v8145
      %v8147 = vsub.f32 1.0, %v8146
      %v8148 = vmul.f32 %v8145, %v8147
      %v8149 = vadd.f32 %v8145, %v8148
      %vm8150 = vweird.f32 %v6143
      %vm8151 = vweird.f32 %v8145
      %vm8152 = vmor %vm8150, %vm8151
      %v8153 = vsel %vm8152, %v8145, %v8149
      %v8154 = vand.u32 2147483647, %v6143
      %vm8155 = vcmp.eq.f32.partialorder %v8154, 8.507059e+37
      %v8156 = vand.u32 %v6143, 2147483648
      %v8157 = vor.u32 1.1754944e-38, %v8156
      %v8158 = vsel %vm8155, %v8157, %v8153
      %v8159 = vmul.f32 1.0, %v8158
      %v8160 = vrcp.pop %v6144
      %v8161 = vmul.f32 %v6144, %v8160
      %v8162 = vsub.f32 1.0, %v8161
      %v8163 = vmul.f32 %v8160, %v8162
      %v8164 = vadd.f32 %v8160, %v8163
      %vm8165 = vweird.f32 %v6144
      %vm8166 = vweird.f32 %v8160
      %vm8167 = vmor %vm8165, %vm8166
      %v8168 = vsel %vm8167, %v8160, %v8164
      %v8169 = vand.u32 2147483647, %v6144
      %vm8170 = vcmp.eq.f32.partialorder %v8169, 8.507059e+37
      %v8171 = vand.u32 %v6144, 2147483648
      %v8172 = vor.u32 1.1754944e-38, %v8171
      %v8173 = vsel %vm8170, %v8172, %v8168
      %v8174 = vmul.f32 1.0, %v8173
      %v8175 = vrcp.pop %v6145
      %v8176 = vmul.f32 %v6145, %v8175
      %v8177 = vsub.f32 1.0, %v8176
      %v8178 = vmul.f32 %v8175, %v8177
      %v8179 = vadd.f32 %v8175, %v8178
      %vm8180 = vweird.f32 %v6145
      %vm8181 = vweird.f32 %v8175
      %vm8182 = vmor %vm8180, %vm8181
      %v8183 = vsel %vm8182, %v8175, %v8179
      %v8184 = vand.u32 2147483647, %v6145
      %vm8185 = vcmp.eq.f32.partialorder %v8184, 8.507059e+37
      %v8186 = vand.u32 %v6145, 2147483648
      %v8187 = vor.u32 1.1754944e-38, %v8186
      %v8188 = vsel %vm8185, %v8187, %v8183
      %v8189 = vmul.f32 1.0, %v8188
      %v8190 = vrcp.pop %v6146
      %v8191 = vmul.f32 %v6146, %v8190
      %v8192 = vsub.f32 1.0, %v8191
      %v8193 = vmul.f32 %v8190, %v8192
      %v8194 = vadd.f32 %v8190, %v8193
      %vm8195 = vweird.f32 %v6146
      %vm8196 = vweird.f32 %v8190
      %vm8197 = vmor %vm8195, %vm8196
      %v8198 = vsel %vm8197, %v8190, %v8194
      %v8199 = vand.u32 2147483647, %v6146
      %vm8200 = vcmp.eq.f32.partialorder %v8199, 8.507059e+37
      %v8201 = vand.u32 %v6146, 2147483648
      %v8202 = vor.u32 1.1754944e-38, %v8201
      %v8203 = vsel %vm8200, %v8202, %v8198
      %v8204 = vmul.f32 1.0, %v8203
      %v8205 = vrcp.pop %v6147
      %v8206 = vmul.f32 %v6147, %v8205
      %v8207 = vsub.f32 1.0, %v8206
      %v8208 = vmul.f32 %v8205, %v8207
      %v8209 = vadd.f32 %v8205, %v8208
      %vm8210 = vweird.f32 %v6147
      %vm8211 = vweird.f32 %v8205
      %vm8212 = vmor %vm8210, %vm8211
      %v8213 = vsel %vm8212, %v8205, %v8209
      %v8214 = vand.u32 2147483647, %v6147
      %vm8215 = vcmp.eq.f32.partialorder %v8214, 8.507059e+37
      %v8216 = vand.u32 %v6147, 2147483648
      %v8217 = vor.u32 1.1754944e-38, %v8216
      %v8218 = vsel %vm8215, %v8217, %v8213
      %v8219 = vmul.f32 1.0, %v8218
      %v8220 = vrcp.pop %v6148
      %v8221 = vmul.f32 %v6148, %v8220
      %v8222 = vsub.f32 1.0, %v8221
      %v8223 = vmul.f32 %v8220, %v8222
      %v8224 = vadd.f32 %v8220, %v8223
      %vm8225 = vweird.f32 %v6148
      %vm8226 = vweird.f32 %v8220
      %vm8227 = vmor %vm8225, %vm8226
      %v8228 = vsel %vm8227, %v8220, %v8224
      %v8229 = vand.u32 2147483647, %v6148
      %vm8230 = vcmp.eq.f32.partialorder %v8229, 8.507059e+37
      %v8231 = vand.u32 %v6148, 2147483648
      %v8232 = vor.u32 1.1754944e-38, %v8231
      %v8233 = vsel %vm8230, %v8232, %v8228
      %v8234 = vmul.f32 1.0, %v8233
      %v8235 = vrcp.pop %v6149
      %v8236 = vmul.f32 %v6149, %v8235
      %v8237 = vsub.f32 1.0, %v8236
      %v8238 = vmul.f32 %v8235, %v8237
      %v8239 = vadd.f32 %v8235, %v8238
      %vm8240 = vweird.f32 %v6149
      %vm8241 = vweird.f32 %v8235
      %vm8242 = vmor %vm8240, %vm8241
      %v8243 = vsel %vm8242, %v8235, %v8239
      %v8244 = vand.u32 2147483647, %v6149
      %vm8245 = vcmp.eq.f32.partialorder %v8244, 8.507059e+37
      %v8246 = vand.u32 %v6149, 2147483648
      %v8247 = vor.u32 1.1754944e-38, %v8246
      %v8248 = vsel %vm8245, %v8247, %v8243
      %v8249 = vmul.f32 1.0, %v8248
      %v8250 = vrcp.pop %v6150
      %v8251 = vmul.f32 %v6150, %v8250
      %v8252 = vsub.f32 1.0, %v8251
      %v8253 = vmul.f32 %v8250, %v8252
      %v8254 = vadd.f32 %v8250, %v8253
      %vm8255 = vweird.f32 %v6150
      %vm8256 = vweird.f32 %v8250
      %vm8257 = vmor %vm8255, %vm8256
      %v8258 = vsel %vm8257, %v8250, %v8254
      %v8259 = vand.u32 2147483647, %v6150
      %vm8260 = vcmp.eq.f32.partialorder %v8259, 8.507059e+37
      %v8261 = vand.u32 %v6150, 2147483648
      %v8262 = vor.u32 1.1754944e-38, %v8261
      %v8263 = vsel %vm8260, %v8262, %v8258
      %v8264 = vmul.f32 1.0, %v8263
      %v8265 = vrcp.pop %v6151
      %v8266 = vmul.f32 %v6151, %v8265
      %v8267 = vsub.f32 1.0, %v8266
      %v8268 = vmul.f32 %v8265, %v8267
      %v8269 = vadd.f32 %v8265, %v8268
      %vm8270 = vweird.f32 %v6151
      %vm8271 = vweird.f32 %v8265
      %vm8272 = vmor %vm8270, %vm8271
      %v8273 = vsel %vm8272, %v8265, %v8269
      %v8274 = vand.u32 2147483647, %v6151
      %vm8275 = vcmp.eq.f32.partialorder %v8274, 8.507059e+37
      %v8276 = vand.u32 %v6151, 2147483648
      %v8277 = vor.u32 1.1754944e-38, %v8276
      %v8278 = vsel %vm8275, %v8277, %v8273
      %v8279 = vmul.f32 1.0, %v8278
      %v8280 = vrcp.pop %v6152
      %v8281 = vmul.f32 %v6152, %v8280
      %v8282 = vsub.f32 1.0, %v8281
      %v8283 = vmul.f32 %v8280, %v8282
      %v8284 = vadd.f32 %v8280, %v8283
      %vm8285 = vweird.f32 %v6152
      %vm8286 = vweird.f32 %v8280
      %vm8287 = vmor %vm8285, %vm8286
      %v8288 = vsel %vm8287, %v8280, %v8284
      %v8289 = vand.u32 2147483647, %v6152
      %vm8290 = vcmp.eq.f32.partialorder %v8289, 8.507059e+37
      %v8291 = vand.u32 %v6152, 2147483648
      %v8292 = vor.u32 1.1754944e-38, %v8291
      %v8293 = vsel %vm8290, %v8292, %v8288
      %v8294 = vmul.f32 1.0, %v8293
      %v8295 = vrcp.pop %v6153
      %v8296 = vmul.f32 %v6153, %v8295
      %v8297 = vsub.f32 1.0, %v8296
      %v8298 = vmul.f32 %v8295, %v8297
      %v8299 = vadd.f32 %v8295, %v8298
      %vm8300 = vweird.f32 %v6153
      %vm8301 = vweird.f32 %v8295
      %vm8302 = vmor %vm8300, %vm8301
      %v8303 = vsel %vm8302, %v8295, %v8299
      %v8304 = vand.u32 2147483647, %v6153
      %vm8305 = vcmp.eq.f32.partialorder %v8304, 8.507059e+37
      %v8306 = vand.u32 %v6153, 2147483648
      %v8307 = vor.u32 1.1754944e-38, %v8306
      %v8308 = vsel %vm8305, %v8307, %v8303
      %v8309 = vmul.f32 1.0, %v8308
      %v8310 = vrcp.pop %v6154
      %v8311 = vmul.f32 %v6154, %v8310
      %v8312 = vsub.f32 1.0, %v8311
      %v8313 = vmul.f32 %v8310, %v8312
      %v8314 = vadd.f32 %v8310, %v8313
      %vm8315 = vweird.f32 %v6154
      %vm8316 = vweird.f32 %v8310
      %vm8317 = vmor %vm8315, %vm8316
      %v8318 = vsel %vm8317, %v8310, %v8314
      %v8319 = vand.u32 2147483647, %v6154
      %vm8320 = vcmp.eq.f32.partialorder %v8319, 8.507059e+37
      %v8321 = vand.u32 %v6154, 2147483648
      %v8322 = vor.u32 1.1754944e-38, %v8321
      %v8323 = vsel %vm8320, %v8322, %v8318
      %v8324 = vmul.f32 1.0, %v8323
      %v8325 = vrcp.pop %v6155
      %v8326 = vmul.f32 %v6155, %v8325
      %v8327 = vsub.f32 1.0, %v8326
      %v8328 = vmul.f32 %v8325, %v8327
      %v8329 = vadd.f32 %v8325, %v8328
      %vm8330 = vweird.f32 %v6155
      %vm8331 = vweird.f32 %v8325
      %vm8332 = vmor %vm8330, %vm8331
      %v8333 = vsel %vm8332, %v8325, %v8329
      %v8334 = vand.u32 2147483647, %v6155
      %vm8335 = vcmp.eq.f32.partialorder %v8334, 8.507059e+37
      %v8336 = vand.u32 %v6155, 2147483648
      %v8337 = vor.u32 1.1754944e-38, %v8336
      %v8338 = vsel %vm8335, %v8337, %v8333
      %v8339 = vmul.f32 1.0, %v8338
      %v8340 = vrcp.pop %v6156
      %v8341 = vmul.f32 %v6156, %v8340
      %v8342 = vsub.f32 1.0, %v8341
      %v8343 = vmul.f32 %v8340, %v8342
      %v8344 = vadd.f32 %v8340, %v8343
      %vm8345 = vweird.f32 %v6156
      %vm8346 = vweird.f32 %v8340
      %vm8347 = vmor %vm8345, %vm8346
      %v8348 = vsel %vm8347, %v8340, %v8344
      %v8349 = vand.u32 2147483647, %v6156
      %vm8350 = vcmp.eq.f32.partialorder %v8349, 8.507059e+37
      %v8351 = vand.u32 %v6156, 2147483648
      %v8352 = vor.u32 1.1754944e-38, %v8351
      %v8353 = vsel %vm8350, %v8352, %v8348
      %v8354 = vmul.f32 1.0, %v8353
      %v8355 = vrcp.pop %v6157
      %v8356 = vmul.f32 %v6157, %v8355
      %v8357 = vsub.f32 1.0, %v8356
      %v8358 = vmul.f32 %v8355, %v8357
      %v8359 = vadd.f32 %v8355, %v8358
      %vm8360 = vweird.f32 %v6157
      %vm8361 = vweird.f32 %v8355
      %vm8362 = vmor %vm8360, %vm8361
      %v8363 = vsel %vm8362, %v8355, %v8359
      %v8364 = vand.u32 2147483647, %v6157
      %vm8365 = vcmp.eq.f32.partialorder %v8364, 8.507059e+37
      %v8366 = vand.u32 %v6157, 2147483648
      %v8367 = vor.u32 1.1754944e-38, %v8366
      %v8368 = vsel %vm8365, %v8367, %v8363
      %v8369 = vmul.f32 1.0, %v8368
      %v8370 = vrcp.pop %v6158
      %v8371 = vmul.f32 %v6158, %v8370
      %v8372 = vsub.f32 1.0, %v8371
      %v8373 = vmul.f32 %v8370, %v8372
      %v8374 = vadd.f32 %v8370, %v8373
      %vm8375 = vweird.f32 %v6158
      %vm8376 = vweird.f32 %v8370
      %vm8377 = vmor %vm8375, %vm8376
      %v8378 = vsel %vm8377, %v8370, %v8374
      %v8379 = vand.u32 2147483647, %v6158
      %vm8380 = vcmp.eq.f32.partialorder %v8379, 8.507059e+37
      %v8381 = vand.u32 %v6158, 2147483648
      %v8382 = vor.u32 1.1754944e-38, %v8381
      %v8383 = vsel %vm8380, %v8382, %v8378
      %v8384 = vmul.f32 1.0, %v8383
      %v8385 = vrcp.pop %v6159
      %v8386 = vmul.f32 %v6159, %v8385
      %v8387 = vsub.f32 1.0, %v8386
      %v8388 = vmul.f32 %v8385, %v8387
      %v8389 = vadd.f32 %v8385, %v8388
      %vm8390 = vweird.f32 %v6159
      %vm8391 = vweird.f32 %v8385
      %vm8392 = vmor %vm8390, %vm8391
      %v8393 = vsel %vm8392, %v8385, %v8389
      %v8394 = vand.u32 2147483647, %v6159
      %vm8395 = vcmp.eq.f32.partialorder %v8394, 8.507059e+37
      %v8396 = vand.u32 %v6159, 2147483648
      %v8397 = vor.u32 1.1754944e-38, %v8396
      %v8398 = vsel %vm8395, %v8397, %v8393
      %v8399 = vmul.f32 1.0, %v8398
      %v8400 = vrcp.pop %v6160
      %v8401 = vmul.f32 %v6160, %v8400
      %v8402 = vsub.f32 1.0, %v8401
      %v8403 = vmul.f32 %v8400, %v8402
      %v8404 = vadd.f32 %v8400, %v8403
      %vm8405 = vweird.f32 %v6160
      %vm8406 = vweird.f32 %v8400
      %vm8407 = vmor %vm8405, %vm8406
      %v8408 = vsel %vm8407, %v8400, %v8404
      %v8409 = vand.u32 2147483647, %v6160
      %vm8410 = vcmp.eq.f32.partialorder %v8409, 8.507059e+37
      %v8411 = vand.u32 %v6160, 2147483648
      %v8412 = vor.u32 1.1754944e-38, %v8411
      %v8413 = vsel %vm8410, %v8412, %v8408
      %v8414 = vmul.f32 1.0, %v8413
      %v8415 = vrcp.pop %v6161
      %v8416 = vmul.f32 %v6161, %v8415
      %v8417 = vsub.f32 1.0, %v8416
      %v8418 = vmul.f32 %v8415, %v8417
      %v8419 = vadd.f32 %v8415, %v8418
      %vm8420 = vweird.f32 %v6161
      %vm8421 = vweird.f32 %v8415
      %vm8422 = vmor %vm8420, %vm8421
      %v8423 = vsel %vm8422, %v8415, %v8419
      %v8424 = vand.u32 2147483647, %v6161
      %vm8425 = vcmp.eq.f32.partialorder %v8424, 8.507059e+37
      %v8426 = vand.u32 %v6161, 2147483648
      %v8427 = vor.u32 1.1754944e-38, %v8426
      %v8428 = vsel %vm8425, %v8427, %v8423
      %v8429 = vmul.f32 1.0, %v8428
      %v8430 = vrcp.pop %v6162
      %v8431 = vmul.f32 %v6162, %v8430
      %v8432 = vsub.f32 1.0, %v8431
      %v8433 = vmul.f32 %v8430, %v8432
      %v8434 = vadd.f32 %v8430, %v8433
      %vm8435 = vweird.f32 %v6162
      %vm8436 = vweird.f32 %v8430
      %vm8437 = vmor %vm8435, %vm8436
      %v8438 = vsel %vm8437, %v8430, %v8434
      %v8439 = vand.u32 2147483647, %v6162
      %vm8440 = vcmp.eq.f32.partialorder %v8439, 8.507059e+37
      %v8441 = vand.u32 %v6162, 2147483648
      %v8442 = vor.u32 1.1754944e-38, %v8441
      %v8443 = vsel %vm8440, %v8442, %v8438
      %v8444 = vmul.f32 1.0, %v8443
      %v8445 = vrcp.pop %v6163
      %v8446 = vmul.f32 %v6163, %v8445
      %v8447 = vsub.f32 1.0, %v8446
      %v8448 = vmul.f32 %v8445, %v8447
      %v8449 = vadd.f32 %v8445, %v8448
      %vm8450 = vweird.f32 %v6163
      %vm8451 = vweird.f32 %v8445
      %vm8452 = vmor %vm8450, %vm8451
      %v8453 = vsel %vm8452, %v8445, %v8449
      %v8454 = vand.u32 2147483647, %v6163
      %vm8455 = vcmp.eq.f32.partialorder %v8454, 8.507059e+37
      %v8456 = vand.u32 %v6163, 2147483648
      %v8457 = vor.u32 1.1754944e-38, %v8456
      %v8458 = vsel %vm8455, %v8457, %v8453
      %v8459 = vmul.f32 1.0, %v8458
      %v8460 = vrcp.pop %v6164
      %v8461 = vmul.f32 %v6164, %v8460
      %v8462 = vsub.f32 1.0, %v8461
      %v8463 = vmul.f32 %v8460, %v8462
      %v8464 = vadd.f32 %v8460, %v8463
      %vm8465 = vweird.f32 %v6164
      %vm8466 = vweird.f32 %v8460
      %vm8467 = vmor %vm8465, %vm8466
      %v8468 = vsel %vm8467, %v8460, %v8464
      %v8469 = vand.u32 2147483647, %v6164
      %vm8470 = vcmp.eq.f32.partialorder %v8469, 8.507059e+37
      %v8471 = vand.u32 %v6164, 2147483648
      %v8472 = vor.u32 1.1754944e-38, %v8471
      %v8473 = vsel %vm8470, %v8472, %v8468
      %v8474 = vmul.f32 1.0, %v8473
      %v8475 = vrcp.pop %v6165
      %v8476 = vmul.f32 %v6165, %v8475
      %v8477 = vsub.f32 1.0, %v8476
      %v8478 = vmul.f32 %v8475, %v8477
      %v8479 = vadd.f32 %v8475, %v8478
      %vm8480 = vweird.f32 %v6165
      %vm8481 = vweird.f32 %v8475
      %vm8482 = vmor %vm8480, %vm8481
      %v8483 = vsel %vm8482, %v8475, %v8479
      %v8484 = vand.u32 2147483647, %v6165
      %vm8485 = vcmp.eq.f32.partialorder %v8484, 8.507059e+37
      %v8486 = vand.u32 %v6165, 2147483648
      %v8487 = vor.u32 1.1754944e-38, %v8486
      %v8488 = vsel %vm8485, %v8487, %v8483
      %v8489 = vmul.f32 1.0, %v8488
      %v8490 = vrcp.pop %v6166
      %v8491 = vmul.f32 %v6166, %v8490
      %v8492 = vsub.f32 1.0, %v8491
      %v8493 = vmul.f32 %v8490, %v8492
      %v8494 = vadd.f32 %v8490, %v8493
      %vm8495 = vweird.f32 %v6166
      %vm8496 = vweird.f32 %v8490
      %vm8497 = vmor %vm8495, %vm8496
      %v8498 = vsel %vm8497, %v8490, %v8494
      %v8499 = vand.u32 2147483647, %v6166
      %vm8500 = vcmp.eq.f32.partialorder %v8499, 8.507059e+37
      %v8501 = vand.u32 %v6166, 2147483648
      %v8502 = vor.u32 1.1754944e-38, %v8501
      %v8503 = vsel %vm8500, %v8502, %v8498
      %v8504 = vmul.f32 1.0, %v8503
      %v8505 = vrcp.pop %v6167
      %v8506 = vmul.f32 %v6167, %v8505
      %v8507 = vsub.f32 1.0, %v8506
      %v8508 = vmul.f32 %v8505, %v8507
      %v8509 = vadd.f32 %v8505, %v8508
      %vm8510 = vweird.f32 %v6167
      %vm8511 = vweird.f32 %v8505
      %vm8512 = vmor %vm8510, %vm8511
      %v8513 = vsel %vm8512, %v8505, %v8509
      %v8514 = vand.u32 2147483647, %v6167
      %vm8515 = vcmp.eq.f32.partialorder %v8514, 8.507059e+37
      %v8516 = vand.u32 %v6167, 2147483648
      %v8517 = vor.u32 1.1754944e-38, %v8516
      %v8518 = vsel %vm8515, %v8517, %v8513
      %v8519 = vmul.f32 1.0, %v8518
      %v8520 = vrcp.pop %v6168
      %v8521 = vmul.f32 %v6168, %v8520
      %v8522 = vsub.f32 1.0, %v8521
      %v8523 = vmul.f32 %v8520, %v8522
      %v8524 = vadd.f32 %v8520, %v8523
      %vm8525 = vweird.f32 %v6168
      %vm8526 = vweird.f32 %v8520
      %vm8527 = vmor %vm8525, %vm8526
      %v8528 = vsel %vm8527, %v8520, %v8524
      %v8529 = vand.u32 2147483647, %v6168
      %vm8530 = vcmp.eq.f32.partialorder %v8529, 8.507059e+37
      %v8531 = vand.u32 %v6168, 2147483648
      %v8532 = vor.u32 1.1754944e-38, %v8531
      %v8533 = vsel %vm8530, %v8532, %v8528
      %v8534 = vmul.f32 1.0, %v8533
      %v8535 = vrcp.pop %v6169
      %v8536 = vmul.f32 %v6169, %v8535
      %v8537 = vsub.f32 1.0, %v8536
      %v8538 = vmul.f32 %v8535, %v8537
      %v8539 = vadd.f32 %v8535, %v8538
      %vm8540 = vweird.f32 %v6169
      %vm8541 = vweird.f32 %v8535
      %vm8542 = vmor %vm8540, %vm8541
      %v8543 = vsel %vm8542, %v8535, %v8539
      %v8544 = vand.u32 2147483647, %v6169
      %vm8545 = vcmp.eq.f32.partialorder %v8544, 8.507059e+37
      %v8546 = vand.u32 %v6169, 2147483648
      %v8547 = vor.u32 1.1754944e-38, %v8546
      %v8548 = vsel %vm8545, %v8547, %v8543
      %v8549 = vmul.f32 1.0, %v8548
      %v8550 = vrcp.pop %v6170
      %v8551 = vmul.f32 %v6170, %v8550
      %v8552 = vsub.f32 1.0, %v8551
      %v8553 = vmul.f32 %v8550, %v8552
      %v8554 = vadd.f32 %v8550, %v8553
      %vm8555 = vweird.f32 %v6170
      %vm8556 = vweird.f32 %v8550
      %vm8557 = vmor %vm8555, %vm8556
      %v8558 = vsel %vm8557, %v8550, %v8554
      %v8559 = vand.u32 2147483647, %v6170
      %vm8560 = vcmp.eq.f32.partialorder %v8559, 8.507059e+37
      %v8561 = vand.u32 %v6170, 2147483648
      %v8562 = vor.u32 1.1754944e-38, %v8561
      %v8563 = vsel %vm8560, %v8562, %v8558
      %v8564 = vmul.f32 1.0, %v8563
      %v8565 = vrcp.pop %v6171
      %v8566 = vmul.f32 %v6171, %v8565
      %v8567 = vsub.f32 1.0, %v8566
      %v8568 = vmul.f32 %v8565, %v8567
      %v8569 = vadd.f32 %v8565, %v8568
      %vm8570 = vweird.f32 %v6171
      %vm8571 = vweird.f32 %v8565
      %vm8572 = vmor %vm8570, %vm8571
      %v8573 = vsel %vm8572, %v8565, %v8569
      %v8574 = vand.u32 2147483647, %v6171
      %vm8575 = vcmp.eq.f32.partialorder %v8574, 8.507059e+37
      %v8576 = vand.u32 %v6171, 2147483648
      %v8577 = vor.u32 1.1754944e-38, %v8576
      %v8578 = vsel %vm8575, %v8577, %v8573
      %v8579 = vmul.f32 1.0, %v8578
      %v8580 = vrcp.pop %v6172
      %v8581 = vmul.f32 %v6172, %v8580
      %v8582 = vsub.f32 1.0, %v8581
      %v8583 = vmul.f32 %v8580, %v8582
      %v8584 = vadd.f32 %v8580, %v8583
      %vm8585 = vweird.f32 %v6172
      %vm8586 = vweird.f32 %v8580
      %vm8587 = vmor %vm8585, %vm8586
      %v8588 = vsel %vm8587, %v8580, %v8584
      %v8589 = vand.u32 2147483647, %v6172
      %vm8590 = vcmp.eq.f32.partialorder %v8589, 8.507059e+37
      %v8591 = vand.u32 %v6172, 2147483648
      %v8592 = vor.u32 1.1754944e-38, %v8591
      %v8593 = vsel %vm8590, %v8592, %v8588
      %v8594 = vmul.f32 1.0, %v8593
      %v8595 = vrcp.pop %v6173
      %v8596 = vmul.f32 %v6173, %v8595
      %v8597 = vsub.f32 1.0, %v8596
      %v8598 = vmul.f32 %v8595, %v8597
      %v8599 = vadd.f32 %v8595, %v8598
      %vm8600 = vweird.f32 %v6173
      %vm8601 = vweird.f32 %v8595
      %vm8602 = vmor %vm8600, %vm8601
      %v8603 = vsel %vm8602, %v8595, %v8599
      %v8604 = vand.u32 2147483647, %v6173
      %vm8605 = vcmp.eq.f32.partialorder %v8604, 8.507059e+37
      %v8606 = vand.u32 %v6173, 2147483648
      %v8607 = vor.u32 1.1754944e-38, %v8606
      %v8608 = vsel %vm8605, %v8607, %v8603
      %v8609 = vmul.f32 1.0, %v8608
      %v8610 = vrcp.pop %v6174
      %v8611 = vmul.f32 %v6174, %v8610
      %v8612 = vsub.f32 1.0, %v8611
      %v8613 = vmul.f32 %v8610, %v8612
      %v8614 = vadd.f32 %v8610, %v8613
      %vm8615 = vweird.f32 %v6174
      %vm8616 = vweird.f32 %v8610
      %vm8617 = vmor %vm8615, %vm8616
      %v8618 = vsel %vm8617, %v8610, %v8614
      %v8619 = vand.u32 2147483647, %v6174
      %vm8620 = vcmp.eq.f32.partialorder %v8619, 8.507059e+37
      %v8621 = vand.u32 %v6174, 2147483648
      %v8622 = vor.u32 1.1754944e-38, %v8621
      %v8623 = vsel %vm8620, %v8622, %v8618
      %v8624 = vmul.f32 1.0, %v8623
      %v8625 = vrcp.pop %v6175
      %v8626 = vmul.f32 %v6175, %v8625
      %v8627 = vsub.f32 1.0, %v8626
      %v8628 = vmul.f32 %v8625, %v8627
      %v8629 = vadd.f32 %v8625, %v8628
      %vm8630 = vweird.f32 %v6175
      %vm8631 = vweird.f32 %v8625
      %vm8632 = vmor %vm8630, %vm8631
      %v8633 = vsel %vm8632, %v8625, %v8629
      %v8634 = vand.u32 2147483647, %v6175
      %vm8635 = vcmp.eq.f32.partialorder %v8634, 8.507059e+37
      %v8636 = vand.u32 %v6175, 2147483648
      %v8637 = vor.u32 1.1754944e-38, %v8636
      %v8638 = vsel %vm8635, %v8637, %v8633
      %v8639 = vmul.f32 1.0, %v8638
      %v8640 = vrcp.pop %v6176
      %v8641 = vmul.f32 %v6176, %v8640
      %v8642 = vsub.f32 1.0, %v8641
      %v8643 = vmul.f32 %v8640, %v8642
      %v8644 = vadd.f32 %v8640, %v8643
      %vm8645 = vweird.f32 %v6176
      %vm8646 = vweird.f32 %v8640
      %vm8647 = vmor %vm8645, %vm8646
      %v8648 = vsel %vm8647, %v8640, %v8644
      %v8649 = vand.u32 2147483647, %v6176
      %vm8650 = vcmp.eq.f32.partialorder %v8649, 8.507059e+37
      %v8651 = vand.u32 %v6176, 2147483648
      %v8652 = vor.u32 1.1754944e-38, %v8651
      %v8653 = vsel %vm8650, %v8652, %v8648
      %v8654 = vmul.f32 1.0, %v8653
      %v8655 = vrcp.pop %v6177
      %v8656 = vmul.f32 %v6177, %v8655
      %v8657 = vsub.f32 1.0, %v8656
      %v8658 = vmul.f32 %v8655, %v8657
      %v8659 = vadd.f32 %v8655, %v8658
      %vm8660 = vweird.f32 %v6177
      %vm8661 = vweird.f32 %v8655
      %vm8662 = vmor %vm8660, %vm8661
      %v8663 = vsel %vm8662, %v8655, %v8659
      %v8664 = vand.u32 2147483647, %v6177
      %vm8665 = vcmp.eq.f32.partialorder %v8664, 8.507059e+37
      %v8666 = vand.u32 %v6177, 2147483648
      %v8667 = vor.u32 1.1754944e-38, %v8666
      %v8668 = vsel %vm8665, %v8667, %v8663
      %v8669 = vmul.f32 1.0, %v8668
      %v8670 = vrcp.pop %v6178
      %v8671 = vmul.f32 %v6178, %v8670
      %v8672 = vsub.f32 1.0, %v8671
      %v8673 = vmul.f32 %v8670, %v8672
      %v8674 = vadd.f32 %v8670, %v8673
      %vm8675 = vweird.f32 %v6178
      %vm8676 = vweird.f32 %v8670
      %vm8677 = vmor %vm8675, %vm8676
      %v8678 = vsel %vm8677, %v8670, %v8674
      %v8679 = vand.u32 2147483647, %v6178
      %vm8680 = vcmp.eq.f32.partialorder %v8679, 8.507059e+37
      %v8681 = vand.u32 %v6178, 2147483648
      %v8682 = vor.u32 1.1754944e-38, %v8681
      %v8683 = vsel %vm8680, %v8682, %v8678
      %v8684 = vmul.f32 1.0, %v8683
      %v8685 = vrcp.pop %v6179
      %v8686 = vmul.f32 %v6179, %v8685
      %v8687 = vsub.f32 1.0, %v8686
      %v8688 = vmul.f32 %v8685, %v8687
      %v8689 = vadd.f32 %v8685, %v8688
      %vm8690 = vweird.f32 %v6179
      %vm8691 = vweird.f32 %v8685
      %vm8692 = vmor %vm8690, %vm8691
      %v8693 = vsel %vm8692, %v8685, %v8689
      %v8694 = vand.u32 2147483647, %v6179
      %vm8695 = vcmp.eq.f32.partialorder %v8694, 8.507059e+37
      %v8696 = vand.u32 %v6179, 2147483648
      %v8697 = vor.u32 1.1754944e-38, %v8696
      %v8698 = vsel %vm8695, %v8697, %v8693
      %v8699 = vmul.f32 1.0, %v8698
      %v8700 = vrcp.pop %v6180
      %v8701 = vmul.f32 %v6180, %v8700
      %v8702 = vsub.f32 1.0, %v8701
      %v8703 = vmul.f32 %v8700, %v8702
      %v8704 = vadd.f32 %v8700, %v8703
      %vm8705 = vweird.f32 %v6180
      %vm8706 = vweird.f32 %v8700
      %vm8707 = vmor %vm8705, %vm8706
      %v8708 = vsel %vm8707, %v8700, %v8704
      %v8709 = vand.u32 2147483647, %v6180
      %vm8710 = vcmp.eq.f32.partialorder %v8709, 8.507059e+37
      %v8711 = vand.u32 %v6180, 2147483648
      %v8712 = vor.u32 1.1754944e-38, %v8711
      %v8713 = vsel %vm8710, %v8712, %v8708
      %v8714 = vmul.f32 1.0, %v8713
      %v8715 = vrcp.pop %v6181
      %v8716 = vmul.f32 %v6181, %v8715
      %v8717 = vsub.f32 1.0, %v8716
      %v8718 = vmul.f32 %v8715, %v8717
      %v8719 = vadd.f32 %v8715, %v8718
      %vm8720 = vweird.f32 %v6181
      %vm8721 = vweird.f32 %v8715
      %vm8722 = vmor %vm8720, %vm8721
      %v8723 = vsel %vm8722, %v8715, %v8719
      %v8724 = vand.u32 2147483647, %v6181
      %vm8725 = vcmp.eq.f32.partialorder %v8724, 8.507059e+37
      %v8726 = vand.u32 %v6181, 2147483648
      %v8727 = vor.u32 1.1754944e-38, %v8726
      %v8728 = vsel %vm8725, %v8727, %v8723
      %v8729 = vmul.f32 1.0, %v8728
      %v8730 = vrcp.pop %v6182
      %v8731 = vmul.f32 %v6182, %v8730
      %v8732 = vsub.f32 1.0, %v8731
      %v8733 = vmul.f32 %v8730, %v8732
      %v8734 = vadd.f32 %v8730, %v8733
      %vm8735 = vweird.f32 %v6182
      %vm8736 = vweird.f32 %v8730
      %vm8737 = vmor %vm8735, %vm8736
      %v8738 = vsel %vm8737, %v8730, %v8734
      %v8739 = vand.u32 2147483647, %v6182
      %vm8740 = vcmp.eq.f32.partialorder %v8739, 8.507059e+37
      %v8741 = vand.u32 %v6182, 2147483648
      %v8742 = vor.u32 1.1754944e-38, %v8741
      %v8743 = vsel %vm8740, %v8742, %v8738
      %v8744 = vmul.f32 1.0, %v8743
      %v8745 = vrcp.pop %v6183
      %v8746 = vmul.f32 %v6183, %v8745
      %v8747 = vsub.f32 1.0, %v8746
      %v8748 = vmul.f32 %v8745, %v8747
      %v8749 = vadd.f32 %v8745, %v8748
      %vm8750 = vweird.f32 %v6183
      %vm8751 = vweird.f32 %v8745
      %vm8752 = vmor %vm8750, %vm8751
      %v8753 = vsel %vm8752, %v8745, %v8749
      %v8754 = vand.u32 2147483647, %v6183
      %vm8755 = vcmp.eq.f32.partialorder %v8754, 8.507059e+37
      %v8756 = vand.u32 %v6183, 2147483648
      %v8757 = vor.u32 1.1754944e-38, %v8756
      %v8758 = vsel %vm8755, %v8757, %v8753
      %v8759 = vmul.f32 1.0, %v8758
      %v8760 = vrcp.pop %v6184
      %v8761 = vmul.f32 %v6184, %v8760
      %v8762 = vsub.f32 1.0, %v8761
      %v8763 = vmul.f32 %v8760, %v8762
      %v8764 = vadd.f32 %v8760, %v8763
      %vm8765 = vweird.f32 %v6184
      %vm8766 = vweird.f32 %v8760
      %vm8767 = vmor %vm8765, %vm8766
      %v8768 = vsel %vm8767, %v8760, %v8764
      %v8769 = vand.u32 2147483647, %v6184
      %vm8770 = vcmp.eq.f32.partialorder %v8769, 8.507059e+37
      %v8771 = vand.u32 %v6184, 2147483648
      %v8772 = vor.u32 1.1754944e-38, %v8771
      %v8773 = vsel %vm8770, %v8772, %v8768
      %v8774 = vmul.f32 1.0, %v8773
      %v8775 = vrcp.pop %v6185
      %v8776 = vmul.f32 %v6185, %v8775
      %v8777 = vsub.f32 1.0, %v8776
      %v8778 = vmul.f32 %v8775, %v8777
      %v8779 = vadd.f32 %v8775, %v8778
      %vm8780 = vweird.f32 %v6185
      %vm8781 = vweird.f32 %v8775
      %vm8782 = vmor %vm8780, %vm8781
      %v8783 = vsel %vm8782, %v8775, %v8779
      %v8784 = vand.u32 2147483647, %v6185
      %vm8785 = vcmp.eq.f32.partialorder %v8784, 8.507059e+37
      %v8786 = vand.u32 %v6185, 2147483648
      %v8787 = vor.u32 1.1754944e-38, %v8786
      %v8788 = vsel %vm8785, %v8787, %v8783
      %v8789 = vmul.f32 1.0, %v8788
      %v8790 = vrcp.pop %v6186
      %v8791 = vmul.f32 %v6186, %v8790
      %v8792 = vsub.f32 1.0, %v8791
      %v8793 = vmul.f32 %v8790, %v8792
      %v8794 = vadd.f32 %v8790, %v8793
      %vm8795 = vweird.f32 %v6186
      %vm8796 = vweird.f32 %v8790
      %vm8797 = vmor %vm8795, %vm8796
      %v8798 = vsel %vm8797, %v8790, %v8794
      %v8799 = vand.u32 2147483647, %v6186
      %vm8800 = vcmp.eq.f32.partialorder %v8799, 8.507059e+37
      %v8801 = vand.u32 %v6186, 2147483648
      %v8802 = vor.u32 1.1754944e-38, %v8801
      %v8803 = vsel %vm8800, %v8802, %v8798
      %v8804 = vmul.f32 1.0, %v8803
      %v8805 = vrcp.pop %v6187
      %v8806 = vmul.f32 %v6187, %v8805
      %v8807 = vsub.f32 1.0, %v8806
      %v8808 = vmul.f32 %v8805, %v8807
      %v8809 = vadd.f32 %v8805, %v8808
      %vm8810 = vweird.f32 %v6187
      %vm8811 = vweird.f32 %v8805
      %vm8812 = vmor %vm8810, %vm8811
      %v8813 = vsel %vm8812, %v8805, %v8809
      %v8814 = vand.u32 2147483647, %v6187
      %vm8815 = vcmp.eq.f32.partialorder %v8814, 8.507059e+37
      %v8816 = vand.u32 %v6187, 2147483648
      %v8817 = vor.u32 1.1754944e-38, %v8816
      %v8818 = vsel %vm8815, %v8817, %v8813
      %v8819 = vmul.f32 1.0, %v8818
      %v8820 = vrcp.pop %v6188
      %v8821 = vmul.f32 %v6188, %v8820
      %v8822 = vsub.f32 1.0, %v8821
      %v8823 = vmul.f32 %v8820, %v8822
      %v8824 = vadd.f32 %v8820, %v8823
      %vm8825 = vweird.f32 %v6188
      %vm8826 = vweird.f32 %v8820
      %vm8827 = vmor %vm8825, %vm8826
      %v8828 = vsel %vm8827, %v8820, %v8824
      %v8829 = vand.u32 2147483647, %v6188
      %vm8830 = vcmp.eq.f32.partialorder %v8829, 8.507059e+37
      %v8831 = vand.u32 %v6188, 2147483648
      %v8832 = vor.u32 1.1754944e-38, %v8831
      %v8833 = vsel %vm8830, %v8832, %v8828
      %v8834 = vmul.f32 1.0, %v8833
      %v8835 = vrcp.pop %v6189
      %v8836 = vmul.f32 %v6189, %v8835
      %v8837 = vsub.f32 1.0, %v8836
      %v8838 = vmul.f32 %v8835, %v8837
      %v8839 = vadd.f32 %v8835, %v8838
      %vm8840 = vweird.f32 %v6189
      %vm8841 = vweird.f32 %v8835
      %vm8842 = vmor %vm8840, %vm8841
      %v8843 = vsel %vm8842, %v8835, %v8839
      %v8844 = vand.u32 2147483647, %v6189
      %vm8845 = vcmp.eq.f32.partialorder %v8844, 8.507059e+37
      %v8846 = vand.u32 %v6189, 2147483648
      %v8847 = vor.u32 1.1754944e-38, %v8846
      %v8848 = vsel %vm8845, %v8847, %v8843
      %v8849 = vmul.f32 1.0, %v8848
      %v8850 = vrcp.pop %v6190
      %v8851 = vmul.f32 %v6190, %v8850
      %v8852 = vsub.f32 1.0, %v8851
      %v8853 = vmul.f32 %v8850, %v8852
      %v8854 = vadd.f32 %v8850, %v8853
      %vm8855 = vweird.f32 %v6190
      %vm8856 = vweird.f32 %v8850
      %vm8857 = vmor %vm8855, %vm8856
      %v8858 = vsel %vm8857, %v8850, %v8854
      %v8859 = vand.u32 2147483647, %v6190
      %vm8860 = vcmp.eq.f32.partialorder %v8859, 8.507059e+37
      %v8861 = vand.u32 %v6190, 2147483648
      %v8862 = vor.u32 1.1754944e-38, %v8861
      %v8863 = vsel %vm8860, %v8862, %v8858
      %v8864 = vmul.f32 1.0, %v8863
      %v8865 = vrcp.pop %v6191
      %v8866 = vmul.f32 %v6191, %v8865
      %v8867 = vsub.f32 1.0, %v8866
      %v8868 = vmul.f32 %v8865, %v8867
      %v8869 = vadd.f32 %v8865, %v8868
      %vm8870 = vweird.f32 %v6191
      %vm8871 = vweird.f32 %v8865
      %vm8872 = vmor %vm8870, %vm8871
      %v8873 = vsel %vm8872, %v8865, %v8869
      %v8874 = vand.u32 2147483647, %v6191
      %vm8875 = vcmp.eq.f32.partialorder %v8874, 8.507059e+37
      %v8876 = vand.u32 %v6191, 2147483648
      %v8877 = vor.u32 1.1754944e-38, %v8876
      %v8878 = vsel %vm8875, %v8877, %v8873
      %v8879 = vmul.f32 1.0, %v8878
      %v8880 = vrcp.pop %v6192
      %v8881 = vmul.f32 %v6192, %v8880
      %v8882 = vsub.f32 1.0, %v8881
      %v8883 = vmul.f32 %v8880, %v8882
      %v8884 = vadd.f32 %v8880, %v8883
      %vm8885 = vweird.f32 %v6192
      %vm8886 = vweird.f32 %v8880
      %vm8887 = vmor %vm8885, %vm8886
      %v8888 = vsel %vm8887, %v8880, %v8884
      %v8889 = vand.u32 2147483647, %v6192
      %vm8890 = vcmp.eq.f32.partialorder %v8889, 8.507059e+37
      %v8891 = vand.u32 %v6192, 2147483648
      %v8892 = vor.u32 1.1754944e-38, %v8891
      %v8893 = vsel %vm8890, %v8892, %v8888
      %v8894 = vmul.f32 1.0, %v8893
      %v8895 = vrcp.pop %v6193
      %v8896 = vmul.f32 %v6193, %v8895
      %v8897 = vsub.f32 1.0, %v8896
      %v8898 = vmul.f32 %v8895, %v8897
      %v8899 = vadd.f32 %v8895, %v8898
      %vm8900 = vweird.f32 %v6193
      %vm8901 = vweird.f32 %v8895
      %vm8902 = vmor %vm8900, %vm8901
      %v8903 = vsel %vm8902, %v8895, %v8899
      %v8904 = vand.u32 2147483647, %v6193
      %vm8905 = vcmp.eq.f32.partialorder %v8904, 8.507059e+37
      %v8906 = vand.u32 %v6193, 2147483648
      %v8907 = vor.u32 1.1754944e-38, %v8906
      %v8908 = vsel %vm8905, %v8907, %v8903
      %v8909 = vmul.f32 1.0, %v8908
      %v8910 = vrcp.pop %v6194
      %v8911 = vmul.f32 %v6194, %v8910
      %v8912 = vsub.f32 1.0, %v8911
      %v8913 = vmul.f32 %v8910, %v8912
      %v8914 = vadd.f32 %v8910, %v8913
      %vm8915 = vweird.f32 %v6194
      %vm8916 = vweird.f32 %v8910
      %vm8917 = vmor %vm8915, %vm8916
      %v8918 = vsel %vm8917, %v8910, %v8914
      %v8919 = vand.u32 2147483647, %v6194
      %vm8920 = vcmp.eq.f32.partialorder %v8919, 8.507059e+37
      %v8921 = vand.u32 %v6194, 2147483648
      %v8922 = vor.u32 1.1754944e-38, %v8921
      %v8923 = vsel %vm8920, %v8922, %v8918
      %v8924 = vmul.f32 1.0, %v8923
      %v8925 = vrcp.pop %v6195
      %v8926 = vmul.f32 %v6195, %v8925
      %v8927 = vsub.f32 1.0, %v8926
      %v8928 = vmul.f32 %v8925, %v8927
      %v8929 = vadd.f32 %v8925, %v8928
      %vm8930 = vweird.f32 %v6195
      %vm8931 = vweird.f32 %v8925
      %vm8932 = vmor %vm8930, %vm8931
      %v8933 = vsel %vm8932, %v8925, %v8929
      %v8934 = vand.u32 2147483647, %v6195
      %vm8935 = vcmp.eq.f32.partialorder %v8934, 8.507059e+37
      %v8936 = vand.u32 %v6195, 2147483648
      %v8937 = vor.u32 1.1754944e-38, %v8936
      %v8938 = vsel %vm8935, %v8937, %v8933
      %v8939 = vmul.f32 1.0, %v8938
      %v8940 = vrcp.pop %v6196
      %v8941 = vmul.f32 %v6196, %v8940
      %v8942 = vsub.f32 1.0, %v8941
      %v8943 = vmul.f32 %v8940, %v8942
      %v8944 = vadd.f32 %v8940, %v8943
      %vm8945 = vweird.f32 %v6196
      %vm8946 = vweird.f32 %v8940
      %vm8947 = vmor %vm8945, %vm8946
      %v8948 = vsel %vm8947, %v8940, %v8944
      %v8949 = vand.u32 2147483647, %v6196
      %vm8950 = vcmp.eq.f32.partialorder %v8949, 8.507059e+37
      %v8951 = vand.u32 %v6196, 2147483648
      %v8952 = vor.u32 1.1754944e-38, %v8951
      %v8953 = vsel %vm8950, %v8952, %v8948
      %v8954 = vmul.f32 1.0, %v8953
      %v8955 = vrcp.pop %v6197
      %v8956 = vmul.f32 %v6197, %v8955
      %v8957 = vsub.f32 1.0, %v8956
      %v8958 = vmul.f32 %v8955, %v8957
      %v8959 = vadd.f32 %v8955, %v8958
      %vm8960 = vweird.f32 %v6197
      %vm8961 = vweird.f32 %v8955
      %vm8962 = vmor %vm8960, %vm8961
      %v8963 = vsel %vm8962, %v8955, %v8959
      %v8964 = vand.u32 2147483647, %v6197
      %vm8965 = vcmp.eq.f32.partialorder %v8964, 8.507059e+37
      %v8966 = vand.u32 %v6197, 2147483648
      %v8967 = vor.u32 1.1754944e-38, %v8966
      %v8968 = vsel %vm8965, %v8967, %v8963
      %v8969 = vmul.f32 1.0, %v8968
      %v8970 = vrcp.pop %v6198
      %v8971 = vmul.f32 %v6198, %v8970
      %v8972 = vsub.f32 1.0, %v8971
      %v8973 = vmul.f32 %v8970, %v8972
      %v8974 = vadd.f32 %v8970, %v8973
      %vm8975 = vweird.f32 %v6198
      %vm8976 = vweird.f32 %v8970
      %vm8977 = vmor %vm8975, %vm8976
      %v8978 = vsel %vm8977, %v8970, %v8974
      %v8979 = vand.u32 2147483647, %v6198
      %vm8980 = vcmp.eq.f32.partialorder %v8979, 8.507059e+37
      %v8981 = vand.u32 %v6198, 2147483648
      %v8982 = vor.u32 1.1754944e-38, %v8981
      %v8983 = vsel %vm8980, %v8982, %v8978
      %v8984 = vmul.f32 1.0, %v8983
      %v8985 = vrcp.pop %v6199
      %v8986 = vmul.f32 %v6199, %v8985
      %v8987 = vsub.f32 1.0, %v8986
      %v8988 = vmul.f32 %v8985, %v8987
      %v8989 = vadd.f32 %v8985, %v8988
      %vm8990 = vweird.f32 %v6199
      %vm8991 = vweird.f32 %v8985
      %vm8992 = vmor %vm8990, %vm8991
      %v8993 = vsel %vm8992, %v8985, %v8989
      %v8994 = vand.u32 2147483647, %v6199
      %vm8995 = vcmp.eq.f32.partialorder %v8994, 8.507059e+37
      %v8996 = vand.u32 %v6199, 2147483648
      %v8997 = vor.u32 1.1754944e-38, %v8996
      %v8998 = vsel %vm8995, %v8997, %v8993
      %v8999 = vmul.f32 1.0, %v8998
      %v9000 = vrcp.pop %v6200
      %v9001 = vmul.f32 %v6200, %v9000
      %v9002 = vsub.f32 1.0, %v9001
      %v9003 = vmul.f32 %v9000, %v9002
      %v9004 = vadd.f32 %v9000, %v9003
      %vm9005 = vweird.f32 %v6200
      %vm9006 = vweird.f32 %v9000
      %vm9007 = vmor %vm9005, %vm9006
      %v9008 = vsel %vm9007, %v9000, %v9004
      %v9009 = vand.u32 2147483647, %v6200
      %vm9010 = vcmp.eq.f32.partialorder %v9009, 8.507059e+37
      %v9011 = vand.u32 %v6200, 2147483648
      %v9012 = vor.u32 1.1754944e-38, %v9011
      %v9013 = vsel %vm9010, %v9012, %v9008
      %v9014 = vmul.f32 1.0, %v9013
      %v9015 = vrcp.pop %v6201
      %v9016 = vmul.f32 %v6201, %v9015
      %v9017 = vsub.f32 1.0, %v9016
      %v9018 = vmul.f32 %v9015, %v9017
      %v9019 = vadd.f32 %v9015, %v9018
      %vm9020 = vweird.f32 %v6201
      %vm9021 = vweird.f32 %v9015
      %vm9022 = vmor %vm9020, %vm9021
      %v9023 = vsel %vm9022, %v9015, %v9019
      %v9024 = vand.u32 2147483647, %v6201
      %vm9025 = vcmp.eq.f32.partialorder %v9024, 8.507059e+37
      %v9026 = vand.u32 %v6201, 2147483648
      %v9027 = vor.u32 1.1754944e-38, %v9026
      %v9028 = vsel %vm9025, %v9027, %v9023
      %v9029 = vmul.f32 1.0, %v9028
      %v9030 = vrcp.pop %v6202
      %v9031 = vmul.f32 %v6202, %v9030
      %v9032 = vsub.f32 1.0, %v9031
      %v9033 = vmul.f32 %v9030, %v9032
      %v9034 = vadd.f32 %v9030, %v9033
      %vm9035 = vweird.f32 %v6202
      %vm9036 = vweird.f32 %v9030
      %vm9037 = vmor %vm9035, %vm9036
      %v9038 = vsel %vm9037, %v9030, %v9034
      %v9039 = vand.u32 2147483647, %v6202
      %vm9040 = vcmp.eq.f32.partialorder %v9039, 8.507059e+37
      %v9041 = vand.u32 %v6202, 2147483648
      %v9042 = vor.u32 1.1754944e-38, %v9041
      %v9043 = vsel %vm9040, %v9042, %v9038
      %v9044 = vmul.f32 1.0, %v9043
      %v9045 = vrcp.pop %v6203
      %v9046 = vmul.f32 %v6203, %v9045
      %v9047 = vsub.f32 1.0, %v9046
      %v9048 = vmul.f32 %v9045, %v9047
      %v9049 = vadd.f32 %v9045, %v9048
      %vm9050 = vweird.f32 %v6203
      %vm9051 = vweird.f32 %v9045
      %vm9052 = vmor %vm9050, %vm9051
      %v9053 = vsel %vm9052, %v9045, %v9049
      %v9054 = vand.u32 2147483647, %v6203
      %vm9055 = vcmp.eq.f32.partialorder %v9054, 8.507059e+37
      %v9056 = vand.u32 %v6203, 2147483648
      %v9057 = vor.u32 1.1754944e-38, %v9056
      %v9058 = vsel %vm9055, %v9057, %v9053
      %v9059 = vmul.f32 1.0, %v9058
      %v9060 = vrcp.pop %v6204
      %v9061 = vmul.f32 %v6204, %v9060
      %v9062 = vsub.f32 1.0, %v9061
      %v9063 = vmul.f32 %v9060, %v9062
      %v9064 = vadd.f32 %v9060, %v9063
      %vm9065 = vweird.f32 %v6204
      %vm9066 = vweird.f32 %v9060
      %vm9067 = vmor %vm9065, %vm9066
      %v9068 = vsel %vm9067, %v9060, %v9064
      %v9069 = vand.u32 2147483647, %v6204
      %vm9070 = vcmp.eq.f32.partialorder %v9069, 8.507059e+37
      %v9071 = vand.u32 %v6204, 2147483648
      %v9072 = vor.u32 1.1754944e-38, %v9071
      %v9073 = vsel %vm9070, %v9072, %v9068
      %v9074 = vmul.f32 1.0, %v9073
      %v9075 = vrcp.pop %v6205
      %v9076 = vmul.f32 %v6205, %v9075
      %v9077 = vsub.f32 1.0, %v9076
      %v9078 = vmul.f32 %v9075, %v9077
      %v9079 = vadd.f32 %v9075, %v9078
      %vm9080 = vweird.f32 %v6205
      %vm9081 = vweird.f32 %v9075
      %vm9082 = vmor %vm9080, %vm9081
      %v9083 = vsel %vm9082, %v9075, %v9079
      %v9084 = vand.u32 2147483647, %v6205
      %vm9085 = vcmp.eq.f32.partialorder %v9084, 8.507059e+37
      %v9086 = vand.u32 %v6205, 2147483648
      %v9087 = vor.u32 1.1754944e-38, %v9086
      %v9088 = vsel %vm9085, %v9087, %v9083
      %v9089 = vmul.f32 1.0, %v9088
      %v9090 = vrcp.pop %v6206
      %v9091 = vmul.f32 %v6206, %v9090
      %v9092 = vsub.f32 1.0, %v9091
      %v9093 = vmul.f32 %v9090, %v9092
      %v9094 = vadd.f32 %v9090, %v9093
      %vm9095 = vweird.f32 %v6206
      %vm9096 = vweird.f32 %v9090
      %vm9097 = vmor %vm9095, %vm9096
      %v9098 = vsel %vm9097, %v9090, %v9094
      %v9099 = vand.u32 2147483647, %v6206
      %vm9100 = vcmp.eq.f32.partialorder %v9099, 8.507059e+37
      %v9101 = vand.u32 %v6206, 2147483648
      %v9102 = vor.u32 1.1754944e-38, %v9101
      %v9103 = vsel %vm9100, %v9102, %v9098
      %v9104 = vmul.f32 1.0, %v9103
      %v9105 = vrcp.pop %v6207
      %v9106 = vmul.f32 %v6207, %v9105
      %v9107 = vsub.f32 1.0, %v9106
      %v9108 = vmul.f32 %v9105, %v9107
      %v9109 = vadd.f32 %v9105, %v9108
      %vm9110 = vweird.f32 %v6207
      %vm9111 = vweird.f32 %v9105
      %vm9112 = vmor %vm9110, %vm9111
      %v9113 = vsel %vm9112, %v9105, %v9109
      %v9114 = vand.u32 2147483647, %v6207
      %vm9115 = vcmp.eq.f32.partialorder %v9114, 8.507059e+37
      %v9116 = vand.u32 %v6207, 2147483648
      %v9117 = vor.u32 1.1754944e-38, %v9116
      %v9118 = vsel %vm9115, %v9117, %v9113
      %v9119 = vmul.f32 1.0, %v9118
      %v9120 = vrcp.pop %v6208
      %v9121 = vmul.f32 %v6208, %v9120
      %v9122 = vsub.f32 1.0, %v9121
      %v9123 = vmul.f32 %v9120, %v9122
      %v9124 = vadd.f32 %v9120, %v9123
      %vm9125 = vweird.f32 %v6208
      %vm9126 = vweird.f32 %v9120
      %vm9127 = vmor %vm9125, %vm9126
      %v9128 = vsel %vm9127, %v9120, %v9124
      %v9129 = vand.u32 2147483647, %v6208
      %vm9130 = vcmp.eq.f32.partialorder %v9129, 8.507059e+37
      %v9131 = vand.u32 %v6208, 2147483648
      %v9132 = vor.u32 1.1754944e-38, %v9131
      %v9133 = vsel %vm9130, %v9132, %v9128
      %v9134 = vmul.f32 1.0, %v9133
      %v9135 = vrcp.pop %v6209
      %v9136 = vmul.f32 %v6209, %v9135
      %v9137 = vsub.f32 1.0, %v9136
      %v9138 = vmul.f32 %v9135, %v9137
      %v9139 = vadd.f32 %v9135, %v9138
      %vm9140 = vweird.f32 %v6209
      %vm9141 = vweird.f32 %v9135
      %vm9142 = vmor %vm9140, %vm9141
      %v9143 = vsel %vm9142, %v9135, %v9139
      %v9144 = vand.u32 2147483647, %v6209
      %vm9145 = vcmp.eq.f32.partialorder %v9144, 8.507059e+37
      %v9146 = vand.u32 %v6209, 2147483648
      %v9147 = vor.u32 1.1754944e-38, %v9146
      %v9148 = vsel %vm9145, %v9147, %v9143
      %v9149 = vmul.f32 1.0, %v9148
      %v9150 = vrcp.pop %v6210
      %v9151 = vmul.f32 %v6210, %v9150
      %v9152 = vsub.f32 1.0, %v9151
      %v9153 = vmul.f32 %v9150, %v9152
      %v9154 = vadd.f32 %v9150, %v9153
      %vm9155 = vweird.f32 %v6210
      %vm9156 = vweird.f32 %v9150
      %vm9157 = vmor %vm9155, %vm9156
      %v9158 = vsel %vm9157, %v9150, %v9154
      %v9159 = vand.u32 2147483647, %v6210
      %vm9160 = vcmp.eq.f32.partialorder %v9159, 8.507059e+37
      %v9161 = vand.u32 %v6210, 2147483648
      %v9162 = vor.u32 1.1754944e-38, %v9161
      %v9163 = vsel %vm9160, %v9162, %v9158
      %v9164 = vmul.f32 1.0, %v9163
      %v9165 = vrcp.pop %v6211
      %v9166 = vmul.f32 %v6211, %v9165
      %v9167 = vsub.f32 1.0, %v9166
      %v9168 = vmul.f32 %v9165, %v9167
      %v9169 = vadd.f32 %v9165, %v9168
      %vm9170 = vweird.f32 %v6211
      %vm9171 = vweird.f32 %v9165
      %vm9172 = vmor %vm9170, %vm9171
      %v9173 = vsel %vm9172, %v9165, %v9169
      %v9174 = vand.u32 2147483647, %v6211
      %vm9175 = vcmp.eq.f32.partialorder %v9174, 8.507059e+37
      %v9176 = vand.u32 %v6211, 2147483648
      %v9177 = vor.u32 1.1754944e-38, %v9176
      %v9178 = vsel %vm9175, %v9177, %v9173
      %v9179 = vmul.f32 1.0, %v9178
      %v9180 = vrcp.pop %v6212
      %v9181 = vmul.f32 %v6212, %v9180
      %v9182 = vsub.f32 1.0, %v9181
      %v9183 = vmul.f32 %v9180, %v9182
      %v9184 = vadd.f32 %v9180, %v9183
      %vm9185 = vweird.f32 %v6212
      %vm9186 = vweird.f32 %v9180
      %vm9187 = vmor %vm9185, %vm9186
      %v9188 = vsel %vm9187, %v9180, %v9184
      %v9189 = vand.u32 2147483647, %v6212
      %vm9190 = vcmp.eq.f32.partialorder %v9189, 8.507059e+37
      %v9191 = vand.u32 %v6212, 2147483648
      %v9192 = vor.u32 1.1754944e-38, %v9191
      %v9193 = vsel %vm9190, %v9192, %v9188
      %v9194 = vmul.f32 1.0, %v9193
      %v9195 = vrcp.pop %v6213
      %v9196 = vmul.f32 %v6213, %v9195
      %v9197 = vsub.f32 1.0, %v9196
      %v9198 = vmul.f32 %v9195, %v9197
      %v9199 = vadd.f32 %v9195, %v9198
      %vm9200 = vweird.f32 %v6213
      %vm9201 = vweird.f32 %v9195
      %vm9202 = vmor %vm9200, %vm9201
      %v9203 = vsel %vm9202, %v9195, %v9199
      %v9204 = vand.u32 2147483647, %v6213
      %vm9205 = vcmp.eq.f32.partialorder %v9204, 8.507059e+37
      %v9206 = vand.u32 %v6213, 2147483648
      %v9207 = vor.u32 1.1754944e-38, %v9206
      %v9208 = vsel %vm9205, %v9207, %v9203
      %v9209 = vmul.f32 1.0, %v9208
      %v9210 = vrcp.pop %v6214
      %v9211 = vmul.f32 %v6214, %v9210
      %v9212 = vsub.f32 1.0, %v9211
      %v9213 = vmul.f32 %v9210, %v9212
      %v9214 = vadd.f32 %v9210, %v9213
      %vm9215 = vweird.f32 %v6214
      %vm9216 = vweird.f32 %v9210
      %vm9217 = vmor %vm9215, %vm9216
      %v9218 = vsel %vm9217, %v9210, %v9214
      %v9219 = vand.u32 2147483647, %v6214
      %vm9220 = vcmp.eq.f32.partialorder %v9219, 8.507059e+37
      %v9221 = vand.u32 %v6214, 2147483648
      %v9222 = vor.u32 1.1754944e-38, %v9221
      %v9223 = vsel %vm9220, %v9222, %v9218
      %v9224 = vmul.f32 1.0, %v9223
      %v9225 = vrcp.pop %v6215
      %v9226 = vmul.f32 %v6215, %v9225
      %v9227 = vsub.f32 1.0, %v9226
      %v9228 = vmul.f32 %v9225, %v9227
      %v9229 = vadd.f32 %v9225, %v9228
      %vm9230 = vweird.f32 %v6215
      %vm9231 = vweird.f32 %v9225
      %vm9232 = vmor %vm9230, %vm9231
      %v9233 = vsel %vm9232, %v9225, %v9229
      %v9234 = vand.u32 2147483647, %v6215
      %vm9235 = vcmp.eq.f32.partialorder %v9234, 8.507059e+37
      %v9236 = vand.u32 %v6215, 2147483648
      %v9237 = vor.u32 1.1754944e-38, %v9236
      %v9238 = vsel %vm9235, %v9237, %v9233
      %v9239 = vmul.f32 1.0, %v9238
      %v9240 = vrcp.pop %v6216
      %v9241 = vmul.f32 %v6216, %v9240
      %v9242 = vsub.f32 1.0, %v9241
      %v9243 = vmul.f32 %v9240, %v9242
      %v9244 = vadd.f32 %v9240, %v9243
      %vm9245 = vweird.f32 %v6216
      %vm9246 = vweird.f32 %v9240
      %vm9247 = vmor %vm9245, %vm9246
      %v9248 = vsel %vm9247, %v9240, %v9244
      %v9249 = vand.u32 2147483647, %v6216
      %vm9250 = vcmp.eq.f32.partialorder %v9249, 8.507059e+37
      %v9251 = vand.u32 %v6216, 2147483648
      %v9252 = vor.u32 1.1754944e-38, %v9251
      %v9253 = vsel %vm9250, %v9252, %v9248
      %v9254 = vmul.f32 1.0, %v9253
      %v9255 = vrcp.pop %v6217
      %v9256 = vmul.f32 %v6217, %v9255
      %v9257 = vsub.f32 1.0, %v9256
      %v9258 = vmul.f32 %v9255, %v9257
      %v9259 = vadd.f32 %v9255, %v9258
      %vm9260 = vweird.f32 %v6217
      %vm9261 = vweird.f32 %v9255
      %vm9262 = vmor %vm9260, %vm9261
      %v9263 = vsel %vm9262, %v9255, %v9259
      %v9264 = vand.u32 2147483647, %v6217
      %vm9265 = vcmp.eq.f32.partialorder %v9264, 8.507059e+37
      %v9266 = vand.u32 %v6217, 2147483648
      %v9267 = vor.u32 1.1754944e-38, %v9266
      %v9268 = vsel %vm9265, %v9267, %v9263
      %v9269 = vmul.f32 1.0, %v9268
      %v9270 = vrcp.pop %v6218
      %v9271 = vmul.f32 %v6218, %v9270
      %v9272 = vsub.f32 1.0, %v9271
      %v9273 = vmul.f32 %v9270, %v9272
      %v9274 = vadd.f32 %v9270, %v9273
      %vm9275 = vweird.f32 %v6218
      %vm9276 = vweird.f32 %v9270
      %vm9277 = vmor %vm9275, %vm9276
      %v9278 = vsel %vm9277, %v9270, %v9274
      %v9279 = vand.u32 2147483647, %v6218
      %vm9280 = vcmp.eq.f32.partialorder %v9279, 8.507059e+37
      %v9281 = vand.u32 %v6218, 2147483648
      %v9282 = vor.u32 1.1754944e-38, %v9281
      %v9283 = vsel %vm9280, %v9282, %v9278
      %v9284 = vmul.f32 1.0, %v9283
      %v9285 = vrcp.pop %v6219
      %v9286 = vmul.f32 %v6219, %v9285
      %v9287 = vsub.f32 1.0, %v9286
      %v9288 = vmul.f32 %v9285, %v9287
      %v9289 = vadd.f32 %v9285, %v9288
      %vm9290 = vweird.f32 %v6219
      %vm9291 = vweird.f32 %v9285
      %vm9292 = vmor %vm9290, %vm9291
      %v9293 = vsel %vm9292, %v9285, %v9289
      %v9294 = vand.u32 2147483647, %v6219
      %vm9295 = vcmp.eq.f32.partialorder %v9294, 8.507059e+37
      %v9296 = vand.u32 %v6219, 2147483648
      %v9297 = vor.u32 1.1754944e-38, %v9296
      %v9298 = vsel %vm9295, %v9297, %v9293
      %v9299 = vmul.f32 1.0, %v9298
      %v9300 = vrcp.pop %v6220
      %v9301 = vmul.f32 %v6220, %v9300
      %v9302 = vsub.f32 1.0, %v9301
      %v9303 = vmul.f32 %v9300, %v9302
      %v9304 = vadd.f32 %v9300, %v9303
      %vm9305 = vweird.f32 %v6220
      %vm9306 = vweird.f32 %v9300
      %vm9307 = vmor %vm9305, %vm9306
      %v9308 = vsel %vm9307, %v9300, %v9304
      %v9309 = vand.u32 2147483647, %v6220
      %vm9310 = vcmp.eq.f32.partialorder %v9309, 8.507059e+37
      %v9311 = vand.u32 %v6220, 2147483648
      %v9312 = vor.u32 1.1754944e-38, %v9311
      %v9313 = vsel %vm9310, %v9312, %v9308
      %v9314 = vmul.f32 1.0, %v9313
      %v9315 = vrcp.pop %v6221
      %v9316 = vmul.f32 %v6221, %v9315
      %v9317 = vsub.f32 1.0, %v9316
      %v9318 = vmul.f32 %v9315, %v9317
      %v9319 = vadd.f32 %v9315, %v9318
      %vm9320 = vweird.f32 %v6221
      %vm9321 = vweird.f32 %v9315
      %vm9322 = vmor %vm9320, %vm9321
      %v9323 = vsel %vm9322, %v9315, %v9319
      %v9324 = vand.u32 2147483647, %v6221
      %vm9325 = vcmp.eq.f32.partialorder %v9324, 8.507059e+37
      %v9326 = vand.u32 %v6221, 2147483648
      %v9327 = vor.u32 1.1754944e-38, %v9326
      %v9328 = vsel %vm9325, %v9327, %v9323
      %v9329 = vmul.f32 1.0, %v9328
      %v9330 = vrcp.pop %v6222
      %v9331 = vmul.f32 %v6222, %v9330
      %v9332 = vsub.f32 1.0, %v9331
      %v9333 = vmul.f32 %v9330, %v9332
      %v9334 = vadd.f32 %v9330, %v9333
      %vm9335 = vweird.f32 %v6222
      %vm9336 = vweird.f32 %v9330
      %vm9337 = vmor %vm9335, %vm9336
      %v9338 = vsel %vm9337, %v9330, %v9334
      %v9339 = vand.u32 2147483647, %v6222
      %vm9340 = vcmp.eq.f32.partialorder %v9339, 8.507059e+37
      %v9341 = vand.u32 %v6222, 2147483648
      %v9342 = vor.u32 1.1754944e-38, %v9341
      %v9343 = vsel %vm9340, %v9342, %v9338
      %v9344 = vmul.f32 1.0, %v9343
      %v9345 = vrcp.pop %v6223
      %v9346 = vmul.f32 %v6223, %v9345
      %v9347 = vsub.f32 1.0, %v9346
      %v9348 = vmul.f32 %v9345, %v9347
      %v9349 = vadd.f32 %v9345, %v9348
      %vm9350 = vweird.f32 %v6223
      %vm9351 = vweird.f32 %v9345
      %vm9352 = vmor %vm9350, %vm9351
      %v9353 = vsel %vm9352, %v9345, %v9349
      %v9354 = vand.u32 2147483647, %v6223
      %vm9355 = vcmp.eq.f32.partialorder %v9354, 8.507059e+37
      %v9356 = vand.u32 %v6223, 2147483648
      %v9357 = vor.u32 1.1754944e-38, %v9356
      %v9358 = vsel %vm9355, %v9357, %v9353
      %v9359 = vmul.f32 1.0, %v9358
      %v9360 = vrcp.pop %v6224
      %v9361 = vmul.f32 %v6224, %v9360
      %v9362 = vsub.f32 1.0, %v9361
      %v9363 = vmul.f32 %v9360, %v9362
      %v9364 = vadd.f32 %v9360, %v9363
      %vm9365 = vweird.f32 %v6224
      %vm9366 = vweird.f32 %v9360
      %vm9367 = vmor %vm9365, %vm9366
      %v9368 = vsel %vm9367, %v9360, %v9364
      %v9369 = vand.u32 2147483647, %v6224
      %vm9370 = vcmp.eq.f32.partialorder %v9369, 8.507059e+37
      %v9371 = vand.u32 %v6224, 2147483648
      %v9372 = vor.u32 1.1754944e-38, %v9371
      %v9373 = vsel %vm9370, %v9372, %v9368
      %v9374 = vmul.f32 1.0, %v9373
      %v9375 = vrcp.pop %v6225
      %v9376 = vmul.f32 %v6225, %v9375
      %v9377 = vsub.f32 1.0, %v9376
      %v9378 = vmul.f32 %v9375, %v9377
      %v9379 = vadd.f32 %v9375, %v9378
      %vm9380 = vweird.f32 %v6225
      %vm9381 = vweird.f32 %v9375
      %vm9382 = vmor %vm9380, %vm9381
      %v9383 = vsel %vm9382, %v9375, %v9379
      %v9384 = vand.u32 2147483647, %v6225
      %vm9385 = vcmp.eq.f32.partialorder %v9384, 8.507059e+37
      %v9386 = vand.u32 %v6225, 2147483648
      %v9387 = vor.u32 1.1754944e-38, %v9386
      %v9388 = vsel %vm9385, %v9387, %v9383
      %v9389 = vmul.f32 1.0, %v9388
      %v9390 = vrcp.pop %v6226
      %v9391 = vmul.f32 %v6226, %v9390
      %v9392 = vsub.f32 1.0, %v9391
      %v9393 = vmul.f32 %v9390, %v9392
      %v9394 = vadd.f32 %v9390, %v9393
      %vm9395 = vweird.f32 %v6226
      %vm9396 = vweird.f32 %v9390
      %vm9397 = vmor %vm9395, %vm9396
      %v9398 = vsel %vm9397, %v9390, %v9394
      %v9399 = vand.u32 2147483647, %v6226
      %vm9400 = vcmp.eq.f32.partialorder %v9399, 8.507059e+37
      %v9401 = vand.u32 %v6226, 2147483648
      %v9402 = vor.u32 1.1754944e-38, %v9401
      %v9403 = vsel %vm9400, %v9402, %v9398
      %v9404 = vmul.f32 1.0, %v9403
      %v9405 = vrcp.pop %v6227
      %v9406 = vmul.f32 %v6227, %v9405
      %v9407 = vsub.f32 1.0, %v9406
      %v9408 = vmul.f32 %v9405, %v9407
      %v9409 = vadd.f32 %v9405, %v9408
      %vm9410 = vweird.f32 %v6227
      %vm9411 = vweird.f32 %v9405
      %vm9412 = vmor %vm9410, %vm9411
      %v9413 = vsel %vm9412, %v9405, %v9409
      %v9414 = vand.u32 2147483647, %v6227
      %vm9415 = vcmp.eq.f32.partialorder %v9414, 8.507059e+37
      %v9416 = vand.u32 %v6227, 2147483648
      %v9417 = vor.u32 1.1754944e-38, %v9416
      %v9418 = vsel %vm9415, %v9417, %v9413
      %v9419 = vmul.f32 1.0, %v9418
      %v9420 = vrcp.pop %v6228
      %v9421 = vmul.f32 %v6228, %v9420
      %v9422 = vsub.f32 1.0, %v9421
      %v9423 = vmul.f32 %v9420, %v9422
      %v9424 = vadd.f32 %v9420, %v9423
      %vm9425 = vweird.f32 %v6228
      %vm9426 = vweird.f32 %v9420
      %vm9427 = vmor %vm9425, %vm9426
      %v9428 = vsel %vm9427, %v9420, %v9424
      %v9429 = vand.u32 2147483647, %v6228
      %vm9430 = vcmp.eq.f32.partialorder %v9429, 8.507059e+37
      %v9431 = vand.u32 %v6228, 2147483648
      %v9432 = vor.u32 1.1754944e-38, %v9431
      %v9433 = vsel %vm9430, %v9432, %v9428
      %v9434 = vmul.f32 1.0, %v9433
      %v9435 = vrcp.pop %v6229
      %v9436 = vmul.f32 %v6229, %v9435
      %v9437 = vsub.f32 1.0, %v9436
      %v9438 = vmul.f32 %v9435, %v9437
      %v9439 = vadd.f32 %v9435, %v9438
      %vm9440 = vweird.f32 %v6229
      %vm9441 = vweird.f32 %v9435
      %vm9442 = vmor %vm9440, %vm9441
      %v9443 = vsel %vm9442, %v9435, %v9439
      %v9444 = vand.u32 2147483647, %v6229
      %vm9445 = vcmp.eq.f32.partialorder %v9444, 8.507059e+37
      %v9446 = vand.u32 %v6229, 2147483648
      %v9447 = vor.u32 1.1754944e-38, %v9446
      %v9448 = vsel %vm9445, %v9447, %v9443
      %v9449 = vmul.f32 1.0, %v9448
      %v9450 = vrcp.pop %v6230
      %v9451 = vmul.f32 %v6230, %v9450
      %v9452 = vsub.f32 1.0, %v9451
      %v9453 = vmul.f32 %v9450, %v9452
      %v9454 = vadd.f32 %v9450, %v9453
      %vm9455 = vweird.f32 %v6230
      %vm9456 = vweird.f32 %v9450
      %vm9457 = vmor %vm9455, %vm9456
      %v9458 = vsel %vm9457, %v9450, %v9454
      %v9459 = vand.u32 2147483647, %v6230
      %vm9460 = vcmp.eq.f32.partialorder %v9459, 8.507059e+37
      %v9461 = vand.u32 %v6230, 2147483648
      %v9462 = vor.u32 1.1754944e-38, %v9461
      %v9463 = vsel %vm9460, %v9462, %v9458
      %v9464 = vmul.f32 1.0, %v9463
      %v9465 = vrcp.pop %v6231
      %v9466 = vmul.f32 %v6231, %v9465
      %v9467 = vsub.f32 1.0, %v9466
      %v9468 = vmul.f32 %v9465, %v9467
      %v9469 = vadd.f32 %v9465, %v9468
      %vm9470 = vweird.f32 %v6231
      %vm9471 = vweird.f32 %v9465
      %vm9472 = vmor %vm9470, %vm9471
      %v9473 = vsel %vm9472, %v9465, %v9469
      %v9474 = vand.u32 2147483647, %v6231
      %vm9475 = vcmp.eq.f32.partialorder %v9474, 8.507059e+37
      %v9476 = vand.u32 %v6231, 2147483648
      %v9477 = vor.u32 1.1754944e-38, %v9476
      %v9478 = vsel %vm9475, %v9477, %v9473
      %v9479 = vmul.f32 1.0, %v9478
      %v9480 = vrcp.pop %v6232
      %v9481 = vmul.f32 %v6232, %v9480
      %v9482 = vsub.f32 1.0, %v9481
      %v9483 = vmul.f32 %v9480, %v9482
      %v9484 = vadd.f32 %v9480, %v9483
      %vm9485 = vweird.f32 %v6232
      %vm9486 = vweird.f32 %v9480
      %vm9487 = vmor %vm9485, %vm9486
      %v9488 = vsel %vm9487, %v9480, %v9484
      %v9489 = vand.u32 2147483647, %v6232
      %vm9490 = vcmp.eq.f32.partialorder %v9489, 8.507059e+37
      %v9491 = vand.u32 %v6232, 2147483648
      %v9492 = vor.u32 1.1754944e-38, %v9491
      %v9493 = vsel %vm9490, %v9492, %v9488
      %v9494 = vmul.f32 1.0, %v9493
      %v9495 = vrcp.pop %v6233
      %v9496 = vmul.f32 %v6233, %v9495
      %v9497 = vsub.f32 1.0, %v9496
      %v9498 = vmul.f32 %v9495, %v9497
      %v9499 = vadd.f32 %v9495, %v9498
      %vm9500 = vweird.f32 %v6233
      %vm9501 = vweird.f32 %v9495
      %vm9502 = vmor %vm9500, %vm9501
      %v9503 = vsel %vm9502, %v9495, %v9499
      %v9504 = vand.u32 2147483647, %v6233
      %vm9505 = vcmp.eq.f32.partialorder %v9504, 8.507059e+37
      %v9506 = vand.u32 %v6233, 2147483648
      %v9507 = vor.u32 1.1754944e-38, %v9506
      %v9508 = vsel %vm9505, %v9507, %v9503
      %v9509 = vmul.f32 1.0, %v9508
      %v9510 = vrcp.pop %v6234
      %v9511 = vmul.f32 %v6234, %v9510
      %v9512 = vsub.f32 1.0, %v9511
      %v9513 = vmul.f32 %v9510, %v9512
      %v9514 = vadd.f32 %v9510, %v9513
      %vm9515 = vweird.f32 %v6234
      %vm9516 = vweird.f32 %v9510
      %vm9517 = vmor %vm9515, %vm9516
      %v9518 = vsel %vm9517, %v9510, %v9514
      %v9519 = vand.u32 2147483647, %v6234
      %vm9520 = vcmp.eq.f32.partialorder %v9519, 8.507059e+37
      %v9521 = vand.u32 %v6234, 2147483648
      %v9522 = vor.u32 1.1754944e-38, %v9521
      %v9523 = vsel %vm9520, %v9522, %v9518
      %v9524 = vmul.f32 1.0, %v9523
      %v9525 = vrcp.pop %v6235
      %v9526 = vmul.f32 %v6235, %v9525
      %v9527 = vsub.f32 1.0, %v9526
      %v9528 = vmul.f32 %v9525, %v9527
      %v9529 = vadd.f32 %v9525, %v9528
      %vm9530 = vweird.f32 %v6235
      %vm9531 = vweird.f32 %v9525
      %vm9532 = vmor %vm9530, %vm9531
      %v9533 = vsel %vm9532, %v9525, %v9529
      %v9534 = vand.u32 2147483647, %v6235
      %vm9535 = vcmp.eq.f32.partialorder %v9534, 8.507059e+37
      %v9536 = vand.u32 %v6235, 2147483648
      %v9537 = vor.u32 1.1754944e-38, %v9536
      %v9538 = vsel %vm9535, %v9537, %v9533
      %v9539 = vmul.f32 1.0, %v9538
      %v9540 = vrcp.pop %v6236
      %v9541 = vmul.f32 %v6236, %v9540
      %v9542 = vsub.f32 1.0, %v9541
      %v9543 = vmul.f32 %v9540, %v9542
      %v9544 = vadd.f32 %v9540, %v9543
      %vm9545 = vweird.f32 %v6236
      %vm9546 = vweird.f32 %v9540
      %vm9547 = vmor %vm9545, %vm9546
      %v9548 = vsel %vm9547, %v9540, %v9544
      %v9549 = vand.u32 2147483647, %v6236
      %vm9550 = vcmp.eq.f32.partialorder %v9549, 8.507059e+37
      %v9551 = vand.u32 %v6236, 2147483648
      %v9552 = vor.u32 1.1754944e-38, %v9551
      %v9553 = vsel %vm9550, %v9552, %v9548
      %v9554 = vmul.f32 1.0, %v9553
      %v9555 = vrcp.pop %v6237
      %v9556 = vmul.f32 %v6237, %v9555
      %v9557 = vsub.f32 1.0, %v9556
      %v9558 = vmul.f32 %v9555, %v9557
      %v9559 = vadd.f32 %v9555, %v9558
      %vm9560 = vweird.f32 %v6237
      %vm9561 = vweird.f32 %v9555
      %vm9562 = vmor %vm9560, %vm9561
      %v9563 = vsel %vm9562, %v9555, %v9559
      %v9564 = vand.u32 2147483647, %v6237
      %vm9565 = vcmp.eq.f32.partialorder %v9564, 8.507059e+37
      %v9566 = vand.u32 %v6237, 2147483648
      %v9567 = vor.u32 1.1754944e-38, %v9566
      %v9568 = vsel %vm9565, %v9567, %v9563
      %v9569 = vmul.f32 1.0, %v9568
      %v9570 = vrcp.pop %v6238
      %v9571 = vmul.f32 %v6238, %v9570
      %v9572 = vsub.f32 1.0, %v9571
      %v9573 = vmul.f32 %v9570, %v9572
      %v9574 = vadd.f32 %v9570, %v9573
      %vm9575 = vweird.f32 %v6238
      %vm9576 = vweird.f32 %v9570
      %vm9577 = vmor %vm9575, %vm9576
      %v9578 = vsel %vm9577, %v9570, %v9574
      %v9579 = vand.u32 2147483647, %v6238
      %vm9580 = vcmp.eq.f32.partialorder %v9579, 8.507059e+37
      %v9581 = vand.u32 %v6238, 2147483648
      %v9582 = vor.u32 1.1754944e-38, %v9581
      %v9583 = vsel %vm9580, %v9582, %v9578
      %v9584 = vmul.f32 1.0, %v9583
      %v9585 = vrcp.pop %v6239
      %v9586 = vmul.f32 %v6239, %v9585
      %v9587 = vsub.f32 1.0, %v9586
      %v9588 = vmul.f32 %v9585, %v9587
      %v9589 = vadd.f32 %v9585, %v9588
      %vm9590 = vweird.f32 %v6239
      %vm9591 = vweird.f32 %v9585
      %vm9592 = vmor %vm9590, %vm9591
      %v9593 = vsel %vm9592, %v9585, %v9589
      %v9594 = vand.u32 2147483647, %v6239
      %vm9595 = vcmp.eq.f32.partialorder %v9594, 8.507059e+37
      %v9596 = vand.u32 %v6239, 2147483648
      %v9597 = vor.u32 1.1754944e-38, %v9596
      %v9598 = vsel %vm9595, %v9597, %v9593
      %v9599 = vmul.f32 1.0, %v9598
      %9600 = vst [vmem:[%s423] sm:$0xff] %v6254
      %9601 = vst [vmem:[%s423 + $0x8] sm:$0xff] %v6269
      %9602 = vst [vmem:[%s423 + $0x10] sm:$0xff] %v6284
      %9603 = vst [vmem:[%s423 + $0x18] sm:$0xff] %v6299
      %9604 = vst [vmem:[%s423 + $0x20] sm:$0xff] %v6314
      %9605 = vst [vmem:[%s423 + $0x28] sm:$0xff] %v6329
      %9606 = vst [vmem:[%s423 + $0x30] sm:$0xff] %v6344
      %9607 = vst [vmem:[%s423 + $0x38] sm:$0xff] %v6359
      %9608 = vst [vmem:[%s423 + $0x40] sm:$0xff] %v6374
      %9609 = vst [vmem:[%s423 + $0x48] sm:$0xff] %v6389
      %9610 = vst [vmem:[%s423 + $0x50] sm:$0xff] %v6404
      %9611 = vst [vmem:[%s423 + $0x58] sm:$0xff] %v6419
      %9612 = vst [vmem:[%s423 + $0x60] sm:$0xff] %v6434
      %9613 = vst [vmem:[%s423 + $0x68] sm:$0xff] %v6449
      %9614 = vst [vmem:[%s423 + $0x70] sm:$0xff] %v6464
      %9615 = vst [vmem:[%s423 + $0x78] sm:$0xff] %v6479
      %9616 = vst [vmem:[%s423 + $0x80] sm:$0xff] %v6494
      %9617 = vst [vmem:[%s423 + $0x88] sm:$0xff] %v6509
      %9618 = vst [vmem:[%s423 + $0x90] sm:$0xff] %v6524
      %9619 = vst [vmem:[%s423 + $0x98] sm:$0xff] %v6539
      %9620 = vst [vmem:[%s423 + $0xa0] sm:$0xff] %v6554
      %9621 = vst [vmem:[%s423 + $0xa8] sm:$0xff] %v6569
      %9622 = vst [vmem:[%s423 + $0xb0] sm:$0xff] %v6584
      %9623 = vst [vmem:[%s423 + $0xb8] sm:$0xff] %v6599
      %9624 = vst [vmem:[%s423 + $0xc0] sm:$0xff] %v6614
      %9625 = vst [vmem:[%s423 + $0xc8] sm:$0xff] %v6629
      %9626 = vst [vmem:[%s423 + $0xd0] sm:$0xff] %v6644
      %9627 = vst [vmem:[%s423 + $0xd8] sm:$0xff] %v6659
      %9628 = vst [vmem:[%s423 + $0xe0] sm:$0xff] %v6674
      %9629 = vst [vmem:[%s423 + $0xe8] sm:$0xff] %v6689
      %9630 = vst [vmem:[%s423 + $0xf0] sm:$0xff] %v6704
      %9631 = vst [vmem:[%s423 + $0xf8] sm:$0xff] %v6719
      %9632 = vst [vmem:[%s423 + $0x100] sm:$0xff] %v6734
      %9633 = vst [vmem:[%s423 + $0x108] sm:$0xff] %v6749
      %9634 = vst [vmem:[%s423 + $0x110] sm:$0xff] %v6764
      %9635 = vst [vmem:[%s423 + $0x118] sm:$0xff] %v6779
      %9636 = vst [vmem:[%s423 + $0x120] sm:$0xff] %v6794
      %9637 = vst [vmem:[%s423 + $0x128] sm:$0xff] %v6809
      %9638 = vst [vmem:[%s423 + $0x130] sm:$0xff] %v6824
      %9639 = vst [vmem:[%s423 + $0x138] sm:$0xff] %v6839
      %9640 = vst [vmem:[%s423 + $0x140] sm:$0xff] %v6854
      %9641 = vst [vmem:[%s423 + $0x148] sm:$0xff] %v6869
      %9642 = vst [vmem:[%s423 + $0x150] sm:$0xff] %v6884
      %9643 = vst [vmem:[%s423 + $0x158] sm:$0xff] %v6899
      %9644 = vst [vmem:[%s423 + $0x160] sm:$0xff] %v6914
      %9645 = vst [vmem:[%s423 + $0x168] sm:$0xff] %v6929
      %9646 = vst [vmem:[%s423 + $0x170] sm:$0xff] %v6944
      %9647 = vst [vmem:[%s423 + $0x178] sm:$0xff] %v6959
      %9648 = vst [vmem:[%s423 + $0x180] sm:$0xff] %v6974
      %9649 = vst [vmem:[%s423 + $0x188] sm:$0xff] %v6989
      %9650 = vst [vmem:[%s423 + $0x190] sm:$0xff] %v7004
      %9651 = vst [vmem:[%s423 + $0x198] sm:$0xff] %v7019
      %9652 = vst [vmem:[%s423 + $0x1a0] sm:$0xff] %v7034
      %9653 = vst [vmem:[%s423 + $0x1a8] sm:$0xff] %v7049
      %9654 = vst [vmem:[%s423 + $0x1b0] sm:$0xff] %v7064
      %9655 = vst [vmem:[%s423 + $0x1b8] sm:$0xff] %v7079
      %9656 = vst [vmem:[%s423 + $0x1c0] sm:$0xff] %v7094
      %9657 = vst [vmem:[%s423 + $0x1c8] sm:$0xff] %v7109
      %9658 = vst [vmem:[%s423 + $0x1d0] sm:$0xff] %v7124
      %9659 = vst [vmem:[%s423 + $0x1d8] sm:$0xff] %v7139
      %9660 = vst [vmem:[%s423 + $0x1e0] sm:$0xff] %v7154
      %9661 = vst [vmem:[%s423 + $0x1e8] sm:$0xff] %v7169
      %9662 = vst [vmem:[%s423 + $0x1f0] sm:$0xff] %v7184
      %9663 = vst [vmem:[%s423 + $0x1f8] sm:$0xff] %v7199
      %9664 = vst [vmem:[%s423 + $0x200] sm:$0xff] %v7214
      %9665 = vst [vmem:[%s423 + $0x208] sm:$0xff] %v7229
      %9666 = vst [vmem:[%s423 + $0x210] sm:$0xff] %v7244
      %9667 = vst [vmem:[%s423 + $0x218] sm:$0xff] %v7259
      %9668 = vst [vmem:[%s423 + $0x220] sm:$0xff] %v7274
      %9669 = vst [vmem:[%s423 + $0x228] sm:$0xff] %v7289
      %9670 = vst [vmem:[%s423 + $0x230] sm:$0xff] %v7304
      %9671 = vst [vmem:[%s423 + $0x238] sm:$0xff] %v7319
      %9672 = vst [vmem:[%s423 + $0x240] sm:$0xff] %v7334
      %9673 = vst [vmem:[%s423 + $0x248] sm:$0xff] %v7349
      %9674 = vst [vmem:[%s423 + $0x250] sm:$0xff] %v7364
      %9675 = vst [vmem:[%s423 + $0x258] sm:$0xff] %v7379
      %9676 = vst [vmem:[%s423 + $0x260] sm:$0xff] %v7394
      %9677 = vst [vmem:[%s423 + $0x268] sm:$0xff] %v7409
      %9678 = vst [vmem:[%s423 + $0x270] sm:$0xff] %v7424
      %9679 = vst [vmem:[%s423 + $0x278] sm:$0xff] %v7439
      %9680 = vst [vmem:[%s423 + $0x280] sm:$0xff] %v7454
      %9681 = vst [vmem:[%s423 + $0x288] sm:$0xff] %v7469
      %9682 = vst [vmem:[%s423 + $0x290] sm:$0xff] %v7484
      %9683 = vst [vmem:[%s423 + $0x298] sm:$0xff] %v7499
      %9684 = vst [vmem:[%s423 + $0x2a0] sm:$0xff] %v7514
      %9685 = vst [vmem:[%s423 + $0x2a8] sm:$0xff] %v7529
      %9686 = vst [vmem:[%s423 + $0x2b0] sm:$0xff] %v7544
      %9687 = vst [vmem:[%s423 + $0x2b8] sm:$0xff] %v7559
      %9688 = vst [vmem:[%s423 + $0x2c0] sm:$0xff] %v7574
      %9689 = vst [vmem:[%s423 + $0x2c8] sm:$0xff] %v7589
      %9690 = vst [vmem:[%s423 + $0x2d0] sm:$0xff] %v7604
      %9691 = vst [vmem:[%s423 + $0x2d8] sm:$0xff] %v7619
      %9692 = vst [vmem:[%s423 + $0x2e0] sm:$0xff] %v7634
      %9693 = vst [vmem:[%s423 + $0x2e8] sm:$0xff] %v7649
      %9694 = vst [vmem:[%s423 + $0x2f0] sm:$0xff] %v7664
      %9695 = vst [vmem:[%s423 + $0x2f8] sm:$0xff] %v7679
      %9696 = vst [vmem:[%s423 + $0x300] sm:$0xff] %v7694
      %9697 = vst [vmem:[%s423 + $0x308] sm:$0xff] %v7709
      %9698 = vst [vmem:[%s423 + $0x310] sm:$0xff] %v7724
      %9699 = vst [vmem:[%s423 + $0x318] sm:$0xff] %v7739
      %9700 = vst [vmem:[%s423 + $0x320] sm:$0xff] %v7754
      %9701 = vst [vmem:[%s423 + $0x328] sm:$0xff] %v7769
      %9702 = vst [vmem:[%s423 + $0x330] sm:$0xff] %v7784
      %9703 = vst [vmem:[%s423 + $0x338] sm:$0xff] %v7799
      %9704 = vst [vmem:[%s423 + $0x340] sm:$0xff] %v7814
      %9705 = vst [vmem:[%s423 + $0x348] sm:$0xff] %v7829
      %9706 = vst [vmem:[%s423 + $0x350] sm:$0xff] %v7844
      %9707 = vst [vmem:[%s423 + $0x358] sm:$0xff] %v7859
      %9708 = vst [vmem:[%s423 + $0x360] sm:$0xff] %v7874
      %9709 = vst [vmem:[%s423 + $0x368] sm:$0xff] %v7889
      %9710 = vst [vmem:[%s423 + $0x370] sm:$0xff] %v7904
      %9711 = vst [vmem:[%s423 + $0x378] sm:$0xff] %v7919
      %9712 = vst [vmem:[%s423 + $0x380] sm:$0xff] %v7934
      %9713 = vst [vmem:[%s423 + $0x388] sm:$0xff] %v7949
      %9714 = vst [vmem:[%s423 + $0x390] sm:$0xff] %v7964
      %9715 = vst [vmem:[%s423 + $0x398] sm:$0xff] %v7979
      %9716 = vst [vmem:[%s423 + $0x3a0] sm:$0xff] %v7994
      %9717 = vst [vmem:[%s423 + $0x3a8] sm:$0xff] %v8009
      %9718 = vst [vmem:[%s423 + $0x3b0] sm:$0xff] %v8024
      %9719 = vst [vmem:[%s423 + $0x3b8] sm:$0xff] %v8039
      %9720 = vst [vmem:[%s423 + $0x3c0] sm:$0xff] %v8054
      %9721 = vst [vmem:[%s423 + $0x3c8] sm:$0xff] %v8069
      %9722 = vst [vmem:[%s423 + $0x3d0] sm:$0xff] %v8084
      %9723 = vst [vmem:[%s423 + $0x3d8] sm:$0xff] %v8099
      %9724 = vst [vmem:[%s423 + $0x3e0] sm:$0xff] %v8114
      %9725 = vst [vmem:[%s423 + $0x3e8] sm:$0xff] %v8129
      %9726 = vst [vmem:[%s423 + $0x3f0] sm:$0xff] %v8144
      %9727 = vst [vmem:[%s423 + $0x3f8] sm:$0xff] %v8159
      %9728 = vst [vmem:[%s423 + $0x400] sm:$0xff] %v8174
      %9729 = vst [vmem:[%s423 + $0x408] sm:$0xff] %v8189
      %9730 = vst [vmem:[%s423 + $0x410] sm:$0xff] %v8204
      %9731 = vst [vmem:[%s423 + $0x418] sm:$0xff] %v8219
      %9732 = vst [vmem:[%s423 + $0x420] sm:$0xff] %v8234
      %9733 = vst [vmem:[%s423 + $0x428] sm:$0xff] %v8249
      %9734 = vst [vmem:[%s423 + $0x430] sm:$0xff] %v8264
      %9735 = vst [vmem:[%s423 + $0x438] sm:$0xff] %v8279
      %9736 = vst [vmem:[%s423 + $0x440] sm:$0xff] %v8294
      %9737 = vst [vmem:[%s423 + $0x448] sm:$0xff] %v8309
      %9738 = vst [vmem:[%s423 + $0x450] sm:$0xff] %v8324
      %9739 = vst [vmem:[%s423 + $0x458] sm:$0xff] %v8339
      %9740 = vst [vmem:[%s423 + $0x460] sm:$0xff] %v8354
      %9741 = vst [vmem:[%s423 + $0x468] sm:$0xff] %v8369
      %9742 = vst [vmem:[%s423 + $0x470] sm:$0xff] %v8384
      %9743 = vst [vmem:[%s423 + $0x478] sm:$0xff] %v8399
      %9744 = vst [vmem:[%s423 + $0x480] sm:$0xff] %v8414
      %9745 = vst [vmem:[%s423 + $0x488] sm:$0xff] %v8429
      %9746 = vst [vmem:[%s423 + $0x490] sm:$0xff] %v8444
      %9747 = vst [vmem:[%s423 + $0x498] sm:$0xff] %v8459
      %9748 = vst [vmem:[%s423 + $0x4a0] sm:$0xff] %v8474
      %9749 = vst [vmem:[%s423 + $0x4a8] sm:$0xff] %v8489
      %9750 = vst [vmem:[%s423 + $0x4b0] sm:$0xff] %v8504
      %9751 = vst [vmem:[%s423 + $0x4b8] sm:$0xff] %v8519
      %9752 = vst [vmem:[%s423 + $0x4c0] sm:$0xff] %v8534
      %9753 = vst [vmem:[%s423 + $0x4c8] sm:$0xff] %v8549
      %9754 = vst [vmem:[%s423 + $0x4d0] sm:$0xff] %v8564
      %9755 = vst [vmem:[%s423 + $0x4d8] sm:$0xff] %v8579
      %9756 = vst [vmem:[%s423 + $0x4e0] sm:$0xff] %v8594
      %9757 = vst [vmem:[%s423 + $0x4e8] sm:$0xff] %v8609
      %9758 = vst [vmem:[%s423 + $0x4f0] sm:$0xff] %v8624
      %9759 = vst [vmem:[%s423 + $0x4f8] sm:$0xff] %v8639
      %9760 = vst [vmem:[%s423 + $0x500] sm:$0xff] %v8654
      %9761 = vst [vmem:[%s423 + $0x508] sm:$0xff] %v8669
      %9762 = vst [vmem:[%s423 + $0x510] sm:$0xff] %v8684
      %9763 = vst [vmem:[%s423 + $0x518] sm:$0xff] %v8699
      %9764 = vst [vmem:[%s423 + $0x520] sm:$0xff] %v8714
      %9765 = vst [vmem:[%s423 + $0x528] sm:$0xff] %v8729
      %9766 = vst [vmem:[%s423 + $0x530] sm:$0xff] %v8744
      %9767 = vst [vmem:[%s423 + $0x538] sm:$0xff] %v8759
      %9768 = vst [vmem:[%s423 + $0x540] sm:$0xff] %v8774
      %9769 = vst [vmem:[%s423 + $0x548] sm:$0xff] %v8789
      %9770 = vst [vmem:[%s423 + $0x550] sm:$0xff] %v8804
      %9771 = vst [vmem:[%s423 + $0x558] sm:$0xff] %v8819
      %9772 = vst [vmem:[%s423 + $0x560] sm:$0xff] %v8834
      %9773 = vst [vmem:[%s423 + $0x568] sm:$0xff] %v8849
      %9774 = vst [vmem:[%s423 + $0x570] sm:$0xff] %v8864
      %9775 = vst [vmem:[%s423 + $0x578] sm:$0xff] %v8879
      %9776 = vst [vmem:[%s423 + $0x580] sm:$0xff] %v8894
      %9777 = vst [vmem:[%s423 + $0x588] sm:$0xff] %v8909
      %9778 = vst [vmem:[%s423 + $0x590] sm:$0xff] %v8924
      %9779 = vst [vmem:[%s423 + $0x598] sm:$0xff] %v8939
      %9780 = vst [vmem:[%s423 + $0x5a0] sm:$0xff] %v8954
      %9781 = vst [vmem:[%s423 + $0x5a8] sm:$0xff] %v8969
      %9782 = vst [vmem:[%s423 + $0x5b0] sm:$0xff] %v8984
      %9783 = vst [vmem:[%s423 + $0x5b8] sm:$0xff] %v8999
      %9784 = vst [vmem:[%s423 + $0x5c0] sm:$0xff] %v9014
      %9785 = vst [vmem:[%s423 + $0x5c8] sm:$0xff] %v9029
      %9786 = vst [vmem:[%s423 + $0x5d0] sm:$0xff] %v9044
      %9787 = vst [vmem:[%s423 + $0x5d8] sm:$0xff] %v9059
      %9788 = vst [vmem:[%s423 + $0x5e0] sm:$0xff] %v9074
      %9789 = vst [vmem:[%s423 + $0x5e8] sm:$0xff] %v9089
      %9790 = vst [vmem:[%s423 + $0x5f0] sm:$0xff] %v9104
      %9791 = vst [vmem:[%s423 + $0x5f8] sm:$0xff] %v9119
      %9792 = vst [vmem:[%s423 + $0x600] sm:$0xff] %v9134
      %9793 = vst [vmem:[%s423 + $0x608] sm:$0xff] %v9149
      %9794 = vst [vmem:[%s423 + $0x610] sm:$0xff] %v9164
      %9795 = vst [vmem:[%s423 + $0x618] sm:$0xff] %v9179
      %9796 = vst [vmem:[%s423 + $0x620] sm:$0xff] %v9194
      %9797 = vst [vmem:[%s423 + $0x628] sm:$0xff] %v9209
      %9798 = vst [vmem:[%s423 + $0x630] sm:$0xff] %v9224
      %9799 = vst [vmem:[%s423 + $0x638] sm:$0xff] %v9239
      %9800 = vst [vmem:[%s423 + $0x640] sm:$0xff] %v9254
      %9801 = vst [vmem:[%s423 + $0x648] sm:$0xff] %v9269
      %9802 = vst [vmem:[%s423 + $0x650] sm:$0xff] %v9284
      %9803 = vst [vmem:[%s423 + $0x658] sm:$0xff] %v9299
      %9804 = vst [vmem:[%s423 + $0x660] sm:$0xff] %v9314
      %9805 = vst [vmem:[%s423 + $0x668] sm:$0xff] %v9329
      %9806 = vst [vmem:[%s423 + $0x670] sm:$0xff] %v9344
      %9807 = vst [vmem:[%s423 + $0x678] sm:$0xff] %v9359
      %9808 = vst [vmem:[%s423 + $0x680] sm:$0xff] %v9374
      %9809 = vst [vmem:[%s423 + $0x688] sm:$0xff] %v9389
      %9810 = vst [vmem:[%s423 + $0x690] sm:$0xff] %v9404
      %9811 = vst [vmem:[%s423 + $0x698] sm:$0xff] %v9419
      %9812 = vst [vmem:[%s423 + $0x6a0] sm:$0xff] %v9434
      %9813 = vst [vmem:[%s423 + $0x6a8] sm:$0xff] %v9449
      %9814 = vst [vmem:[%s423 + $0x6b0] sm:$0xff] %v9464
      %9815 = vst [vmem:[%s423 + $0x6b8] sm:$0xff] %v9479
      %9816 = vst [vmem:[%s423 + $0x6c0] sm:$0xff] %v9494
      %9817 = vst [vmem:[%s423 + $0x6c8] sm:$0xff] %v9509
      %9818 = vst [vmem:[%s423 + $0x6d0] sm:$0xff] %v9524
      %9819 = vst [vmem:[%s423 + $0x6d8] sm:$0xff] %v9539
      %9820 = vst [vmem:[%s423 + $0x6e0] sm:$0xff] %v9554
      %9821 = vst [vmem:[%s423 + $0x6e8] sm:$0xff] %v9569
      %9822 = vst [vmem:[%s423 + $0x6f0] sm:$0xff] %v9584
      %9823 = vst [vmem:[%s423 + $0x6f8] sm:$0xff] %v9599
      %9824 = vst [vmem:[%s429] sm:$0xff] %v2698
      %9825 = vst [vmem:[%s429 + $0x8] sm:$0xff] %v2701
      %9826 = vst [vmem:[%s429 + $0x10] sm:$0xff] %v2704
      %9827 = vst [vmem:[%s429 + $0x18] sm:$0xff] %v2707
      %9828 = vst [vmem:[%s429 + $0x20] sm:$0xff] %v2710
      %9829 = vst [vmem:[%s429 + $0x28] sm:$0xff] %v2713
      %9830 = vst [vmem:[%s429 + $0x30] sm:$0xff] %v2716
      %9831 = vst [vmem:[%s429 + $0x38] sm:$0xff] %v2719
      %9832 = vst [vmem:[%s429 + $0x40] sm:$0xff] %v2722
      %9833 = vst [vmem:[%s429 + $0x48] sm:$0xff] %v2725
      %9834 = vst [vmem:[%s429 + $0x50] sm:$0xff] %v2728
      %9835 = vst [vmem:[%s429 + $0x58] sm:$0xff] %v2731
      %9836 = vst [vmem:[%s429 + $0x60] sm:$0xff] %v2734
      %9837 = vst [vmem:[%s429 + $0x68] sm:$0xff] %v2737
      %9838 = vst [vmem:[%s429 + $0x70] sm:$0xff] %v2740
      %9839 = vst [vmem:[%s429 + $0x78] sm:$0xff] %v2743
      %9840 = vst [vmem:[%s429 + $0x80] sm:$0xff] %v2746
      %9841 = vst [vmem:[%s429 + $0x88] sm:$0xff] %v2749
      %9842 = vst [vmem:[%s429 + $0x90] sm:$0xff] %v2752
      %9843 = vst [vmem:[%s429 + $0x98] sm:$0xff] %v2755
      %9844 = vst [vmem:[%s429 + $0xa0] sm:$0xff] %v2758
      %9845 = vst [vmem:[%s429 + $0xa8] sm:$0xff] %v2761
      %9846 = vst [vmem:[%s429 + $0xb0] sm:$0xff] %v2764
      %9847 = vst [vmem:[%s429 + $0xb8] sm:$0xff] %v2767
      %9848 = vst [vmem:[%s429 + $0xc0] sm:$0xff] %v2770
      %9849 = vst [vmem:[%s429 + $0xc8] sm:$0xff] %v2773
      %9850 = vst [vmem:[%s429 + $0xd0] sm:$0xff] %v2776
      %9851 = vst [vmem:[%s429 + $0xd8] sm:$0xff] %v2779
      %9852 = vst [vmem:[%s429 + $0xe0] sm:$0xff] %v2782
      %9853 = vst [vmem:[%s429 + $0xe8] sm:$0xff] %v2785
      %9854 = vst [vmem:[%s429 + $0xf0] sm:$0xff] %v2788
      %9855 = vst [vmem:[%s429 + $0xf8] sm:$0xff] %v2791
      %s9856 = smul.u32 32, %s23
      %p9857 = scmp.lt.s32.totalorder %s9856, 63
      %s9858 = scalar_select %p9857, %s9856, 63
      %s9859 = smul.addr %s9858, 7
      %s9860 = smul.addr %s9859, 8
      %s9861 = scalar_lea.vmem %s10, %s9860
      %s9862 = smul.u32 32, %s23
      %p9863 = scmp.lt.s32.totalorder %s9862, 63
      %s9864 = scalar_select %p9863, %s9862, 63
      %s9865 = smul.addr %s9864, 8
      %s9866 = scalar_lea.vmem %s11, %s9865
      // Predicated region
      $region61: #{vae_forward.1} parent=59 // pred_check
        %p9867 = pneg %p261
      $region62: #{vae_forward.1} parent=59 // pred_check_branch
        %9869 = sbr.rel (%p9867) target = $region64
      $region63: #{vae_forward.1} parent=59 // pred_region
        %s9870 = smul.u32 32, %s23
      $region64: #{vae_forward.1} parent=59 // pred_fallthru
        _
      // Predicated region
      $region65: #{vae_forward.1} parent=59 // pred_check
        %p9871 = pneg %p287
      $region66: #{vae_forward.1} parent=59 // pred_check_branch
        %9873 = sbr.rel (%p9871) target = $region68
      $region67: #{vae_forward.1} parent=59 // pred_region
        %s9874 = smul.u32 32, %s23
      $region68: #{vae_forward.1} parent=59 // pred_fallthru
        _
    $region60: #{vae_forward.1} parent=5 // pred_fallthru
      _
    %p9875 = scmp.le.s32.totalorder 2, %s18
    // Predicated region
    $region69: #{vae_forward.1} parent=5 // pred_check
      %p9876 = pneg %p9875
    $region70: #{vae_forward.1} parent=5 // pred_check_branch
      %9878 = sbr.rel (%p9876) target = $region72
    $region71: #{vae_forward.1} parent=5 // pred_region
      %s9879 = ssub.s32 %s18, 2
      // Predicated region
      $region73: #{vae_forward.1} parent=71 // pred_check
        %p9880 = pneg %p267
      $region74: #{vae_forward.1} parent=71 // pred_check_branch
        %9882 = sbr.rel (%p9880) target = $region76
      $region75: #{vae_forward.1} parent=71 // pred_region
        %s9883 = smul.u32 32, %s24
        %p9884 = scmp.lt.s32.totalorder %s9883, 63
        %s9885 = scalar_select %p9884, %s9883, 63
        %s9886 = smul.addr %s9885, 7
        %s9887 = smul.addr %s9886, 8
        %s9888 = scalar_lea.vmem %s10, %s9887
      $region76: #{vae_forward.1} parent=71 // pred_fallthru
        _
      // Predicated region
      $region77: #{vae_forward.1} parent=71 // pred_check
        %p9889 = pneg %p293
      $region78: #{vae_forward.1} parent=71 // pred_check_branch
        %9891 = sbr.rel (%p9889) target = $region80
      $region79: #{vae_forward.1} parent=71 // pred_region
        %s9892 = smul.u32 32, %s24
        %p9893 = scmp.lt.s32.totalorder %s9892, 63
        %s9894 = scalar_select %p9893, %s9892, 63
        %s9895 = smul.addr %s9894, 8
        %s9896 = scalar_lea.vmem %s11, %s9895
      $region80: #{vae_forward.1} parent=71 // pred_fallthru
        _
    $region72: #{vae_forward.1} parent=5 // pred_fallthru
      _
  $region6: #{vae_forward.1} parent=0 // loop_footer
    %s22 = sadd.s32 1, %s18
  $region7: #{vae_forward.1} parent=0 // loop_footer_branch
    %17 = sbr.rel target = $region3
  $region8: #{vae_forward.1} parent=0 // loop_exit
    _

</llo_original>
